<compile_context>
chip_gen: v7x
topology: tpu7x:2x2x1
jax: 0.10.0
libtpu: 0.0.40
codegen_flags: <defaults>
</compile_context>

<pallas_src>
import functools

import numpy as np
import jax
import jax.numpy as jnp
from jax.experimental import pallas as pl
from jax.experimental.pallas import tpu as pltpu

# ----------------------------- model config (small) -----------------------------
PATCH = 4          # downsapmle_size
IN_CH = 3
EMBED = 32         # embed_dim
DEPTHS = (2, 2)
HEADS = (2, 4)
WS = 4             # window_size
MLP_RATIO = 4.0
NUM_CLASSES = 4
NUM_LAYERS = len(DEPTHS)
NUM_FEATURES = EMBED * 2 ** (NUM_LAYERS - 1)
LN_EPS = 1e-5
MM_DTYPE = jnp.bfloat16      # MXU operand dtype (accumulation stays f32)


# ================================ kernel helpers ================================

def _mm(a, b):
    """bf16 matmul with f32 accumulation on the MXU."""
    return jnp.dot(a.astype(MM_DTYPE), b.astype(MM_DTYPE),
                   preferred_element_type=jnp.float32)


def _ln(x, g, b, eps=LN_EPS):
    mu = jnp.mean(x, axis=-1, keepdims=True)
    xc = x - mu
    var = jnp.mean(xc * xc, axis=-1, keepdims=True)
    return xc * jax.lax.rsqrt(var + eps) * g + b


def _gelu(x):
    # exact (erf-based) GELU, matching torch nn.GELU() default
    return 0.5 * x * (1.0 + jax.lax.erf(x * np.float32(1.0 / np.sqrt(2.0))))


def _row_tile(m):
    # Largest tile that still splits the rows into 2 grid steps (so both v7x
    # TensorCores get work); keep a single tile when it can't be split cleanly.
    if m % 2 == 0 and (m // 2) % 8 == 0:
        return m // 2
    return m


# ================================ Pallas kernels ================================

def _patch_embed_kernel(p_ref, w_ref, b_ref, g_ref, bb_ref, o_ref):
    # fused: patch matmul (== stride-4 conv) + bias + LayerNorm
    y = _mm(p_ref[...], w_ref[...]) + b_ref[...]
    o_ref[...] = _ln(y, g_ref[...], bb_ref[...]).astype(o_ref.dtype)


def patch_embed_call(patches, p):
    M, K = patches.shape
    N = p["w"].shape[1]
    TM = _row_tile(M)
    return pl.pallas_call(
        _patch_embed_kernel,
        out_shape=jax.ShapeDtypeStruct((M, N), jnp.float32),
        grid=(M // TM,),
        in_specs=[
            pl.BlockSpec((TM, K), lambda i: (i, 0)),
            pl.BlockSpec((K, N), lambda i: (0, 0)),
            pl.BlockSpec((1, N), lambda i: (0, 0)),
            pl.BlockSpec((1, N), lambda i: (0, 0)),
            pl.BlockSpec((1, N), lambda i: (0, 0)),
        ],
        out_specs=pl.BlockSpec((TM, N), lambda i: (i, 0)),
        compiler_params=pltpu.CompilerParams(dimension_semantics=("parallel",)),
    )(patches, p["w"], p["b"].reshape(1, N), p["ng"].reshape(1, N),
      p["nb"].reshape(1, N))


def _attn_block_kernel(xw_ref, g1_ref, b1_ref, qkvw_ref, qkvb_ref, rb_ref,
                       mask_ref, pw_ref, pb_ref, o_ref, *, num_heads, scale,
                       fuse_ln):
    # One grid step == all windows of one image.
    WT, N, C = xw_ref.shape
    Dh = C // num_heads

    x = xw_ref[...]                       # (WT, N, C)
    xr = x.reshape(WT * N, C)             # merge leading dims (layout preserving)
    xn = _ln(xr, g1_ref[...], b1_ref[...]) if fuse_ln else xr

    qkv = _mm(xn, qkvw_ref[...]) + qkvb_ref[...]      # (WT*N, 3C), f32
    qkv = qkv.reshape(WT, N, 3 * C)

    rb = rb_ref[...]                      # (nH, N, N)  relative position bias
    mk = mask_ref[...]                    # (WT, N, N)  shift mask (zeros if none)
    pw = pw_ref[...]                      # (C, C)      proj weight

    acc = jnp.zeros((WT * N, C), jnp.float32)
    for h in range(num_heads):            # nH is 2 or 4 — static unroll
        q = qkv[:, :, h * Dh:(h + 1) * Dh] * scale
        k = qkv[:, :, C + h * Dh:C + (h + 1) * Dh]
        v = qkv[:, :, 2 * C + h * Dh:2 * C + (h + 1) * Dh]
        # scores = q @ k^T, batched over windows
        s = jax.lax.dot_general(q.astype(MM_DTYPE), k.astype(MM_DTYPE),
                                (((2,), (2,)), ((0,), (0,))),
                                preferred_element_type=jnp.float32)
        s = s + rb[h] + mk
        m = jnp.max(s, axis=-1, keepdims=True)
        e = jnp.exp(s - m)
        pattn = e * pl.reciprocal(jnp.sum(e, axis=-1, keepdims=True), approx=True)
        oh = jax.lax.dot_general(pattn.astype(MM_DTYPE), v.astype(MM_DTYPE),
                                 (((2,), (1,)), ((0,), (0,))),
                                 preferred_element_type=jnp.float32)   # (WT,N,Dh)
        # distribute the output projection per head: avoids a lane-concat
        acc = acc + _mm(oh.reshape(WT * N, Dh), pw[h * Dh:(h + 1) * Dh, :])

    out = acc + pb_ref[...]
    if fuse_ln:                           # residual fused when LN is fused (no pad)
        out = out + xr
    o_ref[...] = out.reshape(WT, N, C).astype(o_ref.dtype)


def attn_block_call(xw, blk, rb, mask, num_heads, scale, fuse_ln):
    Bn, N, C = xw.shape
    nW = mask.shape[0]
    B = Bn // nW
    kern = functools.partial(_attn_block_kernel, num_heads=num_heads,
                             scale=scale, fuse_ln=fuse_ln)
    return pl.pallas_call(
        kern,
        out_shape=jax.ShapeDtypeStruct((Bn, N, C), jnp.float32),
        grid=(B,),
        in_specs=[
            pl.BlockSpec((nW, N, C), lambda b: (b, 0, 0)),          # windows
            pl.BlockSpec((1, C), lambda b: (0, 0)),                 # norm1 gamma
            pl.BlockSpec((1, C), lambda b: (0, 0)),                 # norm1 beta
            pl.BlockSpec((C, 3 * C), lambda b: (0, 0)),             # qkv weight
            pl.BlockSpec((1, 3 * C), lambda b: (0, 0)),             # qkv bias
            pl.BlockSpec((num_heads, N, N), lambda b: (0, 0, 0)),   # rel bias
            pl.BlockSpec((nW, N, N), lambda b: (0, 0, 0)),          # shift mask
            pl.BlockSpec((C, C), lambda b: (0, 0)),                 # proj weight
            pl.BlockSpec((1, C), lambda b: (0, 0)),                 # proj bias
        ],
        out_specs=pl.BlockSpec((nW, N, C), lambda b: (b, 0, 0)),
        compiler_params=pltpu.CompilerParams(dimension_semantics=("parallel",)),
    )(xw, blk["norm1_g"].reshape(1, C), blk["norm1_b"].reshape(1, C),
      blk["qkv_w"], blk["qkv_b"].reshape(1, 3 * C),
      rb, mask, blk["proj_w"], blk["proj_b"].reshape(1, C))


def _mlp_block_kernel(x_ref, g2_ref, b2_ref, w1_ref, bb1_ref, w2_ref, bb2_ref,
                      o_ref):
    # fused: LN2 -> fc1 + GELU -> fc2 -> +residual
    x = x_ref[...]
    xn = _ln(x, g2_ref[...], b2_ref[...])
    h = _gelu(_mm(xn, w1_ref[...]) + bb1_ref[...])
    y = _mm(h, w2_ref[...]) + bb2_ref[...]
    o_ref[...] = (x + y).astype(o_ref.dtype)


def mlp_block_call(x2, blk):
    M, C = x2.shape
    hidden = blk["fc1_w"].shape[1]
    TM = _row_tile(M)
    return pl.pallas_call(
        _mlp_block_kernel,
        out_shape=jax.ShapeDtypeStruct((M, C), jnp.float32),
        grid=(M // TM,),
        in_specs=[
            pl.BlockSpec((TM, C), lambda i: (i, 0)),
            pl.BlockSpec((1, C), lambda i: (0, 0)),
            pl.BlockSpec((1, C), lambda i: (0, 0)),
            pl.BlockSpec((C, hidden), lambda i: (0, 0)),
            pl.BlockSpec((1, hidden), lambda i: (0, 0)),
            pl.BlockSpec((hidden, C), lambda i: (0, 0)),
            pl.BlockSpec((1, C), lambda i: (0, 0)),
        ],
        out_specs=pl.BlockSpec((TM, C), lambda i: (i, 0)),
        compiler_params=pltpu.CompilerParams(dimension_semantics=("parallel",)),
    )(x2, blk["norm2_g"].reshape(1, C), blk["norm2_b"].reshape(1, C),
      blk["fc1_w"], blk["fc1_b"].reshape(1, hidden),
      blk["fc2_w"], blk["fc2_b"].reshape(1, C))


def _merge_kernel(x_ref, g_ref, b_ref, w_ref, o_ref):
    # fused: LN(4C) -> reduction linear (no bias)
    xn = _ln(x_ref[...], g_ref[...], b_ref[...])
    o_ref[...] = _mm(xn, w_ref[...]).astype(o_ref.dtype)


def merge_call(x2, p):
    M, C4 = x2.shape
    C2 = p["w"].shape[1]
    TM = _row_tile(M)
    return pl.pallas_call(
        _merge_kernel,
        out_shape=jax.ShapeDtypeStruct((M, C2), jnp.float32),
        grid=(M // TM,),
        in_specs=[
            pl.BlockSpec((TM, C4), lambda i: (i, 0)),
            pl.BlockSpec((1, C4), lambda i: (0, 0)),
            pl.BlockSpec((1, C4), lambda i: (0, 0)),
            pl.BlockSpec((C4, C2), lambda i: (0, 0)),
        ],
        out_specs=pl.BlockSpec((TM, C2), lambda i: (i, 0)),
        compiler_params=pltpu.CompilerParams(dimension_semantics=("parallel",)),
    )(x2, p["ng"].reshape(1, C4), p["nb"].reshape(1, C4), p["w"])


def _head_kernel(x_ref, g_ref, b_ref, hw_ref, hb_ref, o_ref):
    # fused: final LN -> token average pool -> classifier head
    xn = _ln(x_ref[...], g_ref[...], b_ref[...])      # (B, L, C)
    pooled = jnp.mean(xn, axis=1)                     # (B, C)
    o_ref[...] = (_mm(pooled, hw_ref[...]) + hb_ref[...]).astype(o_ref.dtype)


def head_call(x, params):
    B, L, C = x.shape
    NC = params["head_w"].shape[1]
    return pl.pallas_call(
        _head_kernel,
        out_shape=jax.ShapeDtypeStruct((B, NC), jnp.float32),
        grid=(1,),
        in_specs=[
            pl.BlockSpec((B, L, C), lambda i: (0, 0, 0)),
            pl.BlockSpec((1, C), lambda i: (0, 0)),
            pl.BlockSpec((1, C), lambda i: (0, 0)),
            pl.BlockSpec((C, NC), lambda i: (0, 0)),
            pl.BlockSpec((1, NC), lambda i: (0, 0)),
        ],
        out_specs=pl.BlockSpec((B, NC), lambda i: (0, 0)),
        compiler_params=pltpu.CompilerParams(dimension_semantics=("arbitrary",)),
    )(x, params["norm_g"].reshape(1, C), params["norm_b"].reshape(1, C),
      params["head_w"], params["head_b"].reshape(1, NC))


def _layernorm_kernel(x_ref, g_ref, b_ref, o_ref):
    o_ref[...] = _ln(x_ref[...], g_ref[...], b_ref[...]).astype(o_ref.dtype)


def layernorm(x, g, b):
    # standalone LN — only used on the (never-taken-here) window-padding path,
    # where the reference pads AFTER norm1 so LN cannot be fused into attention.
    M, C = x.shape
    TM = _row_tile(M)
    return pl.pallas_call(
        _layernorm_kernel,
        out_shape=jax.ShapeDtypeStruct((M, C), jnp.float32),
        grid=(M // TM,),
        in_specs=[
            pl.BlockSpec((TM, C), lambda i: (i, 0)),
            pl.BlockSpec((1, C), lambda i: (0, 0)),
            pl.BlockSpec((1, C), lambda i: (0, 0)),
        ],
        out_specs=pl.BlockSpec((TM, C), lambda i: (i, 0)),
        compiler_params=pltpu.CompilerParams(dimension_semantics=("parallel",)),
    )(x, g.reshape(1, C), b.reshape(1, C))


# ================================ JAX glue (shapes) ================================

def window_partition(x, ws):
    B, H, W, C = x.shape
    x = x.reshape(B, H // ws, ws, W // ws, ws, C)
    return x.transpose(0, 1, 3, 2, 4, 5).reshape(-1, ws, ws, C)


def window_reverse(windows, ws, H, W):
    B = windows.shape[0] // (H * W // ws // ws)
    x = windows.reshape(B, H // ws, W // ws, ws, ws, -1)
    return x.transpose(0, 1, 3, 2, 4, 5).reshape(B, H, W, -1)


def relative_position_index(ws):
    coords = np.stack(np.meshgrid(np.arange(ws), np.arange(ws), indexing="ij"))
    coords_flatten = coords.reshape(2, -1)
    rel = coords_flatten[:, :, None] - coords_flatten[:, None, :]
    rel = rel.transpose(1, 2, 0).copy()
    rel[:, :, 0] += ws - 1
    rel[:, :, 1] += ws - 1
    rel[:, :, 0] *= 2 * ws - 1
    return rel.sum(-1)  # (ws*ws, ws*ws) int


def create_mask(H, W, ws, shift):
    # Reproduces BasicLayer.create_mask exactly (including the reference's
    # w_slices as written).
    Hp = int(np.ceil(H / ws)) * ws
    Wp = int(np.ceil(W / ws)) * ws
    img_mask = np.zeros((1, Hp, Wp, 1), dtype=np.float32)
    h_slices = (slice(0, -ws), slice(-ws, -shift), slice(-shift, None))
    w_slices = (slice(0, -ws), slice(-ws, -ws), slice(-ws, None))
    cnt = 0
    for h in h_slices:
        for w in w_slices:
            img_mask[:, h, w, :] = cnt
            cnt += 1
    mw = img_mask.reshape(1, Hp // ws, ws, Wp // ws, ws, 1)
    mw = mw.transpose(0, 1, 3, 2, 4, 5).reshape(-1, ws * ws)
    attn_mask = mw[:, None, :] - mw[:, :, None]
    attn_mask = np.where(attn_mask != 0, -100.0, 0.0).astype(np.float32)
    return jnp.asarray(attn_mask)  # (nW, N, N)


# ================================ model pieces ================================

def patch_embed_fwd(x, p):
    B, C, H, W = x.shape
    ps = PATCH
    if H % ps != 0 or W % ps != 0:
        x = jnp.pad(x, ((0, 0), (0, 0), (0, ps - H % ps), (0, ps - W % ps)))
    B, C, H, W = x.shape
    Hn, Wn = H // ps, W // ps
    # strided conv with kernel==stride  ==  patch flatten (C, ph, pw order) + matmul
    patches = x.reshape(B, C, Hn, ps, Wn, ps).transpose(0, 2, 4, 1, 3, 5)
    patches = patches.reshape(B * Hn * Wn, C * ps * ps)
    y = patch_embed_call(patches, p)
    return y.reshape(B, Hn * Wn, EMBED), Hn, Wn


def swin_block_fwd(x, H, W, blk, ws, shift, attn_mask, num_heads):
    B, L, C = x.shape
    Dh = C // num_heads
    scale = Dh ** (-0.5)
    N = ws * ws

    pad_r = (ws - W % ws) % ws
    pad_d = (ws - H % ws) % ws
    need_pad = pad_r > 0 or pad_d > 0

    if need_pad:
        # reference pads with zeros AFTER norm1, so LN cannot be fused here.
        xs = layernorm(x.reshape(B * L, C), blk["norm1_g"], blk["norm1_b"])
        xs = xs.reshape(B, H, W, C)
        xs = jnp.pad(xs, ((0, 0), (0, pad_d), (0, pad_r), (0, 0)))
        fuse_ln = False
    else:
        xs = x.reshape(B, H, W, C)        # raw tokens; LN + residual fused in-kernel
        fuse_ln = True
    Hp, Wp = H + pad_d, W + pad_r
    nW = (Hp // ws) * (Wp // ws)

    if shift > 0:
        xs = jnp.roll(xs, shift=(-shift, -shift), axis=(1, 2))
        mask = attn_mask                                   # (nW, N, N)
    else:
        mask = jnp.zeros((nW, N, N), jnp.float32)          # identity add

    xw = window_partition(xs, ws).reshape(B * nW, N, C)

    rel_idx = relative_position_index(ws).reshape(-1)
    rb = blk["rpb_table"][rel_idx].reshape(N, N, num_heads).transpose(2, 0, 1)

    out_w = attn_block_call(xw, blk, rb, mask, num_heads, scale, fuse_ln)

    xs = window_reverse(out_w.reshape(-1, ws, ws, C), ws, Hp, Wp)
    if shift > 0:
        xs = jnp.roll(xs, shift=(shift, shift), axis=(1, 2))
    if need_pad:
        xs = xs[:, :H, :W, :]
    x_mid = xs.reshape(B, H * W, C)
    if not fuse_ln:
        x_mid = x + x_mid                 # residual not fused on the padded path

    # fused MLP block (LN2 + fc1/GELU + fc2 + residual)
    x_out = mlp_block_call(x_mid.reshape(B * L, C), blk).reshape(B, L, C)
    return x_out


def patch_merging_fwd(x, H, W, p):
    B, L, C = x.shape
    x = x.reshape(B, H, W, C)
    if H % 2 == 1 or W % 2 == 1:
        x = jnp.pad(x, ((0, 0), (0, H % 2), (0, W % 2), (0, 0)))
    x0 = x[:, 0::2, 0::2, :]
    x1 = x[:, 1::2, 0::2, :]
    x2 = x[:, 0::2, 1::2, :]
    x3 = x[:, 1::2, 1::2, :]
    x = jnp.concatenate([x0, x1, x2, x3], axis=-1)
    M = x.shape[1] * x.shape[2]
    y = merge_call(x.reshape(B * M, 4 * C), p)
    return y.reshape(B, M, 2 * C)


def basic_layer_fwd(x, H, W, lp, depth, num_heads, ws):
    shift = ws // 2
    attn_mask = create_mask(H, W, ws, shift)
    for j in range(depth):
        blk_shift = 0 if j % 2 == 0 else shift
        x = swin_block_fwd(x, H, W, lp["blocks"][j], ws, blk_shift, attn_mask,
                           num_heads)
    if lp["downsample"] is not None:
        x = patch_merging_fwd(x, H, W, lp["downsample"])
        H, W = (H + 1) // 2, (W + 1) // 2
    return x, H, W


def swin_forward(params, x):
    # layout: x is NCHW float32
    x, H, W = patch_embed_fwd(x, params["patch_embed"])
    for li in range(NUM_LAYERS):
        x, H, W = basic_layer_fwd(x, H, W, params["layers"][li], DEPTHS[li],
                                  HEADS[li], WS)
    return head_call(x, params)   # fused final LN + avgpool + classifier


# ================================ deterministic init ================================

def init_params(key):
    keys = iter(jax.random.split(key, 512))

    def nrm(shape, std=0.02):
        return std * jax.random.normal(next(keys), shape, jnp.float32)

    params = {
        "patch_embed": {
            "w": nrm((IN_CH * PATCH * PATCH, EMBED)),
            "b": jnp.zeros((EMBED,), jnp.float32),
            "ng": jnp.ones((EMBED,), jnp.float32),
            "nb": jnp.zeros((EMBED,), jnp.float32),
        },
        "layers": [],
    }
    for i in range(NUM_LAYERS):
        d = EMBED * 2 ** i
        h = HEADS[i]
        hidden = int(d * MLP_RATIO)
        blocks = []
        for _ in range(DEPTHS[i]):
            blocks.append({
                "norm1_g": jnp.ones((d,), jnp.float32),
                "norm1_b": jnp.zeros((d,), jnp.float32),
                "qkv_w": nrm((d, 3 * d)),
                "qkv_b": jnp.zeros((3 * d,), jnp.float32),
                "proj_w": nrm((d, d)),
                "proj_b": jnp.zeros((d,), jnp.float32),
                "rpb_table": nrm(((2 * WS - 1) ** 2, h)),
                "norm2_g": jnp.ones((d,), jnp.float32),
                "norm2_b": jnp.zeros((d,), jnp.float32),
                "fc1_w": nrm((d, hidden)),
                "fc1_b": jnp.zeros((hidden,), jnp.float32),
                "fc2_w": nrm((hidden, d)),
                "fc2_b": jnp.zeros((d,), jnp.float32),
            })
        downsample = None
        if i < NUM_LAYERS - 1:
            downsample = {
                "ng": jnp.ones((4 * d,), jnp.float32),
                "nb": jnp.zeros((4 * d,), jnp.float32),
                "w": nrm((4 * d, 2 * d)),
            }
        params["layers"].append({"blocks": blocks, "downsample": downsample})

    params["norm_g"] = jnp.ones((NUM_FEATURES,), jnp.float32)
    params["norm_b"] = jnp.zeros((NUM_FEATURES,), jnp.float32)
    params["head_w"] = nrm((NUM_FEATURES, NUM_CLASSES))
    params["head_b"] = jnp.zeros((NUM_CLASSES,), jnp.float32)
    return params


# ================================ main ================================

if __name__ == "__main__":
    key = jax.random.PRNGKey(0)
    pkey, xkey = jax.random.split(key)
    params = init_params(pkey)
    x = jax.random.normal(xkey, (2, IN_CH, 32, 32), jnp.float32)  # NCHW

    fwd = jax.jit(swin_forward)
    out = fwd(params, x)
    jax.block_until_ready(out)
    assert out.shape == (2, NUM_CLASSES)
    assert bool(jnp.all(jnp.isfinite(out)))
    print("KERNEL_OK")
</pallas_src>

<mosaic_0001>
module attributes {stable_mosaic.version = 11 : i64} {
  func.func @_patch_embed_kernel(%arg0: i32, %arg1: memref<64x48xf32, #tpu.memory_space<vmem>>, %arg2: memref<48x32xf32, #tpu.memory_space<vmem>>, %arg3: memref<1x32xf32, #tpu.memory_space<vmem>>, %arg4: memref<1x32xf32, #tpu.memory_space<vmem>>, %arg5: memref<1x32xf32, #tpu.memory_space<vmem>>, %arg6: memref<64x32xf32, #tpu.memory_space<vmem>>) attributes {dimension_semantics = [#tpu.dimension_semantics<parallel>], iteration_bounds = array<i64: 2>, scalar_prefetch = 0 : i64, scratch_operands = 0 : i64, tpu.core_type = #tpu.core_type<tc>, window_params = [{transform_indices = @transform_0, window_bounds = array<i64: 64, 48>}, {pipeline_mode = #tpu.pipeline_mode<synchronous>, transform_indices = @transform_1, window_bounds = array<i64: 48, 32>}, {pipeline_mode = #tpu.pipeline_mode<synchronous>, transform_indices = @transform_2, window_bounds = array<i64: 1, 32>}, {pipeline_mode = #tpu.pipeline_mode<synchronous>, transform_indices = @transform_3, window_bounds = array<i64: 1, 32>}, {pipeline_mode = #tpu.pipeline_mode<synchronous>, transform_indices = @transform_4, window_bounds = array<i64: 1, 32>}, {transform_indices = @transform_5, window_bounds = array<i64: 64, 32>}]} {
    %c0 = arith.constant 0 : index
    %c0_0 = arith.constant 0 : index
    %0 = vector.load %arg1[%c0, %c0_0] : memref<64x48xf32, #tpu.memory_space<vmem>>, vector<64x48xf32>
    %c0_1 = arith.constant 0 : index
    %c0_2 = arith.constant 0 : index
    %1 = vector.load %arg2[%c0_1, %c0_2] : memref<48x32xf32, #tpu.memory_space<vmem>>, vector<48x32xf32>
    %2 = arith.truncf %0 : vector<64x48xf32> to vector<64x48xbf16>
    %3 = arith.truncf %1 : vector<48x32xf32> to vector<48x32xbf16>
    %cst = arith.constant dense<0.000000e+00> : vector<64x32xf32>
    %4 = tpu.matmul %2, %3, %cst {dimension_numbers = #tpu.dot_dimension_numbers<[1], [0], [0], [1], [0, 0, 1, 1], [], []>} : vector<64x48xbf16>, vector<48x32xbf16>, vector<64x32xf32> -> vector<64x32xf32>
    %c0_3 = arith.constant 0 : index
    %c0_4 = arith.constant 0 : index
    %5 = vector.load %arg3[%c0_3, %c0_4] : memref<1x32xf32, #tpu.memory_space<vmem>>, vector<1x32xf32>
    %6 = vector.broadcast %5 : vector<1x32xf32> to vector<64x32xf32>
    %7 = arith.addf %4, %6 : vector<64x32xf32>
    %c0_5 = arith.constant 0 : index
    %c0_6 = arith.constant 0 : index
    %8 = vector.load %arg4[%c0_5, %c0_6] : memref<1x32xf32, #tpu.memory_space<vmem>>, vector<1x32xf32>
    %c0_7 = arith.constant 0 : index
    %c0_8 = arith.constant 0 : index
    %9 = vector.load %arg5[%c0_7, %c0_8] : memref<1x32xf32, #tpu.memory_space<vmem>>, vector<1x32xf32>
    %cst_9 = arith.constant dense<0.000000e+00> : vector<64xf32>
    %10 = vector.multi_reduction <add>, %7, %cst_9 [1] : vector<64x32xf32> to vector<64xf32>
    %11 = vector.shape_cast %10 : vector<64xf32> to vector<64x1xf32>
    %cst_10 = arith.constant 3.200000e+01 : f32
    %12 = vector.broadcast %cst_10 : f32 to vector<64x1xf32>
    %13 = arith.divf %11, %12 : vector<64x1xf32>
    %14 = vector.broadcast %13 : vector<64x1xf32> to vector<64x32xf32>
    %15 = arith.subf %7, %14 : vector<64x32xf32>
    %16 = arith.mulf %15, %15 : vector<64x32xf32>
    %cst_11 = arith.constant dense<0.000000e+00> : vector<64xf32>
    %17 = vector.multi_reduction <add>, %16, %cst_11 [1] : vector<64x32xf32> to vector<64xf32>
    %18 = vector.shape_cast %17 : vector<64xf32> to vector<64x1xf32>
    %cst_12 = arith.constant 3.200000e+01 : f32
    %19 = vector.broadcast %cst_12 : f32 to vector<64x1xf32>
    %20 = arith.divf %18, %19 : vector<64x1xf32>
    %cst_13 = arith.constant 9.99999974E-6 : f32
    %21 = vector.broadcast %cst_13 : f32 to vector<64x1xf32>
    %22 = arith.addf %20, %21 : vector<64x1xf32>
    %23 = math.rsqrt %22 : vector<64x1xf32>
    %24 = vector.broadcast %23 : vector<64x1xf32> to vector<64x32xf32>
    %25 = arith.mulf %15, %24 : vector<64x32xf32>
    %26 = vector.broadcast %8 : vector<1x32xf32> to vector<64x32xf32>
    %27 = arith.mulf %25, %26 : vector<64x32xf32>
    %28 = vector.broadcast %9 : vector<1x32xf32> to vector<64x32xf32>
    %29 = arith.addf %27, %28 : vector<64x32xf32>
    %c0_14 = arith.constant 0 : index
    %c0_15 = arith.constant 0 : index
    %30 = vector.load %arg6[%c0_14, %c0_15] : memref<64x32xf32, #tpu.memory_space<vmem>>, vector<64x32xf32>
    tpu.vector_store %arg6[%c0_14, %c0_15], %29 {strides = array<i32>} : memref<64x32xf32, #tpu.memory_space<vmem>>, vector<64x32xf32>,
    return
  }
  func.func @transform_0(%arg0: i32) -> (i32, i32) {
    %c0_i32 = arith.constant 0 : i32
    %c0_i32_0 = arith.constant 0 : i32
    return %arg0, %c0_i32 : i32, i32
  }
  func.func @transform_1(%arg0: i32) -> (i32, i32) {
    %c0_i32 = arith.constant 0 : i32
    %c0_i32_0 = arith.constant 0 : i32
    %c0_i32_1 = arith.constant 0 : i32
    return %c0_i32, %c0_i32_0 : i32, i32
  }
  func.func @transform_2(%arg0: i32) -> (i32, i32) {
    %c0_i32 = arith.constant 0 : i32
    %c0_i32_0 = arith.constant 0 : i32
    %c0_i32_1 = arith.constant 0 : i32
    return %c0_i32, %c0_i32_0 : i32, i32
  }
  func.func @transform_3(%arg0: i32) -> (i32, i32) {
    %c0_i32 = arith.constant 0 : i32
    %c0_i32_0 = arith.constant 0 : i32
    %c0_i32_1 = arith.constant 0 : i32
    return %c0_i32, %c0_i32_0 : i32, i32
  }
  func.func @transform_4(%arg0: i32) -> (i32, i32) {
    %c0_i32 = arith.constant 0 : i32
    %c0_i32_0 = arith.constant 0 : i32
    %c0_i32_1 = arith.constant 0 : i32
    return %c0_i32, %c0_i32_0 : i32, i32
  }
  func.func @transform_5(%arg0: i32) -> (i32, i32) {
    %c0_i32 = arith.constant 0 : i32
    %c0_i32_0 = arith.constant 0 : i32
    return %arg0, %c0_i32 : i32, i32
  }
}

module attributes {stable_mosaic.version = 11 : i64} {
  func.func @_attn_block_kernel(%arg0: i32, %arg1: memref<4x16x32xf32, #tpu.memory_space<vmem>>, %arg2: memref<1x32xf32, #tpu.memory_space<vmem>>, %arg3: memref<1x32xf32, #tpu.memory_space<vmem>>, %arg4: memref<32x96xf32, #tpu.memory_space<vmem>>, %arg5: memref<1x96xf32, #tpu.memory_space<vmem>>, %arg6: memref<2x16x16xf32, #tpu.memory_space<vmem>>, %arg7: memref<4x16x16xf32, #tpu.memory_space<vmem>>, %arg8: memref<32x32xf32, #tpu.memory_space<vmem>>, %arg9: memref<1x32xf32, #tpu.memory_space<vmem>>, %arg10: memref<4x16x32xf32, #tpu.memory_space<vmem>>) attributes {dimension_semantics = [#tpu.dimension_semantics<parallel>], iteration_bounds = array<i64: 2>, scalar_prefetch = 0 : i64, scratch_operands = 0 : i64, tpu.core_type = #tpu.core_type<tc>, window_params = [{transform_indices = @transform_0, window_bounds = array<i64: 4, 16, 32>}, {pipeline_mode = #tpu.pipeline_mode<synchronous>, transform_indices = @transform_1, window_bounds = array<i64: 1, 32>}, {pipeline_mode = #tpu.pipeline_mode<synchronous>, transform_indices = @transform_2, window_bounds = array<i64: 1, 32>}, {pipeline_mode = #tpu.pipeline_mode<synchronous>, transform_indices = @transform_3, window_bounds = array<i64: 32, 96>}, {pipeline_mode = #tpu.pipeline_mode<synchronous>, transform_indices = @transform_4, window_bounds = array<i64: 1, 96>}, {pipeline_mode = #tpu.pipeline_mode<synchronous>, transform_indices = @transform_5, window_bounds = array<i64: 2, 16, 16>}, {pipeline_mode = #tpu.pipeline_mode<synchronous>, transform_indices = @transform_6, window_bounds = array<i64: 4, 16, 16>}, {pipeline_mode = #tpu.pipeline_mode<synchronous>, transform_indices = @transform_7, window_bounds = array<i64: 32, 32>}, {pipeline_mode = #tpu.pipeline_mode<synchronous>, transform_indices = @transform_8, window_bounds = array<i64: 1, 32>}, {transform_indices = @transform_9, window_bounds = array<i64: 4, 16, 32>}]} {
    %c0 = arith.constant 0 : index
    %c0_0 = arith.constant 0 : index
    %c0_1 = arith.constant 0 : index
    %0 = vector.load %arg1[%c0, %c0_0, %c0_1] : memref<4x16x32xf32, #tpu.memory_space<vmem>>, vector<4x16x32xf32>
    %1 = vector.shape_cast %0 : vector<4x16x32xf32> to vector<64x32xf32>
    %c0_2 = arith.constant 0 : index
    %c0_3 = arith.constant 0 : index
    %2 = vector.load %arg2[%c0_2, %c0_3] : memref<1x32xf32, #tpu.memory_space<vmem>>, vector<1x32xf32>
    %c0_4 = arith.constant 0 : index
    %c0_5 = arith.constant 0 : index
    %3 = vector.load %arg3[%c0_4, %c0_5] : memref<1x32xf32, #tpu.memory_space<vmem>>, vector<1x32xf32>
    %cst = arith.constant dense<0.000000e+00> : vector<64xf32>
    %4 = vector.multi_reduction <add>, %1, %cst [1] : vector<64x32xf32> to vector<64xf32>
    %5 = vector.shape_cast %4 : vector<64xf32> to vector<64x1xf32>
    %cst_6 = arith.constant 3.200000e+01 : f32
    %6 = vector.broadcast %cst_6 : f32 to vector<64x1xf32>
    %7 = arith.divf %5, %6 : vector<64x1xf32>
    %8 = vector.broadcast %7 : vector<64x1xf32> to vector<64x32xf32>
    %9 = arith.subf %1, %8 : vector<64x32xf32>
    %10 = arith.mulf %9, %9 : vector<64x32xf32>
    %cst_7 = arith.constant dense<0.000000e+00> : vector<64xf32>
    %11 = vector.multi_reduction <add>, %10, %cst_7 [1] : vector<64x32xf32> to vector<64xf32>
    %12 = vector.shape_cast %11 : vector<64xf32> to vector<64x1xf32>
    %cst_8 = arith.constant 3.200000e+01 : f32
    %13 = vector.broadcast %cst_8 : f32 to vector<64x1xf32>
    %14 = arith.divf %12, %13 : vector<64x1xf32>
    %cst_9 = arith.constant 9.99999974E-6 : f32
    %15 = vector.broadcast %cst_9 : f32 to vector<64x1xf32>
    %16 = arith.addf %14, %15 : vector<64x1xf32>
    %17 = math.rsqrt %16 : vector<64x1xf32>
    %18 = vector.broadcast %17 : vector<64x1xf32> to vector<64x32xf32>
    %19 = arith.mulf %9, %18 : vector<64x32xf32>
    %20 = vector.broadcast %2 : vector<1x32xf32> to vector<64x32xf32>
    %21 = arith.mulf %19, %20 : vector<64x32xf32>
    %22 = vector.broadcast %3 : vector<1x32xf32> to vector<64x32xf32>
    %23 = arith.addf %21, %22 : vector<64x32xf32>
    %c0_10 = arith.constant 0 : index
    %c0_11 = arith.constant 0 : index
    %24 = vector.load %arg4[%c0_10, %c0_11] : memref<32x96xf32, #tpu.memory_space<vmem>>, vector<32x96xf32>
    %25 = arith.truncf %23 : vector<64x32xf32> to vector<64x32xbf16>
    %26 = arith.truncf %24 : vector<32x96xf32> to vector<32x96xbf16>
    %cst_12 = arith.constant dense<0.000000e+00> : vector<64x96xf32>
    %27 = tpu.matmul %25, %26, %cst_12 {dimension_numbers = #tpu.dot_dimension_numbers<[1], [0], [0], [1], [0, 0, 1, 1], [], []>} : vector<64x32xbf16>, vector<32x96xbf16>, vector<64x96xf32> -> vector<64x96xf32>
    %c0_13 = arith.constant 0 : index
    %c0_14 = arith.constant 0 : index
    %28 = vector.load %arg5[%c0_13, %c0_14] : memref<1x96xf32, #tpu.memory_space<vmem>>, vector<1x96xf32>
    %29 = vector.broadcast %28 : vector<1x96xf32> to vector<64x96xf32>
    %30 = arith.addf %27, %29 : vector<64x96xf32>
    %31 = vector.shape_cast %30 : vector<64x96xf32> to vector<4x16x96xf32>
    %c0_15 = arith.constant 0 : index
    %c0_16 = arith.constant 0 : index
    %c0_17 = arith.constant 0 : index
    %32 = vector.load %arg6[%c0_15, %c0_16, %c0_17] : memref<2x16x16xf32, #tpu.memory_space<vmem>>, vector<2x16x16xf32>
    %c0_18 = arith.constant 0 : index
    %c0_19 = arith.constant 0 : index
    %c0_20 = arith.constant 0 : index
    %33 = vector.load %arg7[%c0_18, %c0_19, %c0_20] : memref<4x16x16xf32, #tpu.memory_space<vmem>>, vector<4x16x16xf32>
    %c0_21 = arith.constant 0 : index
    %c0_22 = arith.constant 0 : index
    %34 = vector.load %arg8[%c0_21, %c0_22] : memref<32x32xf32, #tpu.memory_space<vmem>>, vector<32x32xf32>
    %cst_23 = arith.constant 0.000000e+00 : f32
    %35 = vector.broadcast %cst_23 : f32 to vector<64x32xf32>
    %36 = vector.extract_strided_slice %31 {offsets = [0, 0, 0], sizes = [4, 16, 16], strides = [1, 1, 1]} : vector<4x16x96xf32> to vector<4x16x16xf32>
    %cst_24 = arith.constant 2.500000e-01 : f32
    %37 = vector.broadcast %cst_24 : f32 to vector<4x16x16xf32>
    %38 = arith.mulf %36, %37 : vector<4x16x16xf32>
    %39 = vector.extract_strided_slice %31 {offsets = [0, 0, 32], sizes = [4, 16, 16], strides = [1, 1, 1]} : vector<4x16x96xf32> to vector<4x16x16xf32>
    %40 = vector.extract_strided_slice %31 {offsets = [0, 0, 64], sizes = [4, 16, 16], strides = [1, 1, 1]} : vector<4x16x96xf32> to vector<4x16x16xf32>
    %41 = arith.truncf %38 : vector<4x16x16xf32> to vector<4x16x16xbf16>
    %42 = arith.truncf %39 : vector<4x16x16xf32> to vector<4x16x16xbf16>
    %cst_25 = arith.constant dense<0.000000e+00> : vector<4x16x16xf32>
    %43 = tpu.matmul %41, %42, %cst_25 {dimension_numbers = #tpu.dot_dimension_numbers<[2], [2], [1], [1], [0, 0, 0, 1, 1, 1], [0], [0]>} : vector<4x16x16xbf16>, vector<4x16x16xbf16>, vector<4x16x16xf32> -> vector<4x16x16xf32>
    %44 = vector.extract_strided_slice %32 {offsets = [0, 0, 0], sizes = [1, 16, 16], strides = [1, 1, 1]} : vector<2x16x16xf32> to vector<1x16x16xf32>
    %45 = vector.shape_cast %44 : vector<1x16x16xf32> to vector<16x16xf32>
    %46 = vector.shape_cast %45 : vector<16x16xf32> to vector<1x16x16xf32>
    %47 = vector.broadcast %46 : vector<1x16x16xf32> to vector<4x16x16xf32>
    %48 = arith.addf %43, %47 : vector<4x16x16xf32>
    %49 = arith.addf %48, %33 : vector<4x16x16xf32>
    %cst_26 = arith.constant dense<0xFF800000> : vector<4x16xf32>
    %50 = vector.multi_reduction <maximumf>, %49, %cst_26 [2] : vector<4x16x16xf32> to vector<4x16xf32>
    %51 = vector.shape_cast %50 : vector<4x16xf32> to vector<4x16x1xf32>
    %52 = vector.broadcast %51 : vector<4x16x1xf32> to vector<4x16x16xf32>
    %53 = arith.subf %49, %52 : vector<4x16x16xf32>
    %54 = math.exp %53 : vector<4x16x16xf32>
    %cst_27 = arith.constant dense<0.000000e+00> : vector<4x16xf32>
    %55 = vector.multi_reduction <add>, %54, %cst_27 [2] : vector<4x16x16xf32> to vector<4x16xf32>
    %56 = vector.shape_cast %55 : vector<4x16xf32> to vector<4x16x1xf32>
    %57 = tpu.reciprocal %56 {approx = true} : vector<4x16x1xf32> -> vector<4x16x1xf32>
    %58 = vector.broadcast %57 : vector<4x16x1xf32> to vector<4x16x16xf32>
    %59 = arith.mulf %54, %58 : vector<4x16x16xf32>
    %60 = arith.truncf %59 : vector<4x16x16xf32> to vector<4x16x16xbf16>
    %61 = arith.truncf %40 : vector<4x16x16xf32> to vector<4x16x16xbf16>
    %cst_28 = arith.constant dense<0.000000e+00> : vector<4x16x16xf32>
    %62 = tpu.matmul %60, %61, %cst_28 {dimension_numbers = #tpu.dot_dimension_numbers<[2], [1], [1], [2], [0, 0, 0, 1, 1, 2], [0], [0]>} : vector<4x16x16xbf16>, vector<4x16x16xbf16>, vector<4x16x16xf32> -> vector<4x16x16xf32>
    %63 = vector.shape_cast %62 : vector<4x16x16xf32> to vector<64x16xf32>
    %64 = vector.extract_strided_slice %34 {offsets = [0, 0], sizes = [16, 32], strides = [1, 1]} : vector<32x32xf32> to vector<16x32xf32>
    %65 = arith.truncf %63 : vector<64x16xf32> to vector<64x16xbf16>
    %66 = arith.truncf %64 : vector<16x32xf32> to vector<16x32xbf16>
    %cst_29 = arith.constant dense<0.000000e+00> : vector<64x32xf32>
    %67 = tpu.matmul %65, %66, %cst_29 {dimension_numbers = #tpu.dot_dimension_numbers<[1], [0], [0], [1], [0, 0, 1, 1], [], []>} : vector<64x16xbf16>, vector<16x32xbf16>, vector<64x32xf32> -> vector<64x32xf32>
    %68 = arith.addf %35, %67 : vector<64x32xf32>
    %69 = vector.extract_strided_slice %31 {offsets = [0, 0, 16], sizes = [4, 16, 16], strides = [1, 1, 1]} : vector<4x16x96xf32> to vector<4x16x16xf32>
    %cst_30 = arith.constant 2.500000e-01 : f32
    %70 = vector.broadcast %cst_30 : f32 to vector<4x16x16xf32>
    %71 = arith.mulf %69, %70 : vector<4x16x16xf32>
    %72 = vector.extract_strided_slice %31 {offsets = [0, 0, 48], sizes = [4, 16, 16], strides = [1, 1, 1]} : vector<4x16x96xf32> to vector<4x16x16xf32>
    %73 = vector.extract_strided_slice %31 {offsets = [0, 0, 80], sizes = [4, 16, 16], strides = [1, 1, 1]} : vector<4x16x96xf32> to vector<4x16x16xf32>
    %74 = arith.truncf %71 : vector<4x16x16xf32> to vector<4x16x16xbf16>
    %75 = arith.truncf %72 : vector<4x16x16xf32> to vector<4x16x16xbf16>
    %cst_31 = arith.constant dense<0.000000e+00> : vector<4x16x16xf32>
    %76 = tpu.matmul %74, %75, %cst_31 {dimension_numbers = #tpu.dot_dimension_numbers<[2], [2], [1], [1], [0, 0, 0, 1, 1, 1], [0], [0]>} : vector<4x16x16xbf16>, vector<4x16x16xbf16>, vector<4x16x16xf32> -> vector<4x16x16xf32>
    %77 = vector.extract_strided_slice %32 {offsets = [1, 0, 0], sizes = [1, 16, 16], strides = [1, 1, 1]} : vector<2x16x16xf32> to vector<1x16x16xf32>
    %78 = vector.shape_cast %77 : vector<1x16x16xf32> to vector<16x16xf32>
    %79 = vector.shape_cast %78 : vector<16x16xf32> to vector<1x16x16xf32>
    %80 = vector.broadcast %79 : vector<1x16x16xf32> to vector<4x16x16xf32>
    %81 = arith.addf %76, %80 : vector<4x16x16xf32>
    %82 = arith.addf %81, %33 : vector<4x16x16xf32>
    %cst_32 = arith.constant dense<0xFF800000> : vector<4x16xf32>
    %83 = vector.multi_reduction <maximumf>, %82, %cst_32 [2] : vector<4x16x16xf32> to vector<4x16xf32>
    %84 = vector.shape_cast %83 : vector<4x16xf32> to vector<4x16x1xf32>
    %85 = vector.broadcast %84 : vector<4x16x1xf32> to vector<4x16x16xf32>
    %86 = arith.subf %82, %85 : vector<4x16x16xf32>
    %87 = math.exp %86 : vector<4x16x16xf32>
    %cst_33 = arith.constant dense<0.000000e+00> : vector<4x16xf32>
    %88 = vector.multi_reduction <add>, %87, %cst_33 [2] : vector<4x16x16xf32> to vector<4x16xf32>
    %89 = vector.shape_cast %88 : vector<4x16xf32> to vector<4x16x1xf32>
    %90 = tpu.reciprocal %89 {approx = true} : vector<4x16x1xf32> -> vector<4x16x1xf32>
    %91 = vector.broadcast %90 : vector<4x16x1xf32> to vector<4x16x16xf32>
    %92 = arith.mulf %87, %91 : vector<4x16x16xf32>
    %93 = arith.truncf %92 : vector<4x16x16xf32> to vector<4x16x16xbf16>
    %94 = arith.truncf %73 : vector<4x16x16xf32> to vector<4x16x16xbf16>
    %cst_34 = arith.constant dense<0.000000e+00> : vector<4x16x16xf32>
    %95 = tpu.matmul %93, %94, %cst_34 {dimension_numbers = #tpu.dot_dimension_numbers<[2], [1], [1], [2], [0, 0, 0, 1, 1, 2], [0], [0]>} : vector<4x16x16xbf16>, vector<4x16x16xbf16>, vector<4x16x16xf32> -> vector<4x16x16xf32>
    %96 = vector.shape_cast %95 : vector<4x16x16xf32> to vector<64x16xf32>
    %97 = vector.extract_strided_slice %34 {offsets = [16, 0], sizes = [16, 32], strides = [1, 1]} : vector<32x32xf32> to vector<16x32xf32>
    %98 = arith.truncf %96 : vector<64x16xf32> to vector<64x16xbf16>
    %99 = arith.truncf %97 : vector<16x32xf32> to vector<16x32xbf16>
    %cst_35 = arith.constant dense<0.000000e+00> : vector<64x32xf32>
    %100 = tpu.matmul %98, %99, %cst_35 {dimension_numbers = #tpu.dot_dimension_numbers<[1], [0], [0], [1], [0, 0, 1, 1], [], []>} : vector<64x16xbf16>, vector<16x32xbf16>, vector<64x32xf32> -> vector<64x32xf32>
    %101 = arith.addf %68, %100 : vector<64x32xf32>
    %c0_36 = arith.constant 0 : index
    %c0_37 = arith.constant 0 : index
    %102 = vector.load %arg9[%c0_36, %c0_37] : memref<1x32xf32, #tpu.memory_space<vmem>>, vector<1x32xf32>
    %103 = vector.broadcast %102 : vector<1x32xf32> to vector<64x32xf32>
    %104 = arith.addf %101, %103 : vector<64x32xf32>
    %105 = arith.addf %104, %1 : vector<64x32xf32>
    %106 = vector.shape_cast %105 : vector<64x32xf32> to vector<4x16x32xf32>
    %c0_38 = arith.constant 0 : index
    %c0_39 = arith.constant 0 : index
    %c0_40 = arith.constant 0 : index
    %107 = vector.load %arg10[%c0_38, %c0_39, %c0_40] : memref<4x16x32xf32, #tpu.memory_space<vmem>>, vector<4x16x32xf32>
    tpu.vector_store %arg10[%c0_38, %c0_39, %c0_40], %106 {strides = array<i32>} : memref<4x16x32xf32, #tpu.memory_space<vmem>>, vector<4x16x32xf32>,
    return
  }
  func.func @transform_0(%arg0: i32) -> (i32, i32, i32) {
    %c0_i32 = arith.constant 0 : i32
    %c0_i32_0 = arith.constant 0 : i32
    %c0_i32_1 = arith.constant 0 : i32
    return %arg0, %c0_i32, %c0_i32_0 : i32, i32, i32
  }
  func.func @transform_1(%arg0: i32) -> (i32, i32) {
    %c0_i32 = arith.constant 0 : i32
    %c0_i32_0 = arith.constant 0 : i32
    %c0_i32_1 = arith.constant 0 : i32
    return %c0_i32, %c0_i32_0 : i32, i32
  }
  func.func @transform_2(%arg0: i32) -> (i32, i32) {
    %c0_i32 = arith.constant 0 : i32
    %c0_i32_0 = arith.constant 0 : i32
    %c0_i32_1 = arith.constant 0 : i32
    return %c0_i32, %c0_i32_0 : i32, i32
  }
  func.func @transform_3(%arg0: i32) -> (i32, i32) {
    %c0_i32 = arith.constant 0 : i32
    %c0_i32_0 = arith.constant 0 : i32
    %c0_i32_1 = arith.constant 0 : i32
    return %c0_i32, %c0_i32_0 : i32, i32
  }
  func.func @transform_4(%arg0: i32) -> (i32, i32) {
    %c0_i32 = arith.constant 0 : i32
    %c0_i32_0 = arith.constant 0 : i32
    %c0_i32_1 = arith.constant 0 : i32
    return %c0_i32, %c0_i32_0 : i32, i32
  }
  func.func @transform_5(%arg0: i32) -> (i32, i32, i32) {
    %c0_i32 = arith.constant 0 : i32
    %c0_i32_0 = arith.constant 0 : i32
    %c0_i32_1 = arith.constant 0 : i32
    %c0_i32_2 = arith.constant 0 : i32
    return %c0_i32, %c0_i32_0, %c0_i32_1 : i32, i32, i32
  }
  func.func @transform_6(%arg0: i32) -> (i32, i32, i32) {
    %c0_i32 = arith.constant 0 : i32
    %c0_i32_0 = arith.constant 0 : i32
    %c0_i32_1 = arith.constant 0 : i32
    %c0_i32_2 = arith.constant 0 : i32
    return %c0_i32, %c0_i32_0, %c0_i32_1 : i32, i32, i32
  }
  func.func @transform_7(%arg0: i32) -> (i32, i32) {
    %c0_i32 = arith.constant 0 : i32
    %c0_i32_0 = arith.constant 0 : i32
    %c0_i32_1 = arith.constant 0 : i32
    return %c0_i32, %c0_i32_0 : i32, i32
  }
  func.func @transform_8(%arg0: i32) -> (i32, i32) {
    %c0_i32 = arith.constant 0 : i32
    %c0_i32_0 = arith.constant 0 : i32
    %c0_i32_1 = arith.constant 0 : i32
    return %c0_i32, %c0_i32_0 : i32, i32
  }
  func.func @transform_9(%arg0: i32) -> (i32, i32, i32) {
    %c0_i32 = arith.constant 0 : i32
    %c0_i32_0 = arith.constant 0 : i32
    %c0_i32_1 = arith.constant 0 : i32
    return %arg0, %c0_i32, %c0_i32_0 : i32, i32, i32
  }
}

module attributes {stable_mosaic.version = 11 : i64} {
  func.func @_mlp_block_kernel(%arg0: i32, %arg1: memref<64x32xf32, #tpu.memory_space<vmem>>, %arg2: memref<1x32xf32, #tpu.memory_space<vmem>>, %arg3: memref<1x32xf32, #tpu.memory_space<vmem>>, %arg4: memref<32x128xf32, #tpu.memory_space<vmem>>, %arg5: memref<1x128xf32, #tpu.memory_space<vmem>>, %arg6: memref<128x32xf32, #tpu.memory_space<vmem>>, %arg7: memref<1x32xf32, #tpu.memory_space<vmem>>, %arg8: memref<64x32xf32, #tpu.memory_space<vmem>>) attributes {dimension_semantics = [#tpu.dimension_semantics<parallel>], iteration_bounds = array<i64: 2>, scalar_prefetch = 0 : i64, scratch_operands = 0 : i64, tpu.core_type = #tpu.core_type<tc>, window_params = [{transform_indices = @transform_0, window_bounds = array<i64: 64, 32>}, {pipeline_mode = #tpu.pipeline_mode<synchronous>, transform_indices = @transform_1, window_bounds = array<i64: 1, 32>}, {pipeline_mode = #tpu.pipeline_mode<synchronous>, transform_indices = @transform_2, window_bounds = array<i64: 1, 32>}, {pipeline_mode = #tpu.pipeline_mode<synchronous>, transform_indices = @transform_3, window_bounds = array<i64: 32, 128>}, {pipeline_mode = #tpu.pipeline_mode<synchronous>, transform_indices = @transform_4, window_bounds = array<i64: 1, 128>}, {pipeline_mode = #tpu.pipeline_mode<synchronous>, transform_indices = @transform_5, window_bounds = array<i64: 128, 32>}, {pipeline_mode = #tpu.pipeline_mode<synchronous>, transform_indices = @transform_6, window_bounds = array<i64: 1, 32>}, {transform_indices = @transform_7, window_bounds = array<i64: 64, 32>}]} {
    %c0 = arith.constant 0 : index
    %c0_0 = arith.constant 0 : index
    %0 = vector.load %arg1[%c0, %c0_0] : memref<64x32xf32, #tpu.memory_space<vmem>>, vector<64x32xf32>
    %c0_1 = arith.constant 0 : index
    %c0_2 = arith.constant 0 : index
    %1 = vector.load %arg2[%c0_1, %c0_2] : memref<1x32xf32, #tpu.memory_space<vmem>>, vector<1x32xf32>
    %c0_3 = arith.constant 0 : index
    %c0_4 = arith.constant 0 : index
    %2 = vector.load %arg3[%c0_3, %c0_4] : memref<1x32xf32, #tpu.memory_space<vmem>>, vector<1x32xf32>
    %cst = arith.constant dense<0.000000e+00> : vector<64xf32>
    %3 = vector.multi_reduction <add>, %0, %cst [1] : vector<64x32xf32> to vector<64xf32>
    %4 = vector.shape_cast %3 : vector<64xf32> to vector<64x1xf32>
    %cst_5 = arith.constant 3.200000e+01 : f32
    %5 = vector.broadcast %cst_5 : f32 to vector<64x1xf32>
    %6 = arith.divf %4, %5 : vector<64x1xf32>
    %7 = vector.broadcast %6 : vector<64x1xf32> to vector<64x32xf32>
    %8 = arith.subf %0, %7 : vector<64x32xf32>
    %9 = arith.mulf %8, %8 : vector<64x32xf32>
    %cst_6 = arith.constant dense<0.000000e+00> : vector<64xf32>
    %10 = vector.multi_reduction <add>, %9, %cst_6 [1] : vector<64x32xf32> to vector<64xf32>
    %11 = vector.shape_cast %10 : vector<64xf32> to vector<64x1xf32>
    %cst_7 = arith.constant 3.200000e+01 : f32
    %12 = vector.broadcast %cst_7 : f32 to vector<64x1xf32>
    %13 = arith.divf %11, %12 : vector<64x1xf32>
    %cst_8 = arith.constant 9.99999974E-6 : f32
    %14 = vector.broadcast %cst_8 : f32 to vector<64x1xf32>
    %15 = arith.addf %13, %14 : vector<64x1xf32>
    %16 = math.rsqrt %15 : vector<64x1xf32>
    %17 = vector.broadcast %16 : vector<64x1xf32> to vector<64x32xf32>
    %18 = arith.mulf %8, %17 : vector<64x32xf32>
    %19 = vector.broadcast %1 : vector<1x32xf32> to vector<64x32xf32>
    %20 = arith.mulf %18, %19 : vector<64x32xf32>
    %21 = vector.broadcast %2 : vector<1x32xf32> to vector<64x32xf32>
    %22 = arith.addf %20, %21 : vector<64x32xf32>
    %c0_9 = arith.constant 0 : index
    %c0_10 = arith.constant 0 : index
    %23 = vector.load %arg4[%c0_9, %c0_10] : memref<32x128xf32, #tpu.memory_space<vmem>>, vector<32x128xf32>
    %24 = arith.truncf %22 : vector<64x32xf32> to vector<64x32xbf16>
    %25 = arith.truncf %23 : vector<32x128xf32> to vector<32x128xbf16>
    %cst_11 = arith.constant dense<0.000000e+00> : vector<64x128xf32>
    %26 = tpu.matmul %24, %25, %cst_11 {dimension_numbers = #tpu.dot_dimension_numbers<[1], [0], [0], [1], [0, 0, 1, 1], [], []>} : vector<64x32xbf16>, vector<32x128xbf16>, vector<64x128xf32> -> vector<64x128xf32>
    %c0_12 = arith.constant 0 : index
    %c0_13 = arith.constant 0 : index
    %27 = vector.load %arg5[%c0_12, %c0_13] : memref<1x128xf32, #tpu.memory_space<vmem>>, vector<1x128xf32>
    %28 = vector.broadcast %27 : vector<1x128xf32> to vector<64x128xf32>
    %29 = arith.addf %26, %28 : vector<64x128xf32>
    %cst_14 = arith.constant 5.000000e-01 : f32
    %30 = vector.broadcast %cst_14 : f32 to vector<64x128xf32>
    %31 = arith.mulf %30, %29 : vector<64x128xf32>
    %cst_15 = arith.constant 0.707106769 : f32
    %32 = vector.broadcast %cst_15 : f32 to vector<64x128xf32>
    %33 = arith.mulf %29, %32 : vector<64x128xf32>
    %34 = math.erf %33 : vector<64x128xf32>
    %cst_16 = arith.constant 1.000000e+00 : f32
    %35 = vector.broadcast %cst_16 : f32 to vector<64x128xf32>
    %36 = arith.addf %35, %34 : vector<64x128xf32>
    %37 = arith.mulf %31, %36 : vector<64x128xf32>
    %c0_17 = arith.constant 0 : index
    %c0_18 = arith.constant 0 : index
    %38 = vector.load %arg6[%c0_17, %c0_18] : memref<128x32xf32, #tpu.memory_space<vmem>>, vector<128x32xf32>
    %39 = arith.truncf %37 : vector<64x128xf32> to vector<64x128xbf16>
    %40 = arith.truncf %38 : vector<128x32xf32> to vector<128x32xbf16>
    %cst_19 = arith.constant dense<0.000000e+00> : vector<64x32xf32>
    %41 = tpu.matmul %39, %40, %cst_19 {dimension_numbers = #tpu.dot_dimension_numbers<[1], [0], [0], [1], [0, 0, 1, 1], [], []>} : vector<64x128xbf16>, vector<128x32xbf16>, vector<64x32xf32> -> vector<64x32xf32>
    %c0_20 = arith.constant 0 : index
    %c0_21 = arith.constant 0 : index
    %42 = vector.load %arg7[%c0_20, %c0_21] : memref<1x32xf32, #tpu.memory_space<vmem>>, vector<1x32xf32>
    %43 = vector.broadcast %42 : vector<1x32xf32> to vector<64x32xf32>
    %44 = arith.addf %41, %43 : vector<64x32xf32>
    %45 = arith.addf %0, %44 : vector<64x32xf32>
    %c0_22 = arith.constant 0 : index
    %c0_23 = arith.constant 0 : index
    %46 = vector.load %arg8[%c0_22, %c0_23] : memref<64x32xf32, #tpu.memory_space<vmem>>, vector<64x32xf32>
    tpu.vector_store %arg8[%c0_22, %c0_23], %45 {strides = array<i32>} : memref<64x32xf32, #tpu.memory_space<vmem>>, vector<64x32xf32>,
    return
  }
  func.func @transform_0(%arg0: i32) -> (i32, i32) {
    %c0_i32 = arith.constant 0 : i32
    %c0_i32_0 = arith.constant 0 : i32
    return %arg0, %c0_i32 : i32, i32
  }
  func.func @transform_1(%arg0: i32) -> (i32, i32) {
    %c0_i32 = arith.constant 0 : i32
    %c0_i32_0 = arith.constant 0 : i32
    %c0_i32_1 = arith.constant 0 : i32
    return %c0_i32, %c0_i32_0 : i32, i32
  }
  func.func @transform_2(%arg0: i32) -> (i32, i32) {
    %c0_i32 = arith.constant 0 : i32
    %c0_i32_0 = arith.constant 0 : i32
    %c0_i32_1 = arith.constant 0 : i32
    return %c0_i32, %c0_i32_0 : i32, i32
  }
  func.func @transform_3(%arg0: i32) -> (i32, i32) {
    %c0_i32 = arith.constant 0 : i32
    %c0_i32_0 = arith.constant 0 : i32
    %c0_i32_1 = arith.constant 0 : i32
    return %c0_i32, %c0_i32_0 : i32, i32
  }
  func.func @transform_4(%arg0: i32) -> (i32, i32) {
    %c0_i32 = arith.constant 0 : i32
    %c0_i32_0 = arith.constant 0 : i32
    %c0_i32_1 = arith.constant 0 : i32
    return %c0_i32, %c0_i32_0 : i32, i32
  }
  func.func @transform_5(%arg0: i32) -> (i32, i32) {
    %c0_i32 = arith.constant 0 : i32
    %c0_i32_0 = arith.constant 0 : i32
    %c0_i32_1 = arith.constant 0 : i32
    return %c0_i32, %c0_i32_0 : i32, i32
  }
  func.func @transform_6(%arg0: i32) -> (i32, i32) {
    %c0_i32 = arith.constant 0 : i32
    %c0_i32_0 = arith.constant 0 : i32
    %c0_i32_1 = arith.constant 0 : i32
    return %c0_i32, %c0_i32_0 : i32, i32
  }
  func.func @transform_7(%arg0: i32) -> (i32, i32) {
    %c0_i32 = arith.constant 0 : i32
    %c0_i32_0 = arith.constant 0 : i32
    return %arg0, %c0_i32 : i32, i32
  }
}

module attributes {stable_mosaic.version = 11 : i64} {
  func.func @_merge_kernel(%arg0: i32, %arg1: memref<16x128xf32, #tpu.memory_space<vmem>>, %arg2: memref<1x128xf32, #tpu.memory_space<vmem>>, %arg3: memref<1x128xf32, #tpu.memory_space<vmem>>, %arg4: memref<128x64xf32, #tpu.memory_space<vmem>>, %arg5: memref<16x64xf32, #tpu.memory_space<vmem>>) attributes {dimension_semantics = [#tpu.dimension_semantics<parallel>], iteration_bounds = array<i64: 2>, scalar_prefetch = 0 : i64, scratch_operands = 0 : i64, tpu.core_type = #tpu.core_type<tc>, window_params = [{transform_indices = @transform_0, window_bounds = array<i64: 16, 128>}, {pipeline_mode = #tpu.pipeline_mode<synchronous>, transform_indices = @transform_1, window_bounds = array<i64: 1, 128>}, {pipeline_mode = #tpu.pipeline_mode<synchronous>, transform_indices = @transform_2, window_bounds = array<i64: 1, 128>}, {pipeline_mode = #tpu.pipeline_mode<synchronous>, transform_indices = @transform_3, window_bounds = array<i64: 128, 64>}, {transform_indices = @transform_4, window_bounds = array<i64: 16, 64>}]} {
    %c0 = arith.constant 0 : index
    %c0_0 = arith.constant 0 : index
    %0 = vector.load %arg1[%c0, %c0_0] : memref<16x128xf32, #tpu.memory_space<vmem>>, vector<16x128xf32>
    %c0_1 = arith.constant 0 : index
    %c0_2 = arith.constant 0 : index
    %1 = vector.load %arg2[%c0_1, %c0_2] : memref<1x128xf32, #tpu.memory_space<vmem>>, vector<1x128xf32>
    %c0_3 = arith.constant 0 : index
    %c0_4 = arith.constant 0 : index
    %2 = vector.load %arg3[%c0_3, %c0_4] : memref<1x128xf32, #tpu.memory_space<vmem>>, vector<1x128xf32>
    %cst = arith.constant dense<0.000000e+00> : vector<16xf32>
    %3 = vector.multi_reduction <add>, %0, %cst [1] : vector<16x128xf32> to vector<16xf32>
    %4 = vector.shape_cast %3 : vector<16xf32> to vector<16x1xf32>
    %cst_5 = arith.constant 1.280000e+02 : f32
    %5 = vector.broadcast %cst_5 : f32 to vector<16x1xf32>
    %6 = arith.divf %4, %5 : vector<16x1xf32>
    %7 = vector.broadcast %6 : vector<16x1xf32> to vector<16x128xf32>
    %8 = arith.subf %0, %7 : vector<16x128xf32>
    %9 = arith.mulf %8, %8 : vector<16x128xf32>
    %cst_6 = arith.constant dense<0.000000e+00> : vector<16xf32>
    %10 = vector.multi_reduction <add>, %9, %cst_6 [1] : vector<16x128xf32> to vector<16xf32>
    %11 = vector.shape_cast %10 : vector<16xf32> to vector<16x1xf32>
    %cst_7 = arith.constant 1.280000e+02 : f32
    %12 = vector.broadcast %cst_7 : f32 to vector<16x1xf32>
    %13 = arith.divf %11, %12 : vector<16x1xf32>
    %cst_8 = arith.constant 9.99999974E-6 : f32
    %14 = vector.broadcast %cst_8 : f32 to vector<16x1xf32>
    %15 = arith.addf %13, %14 : vector<16x1xf32>
    %16 = math.rsqrt %15 : vector<16x1xf32>
    %17 = vector.broadcast %16 : vector<16x1xf32> to vector<16x128xf32>
    %18 = arith.mulf %8, %17 : vector<16x128xf32>
    %19 = vector.broadcast %1 : vector<1x128xf32> to vector<16x128xf32>
    %20 = arith.mulf %18, %19 : vector<16x128xf32>
    %21 = vector.broadcast %2 : vector<1x128xf32> to vector<16x128xf32>
    %22 = arith.addf %20, %21 : vector<16x128xf32>
    %c0_9 = arith.constant 0 : index
    %c0_10 = arith.constant 0 : index
    %23 = vector.load %arg4[%c0_9, %c0_10] : memref<128x64xf32, #tpu.memory_space<vmem>>, vector<128x64xf32>
    %24 = arith.truncf %22 : vector<16x128xf32> to vector<16x128xbf16>
    %25 = arith.truncf %23 : vector<128x64xf32> to vector<128x64xbf16>
    %cst_11 = arith.constant dense<0.000000e+00> : vector<16x64xf32>
    %26 = tpu.matmul %24, %25, %cst_11 {dimension_numbers = #tpu.dot_dimension_numbers<[1], [0], [0], [1], [0, 0, 1, 1], [], []>} : vector<16x128xbf16>, vector<128x64xbf16>, vector<16x64xf32> -> vector<16x64xf32>
    %c0_12 = arith.constant 0 : index
    %c0_13 = arith.constant 0 : index
    %27 = vector.load %arg5[%c0_12, %c0_13] : memref<16x64xf32, #tpu.memory_space<vmem>>, vector<16x64xf32>
    tpu.vector_store %arg5[%c0_12, %c0_13], %26 {strides = array<i32>} : memref<16x64xf32, #tpu.memory_space<vmem>>, vector<16x64xf32>,
    return
  }
  func.func @transform_0(%arg0: i32) -> (i32, i32) {
    %c0_i32 = arith.constant 0 : i32
    %c0_i32_0 = arith.constant 0 : i32
    return %arg0, %c0_i32 : i32, i32
  }
  func.func @transform_1(%arg0: i32) -> (i32, i32) {
    %c0_i32 = arith.constant 0 : i32
    %c0_i32_0 = arith.constant 0 : i32
    %c0_i32_1 = arith.constant 0 : i32
    return %c0_i32, %c0_i32_0 : i32, i32
  }
  func.func @transform_2(%arg0: i32) -> (i32, i32) {
    %c0_i32 = arith.constant 0 : i32
    %c0_i32_0 = arith.constant 0 : i32
    %c0_i32_1 = arith.constant 0 : i32
    return %c0_i32, %c0_i32_0 : i32, i32
  }
  func.func @transform_3(%arg0: i32) -> (i32, i32) {
    %c0_i32 = arith.constant 0 : i32
    %c0_i32_0 = arith.constant 0 : i32
    %c0_i32_1 = arith.constant 0 : i32
    return %c0_i32, %c0_i32_0 : i32, i32
  }
  func.func @transform_4(%arg0: i32) -> (i32, i32) {
    %c0_i32 = arith.constant 0 : i32
    %c0_i32_0 = arith.constant 0 : i32
    return %arg0, %c0_i32 : i32, i32
  }
}

module attributes {stable_mosaic.version = 11 : i64} {
  func.func @_mlp_block_kernel(%arg0: i32, %arg1: memref<16x64xf32, #tpu.memory_space<vmem>>, %arg2: memref<1x64xf32, #tpu.memory_space<vmem>>, %arg3: memref<1x64xf32, #tpu.memory_space<vmem>>, %arg4: memref<64x256xf32, #tpu.memory_space<vmem>>, %arg5: memref<1x256xf32, #tpu.memory_space<vmem>>, %arg6: memref<256x64xf32, #tpu.memory_space<vmem>>, %arg7: memref<1x64xf32, #tpu.memory_space<vmem>>, %arg8: memref<16x64xf32, #tpu.memory_space<vmem>>) attributes {dimension_semantics = [#tpu.dimension_semantics<parallel>], iteration_bounds = array<i64: 2>, scalar_prefetch = 0 : i64, scratch_operands = 0 : i64, tpu.core_type = #tpu.core_type<tc>, window_params = [{transform_indices = @transform_0, window_bounds = array<i64: 16, 64>}, {pipeline_mode = #tpu.pipeline_mode<synchronous>, transform_indices = @transform_1, window_bounds = array<i64: 1, 64>}, {pipeline_mode = #tpu.pipeline_mode<synchronous>, transform_indices = @transform_2, window_bounds = array<i64: 1, 64>}, {pipeline_mode = #tpu.pipeline_mode<synchronous>, transform_indices = @transform_3, window_bounds = array<i64: 64, 256>}, {pipeline_mode = #tpu.pipeline_mode<synchronous>, transform_indices = @transform_4, window_bounds = array<i64: 1, 256>}, {pipeline_mode = #tpu.pipeline_mode<synchronous>, transform_indices = @transform_5, window_bounds = array<i64: 256, 64>}, {pipeline_mode = #tpu.pipeline_mode<synchronous>, transform_indices = @transform_6, window_bounds = array<i64: 1, 64>}, {transform_indices = @transform_7, window_bounds = array<i64: 16, 64>}]} {
    %c0 = arith.constant 0 : index
    %c0_0 = arith.constant 0 : index
    %0 = vector.load %arg1[%c0, %c0_0] : memref<16x64xf32, #tpu.memory_space<vmem>>, vector<16x64xf32>
    %c0_1 = arith.constant 0 : index
    %c0_2 = arith.constant 0 : index
    %1 = vector.load %arg2[%c0_1, %c0_2] : memref<1x64xf32, #tpu.memory_space<vmem>>, vector<1x64xf32>
    %c0_3 = arith.constant 0 : index
    %c0_4 = arith.constant 0 : index
    %2 = vector.load %arg3[%c0_3, %c0_4] : memref<1x64xf32, #tpu.memory_space<vmem>>, vector<1x64xf32>
    %cst = arith.constant dense<0.000000e+00> : vector<16xf32>
    %3 = vector.multi_reduction <add>, %0, %cst [1] : vector<16x64xf32> to vector<16xf32>
    %4 = vector.shape_cast %3 : vector<16xf32> to vector<16x1xf32>
    %cst_5 = arith.constant 6.400000e+01 : f32
    %5 = vector.broadcast %cst_5 : f32 to vector<16x1xf32>
    %6 = arith.divf %4, %5 : vector<16x1xf32>
    %7 = vector.broadcast %6 : vector<16x1xf32> to vector<16x64xf32>
    %8 = arith.subf %0, %7 : vector<16x64xf32>
    %9 = arith.mulf %8, %8 : vector<16x64xf32>
    %cst_6 = arith.constant dense<0.000000e+00> : vector<16xf32>
    %10 = vector.multi_reduction <add>, %9, %cst_6 [1] : vector<16x64xf32> to vector<16xf32>
    %11 = vector.shape_cast %10 : vector<16xf32> to vector<16x1xf32>
    %cst_7 = arith.constant 6.400000e+01 : f32
    %12 = vector.broadcast %cst_7 : f32 to vector<16x1xf32>
    %13 = arith.divf %11, %12 : vector<16x1xf32>
    %cst_8 = arith.constant 9.99999974E-6 : f32
    %14 = vector.broadcast %cst_8 : f32 to vector<16x1xf32>
    %15 = arith.addf %13, %14 : vector<16x1xf32>
    %16 = math.rsqrt %15 : vector<16x1xf32>
    %17 = vector.broadcast %16 : vector<16x1xf32> to vector<16x64xf32>
    %18 = arith.mulf %8, %17 : vector<16x64xf32>
    %19 = vector.broadcast %1 : vector<1x64xf32> to vector<16x64xf32>
    %20 = arith.mulf %18, %19 : vector<16x64xf32>
    %21 = vector.broadcast %2 : vector<1x64xf32> to vector<16x64xf32>
    %22 = arith.addf %20, %21 : vector<16x64xf32>
    %c0_9 = arith.constant 0 : index
    %c0_10 = arith.constant 0 : index
    %23 = vector.load %arg4[%c0_9, %c0_10] : memref<64x256xf32, #tpu.memory_space<vmem>>, vector<64x256xf32>
    %24 = arith.truncf %22 : vector<16x64xf32> to vector<16x64xbf16>
    %25 = arith.truncf %23 : vector<64x256xf32> to vector<64x256xbf16>
    %cst_11 = arith.constant dense<0.000000e+00> : vector<16x256xf32>
    %26 = tpu.matmul %24, %25, %cst_11 {dimension_numbers = #tpu.dot_dimension_numbers<[1], [0], [0], [1], [0, 0, 1, 1], [], []>} : vector<16x64xbf16>, vector<64x256xbf16>, vector<16x256xf32> -> vector<16x256xf32>
    %c0_12 = arith.constant 0 : index
    %c0_13 = arith.constant 0 : index
    %27 = vector.load %arg5[%c0_12, %c0_13] : memref<1x256xf32, #tpu.memory_space<vmem>>, vector<1x256xf32>
    %28 = vector.broadcast %27 : vector<1x256xf32> to vector<16x256xf32>
    %29 = arith.addf %26, %28 : vector<16x256xf32>
    %cst_14 = arith.constant 5.000000e-01 : f32
    %30 = vector.broadcast %cst_14 : f32 to vector<16x256xf32>
    %31 = arith.mulf %30, %29 : vector<16x256xf32>
    %cst_15 = arith.constant 0.707106769 : f32
    %32 = vector.broadcast %cst_15 : f32 to vector<16x256xf32>
    %33 = arith.mulf %29, %32 : vector<16x256xf32>
    %34 = math.erf %33 : vector<16x256xf32>
    %cst_16 = arith.constant 1.000000e+00 : f32
    %35 = vector.broadcast %cst_16 : f32 to vector<16x256xf32>
    %36 = arith.addf %35, %34 : vector<16x256xf32>
    %37 = arith.mulf %31, %36 : vector<16x256xf32>
    %c0_17 = arith.constant 0 : index
    %c0_18 = arith.constant 0 : index
    %38 = vector.load %arg6[%c0_17, %c0_18] : memref<256x64xf32, #tpu.memory_space<vmem>>, vector<256x64xf32>
    %39 = arith.truncf %37 : vector<16x256xf32> to vector<16x256xbf16>
    %40 = arith.truncf %38 : vector<256x64xf32> to vector<256x64xbf16>
    %cst_19 = arith.constant dense<0.000000e+00> : vector<16x64xf32>
    %41 = tpu.matmul %39, %40, %cst_19 {dimension_numbers = #tpu.dot_dimension_numbers<[1], [0], [0], [1], [0, 0, 1, 1], [], []>} : vector<16x256xbf16>, vector<256x64xbf16>, vector<16x64xf32> -> vector<16x64xf32>
    %c0_20 = arith.constant 0 : index
    %c0_21 = arith.constant 0 : index
    %42 = vector.load %arg7[%c0_20, %c0_21] : memref<1x64xf32, #tpu.memory_space<vmem>>, vector<1x64xf32>
    %43 = vector.broadcast %42 : vector<1x64xf32> to vector<16x64xf32>
    %44 = arith.addf %41, %43 : vector<16x64xf32>
    %45 = arith.addf %0, %44 : vector<16x64xf32>
    %c0_22 = arith.constant 0 : index
    %c0_23 = arith.constant 0 : index
    %46 = vector.load %arg8[%c0_22, %c0_23] : memref<16x64xf32, #tpu.memory_space<vmem>>, vector<16x64xf32>
    tpu.vector_store %arg8[%c0_22, %c0_23], %45 {strides = array<i32>} : memref<16x64xf32, #tpu.memory_space<vmem>>, vector<16x64xf32>,
    return
  }
  func.func @transform_0(%arg0: i32) -> (i32, i32) {
    %c0_i32 = arith.constant 0 : i32
    %c0_i32_0 = arith.constant 0 : i32
    return %arg0, %c0_i32 : i32, i32
  }
  func.func @transform_1(%arg0: i32) -> (i32, i32) {
    %c0_i32 = arith.constant 0 : i32
    %c0_i32_0 = arith.constant 0 : i32
    %c0_i32_1 = arith.constant 0 : i32
    return %c0_i32, %c0_i32_0 : i32, i32
  }
  func.func @transform_2(%arg0: i32) -> (i32, i32) {
    %c0_i32 = arith.constant 0 : i32
    %c0_i32_0 = arith.constant 0 : i32
    %c0_i32_1 = arith.constant 0 : i32
    return %c0_i32, %c0_i32_0 : i32, i32
  }
  func.func @transform_3(%arg0: i32) -> (i32, i32) {
    %c0_i32 = arith.constant 0 : i32
    %c0_i32_0 = arith.constant 0 : i32
    %c0_i32_1 = arith.constant 0 : i32
    return %c0_i32, %c0_i32_0 : i32, i32
  }
  func.func @transform_4(%arg0: i32) -> (i32, i32) {
    %c0_i32 = arith.constant 0 : i32
    %c0_i32_0 = arith.constant 0 : i32
    %c0_i32_1 = arith.constant 0 : i32
    return %c0_i32, %c0_i32_0 : i32, i32
  }
  func.func @transform_5(%arg0: i32) -> (i32, i32) {
    %c0_i32 = arith.constant 0 : i32
    %c0_i32_0 = arith.constant 0 : i32
    %c0_i32_1 = arith.constant 0 : i32
    return %c0_i32, %c0_i32_0 : i32, i32
  }
  func.func @transform_6(%arg0: i32) -> (i32, i32) {
    %c0_i32 = arith.constant 0 : i32
    %c0_i32_0 = arith.constant 0 : i32
    %c0_i32_1 = arith.constant 0 : i32
    return %c0_i32, %c0_i32_0 : i32, i32
  }
  func.func @transform_7(%arg0: i32) -> (i32, i32) {
    %c0_i32 = arith.constant 0 : i32
    %c0_i32_0 = arith.constant 0 : i32
    return %arg0, %c0_i32 : i32, i32
  }
}

module attributes {stable_mosaic.version = 11 : i64} {
  func.func @_attn_block_kernel(%arg0: i32, %arg1: memref<1x16x64xf32, #tpu.memory_space<vmem>>, %arg2: memref<1x64xf32, #tpu.memory_space<vmem>>, %arg3: memref<1x64xf32, #tpu.memory_space<vmem>>, %arg4: memref<64x192xf32, #tpu.memory_space<vmem>>, %arg5: memref<1x192xf32, #tpu.memory_space<vmem>>, %arg6: memref<4x16x16xf32, #tpu.memory_space<vmem>>, %arg7: memref<1x16x16xf32, #tpu.memory_space<vmem>>, %arg8: memref<64x64xf32, #tpu.memory_space<vmem>>, %arg9: memref<1x64xf32, #tpu.memory_space<vmem>>, %arg10: memref<1x16x64xf32, #tpu.memory_space<vmem>>) attributes {dimension_semantics = [#tpu.dimension_semantics<parallel>], iteration_bounds = array<i64: 2>, scalar_prefetch = 0 : i64, scratch_operands = 0 : i64, tpu.core_type = #tpu.core_type<tc>, window_params = [{transform_indices = @transform_0, window_bounds = array<i64: 1, 16, 64>}, {pipeline_mode = #tpu.pipeline_mode<synchronous>, transform_indices = @transform_1, window_bounds = array<i64: 1, 64>}, {pipeline_mode = #tpu.pipeline_mode<synchronous>, transform_indices = @transform_2, window_bounds = array<i64: 1, 64>}, {pipeline_mode = #tpu.pipeline_mode<synchronous>, transform_indices = @transform_3, window_bounds = array<i64: 64, 192>}, {pipeline_mode = #tpu.pipeline_mode<synchronous>, transform_indices = @transform_4, window_bounds = array<i64: 1, 192>}, {pipeline_mode = #tpu.pipeline_mode<synchronous>, transform_indices = @transform_5, window_bounds = array<i64: 4, 16, 16>}, {pipeline_mode = #tpu.pipeline_mode<synchronous>, transform_indices = @transform_6, window_bounds = array<i64: 1, 16, 16>}, {pipeline_mode = #tpu.pipeline_mode<synchronous>, transform_indices = @transform_7, window_bounds = array<i64: 64, 64>}, {pipeline_mode = #tpu.pipeline_mode<synchronous>, transform_indices = @transform_8, window_bounds = array<i64: 1, 64>}, {transform_indices = @transform_9, window_bounds = array<i64: 1, 16, 64>}]} {
    %c0 = arith.constant 0 : index
    %c0_0 = arith.constant 0 : index
    %c0_1 = arith.constant 0 : index
    %0 = vector.load %arg1[%c0, %c0_0, %c0_1] : memref<1x16x64xf32, #tpu.memory_space<vmem>>, vector<1x16x64xf32>
    %1 = vector.shape_cast %0 : vector<1x16x64xf32> to vector<16x64xf32>
    %c0_2 = arith.constant 0 : index
    %c0_3 = arith.constant 0 : index
    %2 = vector.load %arg2[%c0_2, %c0_3] : memref<1x64xf32, #tpu.memory_space<vmem>>, vector<1x64xf32>
    %c0_4 = arith.constant 0 : index
    %c0_5 = arith.constant 0 : index
    %3 = vector.load %arg3[%c0_4, %c0_5] : memref<1x64xf32, #tpu.memory_space<vmem>>, vector<1x64xf32>
    %cst = arith.constant dense<0.000000e+00> : vector<16xf32>
    %4 = vector.multi_reduction <add>, %1, %cst [1] : vector<16x64xf32> to vector<16xf32>
    %5 = vector.shape_cast %4 : vector<16xf32> to vector<16x1xf32>
    %cst_6 = arith.constant 6.400000e+01 : f32
    %6 = vector.broadcast %cst_6 : f32 to vector<16x1xf32>
    %7 = arith.divf %5, %6 : vector<16x1xf32>
    %8 = vector.broadcast %7 : vector<16x1xf32> to vector<16x64xf32>
    %9 = arith.subf %1, %8 : vector<16x64xf32>
    %10 = arith.mulf %9, %9 : vector<16x64xf32>
    %cst_7 = arith.constant dense<0.000000e+00> : vector<16xf32>
    %11 = vector.multi_reduction <add>, %10, %cst_7 [1] : vector<16x64xf32> to vector<16xf32>
    %12 = vector.shape_cast %11 : vector<16xf32> to vector<16x1xf32>
    %cst_8 = arith.constant 6.400000e+01 : f32
    %13 = vector.broadcast %cst_8 : f32 to vector<16x1xf32>
    %14 = arith.divf %12, %13 : vector<16x1xf32>
    %cst_9 = arith.constant 9.99999974E-6 : f32
    %15 = vector.broadcast %cst_9 : f32 to vector<16x1xf32>
    %16 = arith.addf %14, %15 : vector<16x1xf32>
    %17 = math.rsqrt %16 : vector<16x1xf32>
    %18 = vector.broadcast %17 : vector<16x1xf32> to vector<16x64xf32>
    %19 = arith.mulf %9, %18 : vector<16x64xf32>
    %20 = vector.broadcast %2 : vector<1x64xf32> to vector<16x64xf32>
    %21 = arith.mulf %19, %20 : vector<16x64xf32>
    %22 = vector.broadcast %3 : vector<1x64xf32> to vector<16x64xf32>
    %23 = arith.addf %21, %22 : vector<16x64xf32>
    %c0_10 = arith.constant 0 : index
    %c0_11 = arith.constant 0 : index
    %24 = vector.load %arg4[%c0_10, %c0_11] : memref<64x192xf32, #tpu.memory_space<vmem>>, vector<64x192xf32>
    %25 = arith.truncf %23 : vector<16x64xf32> to vector<16x64xbf16>
    %26 = arith.truncf %24 : vector<64x192xf32> to vector<64x192xbf16>
    %cst_12 = arith.constant dense<0.000000e+00> : vector<16x192xf32>
    %27 = tpu.matmul %25, %26, %cst_12 {dimension_numbers = #tpu.dot_dimension_numbers<[1], [0], [0], [1], [0, 0, 1, 1], [], []>} : vector<16x64xbf16>, vector<64x192xbf16>, vector<16x192xf32> -> vector<16x192xf32>
    %c0_13 = arith.constant 0 : index
    %c0_14 = arith.constant 0 : index
    %28 = vector.load %arg5[%c0_13, %c0_14] : memref<1x192xf32, #tpu.memory_space<vmem>>, vector<1x192xf32>
    %29 = vector.broadcast %28 : vector<1x192xf32> to vector<16x192xf32>
    %30 = arith.addf %27, %29 : vector<16x192xf32>
    %31 = vector.shape_cast %30 : vector<16x192xf32> to vector<1x16x192xf32>
    %c0_15 = arith.constant 0 : index
    %c0_16 = arith.constant 0 : index
    %c0_17 = arith.constant 0 : index
    %32 = vector.load %arg6[%c0_15, %c0_16, %c0_17] : memref<4x16x16xf32, #tpu.memory_space<vmem>>, vector<4x16x16xf32>
    %c0_18 = arith.constant 0 : index
    %c0_19 = arith.constant 0 : index
    %c0_20 = arith.constant 0 : index
    %33 = vector.load %arg7[%c0_18, %c0_19, %c0_20] : memref<1x16x16xf32, #tpu.memory_space<vmem>>, vector<1x16x16xf32>
    %c0_21 = arith.constant 0 : index
    %c0_22 = arith.constant 0 : index
    %34 = vector.load %arg8[%c0_21, %c0_22] : memref<64x64xf32, #tpu.memory_space<vmem>>, vector<64x64xf32>
    %cst_23 = arith.constant 0.000000e+00 : f32
    %35 = vector.broadcast %cst_23 : f32 to vector<16x64xf32>
    %36 = vector.extract_strided_slice %31 {offsets = [0, 0, 0], sizes = [1, 16, 16], strides = [1, 1, 1]} : vector<1x16x192xf32> to vector<1x16x16xf32>
    %cst_24 = arith.constant 2.500000e-01 : f32
    %37 = vector.broadcast %cst_24 : f32 to vector<1x16x16xf32>
    %38 = arith.mulf %36, %37 : vector<1x16x16xf32>
    %39 = vector.extract_strided_slice %31 {offsets = [0, 0, 64], sizes = [1, 16, 16], strides = [1, 1, 1]} : vector<1x16x192xf32> to vector<1x16x16xf32>
    %40 = vector.extract_strided_slice %31 {offsets = [0, 0, 128], sizes = [1, 16, 16], strides = [1, 1, 1]} : vector<1x16x192xf32> to vector<1x16x16xf32>
    %41 = arith.truncf %38 : vector<1x16x16xf32> to vector<1x16x16xbf16>
    %42 = arith.truncf %39 : vector<1x16x16xf32> to vector<1x16x16xbf16>
    %cst_25 = arith.constant dense<0.000000e+00> : vector<1x16x16xf32>
    %43 = tpu.matmul %41, %42, %cst_25 {dimension_numbers = #tpu.dot_dimension_numbers<[2], [2], [1], [1], [0, 0, 0, 1, 1, 1], [0], [0]>} : vector<1x16x16xbf16>, vector<1x16x16xbf16>, vector<1x16x16xf32> -> vector<1x16x16xf32>
    %44 = vector.extract_strided_slice %32 {offsets = [0, 0, 0], sizes = [1, 16, 16], strides = [1, 1, 1]} : vector<4x16x16xf32> to vector<1x16x16xf32>
    %45 = vector.shape_cast %44 : vector<1x16x16xf32> to vector<16x16xf32>
    %46 = vector.shape_cast %45 : vector<16x16xf32> to vector<1x16x16xf32>
    %47 = arith.addf %43, %46 : vector<1x16x16xf32>
    %48 = arith.addf %47, %33 : vector<1x16x16xf32>
    %cst_26 = arith.constant dense<0xFF800000> : vector<1x16xf32>
    %49 = vector.multi_reduction <maximumf>, %48, %cst_26 [2] : vector<1x16x16xf32> to vector<1x16xf32>
    %50 = vector.shape_cast %49 : vector<1x16xf32> to vector<1x16x1xf32>
    %51 = vector.broadcast %50 : vector<1x16x1xf32> to vector<1x16x16xf32>
    %52 = arith.subf %48, %51 : vector<1x16x16xf32>
    %53 = math.exp %52 : vector<1x16x16xf32>
    %cst_27 = arith.constant dense<0.000000e+00> : vector<1x16xf32>
    %54 = vector.multi_reduction <add>, %53, %cst_27 [2] : vector<1x16x16xf32> to vector<1x16xf32>
    %55 = vector.shape_cast %54 : vector<1x16xf32> to vector<1x16x1xf32>
    %56 = tpu.reciprocal %55 {approx = true} : vector<1x16x1xf32> -> vector<1x16x1xf32>
    %57 = vector.broadcast %56 : vector<1x16x1xf32> to vector<1x16x16xf32>
    %58 = arith.mulf %53, %57 : vector<1x16x16xf32>
    %59 = arith.truncf %58 : vector<1x16x16xf32> to vector<1x16x16xbf16>
    %60 = arith.truncf %40 : vector<1x16x16xf32> to vector<1x16x16xbf16>
    %cst_28 = arith.constant dense<0.000000e+00> : vector<1x16x16xf32>
    %61 = tpu.matmul %59, %60, %cst_28 {dimension_numbers = #tpu.dot_dimension_numbers<[2], [1], [1], [2], [0, 0, 0, 1, 1, 2], [0], [0]>} : vector<1x16x16xbf16>, vector<1x16x16xbf16>, vector<1x16x16xf32> -> vector<1x16x16xf32>
    %62 = vector.shape_cast %61 : vector<1x16x16xf32> to vector<16x16xf32>
    %63 = vector.extract_strided_slice %34 {offsets = [0, 0], sizes = [16, 64], strides = [1, 1]} : vector<64x64xf32> to vector<16x64xf32>
    %64 = arith.truncf %62 : vector<16x16xf32> to vector<16x16xbf16>
    %65 = arith.truncf %63 : vector<16x64xf32> to vector<16x64xbf16>
    %cst_29 = arith.constant dense<0.000000e+00> : vector<16x64xf32>
    %66 = tpu.matmul %64, %65, %cst_29 {dimension_numbers = #tpu.dot_dimension_numbers<[1], [0], [0], [1], [0, 0, 1, 1], [], []>} : vector<16x16xbf16>, vector<16x64xbf16>, vector<16x64xf32> -> vector<16x64xf32>
    %67 = arith.addf %35, %66 : vector<16x64xf32>
    %68 = vector.extract_strided_slice %31 {offsets = [0, 0, 16], sizes = [1, 16, 16], strides = [1, 1, 1]} : vector<1x16x192xf32> to vector<1x16x16xf32>
    %cst_30 = arith.constant 2.500000e-01 : f32
    %69 = vector.broadcast %cst_30 : f32 to vector<1x16x16xf32>
    %70 = arith.mulf %68, %69 : vector<1x16x16xf32>
    %71 = vector.extract_strided_slice %31 {offsets = [0, 0, 80], sizes = [1, 16, 16], strides = [1, 1, 1]} : vector<1x16x192xf32> to vector<1x16x16xf32>
    %72 = vector.extract_strided_slice %31 {offsets = [0, 0, 144], sizes = [1, 16, 16], strides = [1, 1, 1]} : vector<1x16x192xf32> to vector<1x16x16xf32>
    %73 = arith.truncf %70 : vector<1x16x16xf32> to vector<1x16x16xbf16>
    %74 = arith.truncf %71 : vector<1x16x16xf32> to vector<1x16x16xbf16>
    %cst_31 = arith.constant dense<0.000000e+00> : vector<1x16x16xf32>
    %75 = tpu.matmul %73, %74, %cst_31 {dimension_numbers = #tpu.dot_dimension_numbers<[2], [2], [1], [1], [0, 0, 0, 1, 1, 1], [0], [0]>} : vector<1x16x16xbf16>, vector<1x16x16xbf16>, vector<1x16x16xf32> -> vector<1x16x16xf32>
    %76 = vector.extract_strided_slice %32 {offsets = [1, 0, 0], sizes = [1, 16, 16], strides = [1, 1, 1]} : vector<4x16x16xf32> to vector<1x16x16xf32>
    %77 = vector.shape_cast %76 : vector<1x16x16xf32> to vector<16x16xf32>
    %78 = vector.shape_cast %77 : vector<16x16xf32> to vector<1x16x16xf32>
    %79 = arith.addf %75, %78 : vector<1x16x16xf32>
    %80 = arith.addf %79, %33 : vector<1x16x16xf32>
    %cst_32 = arith.constant dense<0xFF800000> : vector<1x16xf32>
    %81 = vector.multi_reduction <maximumf>, %80, %cst_32 [2] : vector<1x16x16xf32> to vector<1x16xf32>
    %82 = vector.shape_cast %81 : vector<1x16xf32> to vector<1x16x1xf32>
    %83 = vector.broadcast %82 : vector<1x16x1xf32> to vector<1x16x16xf32>
    %84 = arith.subf %80, %83 : vector<1x16x16xf32>
    %85 = math.exp %84 : vector<1x16x16xf32>
    %cst_33 = arith.constant dense<0.000000e+00> : vector<1x16xf32>
    %86 = vector.multi_reduction <add>, %85, %cst_33 [2] : vector<1x16x16xf32> to vector<1x16xf32>
    %87 = vector.shape_cast %86 : vector<1x16xf32> to vector<1x16x1xf32>
    %88 = tpu.reciprocal %87 {approx = true} : vector<1x16x1xf32> -> vector<1x16x1xf32>
    %89 = vector.broadcast %88 : vector<1x16x1xf32> to vector<1x16x16xf32>
    %90 = arith.mulf %85, %89 : vector<1x16x16xf32>
    %91 = arith.truncf %90 : vector<1x16x16xf32> to vector<1x16x16xbf16>
    %92 = arith.truncf %72 : vector<1x16x16xf32> to vector<1x16x16xbf16>
    %cst_34 = arith.constant dense<0.000000e+00> : vector<1x16x16xf32>
    %93 = tpu.matmul %91, %92, %cst_34 {dimension_numbers = #tpu.dot_dimension_numbers<[2], [1], [1], [2], [0, 0, 0, 1, 1, 2], [0], [0]>} : vector<1x16x16xbf16>, vector<1x16x16xbf16>, vector<1x16x16xf32> -> vector<1x16x16xf32>
    %94 = vector.shape_cast %93 : vector<1x16x16xf32> to vector<16x16xf32>
    %95 = vector.extract_strided_slice %34 {offsets = [16, 0], sizes = [16, 64], strides = [1, 1]} : vector<64x64xf32> to vector<16x64xf32>
    %96 = arith.truncf %94 : vector<16x16xf32> to vector<16x16xbf16>
    %97 = arith.truncf %95 : vector<16x64xf32> to vector<16x64xbf16>
    %cst_35 = arith.constant dense<0.000000e+00> : vector<16x64xf32>
    %98 = tpu.matmul %96, %97, %cst_35 {dimension_numbers = #tpu.dot_dimension_numbers<[1], [0], [0], [1], [0, 0, 1, 1], [], []>} : vector<16x16xbf16>, vector<16x64xbf16>, vector<16x64xf32> -> vector<16x64xf32>
    %99 = arith.addf %67, %98 : vector<16x64xf32>
    %100 = vector.extract_strided_slice %31 {offsets = [0, 0, 32], sizes = [1, 16, 16], strides = [1, 1, 1]} : vector<1x16x192xf32> to vector<1x16x16xf32>
    %cst_36 = arith.constant 2.500000e-01 : f32
    %101 = vector.broadcast %cst_36 : f32 to vector<1x16x16xf32>
    %102 = arith.mulf %100, %101 : vector<1x16x16xf32>
    %103 = vector.extract_strided_slice %31 {offsets = [0, 0, 96], sizes = [1, 16, 16], strides = [1, 1, 1]} : vector<1x16x192xf32> to vector<1x16x16xf32>
    %104 = vector.extract_strided_slice %31 {offsets = [0, 0, 160], sizes = [1, 16, 16], strides = [1, 1, 1]} : vector<1x16x192xf32> to vector<1x16x16xf32>
    %105 = arith.truncf %102 : vector<1x16x16xf32> to vector<1x16x16xbf16>
    %106 = arith.truncf %103 : vector<1x16x16xf32> to vector<1x16x16xbf16>
    %cst_37 = arith.constant dense<0.000000e+00> : vector<1x16x16xf32>
    %107 = tpu.matmul %105, %106, %cst_37 {dimension_numbers = #tpu.dot_dimension_numbers<[2], [2], [1], [1], [0, 0, 0, 1, 1, 1], [0], [0]>} : vector<1x16x16xbf16>, vector<1x16x16xbf16>, vector<1x16x16xf32> -> vector<1x16x16xf32>
    %108 = vector.extract_strided_slice %32 {offsets = [2, 0, 0], sizes = [1, 16, 16], strides = [1, 1, 1]} : vector<4x16x16xf32> to vector<1x16x16xf32>
    %109 = vector.shape_cast %108 : vector<1x16x16xf32> to vector<16x16xf32>
    %110 = vector.shape_cast %109 : vector<16x16xf32> to vector<1x16x16xf32>
    %111 = arith.addf %107, %110 : vector<1x16x16xf32>
    %112 = arith.addf %111, %33 : vector<1x16x16xf32>
    %cst_38 = arith.constant dense<0xFF800000> : vector<1x16xf32>
    %113 = vector.multi_reduction <maximumf>, %112, %cst_38 [2] : vector<1x16x16xf32> to vector<1x16xf32>
    %114 = vector.shape_cast %113 : vector<1x16xf32> to vector<1x16x1xf32>
    %115 = vector.broadcast %114 : vector<1x16x1xf32> to vector<1x16x16xf32>
    %116 = arith.subf %112, %115 : vector<1x16x16xf32>
    %117 = math.exp %116 : vector<1x16x16xf32>
    %cst_39 = arith.constant dense<0.000000e+00> : vector<1x16xf32>
    %118 = vector.multi_reduction <add>, %117, %cst_39 [2] : vector<1x16x16xf32> to vector<1x16xf32>
    %119 = vector.shape_cast %118 : vector<1x16xf32> to vector<1x16x1xf32>
    %120 = tpu.reciprocal %119 {approx = true} : vector<1x16x1xf32> -> vector<1x16x1xf32>
    %121 = vector.broadcast %120 : vector<1x16x1xf32> to vector<1x16x16xf32>
    %122 = arith.mulf %117, %121 : vector<1x16x16xf32>
    %123 = arith.truncf %122 : vector<1x16x16xf32> to vector<1x16x16xbf16>
    %124 = arith.truncf %104 : vector<1x16x16xf32> to vector<1x16x16xbf16>
    %cst_40 = arith.constant dense<0.000000e+00> : vector<1x16x16xf32>
    %125 = tpu.matmul %123, %124, %cst_40 {dimension_numbers = #tpu.dot_dimension_numbers<[2], [1], [1], [2], [0, 0, 0, 1, 1, 2], [0], [0]>} : vector<1x16x16xbf16>, vector<1x16x16xbf16>, vector<1x16x16xf32> -> vector<1x16x16xf32>
    %126 = vector.shape_cast %125 : vector<1x16x16xf32> to vector<16x16xf32>
    %127 = vector.extract_strided_slice %34 {offsets = [32, 0], sizes = [16, 64], strides = [1, 1]} : vector<64x64xf32> to vector<16x64xf32>
    %128 = arith.truncf %126 : vector<16x16xf32> to vector<16x16xbf16>
    %129 = arith.truncf %127 : vector<16x64xf32> to vector<16x64xbf16>
    %cst_41 = arith.constant dense<0.000000e+00> : vector<16x64xf32>
    %130 = tpu.matmul %128, %129, %cst_41 {dimension_numbers = #tpu.dot_dimension_numbers<[1], [0], [0], [1], [0, 0, 1, 1], [], []>} : vector<16x16xbf16>, vector<16x64xbf16>, vector<16x64xf32> -> vector<16x64xf32>
    %131 = arith.addf %99, %130 : vector<16x64xf32>
    %132 = vector.extract_strided_slice %31 {offsets = [0, 0, 48], sizes = [1, 16, 16], strides = [1, 1, 1]} : vector<1x16x192xf32> to vector<1x16x16xf32>
    %cst_42 = arith.constant 2.500000e-01 : f32
    %133 = vector.broadcast %cst_42 : f32 to vector<1x16x16xf32>
    %134 = arith.mulf %132, %133 : vector<1x16x16xf32>
    %135 = vector.extract_strided_slice %31 {offsets = [0, 0, 112], sizes = [1, 16, 16], strides = [1, 1, 1]} : vector<1x16x192xf32> to vector<1x16x16xf32>
    %136 = vector.extract_strided_slice %31 {offsets = [0, 0, 176], sizes = [1, 16, 16], strides = [1, 1, 1]} : vector<1x16x192xf32> to vector<1x16x16xf32>
    %137 = arith.truncf %134 : vector<1x16x16xf32> to vector<1x16x16xbf16>
    %138 = arith.truncf %135 : vector<1x16x16xf32> to vector<1x16x16xbf16>
    %cst_43 = arith.constant dense<0.000000e+00> : vector<1x16x16xf32>
    %139 = tpu.matmul %137, %138, %cst_43 {dimension_numbers = #tpu.dot_dimension_numbers<[2], [2], [1], [1], [0, 0, 0, 1, 1, 1], [0], [0]>} : vector<1x16x16xbf16>, vector<1x16x16xbf16>, vector<1x16x16xf32> -> vector<1x16x16xf32>
    %140 = vector.extract_strided_slice %32 {offsets = [3, 0, 0], sizes = [1, 16, 16], strides = [1, 1, 1]} : vector<4x16x16xf32> to vector<1x16x16xf32>
    %141 = vector.shape_cast %140 : vector<1x16x16xf32> to vector<16x16xf32>
    %142 = vector.shape_cast %141 : vector<16x16xf32> to vector<1x16x16xf32>
    %143 = arith.addf %139, %142 : vector<1x16x16xf32>
    %144 = arith.addf %143, %33 : vector<1x16x16xf32>
    %cst_44 = arith.constant dense<0xFF800000> : vector<1x16xf32>
    %145 = vector.multi_reduction <maximumf>, %144, %cst_44 [2] : vector<1x16x16xf32> to vector<1x16xf32>
    %146 = vector.shape_cast %145 : vector<1x16xf32> to vector<1x16x1xf32>
    %147 = vector.broadcast %146 : vector<1x16x1xf32> to vector<1x16x16xf32>
    %148 = arith.subf %144, %147 : vector<1x16x16xf32>
    %149 = math.exp %148 : vector<1x16x16xf32>
    %cst_45 = arith.constant dense<0.000000e+00> : vector<1x16xf32>
    %150 = vector.multi_reduction <add>, %149, %cst_45 [2] : vector<1x16x16xf32> to vector<1x16xf32>
    %151 = vector.shape_cast %150 : vector<1x16xf32> to vector<1x16x1xf32>
    %152 = tpu.reciprocal %151 {approx = true} : vector<1x16x1xf32> -> vector<1x16x1xf32>
    %153 = vector.broadcast %152 : vector<1x16x1xf32> to vector<1x16x16xf32>
    %154 = arith.mulf %149, %153 : vector<1x16x16xf32>
    %155 = arith.truncf %154 : vector<1x16x16xf32> to vector<1x16x16xbf16>
    %156 = arith.truncf %136 : vector<1x16x16xf32> to vector<1x16x16xbf16>
    %cst_46 = arith.constant dense<0.000000e+00> : vector<1x16x16xf32>
    %157 = tpu.matmul %155, %156, %cst_46 {dimension_numbers = #tpu.dot_dimension_numbers<[2], [1], [1], [2], [0, 0, 0, 1, 1, 2], [0], [0]>} : vector<1x16x16xbf16>, vector<1x16x16xbf16>, vector<1x16x16xf32> -> vector<1x16x16xf32>
    %158 = vector.shape_cast %157 : vector<1x16x16xf32> to vector<16x16xf32>
    %159 = vector.extract_strided_slice %34 {offsets = [48, 0], sizes = [16, 64], strides = [1, 1]} : vector<64x64xf32> to vector<16x64xf32>
    %160 = arith.truncf %158 : vector<16x16xf32> to vector<16x16xbf16>
    %161 = arith.truncf %159 : vector<16x64xf32> to vector<16x64xbf16>
    %cst_47 = arith.constant dense<0.000000e+00> : vector<16x64xf32>
    %162 = tpu.matmul %160, %161, %cst_47 {dimension_numbers = #tpu.dot_dimension_numbers<[1], [0], [0], [1], [0, 0, 1, 1], [], []>} : vector<16x16xbf16>, vector<16x64xbf16>, vector<16x64xf32> -> vector<16x64xf32>
    %163 = arith.addf %131, %162 : vector<16x64xf32>
    %c0_48 = arith.constant 0 : index
    %c0_49 = arith.constant 0 : index
    %164 = vector.load %arg9[%c0_48, %c0_49] : memref<1x64xf32, #tpu.memory_space<vmem>>, vector<1x64xf32>
    %165 = vector.broadcast %164 : vector<1x64xf32> to vector<16x64xf32>
    %166 = arith.addf %163, %165 : vector<16x64xf32>
    %167 = arith.addf %166, %1 : vector<16x64xf32>
    %168 = vector.shape_cast %167 : vector<16x64xf32> to vector<1x16x64xf32>
    %c0_50 = arith.constant 0 : index
    %c0_51 = arith.constant 0 : index
    %c0_52 = arith.constant 0 : index
    %169 = vector.load %arg10[%c0_50, %c0_51, %c0_52] : memref<1x16x64xf32, #tpu.memory_space<vmem>>, vector<1x16x64xf32>
    tpu.vector_store %arg10[%c0_50, %c0_51, %c0_52], %168 {strides = array<i32>} : memref<1x16x64xf32, #tpu.memory_space<vmem>>, vector<1x16x64xf32>,
    return
  }
  func.func @transform_0(%arg0: i32) -> (i32, i32, i32) {
    %c0_i32 = arith.constant 0 : i32
    %c0_i32_0 = arith.constant 0 : i32
    %c0_i32_1 = arith.constant 0 : i32
    return %arg0, %c0_i32, %c0_i32_0 : i32, i32, i32
  }
  func.func @transform_1(%arg0: i32) -> (i32, i32) {
    %c0_i32 = arith.constant 0 : i32
    %c0_i32_0 = arith.constant 0 : i32
    %c0_i32_1 = arith.constant 0 : i32
    return %c0_i32, %c0_i32_0 : i32, i32
  }
  func.func @transform_2(%arg0: i32) -> (i32, i32) {
    %c0_i32 = arith.constant 0 : i32
    %c0_i32_0 = arith.constant 0 : i32
    %c0_i32_1 = arith.constant 0 : i32
    return %c0_i32, %c0_i32_0 : i32, i32
  }
  func.func @transform_3(%arg0: i32) -> (i32, i32) {
    %c0_i32 = arith.constant 0 : i32
    %c0_i32_0 = arith.constant 0 : i32
    %c0_i32_1 = arith.constant 0 : i32
    return %c0_i32, %c0_i32_0 : i32, i32
  }
  func.func @transform_4(%arg0: i32) -> (i32, i32) {
    %c0_i32 = arith.constant 0 : i32
    %c0_i32_0 = arith.constant 0 : i32
    %c0_i32_1 = arith.constant 0 : i32
    return %c0_i32, %c0_i32_0 : i32, i32
  }
  func.func @transform_5(%arg0: i32) -> (i32, i32, i32) {
    %c0_i32 = arith.constant 0 : i32
    %c0_i32_0 = arith.constant 0 : i32
    %c0_i32_1 = arith.constant 0 : i32
    %c0_i32_2 = arith.constant 0 : i32
    return %c0_i32, %c0_i32_0, %c0_i32_1 : i32, i32, i32
  }
  func.func @transform_6(%arg0: i32) -> (i32, i32, i32) {
    %c0_i32 = arith.constant 0 : i32
    %c0_i32_0 = arith.constant 0 : i32
    %c0_i32_1 = arith.constant 0 : i32
    %c0_i32_2 = arith.constant 0 : i32
    return %c0_i32, %c0_i32_0, %c0_i32_1 : i32, i32, i32
  }
  func.func @transform_7(%arg0: i32) -> (i32, i32) {
    %c0_i32 = arith.constant 0 : i32
    %c0_i32_0 = arith.constant 0 : i32
    %c0_i32_1 = arith.constant 0 : i32
    return %c0_i32, %c0_i32_0 : i32, i32
  }
  func.func @transform_8(%arg0: i32) -> (i32, i32) {
    %c0_i32 = arith.constant 0 : i32
    %c0_i32_0 = arith.constant 0 : i32
    %c0_i32_1 = arith.constant 0 : i32
    return %c0_i32, %c0_i32_0 : i32, i32
  }
  func.func @transform_9(%arg0: i32) -> (i32, i32, i32) {
    %c0_i32 = arith.constant 0 : i32
    %c0_i32_0 = arith.constant 0 : i32
    %c0_i32_1 = arith.constant 0 : i32
    return %arg0, %c0_i32, %c0_i32_0 : i32, i32, i32
  }
}

module attributes {stable_mosaic.version = 11 : i64} {
  func.func @_head_kernel(%arg0: i32, %arg1: memref<2x16x64xf32, #tpu.memory_space<vmem>>, %arg2: memref<1x64xf32, #tpu.memory_space<vmem>>, %arg3: memref<1x64xf32, #tpu.memory_space<vmem>>, %arg4: memref<64x4xf32, #tpu.memory_space<vmem>>, %arg5: memref<1x4xf32, #tpu.memory_space<vmem>>, %arg6: memref<2x4xf32, #tpu.memory_space<vmem>>) attributes {dimension_semantics = [#tpu.dimension_semantics<arbitrary>], iteration_bounds = array<i64: 1>, scalar_prefetch = 0 : i64, scratch_operands = 0 : i64, tpu.core_type = #tpu.core_type<tc>, window_params = [{pipeline_mode = #tpu.pipeline_mode<synchronous>, transform_indices = @transform_0, window_bounds = array<i64: 2, 16, 64>}, {pipeline_mode = #tpu.pipeline_mode<synchronous>, transform_indices = @transform_1, window_bounds = array<i64: 1, 64>}, {pipeline_mode = #tpu.pipeline_mode<synchronous>, transform_indices = @transform_2, window_bounds = array<i64: 1, 64>}, {pipeline_mode = #tpu.pipeline_mode<synchronous>, transform_indices = @transform_3, window_bounds = array<i64: 64, 4>}, {pipeline_mode = #tpu.pipeline_mode<synchronous>, transform_indices = @transform_4, window_bounds = array<i64: 1, 4>}, {pipeline_mode = #tpu.pipeline_mode<synchronous>, transform_indices = @transform_5, window_bounds = array<i64: 2, 4>}]} {
    %c0 = arith.constant 0 : index
    %c0_0 = arith.constant 0 : index
    %c0_1 = arith.constant 0 : index
    %0 = vector.load %arg1[%c0, %c0_0, %c0_1] : memref<2x16x64xf32, #tpu.memory_space<vmem>>, vector<2x16x64xf32>
    %c0_2 = arith.constant 0 : index
    %c0_3 = arith.constant 0 : index
    %1 = vector.load %arg2[%c0_2, %c0_3] : memref<1x64xf32, #tpu.memory_space<vmem>>, vector<1x64xf32>
    %c0_4 = arith.constant 0 : index
    %c0_5 = arith.constant 0 : index
    %2 = vector.load %arg3[%c0_4, %c0_5] : memref<1x64xf32, #tpu.memory_space<vmem>>, vector<1x64xf32>
    %cst = arith.constant dense<0.000000e+00> : vector<2x16xf32>
    %3 = vector.multi_reduction <add>, %0, %cst [2] : vector<2x16x64xf32> to vector<2x16xf32>
    %4 = vector.shape_cast %3 : vector<2x16xf32> to vector<2x16x1xf32>
    %cst_6 = arith.constant 6.400000e+01 : f32
    %5 = vector.broadcast %cst_6 : f32 to vector<2x16x1xf32>
    %6 = arith.divf %4, %5 : vector<2x16x1xf32>
    %7 = vector.broadcast %6 : vector<2x16x1xf32> to vector<2x16x64xf32>
    %8 = arith.subf %0, %7 : vector<2x16x64xf32>
    %9 = arith.mulf %8, %8 : vector<2x16x64xf32>
    %cst_7 = arith.constant dense<0.000000e+00> : vector<2x16xf32>
    %10 = vector.multi_reduction <add>, %9, %cst_7 [2] : vector<2x16x64xf32> to vector<2x16xf32>
    %11 = vector.shape_cast %10 : vector<2x16xf32> to vector<2x16x1xf32>
    %cst_8 = arith.constant 6.400000e+01 : f32
    %12 = vector.broadcast %cst_8 : f32 to vector<2x16x1xf32>
    %13 = arith.divf %11, %12 : vector<2x16x1xf32>
    %cst_9 = arith.constant 9.99999974E-6 : f32
    %14 = vector.broadcast %cst_9 : f32 to vector<2x16x1xf32>
    %15 = arith.addf %13, %14 : vector<2x16x1xf32>
    %16 = math.rsqrt %15 : vector<2x16x1xf32>
    %17 = vector.broadcast %16 : vector<2x16x1xf32> to vector<2x16x64xf32>
    %18 = arith.mulf %8, %17 : vector<2x16x64xf32>
    %19 = vector.shape_cast %1 : vector<1x64xf32> to vector<1x1x64xf32>
    %20 = vector.broadcast %19 : vector<1x1x64xf32> to vector<2x16x64xf32>
    %21 = arith.mulf %18, %20 : vector<2x16x64xf32>
    %22 = vector.shape_cast %2 : vector<1x64xf32> to vector<1x1x64xf32>
    %23 = vector.broadcast %22 : vector<1x1x64xf32> to vector<2x16x64xf32>
    %24 = arith.addf %21, %23 : vector<2x16x64xf32>
    %cst_10 = arith.constant dense<0.000000e+00> : vector<2x64xf32>
    %25 = vector.multi_reduction <add>, %24, %cst_10 [1] : vector<2x16x64xf32> to vector<2x64xf32>
    %cst_11 = arith.constant 1.600000e+01 : f32
    %26 = vector.broadcast %cst_11 : f32 to vector<2x64xf32>
    %27 = arith.divf %25, %26 : vector<2x64xf32>
    %c0_12 = arith.constant 0 : index
    %c0_13 = arith.constant 0 : index
    %28 = vector.load %arg4[%c0_12, %c0_13] : memref<64x4xf32, #tpu.memory_space<vmem>>, vector<64x4xf32>
    %29 = arith.truncf %27 : vector<2x64xf32> to vector<2x64xbf16>
    %30 = arith.truncf %28 : vector<64x4xf32> to vector<64x4xbf16>
    %cst_14 = arith.constant dense<0.000000e+00> : vector<2x4xf32>
    %31 = tpu.matmul %29, %30, %cst_14 {dimension_numbers = #tpu.dot_dimension_numbers<[1], [0], [0], [1], [0, 0, 1, 1], [], []>} : vector<2x64xbf16>, vector<64x4xbf16>, vector<2x4xf32> -> vector<2x4xf32>
    %c0_15 = arith.constant 0 : index
    %c0_16 = arith.constant 0 : index
    %32 = vector.load %arg5[%c0_15, %c0_16] : memref<1x4xf32, #tpu.memory_space<vmem>>, vector<1x4xf32>
    %33 = vector.broadcast %32 : vector<1x4xf32> to vector<2x4xf32>
    %34 = arith.addf %31, %33 : vector<2x4xf32>
    %c0_17 = arith.constant 0 : index
    %c0_18 = arith.constant 0 : index
    %35 = vector.load %arg6[%c0_17, %c0_18] : memref<2x4xf32, #tpu.memory_space<vmem>>, vector<2x4xf32>
    tpu.vector_store %arg6[%c0_17, %c0_18], %34 {strides = array<i32>} : memref<2x4xf32, #tpu.memory_space<vmem>>, vector<2x4xf32>,
    return
  }
  func.func @transform_0(%arg0: i32) -> (i32, i32, i32) {
    %c0_i32 = arith.constant 0 : i32
    %c0_i32_0 = arith.constant 0 : i32
    %c0_i32_1 = arith.constant 0 : i32
    %c0_i32_2 = arith.constant 0 : i32
    return %c0_i32, %c0_i32_0, %c0_i32_1 : i32, i32, i32
  }
  func.func @transform_1(%arg0: i32) -> (i32, i32) {
    %c0_i32 = arith.constant 0 : i32
    %c0_i32_0 = arith.constant 0 : i32
    %c0_i32_1 = arith.constant 0 : i32
    return %c0_i32, %c0_i32_0 : i32, i32
  }
  func.func @transform_2(%arg0: i32) -> (i32, i32) {
    %c0_i32 = arith.constant 0 : i32
    %c0_i32_0 = arith.constant 0 : i32
    %c0_i32_1 = arith.constant 0 : i32
    return %c0_i32, %c0_i32_0 : i32, i32
  }
  func.func @transform_3(%arg0: i32) -> (i32, i32) {
    %c0_i32 = arith.constant 0 : i32
    %c0_i32_0 = arith.constant 0 : i32
    %c0_i32_1 = arith.constant 0 : i32
    return %c0_i32, %c0_i32_0 : i32, i32
  }
  func.func @transform_4(%arg0: i32) -> (i32, i32) {
    %c0_i32 = arith.constant 0 : i32
    %c0_i32_0 = arith.constant 0 : i32
    %c0_i32_1 = arith.constant 0 : i32
    return %c0_i32, %c0_i32_0 : i32, i32
  }
  func.func @transform_5(%arg0: i32) -> (i32, i32) {
    %c0_i32 = arith.constant 0 : i32
    %c0_i32_0 = arith.constant 0 : i32
    %c0_i32_1 = arith.constant 0 : i32
    return %c0_i32, %c0_i32_0 : i32, i32
  }
}

</mosaic_0001>

<llo_original>
// kernel: swin_forward.11
$region0: #{swin_forward.11}
  #allocation0 [shape = 'u32[]', space=smem, size = 0x4, offset = 0x4, fixed_abs, tag = 'smem constant byte address 0x4 - core index']
  #allocation1 [shape = 'u32[144,128]{1,0:T(1,128)}', space=vmem, size = 0x12000, scoped, tag = 'internal scratch']
  %s0 = inlined_call_operand.vmem [shape: f32[128,48], index: 0, kind: input, shape index: {}]
  %s1 = inlined_call_operand.vmem [shape: f32[48,32], index: 1, kind: input, shape index: {}]
  %s2 = inlined_call_operand.vmem [shape: f32[1,32], index: 2, kind: input, shape index: {}]
  %s3 = inlined_call_operand.vmem [shape: f32[1,32], index: 3, kind: input, shape index: {}]
  %s4 = inlined_call_operand.vmem [shape: f32[1,32], index: 4, kind: input, shape index: {}]
  %s5 = inlined_call_operand.vmem [shape: f32[128,32], index: 5, kind: output, shape index: {}]
  %s6 = sld [smem:[#allocation0]]
  $region53: #{swin_forward.11} parent=0
    _
  %s8 = ssub.s32 1, %s6
  %s9 = scalar_select 0, %s8, %s6
  loop: start=0, step=1, limit=4
  $region2: #{swin_forward.11} parent=0 // loop_pre_header
    _
  $region3: #{swin_forward.11} parent=0 // loop_header
    %s11 = sphi 0, %s15
    %p12 = scmp.ge.s32.totalorder %s11, 4
    %s21 = sphi 0, %s23
    %s24 = sphi 0, %s21
    %s25 = sphi 0, %s24
    %s41 = sphi 0, %s25
    %s45 = sphi 0, %s45
    %s47 = sphi 0, %s45
    %s48 = sphi 0, %s47
    %s62 = sphi 0, %s48
    %s66 = sphi 0, %s66
    %s68 = sphi 0, %s66
    %s69 = sphi 0, %s68
    %s83 = sphi 0, %s69
    %s87 = sphi 0, %s87
    %s89 = sphi 0, %s87
    %s90 = sphi 0, %s89
    %s104 = sphi 0, %s90
    %s108 = sphi 0, %s108
    %s110 = sphi 0, %s108
    %s111 = sphi 0, %s110
    %s125 = sphi 0, %s111
    %s131 = sphi 0, %s133
    %s134 = sphi 0, %s131
    %s135 = sphi 0, %s134
    %s151 = sphi 0, %s135
  $region4: #{swin_forward.11} parent=0 // loop_header_branch
    %14 = sbr.rel (%p12) target = $region8
  $region5: #{swin_forward.11} parent=0 // loop_body
    %s16 = ssub.s32 %s11, 1
    %s17 = ssub.s32 %s11, 2
    %s18 = sadd.s32 %s11, 1
    %s19 = ssub.s32 %s11, %s18
    %p20 = scmp.eq.s32.totalorder %s19, 0
    %s22 = sadd.s32 %s21, 1
    %s23 = scalar_select %p20, %s21, %s22
    %p26 = pneg %p20
    %p27 = scmp.eq.s32.totalorder %s11, 1
    %p28 = por %p26, %p27
    %p29 = scmp.ne.s32.totalorder %s21, %s24
    %p30 = scmp.eq.s32.totalorder %s11, 0
    %p31 = por %p29, %p30
    %p32 = scmp.ne.s32.totalorder %s21, %s24
    %p33 = scmp.eq.s32.totalorder %s16, 1
    %p34 = por %p32, %p33
    %p35 = scmp.ne.s32.totalorder %s24, %s25
    %p36 = scmp.eq.s32.totalorder %s16, 0
    %p37 = por %p35, %p36
    %p38 = scmp.ne.s32.totalorder %s24, %s25
    %p39 = scmp.eq.s32.totalorder %s17, 1
    %p40 = por %p38, %p39
    %p42 = scmp.ne.s32.totalorder %s25, %s41
    %p43 = scmp.eq.s32.totalorder %s17, 0
    %p44 = por %p42, %p43
    %s46 = sadd.s32 %s45, 1
    %p49 = scmp.eq.s32.totalorder %s11, 1
    %p50 = scmp.ne.s32.totalorder %s45, %s47
    %p51 = scmp.eq.s32.totalorder %s11, 0
    %p52 = por %p50, %p51
    %p53 = scmp.ne.s32.totalorder %s45, %s47
    %p54 = scmp.eq.s32.totalorder %s16, 1
    %p55 = por %p53, %p54
    %p56 = scmp.ne.s32.totalorder %s47, %s48
    %p57 = scmp.eq.s32.totalorder %s16, 0
    %p58 = por %p56, %p57
    %p59 = scmp.ne.s32.totalorder %s47, %s48
    %p60 = scmp.eq.s32.totalorder %s17, 1
    %p61 = por %p59, %p60
    %p63 = scmp.ne.s32.totalorder %s48, %s62
    %p64 = scmp.eq.s32.totalorder %s17, 0
    %p65 = por %p63, %p64
    %s67 = sadd.s32 %s66, 1
    %p70 = scmp.eq.s32.totalorder %s11, 1
    %p71 = scmp.ne.s32.totalorder %s66, %s68
    %p72 = scmp.eq.s32.totalorder %s11, 0
    %p73 = por %p71, %p72
    %p74 = scmp.ne.s32.totalorder %s66, %s68
    %p75 = scmp.eq.s32.totalorder %s16, 1
    %p76 = por %p74, %p75
    %p77 = scmp.ne.s32.totalorder %s68, %s69
    %p78 = scmp.eq.s32.totalorder %s16, 0
    %p79 = por %p77, %p78
    %p80 = scmp.ne.s32.totalorder %s68, %s69
    %p81 = scmp.eq.s32.totalorder %s17, 1
    %p82 = por %p80, %p81
    %p84 = scmp.ne.s32.totalorder %s69, %s83
    %p85 = scmp.eq.s32.totalorder %s17, 0
    %p86 = por %p84, %p85
    %s88 = sadd.s32 %s87, 1
    %p91 = scmp.eq.s32.totalorder %s11, 1
    %p92 = scmp.ne.s32.totalorder %s87, %s89
    %p93 = scmp.eq.s32.totalorder %s11, 0
    %p94 = por %p92, %p93
    %p95 = scmp.ne.s32.totalorder %s87, %s89
    %p96 = scmp.eq.s32.totalorder %s16, 1
    %p97 = por %p95, %p96
    %p98 = scmp.ne.s32.totalorder %s89, %s90
    %p99 = scmp.eq.s32.totalorder %s16, 0
    %p100 = por %p98, %p99
    %p101 = scmp.ne.s32.totalorder %s89, %s90
    %p102 = scmp.eq.s32.totalorder %s17, 1
    %p103 = por %p101, %p102
    %p105 = scmp.ne.s32.totalorder %s90, %s104
    %p106 = scmp.eq.s32.totalorder %s17, 0
    %p107 = por %p105, %p106
    %s109 = sadd.s32 %s108, 1
    %p112 = scmp.eq.s32.totalorder %s11, 1
    %p113 = scmp.ne.s32.totalorder %s108, %s110
    %p114 = scmp.eq.s32.totalorder %s11, 0
    %p115 = por %p113, %p114
    %p116 = scmp.ne.s32.totalorder %s108, %s110
    %p117 = scmp.eq.s32.totalorder %s16, 1
    %p118 = por %p116, %p117
    %p119 = scmp.ne.s32.totalorder %s110, %s111
    %p120 = scmp.eq.s32.totalorder %s16, 0
    %p121 = por %p119, %p120
    %p122 = scmp.ne.s32.totalorder %s110, %s111
    %p123 = scmp.eq.s32.totalorder %s17, 1
    %p124 = por %p122, %p123
    %p126 = scmp.ne.s32.totalorder %s111, %s125
    %p127 = scmp.eq.s32.totalorder %s17, 0
    %p128 = por %p126, %p127
    %s129 = ssub.s32 %s11, %s18
    %p130 = scmp.eq.s32.totalorder %s129, 0
    %s132 = sadd.s32 %s131, 1
    %s133 = scalar_select %p130, %s131, %s132
    %p136 = pneg %p130
    %p137 = scmp.eq.s32.totalorder %s11, 1
    %p138 = por %p136, %p137
    %p139 = scmp.ne.s32.totalorder %s131, %s134
    %p140 = scmp.eq.s32.totalorder %s11, 0
    %p141 = por %p139, %p140
    %p142 = scmp.ne.s32.totalorder %s131, %s134
    %p143 = scmp.eq.s32.totalorder %s16, 1
    %p144 = por %p142, %p143
    %p145 = scmp.ne.s32.totalorder %s134, %s135
    %p146 = scmp.eq.s32.totalorder %s16, 0
    %p147 = por %p145, %p146
    %p148 = scmp.ne.s32.totalorder %s134, %s135
    %p149 = scmp.eq.s32.totalorder %s17, 1
    %p150 = por %p148, %p149
    %p152 = scmp.ne.s32.totalorder %s135, %s151
    %p153 = scmp.eq.s32.totalorder %s17, 0
    %p154 = por %p152, %p153
    %p155 = scmp.le.s32.totalorder 1, %s11
    %p156 = scmp.lt.s32.totalorder %s11, 3
    %p157 = pnand %p155, %p156
    %p158 = pneg %p157
    // Predicated region
    $region9: #{swin_forward.11} parent=5 // pred_check
      _
    $region10: #{swin_forward.11} parent=5 // pred_check_branch
      %160 = sbr.rel (%p157) target = $region12
    $region11: #{swin_forward.11} parent=5 // pred_region
      %s161 = ssub.s32 %s11, 1
      // Predicated region
      $region13: #{swin_forward.11} parent=11 // pred_check
        %p162 = pneg %p58
      $region14: #{swin_forward.11} parent=11 // pred_check_branch
        %164 = sbr.rel (%p162) target = $region16
      $region15: #{swin_forward.11} parent=11 // pred_region
        _
      $region16: #{swin_forward.11} parent=11 // pred_fallthru
        _
      // Predicated region
      $region17: #{swin_forward.11} parent=11 // pred_check
        %p165 = pneg %p79
      $region18: #{swin_forward.11} parent=11 // pred_check_branch
        %167 = sbr.rel (%p165) target = $region20
      $region19: #{swin_forward.11} parent=11 // pred_region
        _
      $region20: #{swin_forward.11} parent=11 // pred_fallthru
        _
      // Predicated region
      $region21: #{swin_forward.11} parent=11 // pred_check
        %p168 = pneg %p100
      $region22: #{swin_forward.11} parent=11 // pred_check_branch
        %170 = sbr.rel (%p168) target = $region24
      $region23: #{swin_forward.11} parent=11 // pred_region
        _
      $region24: #{swin_forward.11} parent=11 // pred_fallthru
        _
      // Predicated region
      $region25: #{swin_forward.11} parent=11 // pred_check
        %p171 = pneg %p121
      $region26: #{swin_forward.11} parent=11 // pred_check_branch
        %173 = sbr.rel (%p171) target = $region28
      $region27: #{swin_forward.11} parent=11 // pred_region
        _
      $region28: #{swin_forward.11} parent=11 // pred_fallthru
        _
    $region12: #{swin_forward.11} parent=5 // pred_fallthru
      _
    %p174 = scmp.lt.s32.totalorder %s11, 2
    // Predicated region
    $region29: #{swin_forward.11} parent=5 // pred_check
      %p175 = pneg %p174
    $region30: #{swin_forward.11} parent=5 // pred_check_branch
      %177 = sbr.rel (%p175) target = $region32
    $region31: #{swin_forward.11} parent=5 // pred_region
      // Predicated region
      $region33: #{swin_forward.11} parent=31 // pred_check
        %p178 = pneg %p31
      $region34: #{swin_forward.11} parent=31 // pred_check_branch
        %180 = sbr.rel (%p178) target = $region36
      $region35: #{swin_forward.11} parent=31 // pred_region
        %s181 = smul.u32 8, %s11
        %p182 = scmp.lt.s32.totalorder %s181, 15
        %s183 = scalar_select %p182, %s181, 15
        %s184 = smul.addr %s183, 8
        %s185 = scalar_lea.vmem %s0, %s184
        %s186 = smul.u32 8, %s11
      $region36: #{swin_forward.11} parent=31 // pred_fallthru
        _
    $region32: #{swin_forward.11} parent=5 // pred_fallthru
      _
    %p187 = scmp.le.s32.totalorder 1, %s11
    %p188 = scmp.lt.s32.totalorder %s11, 3
    %p189 = pnand %p187, %p188
    %p190 = pneg %p189
    // Predicated region
    $region37: #{swin_forward.11} parent=5 // pred_check
      _
    $region38: #{swin_forward.11} parent=5 // pred_check_branch
      %192 = sbr.rel (%p189) target = $region40
    $region39: #{swin_forward.11} parent=5 // pred_region
      %s193 = ssub.s32 %s11, 1
      %s194 = smul.u32 8, %s16
      %p195 = scmp.lt.s32.totalorder %s194, 15
      %s196 = scalar_select %p195, %s194, 15
      %s197 = smul.addr %s196, 8
      %s198 = scalar_lea.vmem %s0, %s197
      %p199 = pneg %p37
      %p200 = pneg %p34
      %p201 = pneg %p58
      %p202 = pneg %p55
      %p203 = pneg %p79
      %p204 = pneg %p76
      %p205 = pneg %p100
      %p206 = pneg %p97
      %p207 = pneg %p121
      %p208 = pneg %p118
      %p209 = pneg %p147
      %p210 = pneg %p144
      %s211 = smul.u32 8, %s16
      %p212 = scmp.lt.s32.totalorder %s211, 15
      %s213 = scalar_select %p212, %s211, 15
      %s214 = smul.addr %s213, 8
      %s215 = scalar_lea.vmem %s5, %s214
      %s216 = smul.u32 8, %s16
      %p217 = scmp.lt.s32.totalorder %s216, 15
      %s218 = scalar_select %p217, %s216, 15
      %s219 = smul.addr %s218, 8
      %s220 = scalar_lea.vmem %s0, %s219
      %s221 = smul.u32 8, %s16
      %s222 = smul.u32 8, %s16
      %p223 = scmp.lt.s32.totalorder %s222, 15
      %s224 = scalar_select %p223, %s222, 15
      %s225 = smul.addr %s224, 8
      %s226 = scalar_lea.vmem %s5, %s225
      %s227 = smul.u32 8, %s16
      %v229 = vld [vmem:[%s220] sm:$0xff]
      %v230 = vld [vmem:[%s220 + $0x8] sm:$0xff]
      %v231 = vld [vmem:[%s220 + $0x10] sm:$0xff]
      %v232 = vld [vmem:[%s220 + $0x18] sm:$0xff]
      %v233 = vld [vmem:[%s220 + $0x20] sm:$0xff]
      %v234 = vld [vmem:[%s220 + $0x28] sm:$0xff]
      %v235 = vld [vmem:[%s220 + $0x30] sm:$0xff]
      %v236 = vld [vmem:[%s220 + $0x38] sm:$0xff]
      %v237 = vld [vmem:[%s1] sm:$0xff]
      %v238 = vld [vmem:[%s1 + $0x8] sm:$0xff]
      %v239 = vld [vmem:[%s1 + $0x10] sm:$0xff]
      %v240 = vld [vmem:[%s1 + $0x18] sm:$0xff]
      %v241 = vld [vmem:[%s1 + $0x20] sm:$0xff]
      %v242 = vld [vmem:[%s1 + $0x28] sm:$0xff]
      %v243 = vpack.c.bf16 %v230, %v229
      %v244 = vpack.c.bf16 %v232, %v231
      %v245 = vpack.c.bf16 %v234, %v233
      %v246 = vpack.c.bf16 %v236, %v235
      %v247 = vpack.c.bf16 %v238, %v237
      %v248 = vpack.c.bf16 %v240, %v239
      %v249 = vpack.c.bf16 %v242, %v241
      %v250 = vld [vmem:[%s2] sm:$0x1]
      %v252 = vlaneseq
      %v253 = vshrl.u32 %v252, 7
      %v254 = vsub.s32 0, %v253
      %v255 = vrot.slane %v250, %v254
      %vm257 = vcmask 392192
      %v259 = vsel %vm257, %v243, 0
      %v262 = vsel %vm257, %v244, 0
      %v265 = vsel %vm257, %v245, 0
      %v268 = vsel %vm257, %v246, 0
      %270 = vmatprep.subr.bf16.mxu0 0
      %271 = vmatpush1.bf16.msra.mxu0 %v247
      %272 = vmatprep.subr.bf16.mxu0 0
      %273 = vmatpush1.bf16.msra.mxu0 %v248
      %274 = vmatprep.subr.bf16.mxu0 0
      %275 = vmatpush1.bf16.msra.mxu0 %v249
      %276 = vmatprep.subr.bf16.mxu0 0
      %277 = vmatpush1.bf16.msra.mxu0 0
      %278 = vmatprep.subr.bf16.mxu0 0
      %279 = vmatpush1.bf16.msra.mxu0 0
      %280 = vmatprep.subr.bf16.mxu0 0
      %281 = vmatpush1.bf16.msra.mxu0 0
      %282 = vmatprep.subr.bf16.mxu0 0
      %283 = vmatpush1.bf16.msra.mxu0 0
      %284 = vmatprep.subr.bf16.mxu0 0
      %285 = vmatpush1.bf16.msra.mxu0 0
      %286 = vmatprep.subr.bf16.mxu0 0
      %287 = vmatpush1.bf16.msra.mxu0 0
      %288 = vmatprep.subr.bf16.mxu0 0
      %289 = vmatpush1.bf16.msra.mxu0 0
      %290 = vmatprep.subr.bf16.mxu0 0
      %291 = vmatpush1.bf16.msra.mxu0 0
      %292 = vmatprep.subr.bf16.mxu0 0
      %293 = vmatpush1.bf16.msra.mxu0 0
      %294 = vmatprep.subr.bf16.mxu0 0
      %295 = vmatpush1.bf16.msra.mxu0 0
      %296 = vmatprep.subr.bf16.mxu0 0
      %297 = vmatpush1.bf16.msra.mxu0 0
      %298 = vmatprep.subr.bf16.mxu0 0
      %299 = vmatpush1.bf16.msra.mxu0 0
      %300 = vmatprep.subr.bf16.mxu0 0
      %301 = vmatpush1.bf16.msra.mxu0 0
      %302 = vmatprep.mubr.bf16.mxu0 0
      %303 = vmatmul.mubr.bf16.gmra.mrb[0].mxu0 %v259
      %v304 = vpop.f32.mrb[0].mxu0
      %v305 = vadd.f32 %v255, %v304
      %v306 = vpop.f32.mrb[0].mxu0
      %v307 = vpop.f32.mrb[0].mxu0
      %v308 = vadd.f32 %v255, %v307
      %v309 = vpop.f32.mrb[0].mxu0
      %310 = vmatprep.mubr.bf16.mxu0 0
      %311 = vmatmul.mubr.bf16.gmra.mrb[0].mxu0 %v262
      %v312 = vpop.f32.mrb[0].mxu0
      %v313 = vadd.f32 %v255, %v312
      %v314 = vpop.f32.mrb[0].mxu0
      %v315 = vpop.f32.mrb[0].mxu0
      %v316 = vadd.f32 %v255, %v315
      %v317 = vpop.f32.mrb[0].mxu0
      %318 = vmatprep.mubr.bf16.mxu0 0
      %319 = vmatmul.mubr.bf16.gmra.mrb[0].mxu0 %v265
      %v320 = vpop.f32.mrb[0].mxu0
      %v321 = vadd.f32 %v255, %v320
      %v322 = vpop.f32.mrb[0].mxu0
      %v323 = vpop.f32.mrb[0].mxu0
      %v324 = vadd.f32 %v255, %v323
      %v325 = vpop.f32.mrb[0].mxu0
      %326 = vmatprep.mubr.bf16.mxu0 0
      %327 = vmatmul.mubr.bf16.gmra.mrb[0].mxu0 %v268
      %v328 = vpop.f32.mrb[0].mxu0
      %v329 = vadd.f32 %v255, %v328
      %v330 = vpop.f32.mrb[0].mxu0
      %v331 = vpop.f32.mrb[0].mxu0
      %v332 = vadd.f32 %v255, %v331
      %v333 = vpop.f32.mrb[0].mxu0
      %334 = vdwg.mxu0
      %v335 = vld [vmem:[%s3] sm:$0x1]
      %v336 = vld [vmem:[%s4] sm:$0x1]
      %vm337 = vcmask 261120
      %v338 = vsel %vm337, %v305, 0.0
      %339 = vadd.xlane.f32.xlu0 %v338
      %v340 = vpop.xlane.xlu0 %339
      %v341 = vsel %vm337, %v308, 0.0
      %342 = vadd.xlane.f32.xlu0 %v341
      %v343 = vpop.xlane.xlu0 %342
      %v344 = vsel %vm337, %v313, 0.0
      %345 = vadd.xlane.f32.xlu0 %v344
      %v346 = vpop.xlane.xlu0 %345
      %v347 = vsel %vm337, %v316, 0.0
      %348 = vadd.xlane.f32.xlu0 %v347
      %v349 = vpop.xlane.xlu0 %348
      %v350 = vsel %vm337, %v321, 0.0
      %351 = vadd.xlane.f32.xlu0 %v350
      %v352 = vpop.xlane.xlu0 %351
      %v353 = vsel %vm337, %v324, 0.0
      %354 = vadd.xlane.f32.xlu0 %v353
      %v355 = vpop.xlane.xlu0 %354
      %v356 = vsel %vm337, %v329, 0.0
      %357 = vadd.xlane.f32.xlu0 %v356
      %v358 = vpop.xlane.xlu0 %357
      %v359 = vsel %vm337, %v332, 0.0
      %360 = vadd.xlane.f32.xlu0 %v359
      %v361 = vpop.xlane.xlu0 %360
      %v362 = vrcp.pop 32.0
      %v363 = vmul.f32 %v340, %v362
      %v364 = vmul.f32 %v343, %v362
      %v365 = vmul.f32 %v346, %v362
      %v366 = vmul.f32 %v349, %v362
      %v367 = vmul.f32 %v352, %v362
      %v368 = vmul.f32 %v355, %v362
      %v369 = vmul.f32 %v358, %v362
      %v370 = vmul.f32 %v361, %v362
      %v371 = vsub.f32 %v305, %v363
      %v372 = vsub.f32 %v308, %v364
      %v373 = vsub.f32 %v313, %v365
      %v374 = vsub.f32 %v316, %v366
      %v375 = vsub.f32 %v321, %v367
      %v376 = vsub.f32 %v324, %v368
      %v377 = vsub.f32 %v329, %v369
      %v378 = vsub.f32 %v332, %v370
      %v379 = vmul.f32 %v371, %v371
      %v380 = vmul.f32 %v372, %v372
      %v381 = vmul.f32 %v373, %v373
      %v382 = vmul.f32 %v374, %v374
      %v383 = vmul.f32 %v375, %v375
      %v384 = vmul.f32 %v376, %v376
      %v385 = vmul.f32 %v377, %v377
      %v386 = vmul.f32 %v378, %v378
      %v387 = vsel %vm337, %v379, 0.0
      %388 = vadd.xlane.f32.xlu0 %v387
      %v389 = vpop.xlane.xlu0 %388
      %v390 = vsel %vm337, %v380, 0.0
      %391 = vadd.xlane.f32.xlu0 %v390
      %v392 = vpop.xlane.xlu0 %391
      %v393 = vsel %vm337, %v381, 0.0
      %394 = vadd.xlane.f32.xlu0 %v393
      %v395 = vpop.xlane.xlu0 %394
      %v396 = vsel %vm337, %v382, 0.0
      %397 = vadd.xlane.f32.xlu0 %v396
      %v398 = vpop.xlane.xlu0 %397
      %v399 = vsel %vm337, %v383, 0.0
      %400 = vadd.xlane.f32.xlu0 %v399
      %v401 = vpop.xlane.xlu0 %400
      %v402 = vsel %vm337, %v384, 0.0
      %403 = vadd.xlane.f32.xlu0 %v402
      %v404 = vpop.xlane.xlu0 %403
      %v405 = vsel %vm337, %v385, 0.0
      %406 = vadd.xlane.f32.xlu0 %v405
      %v407 = vpop.xlane.xlu0 %406
      %v408 = vsel %vm337, %v386, 0.0
      %409 = vadd.xlane.f32.xlu0 %v408
      %v410 = vpop.xlane.xlu0 %409
      %v411 = vmul.f32 %v389, %v362
      %v412 = vmul.f32 %v392, %v362
      %v413 = vmul.f32 %v395, %v362
      %v414 = vmul.f32 %v398, %v362
      %v415 = vmul.f32 %v401, %v362
      %v416 = vmul.f32 %v404, %v362
      %v417 = vmul.f32 %v407, %v362
      %v418 = vmul.f32 %v410, %v362
      %v419 = vadd.f32 %v411, 1e-05
      %v420 = vadd.f32 %v412, 1e-05
      %v421 = vadd.f32 %v413, 1e-05
      %v422 = vadd.f32 %v414, 1e-05
      %v423 = vadd.f32 %v415, 1e-05
      %v424 = vadd.f32 %v416, 1e-05
      %v425 = vadd.f32 %v417, 1e-05
      %v426 = vadd.f32 %v418, 1e-05
      %v427 = vrsqrt.pop %v419
      %v428 = vrsqrt.pop %v420
      %v429 = vrsqrt.pop %v421
      %v430 = vrsqrt.pop %v422
      %v431 = vrsqrt.pop %v423
      %v432 = vrsqrt.pop %v424
      %v433 = vrsqrt.pop %v425
      %v434 = vrsqrt.pop %v426
      %v435 = vmul.f32 %v371, %v427
      %v436 = vmul.f32 %v372, %v428
      %v437 = vmul.f32 %v373, %v429
      %v438 = vmul.f32 %v374, %v430
      %v439 = vmul.f32 %v375, %v431
      %v440 = vmul.f32 %v376, %v432
      %v441 = vmul.f32 %v377, %v433
      %v442 = vmul.f32 %v378, %v434
      %v444 = vlaneseq
      %v445 = vshrl.u32 %v444, 7
      %v446 = vsub.s32 0, %v445
      %v447 = vrot.slane %v335, %v446
      %v449 = vmul.f32 %v435, %v447
      %v450 = vmul.f32 %v436, %v447
      %v451 = vmul.f32 %v437, %v447
      %v452 = vmul.f32 %v438, %v447
      %v453 = vmul.f32 %v439, %v447
      %v454 = vmul.f32 %v440, %v447
      %v455 = vmul.f32 %v441, %v447
      %v456 = vmul.f32 %v442, %v447
      %v458 = vlaneseq
      %v459 = vshrl.u32 %v458, 7
      %v460 = vsub.s32 0, %v459
      %v461 = vrot.slane %v336, %v460
      %v463 = vadd.f32 %v449, %v461
      %v464 = vadd.f32 %v450, %v461
      %v465 = vadd.f32 %v451, %v461
      %v466 = vadd.f32 %v452, %v461
      %v467 = vadd.f32 %v453, %v461
      %v468 = vadd.f32 %v454, %v461
      %v469 = vadd.f32 %v455, %v461
      %v470 = vadd.f32 %v456, %v461
      %471 = vst.msk [vmem:[%s226] sm:$0xff] %vm337, %v463
      %472 = vst.msk [vmem:[%s226 + $0x8] sm:$0xff] %vm337, %v464
      %473 = vst.msk [vmem:[%s226 + $0x10] sm:$0xff] %vm337, %v465
      %474 = vst.msk [vmem:[%s226 + $0x18] sm:$0xff] %vm337, %v466
      %475 = vst.msk [vmem:[%s226 + $0x20] sm:$0xff] %vm337, %v467
      %476 = vst.msk [vmem:[%s226 + $0x28] sm:$0xff] %vm337, %v468
      %477 = vst.msk [vmem:[%s226 + $0x30] sm:$0xff] %vm337, %v469
      %478 = vst.msk [vmem:[%s226 + $0x38] sm:$0xff] %vm337, %v470
      %s479 = smul.u32 8, %s16
      %p480 = scmp.lt.s32.totalorder %s479, 15
      %s481 = scalar_select %p480, %s479, 15
      %s482 = smul.addr %s481, 8
      %s483 = scalar_lea.vmem %s5, %s482
      // Predicated region
      $region41: #{swin_forward.11} parent=39 // pred_check
        %p484 = pneg %p144
      $region42: #{swin_forward.11} parent=39 // pred_check_branch
        %486 = sbr.rel (%p484) target = $region44
      $region43: #{swin_forward.11} parent=39 // pred_region
        %s487 = smul.u32 8, %s16
      $region44: #{swin_forward.11} parent=39 // pred_fallthru
        _
    $region40: #{swin_forward.11} parent=5 // pred_fallthru
      _
    %p488 = scmp.le.s32.totalorder 2, %s11
    // Predicated region
    $region45: #{swin_forward.11} parent=5 // pred_check
      %p489 = pneg %p488
    $region46: #{swin_forward.11} parent=5 // pred_check_branch
      %491 = sbr.rel (%p489) target = $region48
    $region47: #{swin_forward.11} parent=5 // pred_region
      %s492 = ssub.s32 %s11, 2
      // Predicated region
      $region49: #{swin_forward.11} parent=47 // pred_check
        %p493 = pneg %p150
      $region50: #{swin_forward.11} parent=47 // pred_check_branch
        %495 = sbr.rel (%p493) target = $region52
      $region51: #{swin_forward.11} parent=47 // pred_region
        %s496 = smul.u32 8, %s17
        %p497 = scmp.lt.s32.totalorder %s496, 15
        %s498 = scalar_select %p497, %s496, 15
        %s499 = smul.addr %s498, 8
        %s500 = scalar_lea.vmem %s5, %s499
      $region52: #{swin_forward.11} parent=47 // pred_fallthru
        _
    $region48: #{swin_forward.11} parent=5 // pred_fallthru
      _
  $region6: #{swin_forward.11} parent=0 // loop_footer
    %s15 = sadd.s32 1, %s11
  $region7: #{swin_forward.11} parent=0 // loop_footer_branch
    %10 = sbr.rel target = $region3
  $region8: #{swin_forward.11} parent=0 // loop_exit
    _

// kernel: swin_forward.13
$region0: #{swin_forward.13}
  #allocation0 [shape = 'u32[]', space=smem, size = 0x4, offset = 0x4, fixed_abs, tag = 'smem constant byte address 0x4 - core index']
  #allocation1 [shape = 'u32[144,128]{1,0:T(1,128)}', space=vmem, size = 0x12000, scoped, tag = 'internal scratch']
  %s0 = inlined_call_operand.vmem [shape: f32[128,32], index: 0, kind: input, shape index: {}]
  %s1 = inlined_call_operand.vmem [shape: f32[1,32], index: 1, kind: input, shape index: {}]
  %s2 = inlined_call_operand.vmem [shape: f32[1,32], index: 2, kind: input, shape index: {}]
  %s3 = inlined_call_operand.vmem [shape: f32[32,128], index: 3, kind: input, shape index: {}]
  %s4 = inlined_call_operand.vmem [shape: f32[1,128], index: 4, kind: input, shape index: {}]
  %s5 = inlined_call_operand.vmem [shape: f32[128,32], index: 5, kind: input, shape index: {}]
  %s6 = inlined_call_operand.vmem [shape: f32[1,32], index: 6, kind: input, shape index: {}]
  %s7 = inlined_call_operand.vmem [shape: f32[128,32], index: 7, kind: output, shape index: {}]
  %s8 = sld [smem:[#allocation0]]
  $region61: #{swin_forward.13} parent=0
    _
  %s10 = ssub.s32 1, %s8
  %s11 = scalar_select 0, %s10, %s8
  loop: start=0, step=1, limit=4
  $region2: #{swin_forward.13} parent=0 // loop_pre_header
    _
  $region3: #{swin_forward.13} parent=0 // loop_header
    %s13 = sphi 0, %s17
    %p14 = scmp.ge.s32.totalorder %s13, 4
    %s23 = sphi 0, %s25
    %s26 = sphi 0, %s23
    %s27 = sphi 0, %s26
    %s43 = sphi 0, %s27
    %s47 = sphi 0, %s47
    %s49 = sphi 0, %s47
    %s50 = sphi 0, %s49
    %s64 = sphi 0, %s50
    %s68 = sphi 0, %s68
    %s70 = sphi 0, %s68
    %s71 = sphi 0, %s70
    %s85 = sphi 0, %s71
    %s89 = sphi 0, %s89
    %s91 = sphi 0, %s89
    %s92 = sphi 0, %s91
    %s106 = sphi 0, %s92
    %s110 = sphi 0, %s110
    %s112 = sphi 0, %s110
    %s113 = sphi 0, %s112
    %s127 = sphi 0, %s113
    %s131 = sphi 0, %s131
    %s133 = sphi 0, %s131
    %s134 = sphi 0, %s133
    %s148 = sphi 0, %s134
    %s152 = sphi 0, %s152
    %s154 = sphi 0, %s152
    %s155 = sphi 0, %s154
    %s169 = sphi 0, %s155
    %s175 = sphi 0, %s177
    %s178 = sphi 0, %s175
    %s179 = sphi 0, %s178
    %s195 = sphi 0, %s179
  $region4: #{swin_forward.13} parent=0 // loop_header_branch
    %16 = sbr.rel (%p14) target = $region8
  $region5: #{swin_forward.13} parent=0 // loop_body
    %s18 = ssub.s32 %s13, 1
    %s19 = ssub.s32 %s13, 2
    %s20 = sadd.s32 %s13, 1
    %s21 = ssub.s32 %s13, %s20
    %p22 = scmp.eq.s32.totalorder %s21, 0
    %s24 = sadd.s32 %s23, 1
    %s25 = scalar_select %p22, %s23, %s24
    %p28 = pneg %p22
    %p29 = scmp.eq.s32.totalorder %s13, 1
    %p30 = por %p28, %p29
    %p31 = scmp.ne.s32.totalorder %s23, %s26
    %p32 = scmp.eq.s32.totalorder %s13, 0
    %p33 = por %p31, %p32
    %p34 = scmp.ne.s32.totalorder %s23, %s26
    %p35 = scmp.eq.s32.totalorder %s18, 1
    %p36 = por %p34, %p35
    %p37 = scmp.ne.s32.totalorder %s26, %s27
    %p38 = scmp.eq.s32.totalorder %s18, 0
    %p39 = por %p37, %p38
    %p40 = scmp.ne.s32.totalorder %s26, %s27
    %p41 = scmp.eq.s32.totalorder %s19, 1
    %p42 = por %p40, %p41
    %p44 = scmp.ne.s32.totalorder %s27, %s43
    %p45 = scmp.eq.s32.totalorder %s19, 0
    %p46 = por %p44, %p45
    %s48 = sadd.s32 %s47, 1
    %p51 = scmp.eq.s32.totalorder %s13, 1
    %p52 = scmp.ne.s32.totalorder %s47, %s49
    %p53 = scmp.eq.s32.totalorder %s13, 0
    %p54 = por %p52, %p53
    %p55 = scmp.ne.s32.totalorder %s47, %s49
    %p56 = scmp.eq.s32.totalorder %s18, 1
    %p57 = por %p55, %p56
    %p58 = scmp.ne.s32.totalorder %s49, %s50
    %p59 = scmp.eq.s32.totalorder %s18, 0
    %p60 = por %p58, %p59
    %p61 = scmp.ne.s32.totalorder %s49, %s50
    %p62 = scmp.eq.s32.totalorder %s19, 1
    %p63 = por %p61, %p62
    %p65 = scmp.ne.s32.totalorder %s50, %s64
    %p66 = scmp.eq.s32.totalorder %s19, 0
    %p67 = por %p65, %p66
    %s69 = sadd.s32 %s68, 1
    %p72 = scmp.eq.s32.totalorder %s13, 1
    %p73 = scmp.ne.s32.totalorder %s68, %s70
    %p74 = scmp.eq.s32.totalorder %s13, 0
    %p75 = por %p73, %p74
    %p76 = scmp.ne.s32.totalorder %s68, %s70
    %p77 = scmp.eq.s32.totalorder %s18, 1
    %p78 = por %p76, %p77
    %p79 = scmp.ne.s32.totalorder %s70, %s71
    %p80 = scmp.eq.s32.totalorder %s18, 0
    %p81 = por %p79, %p80
    %p82 = scmp.ne.s32.totalorder %s70, %s71
    %p83 = scmp.eq.s32.totalorder %s19, 1
    %p84 = por %p82, %p83
    %p86 = scmp.ne.s32.totalorder %s71, %s85
    %p87 = scmp.eq.s32.totalorder %s19, 0
    %p88 = por %p86, %p87
    %s90 = sadd.s32 %s89, 1
    %p93 = scmp.eq.s32.totalorder %s13, 1
    %p94 = scmp.ne.s32.totalorder %s89, %s91
    %p95 = scmp.eq.s32.totalorder %s13, 0
    %p96 = por %p94, %p95
    %p97 = scmp.ne.s32.totalorder %s89, %s91
    %p98 = scmp.eq.s32.totalorder %s18, 1
    %p99 = por %p97, %p98
    %p100 = scmp.ne.s32.totalorder %s91, %s92
    %p101 = scmp.eq.s32.totalorder %s18, 0
    %p102 = por %p100, %p101
    %p103 = scmp.ne.s32.totalorder %s91, %s92
    %p104 = scmp.eq.s32.totalorder %s19, 1
    %p105 = por %p103, %p104
    %p107 = scmp.ne.s32.totalorder %s92, %s106
    %p108 = scmp.eq.s32.totalorder %s19, 0
    %p109 = por %p107, %p108
    %s111 = sadd.s32 %s110, 1
    %p114 = scmp.eq.s32.totalorder %s13, 1
    %p115 = scmp.ne.s32.totalorder %s110, %s112
    %p116 = scmp.eq.s32.totalorder %s13, 0
    %p117 = por %p115, %p116
    %p118 = scmp.ne.s32.totalorder %s110, %s112
    %p119 = scmp.eq.s32.totalorder %s18, 1
    %p120 = por %p118, %p119
    %p121 = scmp.ne.s32.totalorder %s112, %s113
    %p122 = scmp.eq.s32.totalorder %s18, 0
    %p123 = por %p121, %p122
    %p124 = scmp.ne.s32.totalorder %s112, %s113
    %p125 = scmp.eq.s32.totalorder %s19, 1
    %p126 = por %p124, %p125
    %p128 = scmp.ne.s32.totalorder %s113, %s127
    %p129 = scmp.eq.s32.totalorder %s19, 0
    %p130 = por %p128, %p129
    %s132 = sadd.s32 %s131, 1
    %p135 = scmp.eq.s32.totalorder %s13, 1
    %p136 = scmp.ne.s32.totalorder %s131, %s133
    %p137 = scmp.eq.s32.totalorder %s13, 0
    %p138 = por %p136, %p137
    %p139 = scmp.ne.s32.totalorder %s131, %s133
    %p140 = scmp.eq.s32.totalorder %s18, 1
    %p141 = por %p139, %p140
    %p142 = scmp.ne.s32.totalorder %s133, %s134
    %p143 = scmp.eq.s32.totalorder %s18, 0
    %p144 = por %p142, %p143
    %p145 = scmp.ne.s32.totalorder %s133, %s134
    %p146 = scmp.eq.s32.totalorder %s19, 1
    %p147 = por %p145, %p146
    %p149 = scmp.ne.s32.totalorder %s134, %s148
    %p150 = scmp.eq.s32.totalorder %s19, 0
    %p151 = por %p149, %p150
    %s153 = sadd.s32 %s152, 1
    %p156 = scmp.eq.s32.totalorder %s13, 1
    %p157 = scmp.ne.s32.totalorder %s152, %s154
    %p158 = scmp.eq.s32.totalorder %s13, 0
    %p159 = por %p157, %p158
    %p160 = scmp.ne.s32.totalorder %s152, %s154
    %p161 = scmp.eq.s32.totalorder %s18, 1
    %p162 = por %p160, %p161
    %p163 = scmp.ne.s32.totalorder %s154, %s155
    %p164 = scmp.eq.s32.totalorder %s18, 0
    %p165 = por %p163, %p164
    %p166 = scmp.ne.s32.totalorder %s154, %s155
    %p167 = scmp.eq.s32.totalorder %s19, 1
    %p168 = por %p166, %p167
    %p170 = scmp.ne.s32.totalorder %s155, %s169
    %p171 = scmp.eq.s32.totalorder %s19, 0
    %p172 = por %p170, %p171
    %s173 = ssub.s32 %s13, %s20
    %p174 = scmp.eq.s32.totalorder %s173, 0
    %s176 = sadd.s32 %s175, 1
    %s177 = scalar_select %p174, %s175, %s176
    %p180 = pneg %p174
    %p181 = scmp.eq.s32.totalorder %s13, 1
    %p182 = por %p180, %p181
    %p183 = scmp.ne.s32.totalorder %s175, %s178
    %p184 = scmp.eq.s32.totalorder %s13, 0
    %p185 = por %p183, %p184
    %p186 = scmp.ne.s32.totalorder %s175, %s178
    %p187 = scmp.eq.s32.totalorder %s18, 1
    %p188 = por %p186, %p187
    %p189 = scmp.ne.s32.totalorder %s178, %s179
    %p190 = scmp.eq.s32.totalorder %s18, 0
    %p191 = por %p189, %p190
    %p192 = scmp.ne.s32.totalorder %s178, %s179
    %p193 = scmp.eq.s32.totalorder %s19, 1
    %p194 = por %p192, %p193
    %p196 = scmp.ne.s32.totalorder %s179, %s195
    %p197 = scmp.eq.s32.totalorder %s19, 0
    %p198 = por %p196, %p197
    %p199 = scmp.le.s32.totalorder 1, %s13
    %p200 = scmp.lt.s32.totalorder %s13, 3
    %p201 = pnand %p199, %p200
    %p202 = pneg %p201
    // Predicated region
    $region9: #{swin_forward.13} parent=5 // pred_check
      _
    $region10: #{swin_forward.13} parent=5 // pred_check_branch
      %204 = sbr.rel (%p201) target = $region12
    $region11: #{swin_forward.13} parent=5 // pred_region
      %s205 = ssub.s32 %s13, 1
      // Predicated region
      $region13: #{swin_forward.13} parent=11 // pred_check
        %p206 = pneg %p60
      $region14: #{swin_forward.13} parent=11 // pred_check_branch
        %208 = sbr.rel (%p206) target = $region16
      $region15: #{swin_forward.13} parent=11 // pred_region
        _
      $region16: #{swin_forward.13} parent=11 // pred_fallthru
        _
      // Predicated region
      $region17: #{swin_forward.13} parent=11 // pred_check
        %p209 = pneg %p81
      $region18: #{swin_forward.13} parent=11 // pred_check_branch
        %211 = sbr.rel (%p209) target = $region20
      $region19: #{swin_forward.13} parent=11 // pred_region
        _
      $region20: #{swin_forward.13} parent=11 // pred_fallthru
        _
      // Predicated region
      $region21: #{swin_forward.13} parent=11 // pred_check
        %p212 = pneg %p102
      $region22: #{swin_forward.13} parent=11 // pred_check_branch
        %214 = sbr.rel (%p212) target = $region24
      $region23: #{swin_forward.13} parent=11 // pred_region
        _
      $region24: #{swin_forward.13} parent=11 // pred_fallthru
        _
      // Predicated region
      $region25: #{swin_forward.13} parent=11 // pred_check
        %p215 = pneg %p123
      $region26: #{swin_forward.13} parent=11 // pred_check_branch
        %217 = sbr.rel (%p215) target = $region28
      $region27: #{swin_forward.13} parent=11 // pred_region
        _
      $region28: #{swin_forward.13} parent=11 // pred_fallthru
        _
      // Predicated region
      $region29: #{swin_forward.13} parent=11 // pred_check
        %p218 = pneg %p144
      $region30: #{swin_forward.13} parent=11 // pred_check_branch
        %220 = sbr.rel (%p218) target = $region32
      $region31: #{swin_forward.13} parent=11 // pred_region
        _
      $region32: #{swin_forward.13} parent=11 // pred_fallthru
        _
      // Predicated region
      $region33: #{swin_forward.13} parent=11 // pred_check
        %p221 = pneg %p165
      $region34: #{swin_forward.13} parent=11 // pred_check_branch
        %223 = sbr.rel (%p221) target = $region36
      $region35: #{swin_forward.13} parent=11 // pred_region
        _
      $region36: #{swin_forward.13} parent=11 // pred_fallthru
        _
    $region12: #{swin_forward.13} parent=5 // pred_fallthru
      _
    %p224 = scmp.lt.s32.totalorder %s13, 2
    // Predicated region
    $region37: #{swin_forward.13} parent=5 // pred_check
      %p225 = pneg %p224
    $region38: #{swin_forward.13} parent=5 // pred_check_branch
      %227 = sbr.rel (%p225) target = $region40
    $region39: #{swin_forward.13} parent=5 // pred_region
      // Predicated region
      $region41: #{swin_forward.13} parent=39 // pred_check
        %p228 = pneg %p33
      $region42: #{swin_forward.13} parent=39 // pred_check_branch
        %230 = sbr.rel (%p228) target = $region44
      $region43: #{swin_forward.13} parent=39 // pred_region
        %s231 = smul.u32 8, %s13
        %p232 = scmp.lt.s32.totalorder %s231, 15
        %s233 = scalar_select %p232, %s231, 15
        %s234 = smul.addr %s233, 8
        %s235 = scalar_lea.vmem %s0, %s234
        %s236 = smul.u32 8, %s13
      $region44: #{swin_forward.13} parent=39 // pred_fallthru
        _
    $region40: #{swin_forward.13} parent=5 // pred_fallthru
      _
    %p237 = scmp.le.s32.totalorder 1, %s13
    %p238 = scmp.lt.s32.totalorder %s13, 3
    %p239 = pnand %p237, %p238
    %p240 = pneg %p239
    // Predicated region
    $region45: #{swin_forward.13} parent=5 // pred_check
      _
    $region46: #{swin_forward.13} parent=5 // pred_check_branch
      %242 = sbr.rel (%p239) target = $region48
    $region47: #{swin_forward.13} parent=5 // pred_region
      %s243 = ssub.s32 %s13, 1
      %s244 = smul.u32 8, %s18
      %p245 = scmp.lt.s32.totalorder %s244, 15
      %s246 = scalar_select %p245, %s244, 15
      %s247 = smul.addr %s246, 8
      %s248 = scalar_lea.vmem %s0, %s247
      %p249 = pneg %p39
      %p250 = pneg %p36
      %p251 = pneg %p60
      %p252 = pneg %p57
      %p253 = pneg %p81
      %p254 = pneg %p78
      %p255 = pneg %p102
      %p256 = pneg %p99
      %p257 = pneg %p123
      %p258 = pneg %p120
      %p259 = pneg %p144
      %p260 = pneg %p141
      %p261 = pneg %p165
      %p262 = pneg %p162
      %p263 = pneg %p191
      %p264 = pneg %p188
      %s265 = smul.u32 8, %s18
      %p266 = scmp.lt.s32.totalorder %s265, 15
      %s267 = scalar_select %p266, %s265, 15
      %s268 = smul.addr %s267, 8
      %s269 = scalar_lea.vmem %s7, %s268
      %s270 = smul.u32 8, %s18
      %p271 = scmp.lt.s32.totalorder %s270, 15
      %s272 = scalar_select %p271, %s270, 15
      %s273 = smul.addr %s272, 8
      %s274 = scalar_lea.vmem %s0, %s273
      %s275 = smul.u32 8, %s18
      %s276 = smul.u32 8, %s18
      %p277 = scmp.lt.s32.totalorder %s276, 15
      %s278 = scalar_select %p277, %s276, 15
      %s279 = smul.addr %s278, 8
      %s280 = scalar_lea.vmem %s7, %s279
      %s281 = smul.u32 8, %s18
      %v283 = vld [vmem:[%s274] sm:$0xff]
      %v284 = vld [vmem:[%s274 + $0x8] sm:$0xff]
      %v285 = vld [vmem:[%s274 + $0x10] sm:$0xff]
      %v286 = vld [vmem:[%s274 + $0x18] sm:$0xff]
      %v287 = vld [vmem:[%s274 + $0x20] sm:$0xff]
      %v288 = vld [vmem:[%s274 + $0x28] sm:$0xff]
      %v289 = vld [vmem:[%s274 + $0x30] sm:$0xff]
      %v290 = vld [vmem:[%s274 + $0x38] sm:$0xff]
      %v291 = vld [vmem:[%s1] sm:$0x1]
      %v292 = vld [vmem:[%s2] sm:$0x1]
      %vm293 = vcmask 261120
      %v294 = vsel %vm293, %v283, 0.0
      %295 = vadd.xlane.f32.xlu0 %v294
      %v296 = vpop.xlane.xlu0 %295
      %v297 = vsel %vm293, %v284, 0.0
      %298 = vadd.xlane.f32.xlu0 %v297
      %v299 = vpop.xlane.xlu0 %298
      %v300 = vsel %vm293, %v285, 0.0
      %301 = vadd.xlane.f32.xlu0 %v300
      %v302 = vpop.xlane.xlu0 %301
      %v303 = vsel %vm293, %v286, 0.0
      %304 = vadd.xlane.f32.xlu0 %v303
      %v305 = vpop.xlane.xlu0 %304
      %v306 = vsel %vm293, %v287, 0.0
      %307 = vadd.xlane.f32.xlu0 %v306
      %v308 = vpop.xlane.xlu0 %307
      %v309 = vsel %vm293, %v288, 0.0
      %310 = vadd.xlane.f32.xlu0 %v309
      %v311 = vpop.xlane.xlu0 %310
      %v312 = vsel %vm293, %v289, 0.0
      %313 = vadd.xlane.f32.xlu0 %v312
      %v314 = vpop.xlane.xlu0 %313
      %v315 = vsel %vm293, %v290, 0.0
      %316 = vadd.xlane.f32.xlu0 %v315
      %v317 = vpop.xlane.xlu0 %316
      %v318 = vrcp.pop 32.0
      %v319 = vmul.f32 %v296, %v318
      %v320 = vmul.f32 %v299, %v318
      %v321 = vmul.f32 %v302, %v318
      %v322 = vmul.f32 %v305, %v318
      %v323 = vmul.f32 %v308, %v318
      %v324 = vmul.f32 %v311, %v318
      %v325 = vmul.f32 %v314, %v318
      %v326 = vmul.f32 %v317, %v318
      %v327 = vsub.f32 %v283, %v319
      %v328 = vsub.f32 %v284, %v320
      %v329 = vsub.f32 %v285, %v321
      %v330 = vsub.f32 %v286, %v322
      %v331 = vsub.f32 %v287, %v323
      %v332 = vsub.f32 %v288, %v324
      %v333 = vsub.f32 %v289, %v325
      %v334 = vsub.f32 %v290, %v326
      %v335 = vmul.f32 %v327, %v327
      %v336 = vmul.f32 %v328, %v328
      %v337 = vmul.f32 %v329, %v329
      %v338 = vmul.f32 %v330, %v330
      %v339 = vmul.f32 %v331, %v331
      %v340 = vmul.f32 %v332, %v332
      %v341 = vmul.f32 %v333, %v333
      %v342 = vmul.f32 %v334, %v334
      %v343 = vsel %vm293, %v335, 0.0
      %344 = vadd.xlane.f32.xlu0 %v343
      %v345 = vpop.xlane.xlu0 %344
      %v346 = vsel %vm293, %v336, 0.0
      %347 = vadd.xlane.f32.xlu0 %v346
      %v348 = vpop.xlane.xlu0 %347
      %v349 = vsel %vm293, %v337, 0.0
      %350 = vadd.xlane.f32.xlu0 %v349
      %v351 = vpop.xlane.xlu0 %350
      %v352 = vsel %vm293, %v338, 0.0
      %353 = vadd.xlane.f32.xlu0 %v352
      %v354 = vpop.xlane.xlu0 %353
      %v355 = vsel %vm293, %v339, 0.0
      %356 = vadd.xlane.f32.xlu0 %v355
      %v357 = vpop.xlane.xlu0 %356
      %v358 = vsel %vm293, %v340, 0.0
      %359 = vadd.xlane.f32.xlu0 %v358
      %v360 = vpop.xlane.xlu0 %359
      %v361 = vsel %vm293, %v341, 0.0
      %362 = vadd.xlane.f32.xlu0 %v361
      %v363 = vpop.xlane.xlu0 %362
      %v364 = vsel %vm293, %v342, 0.0
      %365 = vadd.xlane.f32.xlu0 %v364
      %v366 = vpop.xlane.xlu0 %365
      %v367 = vmul.f32 %v345, %v318
      %v368 = vmul.f32 %v348, %v318
      %v369 = vmul.f32 %v351, %v318
      %v370 = vmul.f32 %v354, %v318
      %v371 = vmul.f32 %v357, %v318
      %v372 = vmul.f32 %v360, %v318
      %v373 = vmul.f32 %v363, %v318
      %v374 = vmul.f32 %v366, %v318
      %v375 = vadd.f32 %v367, 1e-05
      %v376 = vadd.f32 %v368, 1e-05
      %v377 = vadd.f32 %v369, 1e-05
      %v378 = vadd.f32 %v370, 1e-05
      %v379 = vadd.f32 %v371, 1e-05
      %v380 = vadd.f32 %v372, 1e-05
      %v381 = vadd.f32 %v373, 1e-05
      %v382 = vadd.f32 %v374, 1e-05
      %v383 = vrsqrt.pop %v375
      %v384 = vrsqrt.pop %v376
      %v385 = vrsqrt.pop %v377
      %v386 = vrsqrt.pop %v378
      %v387 = vrsqrt.pop %v379
      %v388 = vrsqrt.pop %v380
      %v389 = vrsqrt.pop %v381
      %v390 = vrsqrt.pop %v382
      %v391 = vmul.f32 %v327, %v383
      %v392 = vmul.f32 %v328, %v384
      %v393 = vmul.f32 %v329, %v385
      %v394 = vmul.f32 %v330, %v386
      %v395 = vmul.f32 %v331, %v387
      %v396 = vmul.f32 %v332, %v388
      %v397 = vmul.f32 %v333, %v389
      %v398 = vmul.f32 %v334, %v390
      %v400 = vlaneseq
      %v401 = vshrl.u32 %v400, 7
      %v402 = vsub.s32 0, %v401
      %v403 = vrot.slane %v291, %v402
      %v405 = vmul.f32 %v391, %v403
      %v406 = vmul.f32 %v392, %v403
      %v407 = vmul.f32 %v393, %v403
      %v408 = vmul.f32 %v394, %v403
      %v409 = vmul.f32 %v395, %v403
      %v410 = vmul.f32 %v396, %v403
      %v411 = vmul.f32 %v397, %v403
      %v412 = vmul.f32 %v398, %v403
      %v414 = vlaneseq
      %v415 = vshrl.u32 %v414, 7
      %v416 = vsub.s32 0, %v415
      %v417 = vrot.slane %v292, %v416
      %v419 = vadd.f32 %v405, %v417
      %v420 = vadd.f32 %v406, %v417
      %v421 = vadd.f32 %v407, %v417
      %v422 = vadd.f32 %v408, %v417
      %v423 = vadd.f32 %v409, %v417
      %v424 = vadd.f32 %v410, %v417
      %v425 = vadd.f32 %v411, %v417
      %v426 = vadd.f32 %v412, %v417
      %v427 = vld [vmem:[%s3] sm:$0xff]
      %v428 = vld [vmem:[%s3 + $0x8] sm:$0xff]
      %v429 = vld [vmem:[%s3 + $0x10] sm:$0xff]
      %v430 = vld [vmem:[%s3 + $0x18] sm:$0xff]
      %v431 = vpack.c.bf16 %v420, %v419
      %v432 = vpack.c.bf16 %v422, %v421
      %v433 = vpack.c.bf16 %v424, %v423
      %v434 = vpack.c.bf16 %v426, %v425
      %v435 = vpack.c.bf16 %v428, %v427
      %v436 = vpack.c.bf16 %v430, %v429
      %v437 = vld [vmem:[%s4] sm:$0x1]
      %v439 = vlaneseq
      %v440 = vshrl.u32 %v439, 7
      %v441 = vsub.s32 0, %v440
      %v442 = vrot.slane %v437, %v441
      %v445 = vsel %vm293, %v431, 0
      %v448 = vsel %vm293, %v432, 0
      %v451 = vsel %vm293, %v433, 0
      %v454 = vsel %vm293, %v434, 0
      %456 = vmatprep.subr.bf16.mxu0 0
      %457 = vmatpush1.bf16.msra.mxu0 %v435
      %458 = vmatprep.subr.bf16.mxu0 0
      %459 = vmatpush1.bf16.msra.mxu0 %v436
      %460 = vmatprep.subr.bf16.mxu0 0
      %461 = vmatpush1.bf16.msra.mxu0 0
      %462 = vmatprep.subr.bf16.mxu0 0
      %463 = vmatpush1.bf16.msra.mxu0 0
      %464 = vmatprep.subr.bf16.mxu0 0
      %465 = vmatpush1.bf16.msra.mxu0 0
      %466 = vmatprep.subr.bf16.mxu0 0
      %467 = vmatpush1.bf16.msra.mxu0 0
      %468 = vmatprep.subr.bf16.mxu0 0
      %469 = vmatpush1.bf16.msra.mxu0 0
      %470 = vmatprep.subr.bf16.mxu0 0
      %471 = vmatpush1.bf16.msra.mxu0 0
      %472 = vmatprep.subr.bf16.mxu0 0
      %473 = vmatpush1.bf16.msra.mxu0 0
      %474 = vmatprep.subr.bf16.mxu0 0
      %475 = vmatpush1.bf16.msra.mxu0 0
      %476 = vmatprep.subr.bf16.mxu0 0
      %477 = vmatpush1.bf16.msra.mxu0 0
      %478 = vmatprep.subr.bf16.mxu0 0
      %479 = vmatpush1.bf16.msra.mxu0 0
      %480 = vmatprep.subr.bf16.mxu0 0
      %481 = vmatpush1.bf16.msra.mxu0 0
      %482 = vmatprep.subr.bf16.mxu0 0
      %483 = vmatpush1.bf16.msra.mxu0 0
      %484 = vmatprep.subr.bf16.mxu0 0
      %485 = vmatpush1.bf16.msra.mxu0 0
      %486 = vmatprep.subr.bf16.mxu0 0
      %487 = vmatpush1.bf16.msra.mxu0 0
      %488 = vmatprep.mubr.bf16.mxu0 0
      %489 = vmatmul.mubr.bf16.gmra.mrb[0].mxu0 %v445
      %v490 = vpop.f32.mrb[0].mxu0
      %v491 = vadd.f32 %v442, %v490
      %v492 = vpop.f32.mrb[0].mxu0
      %v493 = vpop.f32.mrb[0].mxu0
      %v494 = vadd.f32 %v442, %v493
      %v495 = vpop.f32.mrb[0].mxu0
      %496 = vmatprep.mubr.bf16.mxu0 0
      %497 = vmatmul.mubr.bf16.gmra.mrb[0].mxu0 %v448
      %v498 = vpop.f32.mrb[0].mxu0
      %v499 = vadd.f32 %v442, %v498
      %v500 = vpop.f32.mrb[0].mxu0
      %v501 = vpop.f32.mrb[0].mxu0
      %v502 = vadd.f32 %v442, %v501
      %v503 = vpop.f32.mrb[0].mxu0
      %504 = vmatprep.mubr.bf16.mxu0 0
      %505 = vmatmul.mubr.bf16.gmra.mrb[0].mxu0 %v451
      %v506 = vpop.f32.mrb[0].mxu0
      %v507 = vadd.f32 %v442, %v506
      %v508 = vpop.f32.mrb[0].mxu0
      %v509 = vpop.f32.mrb[0].mxu0
      %v510 = vadd.f32 %v442, %v509
      %v511 = vpop.f32.mrb[0].mxu0
      %512 = vmatprep.mubr.bf16.mxu0 0
      %513 = vmatmul.mubr.bf16.gmra.mrb[0].mxu0 %v454
      %v514 = vpop.f32.mrb[0].mxu0
      %v515 = vadd.f32 %v442, %v514
      %v516 = vpop.f32.mrb[0].mxu0
      %v517 = vpop.f32.mrb[0].mxu0
      %v518 = vadd.f32 %v442, %v517
      %v519 = vpop.f32.mrb[0].mxu0
      %520 = vdwg.mxu0
      %v521 = vmul.f32 %v491, 0.5
      %v522 = vmul.f32 %v494, 0.5
      %v523 = vmul.f32 %v499, 0.5
      %v524 = vmul.f32 %v502, 0.5
      %v525 = vmul.f32 %v507, 0.5
      %v526 = vmul.f32 %v510, 0.5
      %v527 = vmul.f32 %v515, 0.5
      %v528 = vmul.f32 %v518, 0.5
      %v529 = vmul.f32 %v491, 0.70710677
      %v530 = vmul.f32 %v494, 0.70710677
      %v531 = vmul.f32 %v499, 0.70710677
      %v532 = vmul.f32 %v502, 0.70710677
      %v533 = vmul.f32 %v507, 0.70710677
      %v534 = vmul.f32 %v510, 0.70710677
      %v535 = vmul.f32 %v515, 0.70710677
      %v536 = vmul.f32 %v518, 0.70710677
      %v537 = verf.f32.pop %v529
      %v538 = verf.f32.pop %v530
      %v539 = verf.f32.pop %v531
      %v540 = verf.f32.pop %v532
      %v541 = verf.f32.pop %v533
      %v542 = verf.f32.pop %v534
      %v543 = verf.f32.pop %v535
      %v544 = verf.f32.pop %v536
      %v545 = vadd.f32 %v537, 1.0
      %v546 = vadd.f32 %v538, 1.0
      %v547 = vadd.f32 %v539, 1.0
      %v548 = vadd.f32 %v540, 1.0
      %v549 = vadd.f32 %v541, 1.0
      %v550 = vadd.f32 %v542, 1.0
      %v551 = vadd.f32 %v543, 1.0
      %v552 = vadd.f32 %v544, 1.0
      %v553 = vmul.f32 %v521, %v545
      %v554 = vmul.f32 %v522, %v546
      %v555 = vmul.f32 %v523, %v547
      %v556 = vmul.f32 %v524, %v548
      %v557 = vmul.f32 %v525, %v549
      %v558 = vmul.f32 %v526, %v550
      %v559 = vmul.f32 %v527, %v551
      %v560 = vmul.f32 %v528, %v552
      %v561 = vld [vmem:[%s5] sm:$0xff]
      %v562 = vld [vmem:[%s5 + $0x8] sm:$0xff]
      %v563 = vld [vmem:[%s5 + $0x10] sm:$0xff]
      %v564 = vld [vmem:[%s5 + $0x18] sm:$0xff]
      %v565 = vld [vmem:[%s5 + $0x20] sm:$0xff]
      %v566 = vld [vmem:[%s5 + $0x28] sm:$0xff]
      %v567 = vld [vmem:[%s5 + $0x30] sm:$0xff]
      %v568 = vld [vmem:[%s5 + $0x38] sm:$0xff]
      %v569 = vld [vmem:[%s5 + $0x40] sm:$0xff]
      %v570 = vld [vmem:[%s5 + $0x48] sm:$0xff]
      %v571 = vld [vmem:[%s5 + $0x50] sm:$0xff]
      %v572 = vld [vmem:[%s5 + $0x58] sm:$0xff]
      %v573 = vld [vmem:[%s5 + $0x60] sm:$0xff]
      %v574 = vld [vmem:[%s5 + $0x68] sm:$0xff]
      %v575 = vld [vmem:[%s5 + $0x70] sm:$0xff]
      %v576 = vld [vmem:[%s5 + $0x78] sm:$0xff]
      %v577 = vpack.c.bf16 %v554, %v553
      %v578 = vpack.c.bf16 %v556, %v555
      %v579 = vpack.c.bf16 %v558, %v557
      %v580 = vpack.c.bf16 %v560, %v559
      %v581 = vpack.c.bf16 %v562, %v561
      %v582 = vpack.c.bf16 %v564, %v563
      %v583 = vpack.c.bf16 %v566, %v565
      %v584 = vpack.c.bf16 %v568, %v567
      %v585 = vpack.c.bf16 %v570, %v569
      %v586 = vpack.c.bf16 %v572, %v571
      %v587 = vpack.c.bf16 %v574, %v573
      %v588 = vpack.c.bf16 %v576, %v575
      %v589 = vld [vmem:[%s6] sm:$0x1]
      %v591 = vlaneseq
      %v592 = vshrl.u32 %v591, 7
      %v593 = vsub.s32 0, %v592
      %v594 = vrot.slane %v589, %v593
      %596 = vmatprep.subr.bf16.mxu0 0
      %597 = vmatpush1.bf16.msra.mxu0 %v581
      %598 = vmatprep.subr.bf16.mxu0 0
      %599 = vmatpush1.bf16.msra.mxu0 %v582
      %600 = vmatprep.subr.bf16.mxu0 0
      %601 = vmatpush1.bf16.msra.mxu0 %v583
      %602 = vmatprep.subr.bf16.mxu0 0
      %603 = vmatpush1.bf16.msra.mxu0 %v584
      %604 = vmatprep.subr.bf16.mxu0 0
      %605 = vmatpush1.bf16.msra.mxu0 %v585
      %606 = vmatprep.subr.bf16.mxu0 0
      %607 = vmatpush1.bf16.msra.mxu0 %v586
      %608 = vmatprep.subr.bf16.mxu0 0
      %609 = vmatpush1.bf16.msra.mxu0 %v587
      %610 = vmatprep.subr.bf16.mxu0 0
      %611 = vmatpush1.bf16.msra.mxu0 %v588
      %612 = vmatprep.subr.bf16.mxu0 0
      %613 = vmatpush1.bf16.msra.mxu0 0
      %614 = vmatprep.subr.bf16.mxu0 0
      %615 = vmatpush1.bf16.msra.mxu0 0
      %616 = vmatprep.subr.bf16.mxu0 0
      %617 = vmatpush1.bf16.msra.mxu0 0
      %618 = vmatprep.subr.bf16.mxu0 0
      %619 = vmatpush1.bf16.msra.mxu0 0
      %620 = vmatprep.subr.bf16.mxu0 0
      %621 = vmatpush1.bf16.msra.mxu0 0
      %622 = vmatprep.subr.bf16.mxu0 0
      %623 = vmatpush1.bf16.msra.mxu0 0
      %624 = vmatprep.subr.bf16.mxu0 0
      %625 = vmatpush1.bf16.msra.mxu0 0
      %626 = vmatprep.subr.bf16.mxu0 0
      %627 = vmatpush1.bf16.msra.mxu0 0
      %628 = vmatprep.mubr.bf16.mxu0 0
      %629 = vmatmul.mubr.bf16.gmra.mrb[0].mxu0 %v577
      %v630 = vpop.f32.mrb[0].mxu0
      %v631 = vadd.f32 %v594, %v630
      %v632 = vpop.f32.mrb[0].mxu0
      %v633 = vpop.f32.mrb[0].mxu0
      %v634 = vadd.f32 %v594, %v633
      %v635 = vpop.f32.mrb[0].mxu0
      %636 = vmatprep.mubr.bf16.mxu0 0
      %637 = vmatmul.mubr.bf16.gmra.mrb[0].mxu0 %v578
      %v638 = vpop.f32.mrb[0].mxu0
      %v639 = vadd.f32 %v594, %v638
      %v640 = vpop.f32.mrb[0].mxu0
      %v641 = vpop.f32.mrb[0].mxu0
      %v642 = vadd.f32 %v594, %v641
      %v643 = vpop.f32.mrb[0].mxu0
      %644 = vmatprep.mubr.bf16.mxu0 0
      %645 = vmatmul.mubr.bf16.gmra.mrb[0].mxu0 %v579
      %v646 = vpop.f32.mrb[0].mxu0
      %v647 = vadd.f32 %v594, %v646
      %v648 = vpop.f32.mrb[0].mxu0
      %v649 = vpop.f32.mrb[0].mxu0
      %v650 = vadd.f32 %v594, %v649
      %v651 = vpop.f32.mrb[0].mxu0
      %652 = vmatprep.mubr.bf16.mxu0 0
      %653 = vmatmul.mubr.bf16.gmra.mrb[0].mxu0 %v580
      %v654 = vpop.f32.mrb[0].mxu0
      %v655 = vadd.f32 %v594, %v654
      %v656 = vpop.f32.mrb[0].mxu0
      %v657 = vpop.f32.mrb[0].mxu0
      %v658 = vadd.f32 %v594, %v657
      %v659 = vpop.f32.mrb[0].mxu0
      %660 = vdwg.mxu0
      %v661 = vadd.f32 %v283, %v631
      %v662 = vadd.f32 %v284, %v634
      %v663 = vadd.f32 %v285, %v639
      %v664 = vadd.f32 %v286, %v642
      %v665 = vadd.f32 %v287, %v647
      %v666 = vadd.f32 %v288, %v650
      %v667 = vadd.f32 %v289, %v655
      %v668 = vadd.f32 %v290, %v658
      %669 = vst.msk [vmem:[%s280] sm:$0xff] %vm293, %v661
      %670 = vst.msk [vmem:[%s280 + $0x8] sm:$0xff] %vm293, %v662
      %671 = vst.msk [vmem:[%s280 + $0x10] sm:$0xff] %vm293, %v663
      %672 = vst.msk [vmem:[%s280 + $0x18] sm:$0xff] %vm293, %v664
      %673 = vst.msk [vmem:[%s280 + $0x20] sm:$0xff] %vm293, %v665
      %674 = vst.msk [vmem:[%s280 + $0x28] sm:$0xff] %vm293, %v666
      %675 = vst.msk [vmem:[%s280 + $0x30] sm:$0xff] %vm293, %v667
      %676 = vst.msk [vmem:[%s280 + $0x38] sm:$0xff] %vm293, %v668
      %s677 = smul.u32 8, %s18
      %p678 = scmp.lt.s32.totalorder %s677, 15
      %s679 = scalar_select %p678, %s677, 15
      %s680 = smul.addr %s679, 8
      %s681 = scalar_lea.vmem %s7, %s680
      // Predicated region
      $region49: #{swin_forward.13} parent=47 // pred_check
        %p682 = pneg %p188
      $region50: #{swin_forward.13} parent=47 // pred_check_branch
        %684 = sbr.rel (%p682) target = $region52
      $region51: #{swin_forward.13} parent=47 // pred_region
        %s685 = smul.u32 8, %s18
      $region52: #{swin_forward.13} parent=47 // pred_fallthru
        _
    $region48: #{swin_forward.13} parent=5 // pred_fallthru
      _
    %p686 = scmp.le.s32.totalorder 2, %s13
    // Predicated region
    $region53: #{swin_forward.13} parent=5 // pred_check
      %p687 = pneg %p686
    $region54: #{swin_forward.13} parent=5 // pred_check_branch
      %689 = sbr.rel (%p687) target = $region56
    $region55: #{swin_forward.13} parent=5 // pred_region
      %s690 = ssub.s32 %s13, 2
      // Predicated region
      $region57: #{swin_forward.13} parent=55 // pred_check
        %p691 = pneg %p194
      $region58: #{swin_forward.13} parent=55 // pred_check_branch
        %693 = sbr.rel (%p691) target = $region60
      $region59: #{swin_forward.13} parent=55 // pred_region
        %s694 = smul.u32 8, %s19
        %p695 = scmp.lt.s32.totalorder %s694, 15
        %s696 = scalar_select %p695, %s694, 15
        %s697 = smul.addr %s696, 8
        %s698 = scalar_lea.vmem %s7, %s697
      $region60: #{swin_forward.13} parent=55 // pred_fallthru
        _
    $region56: #{swin_forward.13} parent=5 // pred_fallthru
      _
  $region6: #{swin_forward.13} parent=0 // loop_footer
    %s17 = sadd.s32 1, %s13
  $region7: #{swin_forward.13} parent=0 // loop_footer_branch
    %12 = sbr.rel target = $region3
  $region8: #{swin_forward.13} parent=0 // loop_exit
    _

// kernel: swin_forward.12
$region0: #{swin_forward.12}
  #allocation0 [shape = 'u32[]', space=smem, size = 0x4, offset = 0x4, fixed_abs, tag = 'smem constant byte address 0x4 - core index']
  #allocation1 [shape = 'u32[144,128]{1,0:T(1,128)}', space=vmem, size = 0x12000, scoped, tag = 'internal scratch']
  %s0 = inlined_call_operand.vmem [shape: f32[8,16,32], index: 0, kind: input, shape index: {}]
  %s1 = inlined_call_operand.vmem [shape: f32[1,32], index: 1, kind: input, shape index: {}]
  %s2 = inlined_call_operand.vmem [shape: f32[1,32], index: 2, kind: input, shape index: {}]
  %s3 = inlined_call_operand.vmem [shape: f32[32,96], index: 3, kind: input, shape index: {}]
  %s4 = inlined_call_operand.vmem [shape: f32[1,96], index: 4, kind: input, shape index: {}]
  %s5 = inlined_call_operand.vmem [shape: f32[2,16,16], index: 5, kind: input, shape index: {}]
  %s6 = inlined_call_operand.vmem [shape: f32[4,16,16], index: 6, kind: input, shape index: {}]
  %s7 = inlined_call_operand.vmem [shape: f32[32,32], index: 7, kind: input, shape index: {}]
  %s8 = inlined_call_operand.vmem [shape: f32[1,32], index: 8, kind: input, shape index: {}]
  %s9 = inlined_call_operand.vmem [shape: f32[8,16,32], index: 9, kind: output, shape index: {}]
  %s10 = sld [smem:[#allocation0]]
  $region69: #{swin_forward.12} parent=0
    _
  %s12 = ssub.s32 1, %s10
  %s13 = scalar_select 0, %s12, %s10
  loop: start=0, step=1, limit=4
  $region2: #{swin_forward.12} parent=0 // loop_pre_header
    _
  $region3: #{swin_forward.12} parent=0 // loop_header
    %s15 = sphi 0, %s19
    %p16 = scmp.ge.s32.totalorder %s15, 4
    %s25 = sphi 0, %s27
    %s28 = sphi 0, %s25
    %s29 = sphi 0, %s28
    %s45 = sphi 0, %s29
    %s49 = sphi 0, %s49
    %s51 = sphi 0, %s49
    %s52 = sphi 0, %s51
    %s66 = sphi 0, %s52
    %s70 = sphi 0, %s70
    %s72 = sphi 0, %s70
    %s73 = sphi 0, %s72
    %s87 = sphi 0, %s73
    %s91 = sphi 0, %s91
    %s93 = sphi 0, %s91
    %s94 = sphi 0, %s93
    %s108 = sphi 0, %s94
    %s112 = sphi 0, %s112
    %s114 = sphi 0, %s112
    %s115 = sphi 0, %s114
    %s129 = sphi 0, %s115
    %s133 = sphi 0, %s133
    %s135 = sphi 0, %s133
    %s136 = sphi 0, %s135
    %s150 = sphi 0, %s136
    %s154 = sphi 0, %s154
    %s156 = sphi 0, %s154
    %s157 = sphi 0, %s156
    %s171 = sphi 0, %s157
    %s175 = sphi 0, %s175
    %s177 = sphi 0, %s175
    %s178 = sphi 0, %s177
    %s192 = sphi 0, %s178
    %s196 = sphi 0, %s196
    %s198 = sphi 0, %s196
    %s199 = sphi 0, %s198
    %s213 = sphi 0, %s199
    %s219 = sphi 0, %s221
    %s222 = sphi 0, %s219
    %s223 = sphi 0, %s222
    %s239 = sphi 0, %s223
  $region4: #{swin_forward.12} parent=0 // loop_header_branch
    %18 = sbr.rel (%p16) target = $region8
  $region5: #{swin_forward.12} parent=0 // loop_body
    %s20 = ssub.s32 %s15, 1
    %s21 = ssub.s32 %s15, 2
    %s22 = sadd.s32 %s15, 1
    %s23 = ssub.s32 %s15, %s22
    %p24 = scmp.eq.s32.totalorder %s23, 0
    %s26 = sadd.s32 %s25, 1
    %s27 = scalar_select %p24, %s25, %s26
    %p30 = pneg %p24
    %p31 = scmp.eq.s32.totalorder %s15, 1
    %p32 = por %p30, %p31
    %p33 = scmp.ne.s32.totalorder %s25, %s28
    %p34 = scmp.eq.s32.totalorder %s15, 0
    %p35 = por %p33, %p34
    %p36 = scmp.ne.s32.totalorder %s25, %s28
    %p37 = scmp.eq.s32.totalorder %s20, 1
    %p38 = por %p36, %p37
    %p39 = scmp.ne.s32.totalorder %s28, %s29
    %p40 = scmp.eq.s32.totalorder %s20, 0
    %p41 = por %p39, %p40
    %p42 = scmp.ne.s32.totalorder %s28, %s29
    %p43 = scmp.eq.s32.totalorder %s21, 1
    %p44 = por %p42, %p43
    %p46 = scmp.ne.s32.totalorder %s29, %s45
    %p47 = scmp.eq.s32.totalorder %s21, 0
    %p48 = por %p46, %p47
    %s50 = sadd.s32 %s49, 1
    %p53 = scmp.eq.s32.totalorder %s15, 1
    %p54 = scmp.ne.s32.totalorder %s49, %s51
    %p55 = scmp.eq.s32.totalorder %s15, 0
    %p56 = por %p54, %p55
    %p57 = scmp.ne.s32.totalorder %s49, %s51
    %p58 = scmp.eq.s32.totalorder %s20, 1
    %p59 = por %p57, %p58
    %p60 = scmp.ne.s32.totalorder %s51, %s52
    %p61 = scmp.eq.s32.totalorder %s20, 0
    %p62 = por %p60, %p61
    %p63 = scmp.ne.s32.totalorder %s51, %s52
    %p64 = scmp.eq.s32.totalorder %s21, 1
    %p65 = por %p63, %p64
    %p67 = scmp.ne.s32.totalorder %s52, %s66
    %p68 = scmp.eq.s32.totalorder %s21, 0
    %p69 = por %p67, %p68
    %s71 = sadd.s32 %s70, 1
    %p74 = scmp.eq.s32.totalorder %s15, 1
    %p75 = scmp.ne.s32.totalorder %s70, %s72
    %p76 = scmp.eq.s32.totalorder %s15, 0
    %p77 = por %p75, %p76
    %p78 = scmp.ne.s32.totalorder %s70, %s72
    %p79 = scmp.eq.s32.totalorder %s20, 1
    %p80 = por %p78, %p79
    %p81 = scmp.ne.s32.totalorder %s72, %s73
    %p82 = scmp.eq.s32.totalorder %s20, 0
    %p83 = por %p81, %p82
    %p84 = scmp.ne.s32.totalorder %s72, %s73
    %p85 = scmp.eq.s32.totalorder %s21, 1
    %p86 = por %p84, %p85
    %p88 = scmp.ne.s32.totalorder %s73, %s87
    %p89 = scmp.eq.s32.totalorder %s21, 0
    %p90 = por %p88, %p89
    %s92 = sadd.s32 %s91, 1
    %p95 = scmp.eq.s32.totalorder %s15, 1
    %p96 = scmp.ne.s32.totalorder %s91, %s93
    %p97 = scmp.eq.s32.totalorder %s15, 0
    %p98 = por %p96, %p97
    %p99 = scmp.ne.s32.totalorder %s91, %s93
    %p100 = scmp.eq.s32.totalorder %s20, 1
    %p101 = por %p99, %p100
    %p102 = scmp.ne.s32.totalorder %s93, %s94
    %p103 = scmp.eq.s32.totalorder %s20, 0
    %p104 = por %p102, %p103
    %p105 = scmp.ne.s32.totalorder %s93, %s94
    %p106 = scmp.eq.s32.totalorder %s21, 1
    %p107 = por %p105, %p106
    %p109 = scmp.ne.s32.totalorder %s94, %s108
    %p110 = scmp.eq.s32.totalorder %s21, 0
    %p111 = por %p109, %p110
    %s113 = sadd.s32 %s112, 1
    %p116 = scmp.eq.s32.totalorder %s15, 1
    %p117 = scmp.ne.s32.totalorder %s112, %s114
    %p118 = scmp.eq.s32.totalorder %s15, 0
    %p119 = por %p117, %p118
    %p120 = scmp.ne.s32.totalorder %s112, %s114
    %p121 = scmp.eq.s32.totalorder %s20, 1
    %p122 = por %p120, %p121
    %p123 = scmp.ne.s32.totalorder %s114, %s115
    %p124 = scmp.eq.s32.totalorder %s20, 0
    %p125 = por %p123, %p124
    %p126 = scmp.ne.s32.totalorder %s114, %s115
    %p127 = scmp.eq.s32.totalorder %s21, 1
    %p128 = por %p126, %p127
    %p130 = scmp.ne.s32.totalorder %s115, %s129
    %p131 = scmp.eq.s32.totalorder %s21, 0
    %p132 = por %p130, %p131
    %s134 = sadd.s32 %s133, 1
    %p137 = scmp.eq.s32.totalorder %s15, 1
    %p138 = scmp.ne.s32.totalorder %s133, %s135
    %p139 = scmp.eq.s32.totalorder %s15, 0
    %p140 = por %p138, %p139
    %p141 = scmp.ne.s32.totalorder %s133, %s135
    %p142 = scmp.eq.s32.totalorder %s20, 1
    %p143 = por %p141, %p142
    %p144 = scmp.ne.s32.totalorder %s135, %s136
    %p145 = scmp.eq.s32.totalorder %s20, 0
    %p146 = por %p144, %p145
    %p147 = scmp.ne.s32.totalorder %s135, %s136
    %p148 = scmp.eq.s32.totalorder %s21, 1
    %p149 = por %p147, %p148
    %p151 = scmp.ne.s32.totalorder %s136, %s150
    %p152 = scmp.eq.s32.totalorder %s21, 0
    %p153 = por %p151, %p152
    %s155 = sadd.s32 %s154, 1
    %p158 = scmp.eq.s32.totalorder %s15, 1
    %p159 = scmp.ne.s32.totalorder %s154, %s156
    %p160 = scmp.eq.s32.totalorder %s15, 0
    %p161 = por %p159, %p160
    %p162 = scmp.ne.s32.totalorder %s154, %s156
    %p163 = scmp.eq.s32.totalorder %s20, 1
    %p164 = por %p162, %p163
    %p165 = scmp.ne.s32.totalorder %s156, %s157
    %p166 = scmp.eq.s32.totalorder %s20, 0
    %p167 = por %p165, %p166
    %p168 = scmp.ne.s32.totalorder %s156, %s157
    %p169 = scmp.eq.s32.totalorder %s21, 1
    %p170 = por %p168, %p169
    %p172 = scmp.ne.s32.totalorder %s157, %s171
    %p173 = scmp.eq.s32.totalorder %s21, 0
    %p174 = por %p172, %p173
    %s176 = sadd.s32 %s175, 1
    %p179 = scmp.eq.s32.totalorder %s15, 1
    %p180 = scmp.ne.s32.totalorder %s175, %s177
    %p181 = scmp.eq.s32.totalorder %s15, 0
    %p182 = por %p180, %p181
    %p183 = scmp.ne.s32.totalorder %s175, %s177
    %p184 = scmp.eq.s32.totalorder %s20, 1
    %p185 = por %p183, %p184
    %p186 = scmp.ne.s32.totalorder %s177, %s178
    %p187 = scmp.eq.s32.totalorder %s20, 0
    %p188 = por %p186, %p187
    %p189 = scmp.ne.s32.totalorder %s177, %s178
    %p190 = scmp.eq.s32.totalorder %s21, 1
    %p191 = por %p189, %p190
    %p193 = scmp.ne.s32.totalorder %s178, %s192
    %p194 = scmp.eq.s32.totalorder %s21, 0
    %p195 = por %p193, %p194
    %s197 = sadd.s32 %s196, 1
    %p200 = scmp.eq.s32.totalorder %s15, 1
    %p201 = scmp.ne.s32.totalorder %s196, %s198
    %p202 = scmp.eq.s32.totalorder %s15, 0
    %p203 = por %p201, %p202
    %p204 = scmp.ne.s32.totalorder %s196, %s198
    %p205 = scmp.eq.s32.totalorder %s20, 1
    %p206 = por %p204, %p205
    %p207 = scmp.ne.s32.totalorder %s198, %s199
    %p208 = scmp.eq.s32.totalorder %s20, 0
    %p209 = por %p207, %p208
    %p210 = scmp.ne.s32.totalorder %s198, %s199
    %p211 = scmp.eq.s32.totalorder %s21, 1
    %p212 = por %p210, %p211
    %p214 = scmp.ne.s32.totalorder %s199, %s213
    %p215 = scmp.eq.s32.totalorder %s21, 0
    %p216 = por %p214, %p215
    %s217 = ssub.s32 %s15, %s22
    %p218 = scmp.eq.s32.totalorder %s217, 0
    %s220 = sadd.s32 %s219, 1
    %s221 = scalar_select %p218, %s219, %s220
    %p224 = pneg %p218
    %p225 = scmp.eq.s32.totalorder %s15, 1
    %p226 = por %p224, %p225
    %p227 = scmp.ne.s32.totalorder %s219, %s222
    %p228 = scmp.eq.s32.totalorder %s15, 0
    %p229 = por %p227, %p228
    %p230 = scmp.ne.s32.totalorder %s219, %s222
    %p231 = scmp.eq.s32.totalorder %s20, 1
    %p232 = por %p230, %p231
    %p233 = scmp.ne.s32.totalorder %s222, %s223
    %p234 = scmp.eq.s32.totalorder %s20, 0
    %p235 = por %p233, %p234
    %p236 = scmp.ne.s32.totalorder %s222, %s223
    %p237 = scmp.eq.s32.totalorder %s21, 1
    %p238 = por %p236, %p237
    %p240 = scmp.ne.s32.totalorder %s223, %s239
    %p241 = scmp.eq.s32.totalorder %s21, 0
    %p242 = por %p240, %p241
    %p243 = scmp.le.s32.totalorder 1, %s15
    %p244 = scmp.lt.s32.totalorder %s15, 3
    %p245 = pnand %p243, %p244
    %p246 = pneg %p245
    // Predicated region
    $region9: #{swin_forward.12} parent=5 // pred_check
      _
    $region10: #{swin_forward.12} parent=5 // pred_check_branch
      %248 = sbr.rel (%p245) target = $region12
    $region11: #{swin_forward.12} parent=5 // pred_region
      %s249 = ssub.s32 %s15, 1
      // Predicated region
      $region13: #{swin_forward.12} parent=11 // pred_check
        %p250 = pneg %p62
      $region14: #{swin_forward.12} parent=11 // pred_check_branch
        %252 = sbr.rel (%p250) target = $region16
      $region15: #{swin_forward.12} parent=11 // pred_region
        _
      $region16: #{swin_forward.12} parent=11 // pred_fallthru
        _
      // Predicated region
      $region17: #{swin_forward.12} parent=11 // pred_check
        %p253 = pneg %p83
      $region18: #{swin_forward.12} parent=11 // pred_check_branch
        %255 = sbr.rel (%p253) target = $region20
      $region19: #{swin_forward.12} parent=11 // pred_region
        _
      $region20: #{swin_forward.12} parent=11 // pred_fallthru
        _
      // Predicated region
      $region21: #{swin_forward.12} parent=11 // pred_check
        %p256 = pneg %p104
      $region22: #{swin_forward.12} parent=11 // pred_check_branch
        %258 = sbr.rel (%p256) target = $region24
      $region23: #{swin_forward.12} parent=11 // pred_region
        _
      $region24: #{swin_forward.12} parent=11 // pred_fallthru
        _
      // Predicated region
      $region25: #{swin_forward.12} parent=11 // pred_check
        %p259 = pneg %p125
      $region26: #{swin_forward.12} parent=11 // pred_check_branch
        %261 = sbr.rel (%p259) target = $region28
      $region27: #{swin_forward.12} parent=11 // pred_region
        _
      $region28: #{swin_forward.12} parent=11 // pred_fallthru
        _
      // Predicated region
      $region29: #{swin_forward.12} parent=11 // pred_check
        %p262 = pneg %p146
      $region30: #{swin_forward.12} parent=11 // pred_check_branch
        %264 = sbr.rel (%p262) target = $region32
      $region31: #{swin_forward.12} parent=11 // pred_region
        _
      $region32: #{swin_forward.12} parent=11 // pred_fallthru
        _
      // Predicated region
      $region33: #{swin_forward.12} parent=11 // pred_check
        %p265 = pneg %p167
      $region34: #{swin_forward.12} parent=11 // pred_check_branch
        %267 = sbr.rel (%p265) target = $region36
      $region35: #{swin_forward.12} parent=11 // pred_region
        _
      $region36: #{swin_forward.12} parent=11 // pred_fallthru
        _
      // Predicated region
      $region37: #{swin_forward.12} parent=11 // pred_check
        %p268 = pneg %p188
      $region38: #{swin_forward.12} parent=11 // pred_check_branch
        %270 = sbr.rel (%p268) target = $region40
      $region39: #{swin_forward.12} parent=11 // pred_region
        _
      $region40: #{swin_forward.12} parent=11 // pred_fallthru
        _
      // Predicated region
      $region41: #{swin_forward.12} parent=11 // pred_check
        %p271 = pneg %p209
      $region42: #{swin_forward.12} parent=11 // pred_check_branch
        %273 = sbr.rel (%p271) target = $region44
      $region43: #{swin_forward.12} parent=11 // pred_region
        _
      $region44: #{swin_forward.12} parent=11 // pred_fallthru
        _
    $region12: #{swin_forward.12} parent=5 // pred_fallthru
      _
    %p274 = scmp.lt.s32.totalorder %s15, 2
    // Predicated region
    $region45: #{swin_forward.12} parent=5 // pred_check
      %p275 = pneg %p274
    $region46: #{swin_forward.12} parent=5 // pred_check_branch
      %277 = sbr.rel (%p275) target = $region48
    $region47: #{swin_forward.12} parent=5 // pred_region
      // Predicated region
      $region49: #{swin_forward.12} parent=47 // pred_check
        %p278 = pneg %p35
      $region50: #{swin_forward.12} parent=47 // pred_check_branch
        %280 = sbr.rel (%p278) target = $region52
      $region51: #{swin_forward.12} parent=47 // pred_region
        %s281 = smul.u32 4, %s15
        %p282 = scmp.lt.s32.totalorder %s281, 7
        %s283 = scalar_select %p282, %s281, 7
        %s284 = smul.addr %s283, 2
        %s285 = smul.addr %s284, 8
        %s286 = scalar_lea.vmem %s0, %s285
        %s287 = smul.u32 4, %s15
      $region52: #{swin_forward.12} parent=47 // pred_fallthru
        _
    $region48: #{swin_forward.12} parent=5 // pred_fallthru
      _
    %p288 = scmp.le.s32.totalorder 1, %s15
    %p289 = scmp.lt.s32.totalorder %s15, 3
    %p290 = pnand %p288, %p289
    %p291 = pneg %p290
    // Predicated region
    $region53: #{swin_forward.12} parent=5 // pred_check
      _
    $region54: #{swin_forward.12} parent=5 // pred_check_branch
      %293 = sbr.rel (%p290) target = $region56
    $region55: #{swin_forward.12} parent=5 // pred_region
      %s294 = ssub.s32 %s15, 1
      %s295 = smul.u32 4, %s20
      %p296 = scmp.lt.s32.totalorder %s295, 7
      %s297 = scalar_select %p296, %s295, 7
      %s298 = smul.addr %s297, 2
      %s299 = smul.addr %s298, 8
      %s300 = scalar_lea.vmem %s0, %s299
      %p301 = pneg %p41
      %p302 = pneg %p38
      %p303 = pneg %p62
      %p304 = pneg %p59
      %p305 = pneg %p83
      %p306 = pneg %p80
      %p307 = pneg %p104
      %p308 = pneg %p101
      %p309 = pneg %p125
      %p310 = pneg %p122
      %p311 = pneg %p146
      %p312 = pneg %p143
      %p313 = pneg %p167
      %p314 = pneg %p164
      %p315 = pneg %p188
      %p316 = pneg %p185
      %p317 = pneg %p209
      %p318 = pneg %p206
      %p319 = pneg %p235
      %p320 = pneg %p232
      %s321 = smul.u32 4, %s20
      %p322 = scmp.lt.s32.totalorder %s321, 7
      %s323 = scalar_select %p322, %s321, 7
      %s324 = smul.addr %s323, 2
      %s325 = smul.addr %s324, 8
      %s326 = scalar_lea.vmem %s9, %s325
      %s327 = smul.u32 4, %s20
      %p328 = scmp.lt.s32.totalorder %s327, 7
      %s329 = scalar_select %p328, %s327, 7
      %s330 = smul.addr %s329, 2
      %s331 = smul.addr %s330, 8
      %s332 = scalar_lea.vmem %s0, %s331
      %s333 = smul.u32 4, %s20
      %s334 = smul.u32 4, %s20
      %p335 = scmp.lt.s32.totalorder %s334, 7
      %s336 = scalar_select %p335, %s334, 7
      %s337 = smul.addr %s336, 2
      %s338 = smul.addr %s337, 8
      %s339 = scalar_lea.vmem %s9, %s338
      %s340 = smul.u32 4, %s20
      %v342 = vld [vmem:[%s332] sm:$0xff]
      %v343 = vld [vmem:[%s332 + $0x8] sm:$0xff]
      %v344 = vld [vmem:[%s332 + $0x10] sm:$0xff]
      %v345 = vld [vmem:[%s332 + $0x18] sm:$0xff]
      %v346 = vld [vmem:[%s332 + $0x20] sm:$0xff]
      %v347 = vld [vmem:[%s332 + $0x28] sm:$0xff]
      %v348 = vld [vmem:[%s332 + $0x30] sm:$0xff]
      %v349 = vld [vmem:[%s332 + $0x38] sm:$0xff]
      %v350 = vld [vmem:[%s1] sm:$0x1]
      %v351 = vld [vmem:[%s2] sm:$0x1]
      %vm352 = vcmask 261120
      %v353 = vsel %vm352, %v342, 0.0
      %354 = vadd.xlane.f32.xlu0 %v353
      %v355 = vpop.xlane.xlu0 %354
      %v356 = vsel %vm352, %v343, 0.0
      %357 = vadd.xlane.f32.xlu0 %v356
      %v358 = vpop.xlane.xlu0 %357
      %v359 = vsel %vm352, %v344, 0.0
      %360 = vadd.xlane.f32.xlu0 %v359
      %v361 = vpop.xlane.xlu0 %360
      %v362 = vsel %vm352, %v345, 0.0
      %363 = vadd.xlane.f32.xlu0 %v362
      %v364 = vpop.xlane.xlu0 %363
      %v365 = vsel %vm352, %v346, 0.0
      %366 = vadd.xlane.f32.xlu0 %v365
      %v367 = vpop.xlane.xlu0 %366
      %v368 = vsel %vm352, %v347, 0.0
      %369 = vadd.xlane.f32.xlu0 %v368
      %v370 = vpop.xlane.xlu0 %369
      %v371 = vsel %vm352, %v348, 0.0
      %372 = vadd.xlane.f32.xlu0 %v371
      %v373 = vpop.xlane.xlu0 %372
      %v374 = vsel %vm352, %v349, 0.0
      %375 = vadd.xlane.f32.xlu0 %v374
      %v376 = vpop.xlane.xlu0 %375
      %v377 = vrcp.pop 32.0
      %v378 = vmul.f32 %v355, %v377
      %v379 = vmul.f32 %v358, %v377
      %v380 = vmul.f32 %v361, %v377
      %v381 = vmul.f32 %v364, %v377
      %v382 = vmul.f32 %v367, %v377
      %v383 = vmul.f32 %v370, %v377
      %v384 = vmul.f32 %v373, %v377
      %v385 = vmul.f32 %v376, %v377
      %v386 = vsub.f32 %v342, %v378
      %v387 = vsub.f32 %v343, %v379
      %v388 = vsub.f32 %v344, %v380
      %v389 = vsub.f32 %v345, %v381
      %v390 = vsub.f32 %v346, %v382
      %v391 = vsub.f32 %v347, %v383
      %v392 = vsub.f32 %v348, %v384
      %v393 = vsub.f32 %v349, %v385
      %v394 = vmul.f32 %v386, %v386
      %v395 = vmul.f32 %v387, %v387
      %v396 = vmul.f32 %v388, %v388
      %v397 = vmul.f32 %v389, %v389
      %v398 = vmul.f32 %v390, %v390
      %v399 = vmul.f32 %v391, %v391
      %v400 = vmul.f32 %v392, %v392
      %v401 = vmul.f32 %v393, %v393
      %v402 = vsel %vm352, %v394, 0.0
      %403 = vadd.xlane.f32.xlu0 %v402
      %v404 = vpop.xlane.xlu0 %403
      %v405 = vsel %vm352, %v395, 0.0
      %406 = vadd.xlane.f32.xlu0 %v405
      %v407 = vpop.xlane.xlu0 %406
      %v408 = vsel %vm352, %v396, 0.0
      %409 = vadd.xlane.f32.xlu0 %v408
      %v410 = vpop.xlane.xlu0 %409
      %v411 = vsel %vm352, %v397, 0.0
      %412 = vadd.xlane.f32.xlu0 %v411
      %v413 = vpop.xlane.xlu0 %412
      %v414 = vsel %vm352, %v398, 0.0
      %415 = vadd.xlane.f32.xlu0 %v414
      %v416 = vpop.xlane.xlu0 %415
      %v417 = vsel %vm352, %v399, 0.0
      %418 = vadd.xlane.f32.xlu0 %v417
      %v419 = vpop.xlane.xlu0 %418
      %v420 = vsel %vm352, %v400, 0.0
      %421 = vadd.xlane.f32.xlu0 %v420
      %v422 = vpop.xlane.xlu0 %421
      %v423 = vsel %vm352, %v401, 0.0
      %424 = vadd.xlane.f32.xlu0 %v423
      %v425 = vpop.xlane.xlu0 %424
      %v426 = vmul.f32 %v404, %v377
      %v427 = vmul.f32 %v407, %v377
      %v428 = vmul.f32 %v410, %v377
      %v429 = vmul.f32 %v413, %v377
      %v430 = vmul.f32 %v416, %v377
      %v431 = vmul.f32 %v419, %v377
      %v432 = vmul.f32 %v422, %v377
      %v433 = vmul.f32 %v425, %v377
      %v434 = vadd.f32 %v426, 1e-05
      %v435 = vadd.f32 %v427, 1e-05
      %v436 = vadd.f32 %v428, 1e-05
      %v437 = vadd.f32 %v429, 1e-05
      %v438 = vadd.f32 %v430, 1e-05
      %v439 = vadd.f32 %v431, 1e-05
      %v440 = vadd.f32 %v432, 1e-05
      %v441 = vadd.f32 %v433, 1e-05
      %v442 = vrsqrt.pop %v434
      %v443 = vrsqrt.pop %v435
      %v444 = vrsqrt.pop %v436
      %v445 = vrsqrt.pop %v437
      %v446 = vrsqrt.pop %v438
      %v447 = vrsqrt.pop %v439
      %v448 = vrsqrt.pop %v440
      %v449 = vrsqrt.pop %v441
      %v450 = vmul.f32 %v386, %v442
      %v451 = vmul.f32 %v387, %v443
      %v452 = vmul.f32 %v388, %v444
      %v453 = vmul.f32 %v389, %v445
      %v454 = vmul.f32 %v390, %v446
      %v455 = vmul.f32 %v391, %v447
      %v456 = vmul.f32 %v392, %v448
      %v457 = vmul.f32 %v393, %v449
      %v459 = vlaneseq
      %v460 = vshrl.u32 %v459, 7
      %v461 = vsub.s32 0, %v460
      %v462 = vrot.slane %v350, %v461
      %v464 = vmul.f32 %v450, %v462
      %v465 = vmul.f32 %v451, %v462
      %v466 = vmul.f32 %v452, %v462
      %v467 = vmul.f32 %v453, %v462
      %v468 = vmul.f32 %v454, %v462
      %v469 = vmul.f32 %v455, %v462
      %v470 = vmul.f32 %v456, %v462
      %v471 = vmul.f32 %v457, %v462
      %v473 = vlaneseq
      %v474 = vshrl.u32 %v473, 7
      %v475 = vsub.s32 0, %v474
      %v476 = vrot.slane %v351, %v475
      %v478 = vadd.f32 %v464, %v476
      %v479 = vadd.f32 %v465, %v476
      %v480 = vadd.f32 %v466, %v476
      %v481 = vadd.f32 %v467, %v476
      %v482 = vadd.f32 %v468, %v476
      %v483 = vadd.f32 %v469, %v476
      %v484 = vadd.f32 %v470, %v476
      %v485 = vadd.f32 %v471, %v476
      %v486 = vld [vmem:[%s3] sm:$0xff]
      %v487 = vld [vmem:[%s3 + $0x8] sm:$0xff]
      %v488 = vld [vmem:[%s3 + $0x10] sm:$0xff]
      %v489 = vld [vmem:[%s3 + $0x18] sm:$0xff]
      %v490 = vpack.c.bf16 %v479, %v478
      %v491 = vpack.c.bf16 %v481, %v480
      %v492 = vpack.c.bf16 %v483, %v482
      %v493 = vpack.c.bf16 %v485, %v484
      %v494 = vpack.c.bf16 %v487, %v486
      %v495 = vpack.c.bf16 %v489, %v488
      %v496 = vld [vmem:[%s4] sm:$0x1]
      %v498 = vlaneseq
      %v499 = vshrl.u32 %v498, 7
      %v500 = vsub.s32 0, %v499
      %v501 = vrot.slane %v496, %v500
      %v504 = vsel %vm352, %v490, 0
      %v507 = vsel %vm352, %v491, 0
      %v510 = vsel %vm352, %v492, 0
      %v513 = vsel %vm352, %v493, 0
      %515 = vmatprep.subr.bf16.mxu0 0
      %516 = vmatpush1.bf16.msra.mxu0 %v494
      %517 = vmatprep.subr.bf16.mxu0 0
      %518 = vmatpush1.bf16.msra.mxu0 %v495
      %519 = vmatprep.subr.bf16.mxu0 0
      %520 = vmatpush1.bf16.msra.mxu0 0
      %521 = vmatprep.subr.bf16.mxu0 0
      %522 = vmatpush1.bf16.msra.mxu0 0
      %523 = vmatprep.subr.bf16.mxu0 0
      %524 = vmatpush1.bf16.msra.mxu0 0
      %525 = vmatprep.subr.bf16.mxu0 0
      %526 = vmatpush1.bf16.msra.mxu0 0
      %527 = vmatprep.subr.bf16.mxu0 0
      %528 = vmatpush1.bf16.msra.mxu0 0
      %529 = vmatprep.subr.bf16.mxu0 0
      %530 = vmatpush1.bf16.msra.mxu0 0
      %531 = vmatprep.subr.bf16.mxu0 0
      %532 = vmatpush1.bf16.msra.mxu0 0
      %533 = vmatprep.subr.bf16.mxu0 0
      %534 = vmatpush1.bf16.msra.mxu0 0
      %535 = vmatprep.subr.bf16.mxu0 0
      %536 = vmatpush1.bf16.msra.mxu0 0
      %537 = vmatprep.subr.bf16.mxu0 0
      %538 = vmatpush1.bf16.msra.mxu0 0
      %539 = vmatprep.subr.bf16.mxu0 0
      %540 = vmatpush1.bf16.msra.mxu0 0
      %541 = vmatprep.subr.bf16.mxu0 0
      %542 = vmatpush1.bf16.msra.mxu0 0
      %543 = vmatprep.subr.bf16.mxu0 0
      %544 = vmatpush1.bf16.msra.mxu0 0
      %545 = vmatprep.subr.bf16.mxu0 0
      %546 = vmatpush1.bf16.msra.mxu0 0
      %547 = vmatprep.mubr.bf16.mxu0 0
      %548 = vmatmul.mubr.bf16.gmra.mrb[0].mxu0 %v504
      %v549 = vpop.f32.mrb[0].mxu0
      %v550 = vadd.f32 %v501, %v549
      %v551 = vpop.f32.mrb[0].mxu0
      %v552 = vpop.f32.mrb[0].mxu0
      %v553 = vadd.f32 %v501, %v552
      %v554 = vpop.f32.mrb[0].mxu0
      %555 = vmatprep.mubr.bf16.mxu0 0
      %556 = vmatmul.mubr.bf16.gmra.mrb[0].mxu0 %v507
      %v557 = vpop.f32.mrb[0].mxu0
      %v558 = vadd.f32 %v501, %v557
      %v559 = vpop.f32.mrb[0].mxu0
      %v560 = vpop.f32.mrb[0].mxu0
      %v561 = vadd.f32 %v501, %v560
      %v562 = vpop.f32.mrb[0].mxu0
      %563 = vmatprep.mubr.bf16.mxu0 0
      %564 = vmatmul.mubr.bf16.gmra.mrb[0].mxu0 %v510
      %v565 = vpop.f32.mrb[0].mxu0
      %v566 = vadd.f32 %v501, %v565
      %v567 = vpop.f32.mrb[0].mxu0
      %v568 = vpop.f32.mrb[0].mxu0
      %v569 = vadd.f32 %v501, %v568
      %v570 = vpop.f32.mrb[0].mxu0
      %571 = vmatprep.mubr.bf16.mxu0 0
      %572 = vmatmul.mubr.bf16.gmra.mrb[0].mxu0 %v513
      %v573 = vpop.f32.mrb[0].mxu0
      %v574 = vadd.f32 %v501, %v573
      %v575 = vpop.f32.mrb[0].mxu0
      %v576 = vpop.f32.mrb[0].mxu0
      %v577 = vadd.f32 %v501, %v576
      %v578 = vpop.f32.mrb[0].mxu0
      %579 = vdwg.mxu0
      %v580 = vld [vmem:[%s5] sm:$0xff]
      %v581 = vld [vmem:[%s5 + $0x8] sm:$0xff]
      %v582 = vld [vmem:[%s5 + $0x10] sm:$0xff]
      %v583 = vld [vmem:[%s5 + $0x18] sm:$0xff]
      %v584 = vld [vmem:[%s6] sm:$0xff]
      %v585 = vld [vmem:[%s6 + $0x8] sm:$0xff]
      %v586 = vld [vmem:[%s6 + $0x10] sm:$0xff]
      %v587 = vld [vmem:[%s6 + $0x18] sm:$0xff]
      %v588 = vld [vmem:[%s6 + $0x20] sm:$0xff]
      %v589 = vld [vmem:[%s6 + $0x28] sm:$0xff]
      %v590 = vld [vmem:[%s6 + $0x30] sm:$0xff]
      %v591 = vld [vmem:[%s6 + $0x38] sm:$0xff]
      %v592 = vld [vmem:[%s7] sm:$0xff]
      %v593 = vld [vmem:[%s7 + $0x8] sm:$0xff]
      %v594 = vld [vmem:[%s7 + $0x10] sm:$0xff]
      %v595 = vld [vmem:[%s7 + $0x18] sm:$0xff]
      %v596 = vmul.f32 %v550, 0.25
      %v597 = vmul.f32 %v553, 0.25
      %v598 = vmul.f32 %v558, 0.25
      %v599 = vmul.f32 %v561, 0.25
      %v600 = vmul.f32 %v566, 0.25
      %v601 = vmul.f32 %v569, 0.25
      %v602 = vmul.f32 %v574, 0.25
      %v603 = vmul.f32 %v577, 0.25
      %v604 = vpack.c.bf16 %v597, %v596
      %v605 = vpack.c.bf16 %v599, %v598
      %v606 = vpack.c.bf16 %v601, %v600
      %v607 = vpack.c.bf16 %v603, %v602
      %v608 = vpack.c.bf16 %v553, %v550
      %v609 = vpack.c.bf16 %v561, %v558
      %v610 = vpack.c.bf16 %v569, %v566
      %v611 = vpack.c.bf16 %v577, %v574
      %613 = vrot.lane.b32.xlu0 %v608, 96
      %v614 = vpop.permute.xlu0 %613
      %vm615 = vcmask 130048
      %v617 = vsel %vm615, %v604, 0
      %v620 = vsel %vm615, %v614, 0
      %622 = vmatprep.subr.bf16.mxu0 0
      %623 = vmatpush1.bf16.xpose.msra.mxu0 %v620
      %624 = vmatprep.subr.bf16.mxu0 0
      %625 = vmatpush1.bf16.xpose.msra.mxu0 0
      %626 = vmatprep.subr.bf16.mxu0 0
      %627 = vmatpush1.bf16.xpose.msra.mxu0 0
      %628 = vmatprep.subr.bf16.mxu0 0
      %629 = vmatpush1.bf16.xpose.msra.mxu0 0
      %630 = vmatprep.subr.bf16.mxu0 0
      %631 = vmatpush1.bf16.xpose.msra.mxu0 0
      %632 = vmatprep.subr.bf16.mxu0 0
      %633 = vmatpush1.bf16.xpose.msra.mxu0 0
      %634 = vmatprep.subr.bf16.mxu0 0
      %635 = vmatpush1.bf16.xpose.msra.mxu0 0
      %636 = vmatprep.subr.bf16.mxu0 0
      %637 = vmatpush1.bf16.xpose.msra.mxu0 0
      %638 = vmatprep.subr.bf16.mxu0 0
      %639 = vmatpush1.bf16.xpose.msra.mxu0 0
      %640 = vmatprep.subr.bf16.mxu0 0
      %641 = vmatpush1.bf16.xpose.msra.mxu0 0
      %642 = vmatprep.subr.bf16.mxu0 0
      %643 = vmatpush1.bf16.xpose.msra.mxu0 0
      %644 = vmatprep.subr.bf16.mxu0 0
      %645 = vmatpush1.bf16.xpose.msra.mxu0 0
      %646 = vmatprep.subr.bf16.mxu0 0
      %647 = vmatpush1.bf16.xpose.msra.mxu0 0
      %648 = vmatprep.subr.bf16.mxu0 0
      %649 = vmatpush1.bf16.xpose.msra.mxu0 0
      %650 = vmatprep.subr.bf16.mxu0 0
      %651 = vmatpush1.bf16.xpose.msra.mxu0 0
      %652 = vmatprep.subr.bf16.mxu0 0
      %653 = vmatpush1.bf16.xpose.msra.mxu0 0
      %654 = vmatprep.mubr.bf16.mxu0 0
      %655 = vmatmul.mubr.bf16.gmra.mrb[0].mxu0 %v617
      %v656 = vpop.f32.mrb[0].mxu0
      %v657 = vadd.f32 %v580, %v656
      %v658 = vpop.f32.mrb[0].mxu0
      %v659 = vpop.f32.mrb[0].mxu0
      %v660 = vadd.f32 %v581, %v659
      %v661 = vpop.f32.mrb[0].mxu0
      %662 = vdwg.mxu0
      %664 = vrot.lane.b32.xlu0 %v609, 96
      %v665 = vpop.permute.xlu0 %664
      %v667 = vsel %vm615, %v605, 0
      %v670 = vsel %vm615, %v665, 0
      %672 = vmatprep.subr.bf16.mxu0 0
      %673 = vmatpush1.bf16.xpose.msra.mxu0 %v670
      %674 = vmatprep.subr.bf16.mxu0 0
      %675 = vmatpush1.bf16.xpose.msra.mxu0 0
      %676 = vmatprep.subr.bf16.mxu0 0
      %677 = vmatpush1.bf16.xpose.msra.mxu0 0
      %678 = vmatprep.subr.bf16.mxu0 0
      %679 = vmatpush1.bf16.xpose.msra.mxu0 0
      %680 = vmatprep.subr.bf16.mxu0 0
      %681 = vmatpush1.bf16.xpose.msra.mxu0 0
      %682 = vmatprep.subr.bf16.mxu0 0
      %683 = vmatpush1.bf16.xpose.msra.mxu0 0
      %684 = vmatprep.subr.bf16.mxu0 0
      %685 = vmatpush1.bf16.xpose.msra.mxu0 0
      %686 = vmatprep.subr.bf16.mxu0 0
      %687 = vmatpush1.bf16.xpose.msra.mxu0 0
      %688 = vmatprep.subr.bf16.mxu0 0
      %689 = vmatpush1.bf16.xpose.msra.mxu0 0
      %690 = vmatprep.subr.bf16.mxu0 0
      %691 = vmatpush1.bf16.xpose.msra.mxu0 0
      %692 = vmatprep.subr.bf16.mxu0 0
      %693 = vmatpush1.bf16.xpose.msra.mxu0 0
      %694 = vmatprep.subr.bf16.mxu0 0
      %695 = vmatpush1.bf16.xpose.msra.mxu0 0
      %696 = vmatprep.subr.bf16.mxu0 0
      %697 = vmatpush1.bf16.xpose.msra.mxu0 0
      %698 = vmatprep.subr.bf16.mxu0 0
      %699 = vmatpush1.bf16.xpose.msra.mxu0 0
      %700 = vmatprep.subr.bf16.mxu0 0
      %701 = vmatpush1.bf16.xpose.msra.mxu0 0
      %702 = vmatprep.subr.bf16.mxu0 0
      %703 = vmatpush1.bf16.xpose.msra.mxu0 0
      %704 = vmatprep.mubr.bf16.mxu0 0
      %705 = vmatmul.mubr.bf16.gmra.mrb[0].mxu0 %v667
      %v706 = vpop.f32.mrb[0].mxu0
      %v707 = vadd.f32 %v580, %v706
      %v708 = vpop.f32.mrb[0].mxu0
      %v709 = vpop.f32.mrb[0].mxu0
      %v710 = vadd.f32 %v581, %v709
      %v711 = vpop.f32.mrb[0].mxu0
      %712 = vdwg.mxu0
      %714 = vrot.lane.b32.xlu0 %v610, 96
      %v715 = vpop.permute.xlu0 %714
      %v717 = vsel %vm615, %v606, 0
      %v720 = vsel %vm615, %v715, 0
      %722 = vmatprep.subr.bf16.mxu0 0
      %723 = vmatpush1.bf16.xpose.msra.mxu0 %v720
      %724 = vmatprep.subr.bf16.mxu0 0
      %725 = vmatpush1.bf16.xpose.msra.mxu0 0
      %726 = vmatprep.subr.bf16.mxu0 0
      %727 = vmatpush1.bf16.xpose.msra.mxu0 0
      %728 = vmatprep.subr.bf16.mxu0 0
      %729 = vmatpush1.bf16.xpose.msra.mxu0 0
      %730 = vmatprep.subr.bf16.mxu0 0
      %731 = vmatpush1.bf16.xpose.msra.mxu0 0
      %732 = vmatprep.subr.bf16.mxu0 0
      %733 = vmatpush1.bf16.xpose.msra.mxu0 0
      %734 = vmatprep.subr.bf16.mxu0 0
      %735 = vmatpush1.bf16.xpose.msra.mxu0 0
      %736 = vmatprep.subr.bf16.mxu0 0
      %737 = vmatpush1.bf16.xpose.msra.mxu0 0
      %738 = vmatprep.subr.bf16.mxu0 0
      %739 = vmatpush1.bf16.xpose.msra.mxu0 0
      %740 = vmatprep.subr.bf16.mxu0 0
      %741 = vmatpush1.bf16.xpose.msra.mxu0 0
      %742 = vmatprep.subr.bf16.mxu0 0
      %743 = vmatpush1.bf16.xpose.msra.mxu0 0
      %744 = vmatprep.subr.bf16.mxu0 0
      %745 = vmatpush1.bf16.xpose.msra.mxu0 0
      %746 = vmatprep.subr.bf16.mxu0 0
      %747 = vmatpush1.bf16.xpose.msra.mxu0 0
      %748 = vmatprep.subr.bf16.mxu0 0
      %749 = vmatpush1.bf16.xpose.msra.mxu0 0
      %750 = vmatprep.subr.bf16.mxu0 0
      %751 = vmatpush1.bf16.xpose.msra.mxu0 0
      %752 = vmatprep.subr.bf16.mxu0 0
      %753 = vmatpush1.bf16.xpose.msra.mxu0 0
      %754 = vmatprep.mubr.bf16.mxu0 0
      %755 = vmatmul.mubr.bf16.gmra.mrb[0].mxu0 %v717
      %v756 = vpop.f32.mrb[0].mxu0
      %v757 = vadd.f32 %v580, %v756
      %v758 = vpop.f32.mrb[0].mxu0
      %v759 = vpop.f32.mrb[0].mxu0
      %v760 = vadd.f32 %v581, %v759
      %v761 = vpop.f32.mrb[0].mxu0
      %762 = vdwg.mxu0
      %764 = vrot.lane.b32.xlu0 %v611, 96
      %v765 = vpop.permute.xlu0 %764
      %v767 = vsel %vm615, %v607, 0
      %v770 = vsel %vm615, %v765, 0
      %772 = vmatprep.subr.bf16.mxu0 0
      %773 = vmatpush1.bf16.xpose.msra.mxu0 %v770
      %774 = vmatprep.subr.bf16.mxu0 0
      %775 = vmatpush1.bf16.xpose.msra.mxu0 0
      %776 = vmatprep.subr.bf16.mxu0 0
      %777 = vmatpush1.bf16.xpose.msra.mxu0 0
      %778 = vmatprep.subr.bf16.mxu0 0
      %779 = vmatpush1.bf16.xpose.msra.mxu0 0
      %780 = vmatprep.subr.bf16.mxu0 0
      %781 = vmatpush1.bf16.xpose.msra.mxu0 0
      %782 = vmatprep.subr.bf16.mxu0 0
      %783 = vmatpush1.bf16.xpose.msra.mxu0 0
      %784 = vmatprep.subr.bf16.mxu0 0
      %785 = vmatpush1.bf16.xpose.msra.mxu0 0
      %786 = vmatprep.subr.bf16.mxu0 0
      %787 = vmatpush1.bf16.xpose.msra.mxu0 0
      %788 = vmatprep.subr.bf16.mxu0 0
      %789 = vmatpush1.bf16.xpose.msra.mxu0 0
      %790 = vmatprep.subr.bf16.mxu0 0
      %791 = vmatpush1.bf16.xpose.msra.mxu0 0
      %792 = vmatprep.subr.bf16.mxu0 0
      %793 = vmatpush1.bf16.xpose.msra.mxu0 0
      %794 = vmatprep.subr.bf16.mxu0 0
      %795 = vmatpush1.bf16.xpose.msra.mxu0 0
      %796 = vmatprep.subr.bf16.mxu0 0
      %797 = vmatpush1.bf16.xpose.msra.mxu0 0
      %798 = vmatprep.subr.bf16.mxu0 0
      %799 = vmatpush1.bf16.xpose.msra.mxu0 0
      %800 = vmatprep.subr.bf16.mxu0 0
      %801 = vmatpush1.bf16.xpose.msra.mxu0 0
      %802 = vmatprep.subr.bf16.mxu0 0
      %803 = vmatpush1.bf16.xpose.msra.mxu0 0
      %804 = vmatprep.mubr.bf16.mxu0 0
      %805 = vmatmul.mubr.bf16.gmra.mrb[0].mxu0 %v767
      %v806 = vpop.f32.mrb[0].mxu0
      %v807 = vadd.f32 %v580, %v806
      %v808 = vpop.f32.mrb[0].mxu0
      %v809 = vpop.f32.mrb[0].mxu0
      %v810 = vadd.f32 %v581, %v809
      %v811 = vpop.f32.mrb[0].mxu0
      %812 = vdwg.mxu0
      %v813 = vadd.f32 %v657, %v584
      %v814 = vadd.f32 %v660, %v585
      %v815 = vadd.f32 %v707, %v586
      %v816 = vadd.f32 %v710, %v587
      %v817 = vadd.f32 %v757, %v588
      %v818 = vadd.f32 %v760, %v589
      %v819 = vadd.f32 %v807, %v590
      %v820 = vadd.f32 %v810, %v591
      %v821 = vsel %vm615, %v813, -inf
      %822 = vmax.xlane.f32.xlu0 %v821
      %v823 = vpop.xlane.xlu0 %822
      %v824 = vsel %vm615, %v814, -inf
      %825 = vmax.xlane.f32.xlu0 %v824
      %v826 = vpop.xlane.xlu0 %825
      %v827 = vsel %vm615, %v815, -inf
      %828 = vmax.xlane.f32.xlu0 %v827
      %v829 = vpop.xlane.xlu0 %828
      %v830 = vsel %vm615, %v816, -inf
      %831 = vmax.xlane.f32.xlu0 %v830
      %v832 = vpop.xlane.xlu0 %831
      %v833 = vsel %vm615, %v817, -inf
      %834 = vmax.xlane.f32.xlu0 %v833
      %v835 = vpop.xlane.xlu0 %834
      %v836 = vsel %vm615, %v818, -inf
      %837 = vmax.xlane.f32.xlu0 %v836
      %v838 = vpop.xlane.xlu0 %837
      %v839 = vsel %vm615, %v819, -inf
      %840 = vmax.xlane.f32.xlu0 %v839
      %v841 = vpop.xlane.xlu0 %840
      %v842 = vsel %vm615, %v820, -inf
      %843 = vmax.xlane.f32.xlu0 %v842
      %v844 = vpop.xlane.xlu0 %843
      %v845 = vsub.f32 %v813, %v823
      %v846 = vsub.f32 %v814, %v826
      %v847 = vsub.f32 %v815, %v829
      %v848 = vsub.f32 %v816, %v832
      %v849 = vsub.f32 %v817, %v835
      %v850 = vsub.f32 %v818, %v838
      %v851 = vsub.f32 %v819, %v841
      %v852 = vsub.f32 %v820, %v844
      %v853 = vmul.f32 %v845, 1.442695
      %v854 = vpow.pop %v853
      %v855 = vmul.f32 %v846, 1.442695
      %v856 = vpow.pop %v855
      %v857 = vmul.f32 %v847, 1.442695
      %v858 = vpow.pop %v857
      %v859 = vmul.f32 %v848, 1.442695
      %v860 = vpow.pop %v859
      %v861 = vmul.f32 %v849, 1.442695
      %v862 = vpow.pop %v861
      %v863 = vmul.f32 %v850, 1.442695
      %v864 = vpow.pop %v863
      %v865 = vmul.f32 %v851, 1.442695
      %v866 = vpow.pop %v865
      %v867 = vmul.f32 %v852, 1.442695
      %v868 = vpow.pop %v867
      %v869 = vsel %vm615, %v854, 0.0
      %870 = vadd.xlane.f32.xlu0 %v869
      %v871 = vpop.xlane.xlu0 %870
      %v872 = vsel %vm615, %v856, 0.0
      %873 = vadd.xlane.f32.xlu0 %v872
      %v874 = vpop.xlane.xlu0 %873
      %v875 = vsel %vm615, %v858, 0.0
      %876 = vadd.xlane.f32.xlu0 %v875
      %v877 = vpop.xlane.xlu0 %876
      %v878 = vsel %vm615, %v860, 0.0
      %879 = vadd.xlane.f32.xlu0 %v878
      %v880 = vpop.xlane.xlu0 %879
      %v881 = vsel %vm615, %v862, 0.0
      %882 = vadd.xlane.f32.xlu0 %v881
      %v883 = vpop.xlane.xlu0 %882
      %v884 = vsel %vm615, %v864, 0.0
      %885 = vadd.xlane.f32.xlu0 %v884
      %v886 = vpop.xlane.xlu0 %885
      %v887 = vsel %vm615, %v866, 0.0
      %888 = vadd.xlane.f32.xlu0 %v887
      %v889 = vpop.xlane.xlu0 %888
      %v890 = vsel %vm615, %v868, 0.0
      %891 = vadd.xlane.f32.xlu0 %v890
      %v892 = vpop.xlane.xlu0 %891
      %v893 = vrcp.pop %v871
      %v894 = vrcp.pop %v874
      %v895 = vrcp.pop %v877
      %v896 = vrcp.pop %v880
      %v897 = vrcp.pop %v883
      %v898 = vrcp.pop %v886
      %v899 = vrcp.pop %v889
      %v900 = vrcp.pop %v892
      %v901 = vmul.f32 %v854, %v893
      %v902 = vmul.f32 %v856, %v894
      %v903 = vmul.f32 %v858, %v895
      %v904 = vmul.f32 %v860, %v896
      %v905 = vmul.f32 %v862, %v897
      %v906 = vmul.f32 %v864, %v898
      %v907 = vmul.f32 %v866, %v899
      %v908 = vmul.f32 %v868, %v900
      %v909 = vpack.c.bf16 %v902, %v901
      %v910 = vpack.c.bf16 %v904, %v903
      %v911 = vpack.c.bf16 %v906, %v905
      %v912 = vpack.c.bf16 %v908, %v907
      %913 = vrot.lane.b32.xlu0 %v608, 64
      %v914 = vpop.permute.xlu0 %913
      %v917 = vsel %vm615, %v909, 0
      %919 = vmatprep.subr.bf16.mxu0 0
      %920 = vmatpush1.bf16.msra.mxu0 %v914
      %921 = vmatprep.subr.bf16.mxu0 0
      %922 = vmatpush1.bf16.msra.mxu0 0
      %923 = vmatprep.subr.bf16.mxu0 0
      %924 = vmatpush1.bf16.msra.mxu0 0
      %925 = vmatprep.subr.bf16.mxu0 0
      %926 = vmatpush1.bf16.msra.mxu0 0
      %927 = vmatprep.subr.bf16.mxu0 0
      %928 = vmatpush1.bf16.msra.mxu0 0
      %929 = vmatprep.subr.bf16.mxu0 0
      %930 = vmatpush1.bf16.msra.mxu0 0
      %931 = vmatprep.subr.bf16.mxu0 0
      %932 = vmatpush1.bf16.msra.mxu0 0
      %933 = vmatprep.subr.bf16.mxu0 0
      %934 = vmatpush1.bf16.msra.mxu0 0
      %935 = vmatprep.subr.bf16.mxu0 0
      %936 = vmatpush1.bf16.msra.mxu0 0
      %937 = vmatprep.subr.bf16.mxu0 0
      %938 = vmatpush1.bf16.msra.mxu0 0
      %939 = vmatprep.subr.bf16.mxu0 0
      %940 = vmatpush1.bf16.msra.mxu0 0
      %941 = vmatprep.subr.bf16.mxu0 0
      %942 = vmatpush1.bf16.msra.mxu0 0
      %943 = vmatprep.subr.bf16.mxu0 0
      %944 = vmatpush1.bf16.msra.mxu0 0
      %945 = vmatprep.subr.bf16.mxu0 0
      %946 = vmatpush1.bf16.msra.mxu0 0
      %947 = vmatprep.subr.bf16.mxu0 0
      %948 = vmatpush1.bf16.msra.mxu0 0
      %949 = vmatprep.subr.bf16.mxu0 0
      %950 = vmatpush1.bf16.msra.mxu0 0
      %951 = vmatprep.mubr.bf16.mxu0 0
      %952 = vmatmul.mubr.bf16.gmra.mrb[0].mxu0 %v917
      %v953 = vpop.f32.mrb[0].mxu0
      %v954 = vadd.f32 0.0, %v953
      %v955 = vpop.f32.mrb[0].mxu0
      %v956 = vpop.f32.mrb[0].mxu0
      %v957 = vadd.f32 0.0, %v956
      %v958 = vpop.f32.mrb[0].mxu0
      %959 = vdwg.mxu0
      %960 = vrot.lane.b32.xlu0 %v609, 64
      %v961 = vpop.permute.xlu0 %960
      %v964 = vsel %vm615, %v910, 0
      %966 = vmatprep.subr.bf16.mxu0 0
      %967 = vmatpush1.bf16.msra.mxu0 %v961
      %968 = vmatprep.subr.bf16.mxu0 0
      %969 = vmatpush1.bf16.msra.mxu0 0
      %970 = vmatprep.subr.bf16.mxu0 0
      %971 = vmatpush1.bf16.msra.mxu0 0
      %972 = vmatprep.subr.bf16.mxu0 0
      %973 = vmatpush1.bf16.msra.mxu0 0
      %974 = vmatprep.subr.bf16.mxu0 0
      %975 = vmatpush1.bf16.msra.mxu0 0
      %976 = vmatprep.subr.bf16.mxu0 0
      %977 = vmatpush1.bf16.msra.mxu0 0
      %978 = vmatprep.subr.bf16.mxu0 0
      %979 = vmatpush1.bf16.msra.mxu0 0
      %980 = vmatprep.subr.bf16.mxu0 0
      %981 = vmatpush1.bf16.msra.mxu0 0
      %982 = vmatprep.subr.bf16.mxu0 0
      %983 = vmatpush1.bf16.msra.mxu0 0
      %984 = vmatprep.subr.bf16.mxu0 0
      %985 = vmatpush1.bf16.msra.mxu0 0
      %986 = vmatprep.subr.bf16.mxu0 0
      %987 = vmatpush1.bf16.msra.mxu0 0
      %988 = vmatprep.subr.bf16.mxu0 0
      %989 = vmatpush1.bf16.msra.mxu0 0
      %990 = vmatprep.subr.bf16.mxu0 0
      %991 = vmatpush1.bf16.msra.mxu0 0
      %992 = vmatprep.subr.bf16.mxu0 0
      %993 = vmatpush1.bf16.msra.mxu0 0
      %994 = vmatprep.subr.bf16.mxu0 0
      %995 = vmatpush1.bf16.msra.mxu0 0
      %996 = vmatprep.subr.bf16.mxu0 0
      %997 = vmatpush1.bf16.msra.mxu0 0
      %998 = vmatprep.mubr.bf16.mxu0 0
      %999 = vmatmul.mubr.bf16.gmra.mrb[0].mxu0 %v964
      %v1000 = vpop.f32.mrb[0].mxu0
      %v1001 = vadd.f32 0.0, %v1000
      %v1002 = vpop.f32.mrb[0].mxu0
      %v1003 = vpop.f32.mrb[0].mxu0
      %v1004 = vadd.f32 0.0, %v1003
      %v1005 = vpop.f32.mrb[0].mxu0
      %1006 = vdwg.mxu0
      %1007 = vrot.lane.b32.xlu0 %v610, 64
      %v1008 = vpop.permute.xlu0 %1007
      %v1011 = vsel %vm615, %v911, 0
      %1013 = vmatprep.subr.bf16.mxu0 0
      %1014 = vmatpush1.bf16.msra.mxu0 %v1008
      %1015 = vmatprep.subr.bf16.mxu0 0
      %1016 = vmatpush1.bf16.msra.mxu0 0
      %1017 = vmatprep.subr.bf16.mxu0 0
      %1018 = vmatpush1.bf16.msra.mxu0 0
      %1019 = vmatprep.subr.bf16.mxu0 0
      %1020 = vmatpush1.bf16.msra.mxu0 0
      %1021 = vmatprep.subr.bf16.mxu0 0
      %1022 = vmatpush1.bf16.msra.mxu0 0
      %1023 = vmatprep.subr.bf16.mxu0 0
      %1024 = vmatpush1.bf16.msra.mxu0 0
      %1025 = vmatprep.subr.bf16.mxu0 0
      %1026 = vmatpush1.bf16.msra.mxu0 0
      %1027 = vmatprep.subr.bf16.mxu0 0
      %1028 = vmatpush1.bf16.msra.mxu0 0
      %1029 = vmatprep.subr.bf16.mxu0 0
      %1030 = vmatpush1.bf16.msra.mxu0 0
      %1031 = vmatprep.subr.bf16.mxu0 0
      %1032 = vmatpush1.bf16.msra.mxu0 0
      %1033 = vmatprep.subr.bf16.mxu0 0
      %1034 = vmatpush1.bf16.msra.mxu0 0
      %1035 = vmatprep.subr.bf16.mxu0 0
      %1036 = vmatpush1.bf16.msra.mxu0 0
      %1037 = vmatprep.subr.bf16.mxu0 0
      %1038 = vmatpush1.bf16.msra.mxu0 0
      %1039 = vmatprep.subr.bf16.mxu0 0
      %1040 = vmatpush1.bf16.msra.mxu0 0
      %1041 = vmatprep.subr.bf16.mxu0 0
      %1042 = vmatpush1.bf16.msra.mxu0 0
      %1043 = vmatprep.subr.bf16.mxu0 0
      %1044 = vmatpush1.bf16.msra.mxu0 0
      %1045 = vmatprep.mubr.bf16.mxu0 0
      %1046 = vmatmul.mubr.bf16.gmra.mrb[0].mxu0 %v1011
      %v1047 = vpop.f32.mrb[0].mxu0
      %v1048 = vadd.f32 0.0, %v1047
      %v1049 = vpop.f32.mrb[0].mxu0
      %v1050 = vpop.f32.mrb[0].mxu0
      %v1051 = vadd.f32 0.0, %v1050
      %v1052 = vpop.f32.mrb[0].mxu0
      %1053 = vdwg.mxu0
      %1054 = vrot.lane.b32.xlu0 %v611, 64
      %v1055 = vpop.permute.xlu0 %1054
      %v1058 = vsel %vm615, %v912, 0
      %1060 = vmatprep.subr.bf16.mxu0 0
      %1061 = vmatpush1.bf16.msra.mxu0 %v1055
      %1062 = vmatprep.subr.bf16.mxu0 0
      %1063 = vmatpush1.bf16.msra.mxu0 0
      %1064 = vmatprep.subr.bf16.mxu0 0
      %1065 = vmatpush1.bf16.msra.mxu0 0
      %1066 = vmatprep.subr.bf16.mxu0 0
      %1067 = vmatpush1.bf16.msra.mxu0 0
      %1068 = vmatprep.subr.bf16.mxu0 0
      %1069 = vmatpush1.bf16.msra.mxu0 0
      %1070 = vmatprep.subr.bf16.mxu0 0
      %1071 = vmatpush1.bf16.msra.mxu0 0
      %1072 = vmatprep.subr.bf16.mxu0 0
      %1073 = vmatpush1.bf16.msra.mxu0 0
      %1074 = vmatprep.subr.bf16.mxu0 0
      %1075 = vmatpush1.bf16.msra.mxu0 0
      %1076 = vmatprep.subr.bf16.mxu0 0
      %1077 = vmatpush1.bf16.msra.mxu0 0
      %1078 = vmatprep.subr.bf16.mxu0 0
      %1079 = vmatpush1.bf16.msra.mxu0 0
      %1080 = vmatprep.subr.bf16.mxu0 0
      %1081 = vmatpush1.bf16.msra.mxu0 0
      %1082 = vmatprep.subr.bf16.mxu0 0
      %1083 = vmatpush1.bf16.msra.mxu0 0
      %1084 = vmatprep.subr.bf16.mxu0 0
      %1085 = vmatpush1.bf16.msra.mxu0 0
      %1086 = vmatprep.subr.bf16.mxu0 0
      %1087 = vmatpush1.bf16.msra.mxu0 0
      %1088 = vmatprep.subr.bf16.mxu0 0
      %1089 = vmatpush1.bf16.msra.mxu0 0
      %1090 = vmatprep.subr.bf16.mxu0 0
      %1091 = vmatpush1.bf16.msra.mxu0 0
      %1092 = vmatprep.mubr.bf16.mxu0 0
      %1093 = vmatmul.mubr.bf16.gmra.mrb[0].mxu0 %v1058
      %v1094 = vpop.f32.mrb[0].mxu0
      %v1095 = vadd.f32 0.0, %v1094
      %v1096 = vpop.f32.mrb[0].mxu0
      %v1097 = vpop.f32.mrb[0].mxu0
      %v1098 = vadd.f32 0.0, %v1097
      %v1099 = vpop.f32.mrb[0].mxu0
      %1100 = vdwg.mxu0
      %v1101 = vpack.c.bf16 %v957, %v954
      %v1102 = vpack.c.bf16 %v1004, %v1001
      %v1103 = vpack.c.bf16 %v1051, %v1048
      %v1104 = vpack.c.bf16 %v1098, %v1095
      %v1105 = vpack.c.bf16 %v593, %v592
      %1107 = vrot.lane.b32.xlu0 %v604, 112
      %v1108 = vpop.permute.xlu0 %1107
      %1109 = vrot.lane.b32.xlu0 %v608, 80
      %v1110 = vpop.permute.xlu0 %1109
      %v1112 = vsel %vm615, %v1108, 0
      %v1115 = vsel %vm615, %v1110, 0
      %1117 = vmatprep.subr.bf16.mxu0 0
      %1118 = vmatpush1.bf16.xpose.msra.mxu0 %v1115
      %1119 = vmatprep.subr.bf16.mxu0 0
      %1120 = vmatpush1.bf16.xpose.msra.mxu0 0
      %1121 = vmatprep.subr.bf16.mxu0 0
      %1122 = vmatpush1.bf16.xpose.msra.mxu0 0
      %1123 = vmatprep.subr.bf16.mxu0 0
      %1124 = vmatpush1.bf16.xpose.msra.mxu0 0
      %1125 = vmatprep.subr.bf16.mxu0 0
      %1126 = vmatpush1.bf16.xpose.msra.mxu0 0
      %1127 = vmatprep.subr.bf16.mxu0 0
      %1128 = vmatpush1.bf16.xpose.msra.mxu0 0
      %1129 = vmatprep.subr.bf16.mxu0 0
      %1130 = vmatpush1.bf16.xpose.msra.mxu0 0
      %1131 = vmatprep.subr.bf16.mxu0 0
      %1132 = vmatpush1.bf16.xpose.msra.mxu0 0
      %1133 = vmatprep.subr.bf16.mxu0 0
      %1134 = vmatpush1.bf16.xpose.msra.mxu0 0
      %1135 = vmatprep.subr.bf16.mxu0 0
      %1136 = vmatpush1.bf16.xpose.msra.mxu0 0
      %1137 = vmatprep.subr.bf16.mxu0 0
      %1138 = vmatpush1.bf16.xpose.msra.mxu0 0
      %1139 = vmatprep.subr.bf16.mxu0 0
      %1140 = vmatpush1.bf16.xpose.msra.mxu0 0
      %1141 = vmatprep.subr.bf16.mxu0 0
      %1142 = vmatpush1.bf16.xpose.msra.mxu0 0
      %1143 = vmatprep.subr.bf16.mxu0 0
      %1144 = vmatpush1.bf16.xpose.msra.mxu0 0
      %1145 = vmatprep.subr.bf16.mxu0 0
      %1146 = vmatpush1.bf16.xpose.msra.mxu0 0
      %1147 = vmatprep.subr.bf16.mxu0 0
      %1148 = vmatpush1.bf16.xpose.msra.mxu0 0
      %1149 = vmatprep.mubr.bf16.mxu0 0
      %1150 = vmatmul.mubr.bf16.gmra.mrb[0].mxu0 %v1112
      %v1151 = vpop.f32.mrb[0].mxu0
      %v1152 = vadd.f32 %v582, %v1151
      %v1153 = vpop.f32.mrb[0].mxu0
      %v1154 = vpop.f32.mrb[0].mxu0
      %v1155 = vadd.f32 %v583, %v1154
      %v1156 = vpop.f32.mrb[0].mxu0
      %1157 = vdwg.mxu0
      %1159 = vrot.lane.b32.xlu0 %v605, 112
      %v1160 = vpop.permute.xlu0 %1159
      %1161 = vrot.lane.b32.xlu0 %v609, 80
      %v1162 = vpop.permute.xlu0 %1161
      %v1164 = vsel %vm615, %v1160, 0
      %v1167 = vsel %vm615, %v1162, 0
      %1169 = vmatprep.subr.bf16.mxu0 0
      %1170 = vmatpush1.bf16.xpose.msra.mxu0 %v1167
      %1171 = vmatprep.subr.bf16.mxu0 0
      %1172 = vmatpush1.bf16.xpose.msra.mxu0 0
      %1173 = vmatprep.subr.bf16.mxu0 0
      %1174 = vmatpush1.bf16.xpose.msra.mxu0 0
      %1175 = vmatprep.subr.bf16.mxu0 0
      %1176 = vmatpush1.bf16.xpose.msra.mxu0 0
      %1177 = vmatprep.subr.bf16.mxu0 0
      %1178 = vmatpush1.bf16.xpose.msra.mxu0 0
      %1179 = vmatprep.subr.bf16.mxu0 0
      %1180 = vmatpush1.bf16.xpose.msra.mxu0 0
      %1181 = vmatprep.subr.bf16.mxu0 0
      %1182 = vmatpush1.bf16.xpose.msra.mxu0 0
      %1183 = vmatprep.subr.bf16.mxu0 0
      %1184 = vmatpush1.bf16.xpose.msra.mxu0 0
      %1185 = vmatprep.subr.bf16.mxu0 0
      %1186 = vmatpush1.bf16.xpose.msra.mxu0 0
      %1187 = vmatprep.subr.bf16.mxu0 0
      %1188 = vmatpush1.bf16.xpose.msra.mxu0 0
      %1189 = vmatprep.subr.bf16.mxu0 0
      %1190 = vmatpush1.bf16.xpose.msra.mxu0 0
      %1191 = vmatprep.subr.bf16.mxu0 0
      %1192 = vmatpush1.bf16.xpose.msra.mxu0 0
      %1193 = vmatprep.subr.bf16.mxu0 0
      %1194 = vmatpush1.bf16.xpose.msra.mxu0 0
      %1195 = vmatprep.subr.bf16.mxu0 0
      %1196 = vmatpush1.bf16.xpose.msra.mxu0 0
      %1197 = vmatprep.subr.bf16.mxu0 0
      %1198 = vmatpush1.bf16.xpose.msra.mxu0 0
      %1199 = vmatprep.subr.bf16.mxu0 0
      %1200 = vmatpush1.bf16.xpose.msra.mxu0 0
      %1201 = vmatprep.mubr.bf16.mxu0 0
      %1202 = vmatmul.mubr.bf16.gmra.mrb[0].mxu0 %v1164
      %v1203 = vpop.f32.mrb[0].mxu0
      %v1204 = vadd.f32 %v582, %v1203
      %v1205 = vpop.f32.mrb[0].mxu0
      %v1206 = vpop.f32.mrb[0].mxu0
      %v1207 = vadd.f32 %v583, %v1206
      %v1208 = vpop.f32.mrb[0].mxu0
      %1209 = vdwg.mxu0
      %1211 = vrot.lane.b32.xlu0 %v606, 112
      %v1212 = vpop.permute.xlu0 %1211
      %1213 = vrot.lane.b32.xlu0 %v610, 80
      %v1214 = vpop.permute.xlu0 %1213
      %v1216 = vsel %vm615, %v1212, 0
      %v1219 = vsel %vm615, %v1214, 0
      %1221 = vmatprep.subr.bf16.mxu0 0
      %1222 = vmatpush1.bf16.xpose.msra.mxu0 %v1219
      %1223 = vmatprep.subr.bf16.mxu0 0
      %1224 = vmatpush1.bf16.xpose.msra.mxu0 0
      %1225 = vmatprep.subr.bf16.mxu0 0
      %1226 = vmatpush1.bf16.xpose.msra.mxu0 0
      %1227 = vmatprep.subr.bf16.mxu0 0
      %1228 = vmatpush1.bf16.xpose.msra.mxu0 0
      %1229 = vmatprep.subr.bf16.mxu0 0
      %1230 = vmatpush1.bf16.xpose.msra.mxu0 0
      %1231 = vmatprep.subr.bf16.mxu0 0
      %1232 = vmatpush1.bf16.xpose.msra.mxu0 0
      %1233 = vmatprep.subr.bf16.mxu0 0
      %1234 = vmatpush1.bf16.xpose.msra.mxu0 0
      %1235 = vmatprep.subr.bf16.mxu0 0
      %1236 = vmatpush1.bf16.xpose.msra.mxu0 0
      %1237 = vmatprep.subr.bf16.mxu0 0
      %1238 = vmatpush1.bf16.xpose.msra.mxu0 0
      %1239 = vmatprep.subr.bf16.mxu0 0
      %1240 = vmatpush1.bf16.xpose.msra.mxu0 0
      %1241 = vmatprep.subr.bf16.mxu0 0
      %1242 = vmatpush1.bf16.xpose.msra.mxu0 0
      %1243 = vmatprep.subr.bf16.mxu0 0
      %1244 = vmatpush1.bf16.xpose.msra.mxu0 0
      %1245 = vmatprep.subr.bf16.mxu0 0
      %1246 = vmatpush1.bf16.xpose.msra.mxu0 0
      %1247 = vmatprep.subr.bf16.mxu0 0
      %1248 = vmatpush1.bf16.xpose.msra.mxu0 0
      %1249 = vmatprep.subr.bf16.mxu0 0
      %1250 = vmatpush1.bf16.xpose.msra.mxu0 0
      %1251 = vmatprep.subr.bf16.mxu0 0
      %1252 = vmatpush1.bf16.xpose.msra.mxu0 0
      %1253 = vmatprep.mubr.bf16.mxu0 0
      %1254 = vmatmul.mubr.bf16.gmra.mrb[0].mxu0 %v1216
      %v1255 = vpop.f32.mrb[0].mxu0
      %v1256 = vadd.f32 %v582, %v1255
      %v1257 = vpop.f32.mrb[0].mxu0
      %v1258 = vpop.f32.mrb[0].mxu0
      %v1259 = vadd.f32 %v583, %v1258
      %v1260 = vpop.f32.mrb[0].mxu0
      %1261 = vdwg.mxu0
      %1263 = vrot.lane.b32.xlu0 %v607, 112
      %v1264 = vpop.permute.xlu0 %1263
      %1265 = vrot.lane.b32.xlu0 %v611, 80
      %v1266 = vpop.permute.xlu0 %1265
      %v1268 = vsel %vm615, %v1264, 0
      %v1271 = vsel %vm615, %v1266, 0
      %1273 = vmatprep.subr.bf16.mxu0 0
      %1274 = vmatpush1.bf16.xpose.msra.mxu0 %v1271
      %1275 = vmatprep.subr.bf16.mxu0 0
      %1276 = vmatpush1.bf16.xpose.msra.mxu0 0
      %1277 = vmatprep.subr.bf16.mxu0 0
      %1278 = vmatpush1.bf16.xpose.msra.mxu0 0
      %1279 = vmatprep.subr.bf16.mxu0 0
      %1280 = vmatpush1.bf16.xpose.msra.mxu0 0
      %1281 = vmatprep.subr.bf16.mxu0 0
      %1282 = vmatpush1.bf16.xpose.msra.mxu0 0
      %1283 = vmatprep.subr.bf16.mxu0 0
      %1284 = vmatpush1.bf16.xpose.msra.mxu0 0
      %1285 = vmatprep.subr.bf16.mxu0 0
      %1286 = vmatpush1.bf16.xpose.msra.mxu0 0
      %1287 = vmatprep.subr.bf16.mxu0 0
      %1288 = vmatpush1.bf16.xpose.msra.mxu0 0
      %1289 = vmatprep.subr.bf16.mxu0 0
      %1290 = vmatpush1.bf16.xpose.msra.mxu0 0
      %1291 = vmatprep.subr.bf16.mxu0 0
      %1292 = vmatpush1.bf16.xpose.msra.mxu0 0
      %1293 = vmatprep.subr.bf16.mxu0 0
      %1294 = vmatpush1.bf16.xpose.msra.mxu0 0
      %1295 = vmatprep.subr.bf16.mxu0 0
      %1296 = vmatpush1.bf16.xpose.msra.mxu0 0
      %1297 = vmatprep.subr.bf16.mxu0 0
      %1298 = vmatpush1.bf16.xpose.msra.mxu0 0
      %1299 = vmatprep.subr.bf16.mxu0 0
      %1300 = vmatpush1.bf16.xpose.msra.mxu0 0
      %1301 = vmatprep.subr.bf16.mxu0 0
      %1302 = vmatpush1.bf16.xpose.msra.mxu0 0
      %1303 = vmatprep.subr.bf16.mxu0 0
      %1304 = vmatpush1.bf16.xpose.msra.mxu0 0
      %1305 = vmatprep.mubr.bf16.mxu0 0
      %1306 = vmatmul.mubr.bf16.gmra.mrb[0].mxu0 %v1268
      %v1307 = vpop.f32.mrb[0].mxu0
      %v1308 = vadd.f32 %v582, %v1307
      %v1309 = vpop.f32.mrb[0].mxu0
      %v1310 = vpop.f32.mrb[0].mxu0
      %v1311 = vadd.f32 %v583, %v1310
      %v1312 = vpop.f32.mrb[0].mxu0
      %1313 = vdwg.mxu0
      %v1314 = vadd.f32 %v1152, %v584
      %v1315 = vadd.f32 %v1155, %v585
      %v1316 = vadd.f32 %v1204, %v586
      %v1317 = vadd.f32 %v1207, %v587
      %v1318 = vadd.f32 %v1256, %v588
      %v1319 = vadd.f32 %v1259, %v589
      %v1320 = vadd.f32 %v1308, %v590
      %v1321 = vadd.f32 %v1311, %v591
      %v1322 = vsel %vm615, %v1314, -inf
      %1323 = vmax.xlane.f32.xlu0 %v1322
      %v1324 = vpop.xlane.xlu0 %1323
      %v1325 = vsel %vm615, %v1315, -inf
      %1326 = vmax.xlane.f32.xlu0 %v1325
      %v1327 = vpop.xlane.xlu0 %1326
      %v1328 = vsel %vm615, %v1316, -inf
      %1329 = vmax.xlane.f32.xlu0 %v1328
      %v1330 = vpop.xlane.xlu0 %1329
      %v1331 = vsel %vm615, %v1317, -inf
      %1332 = vmax.xlane.f32.xlu0 %v1331
      %v1333 = vpop.xlane.xlu0 %1332
      %v1334 = vsel %vm615, %v1318, -inf
      %1335 = vmax.xlane.f32.xlu0 %v1334
      %v1336 = vpop.xlane.xlu0 %1335
      %v1337 = vsel %vm615, %v1319, -inf
      %1338 = vmax.xlane.f32.xlu0 %v1337
      %v1339 = vpop.xlane.xlu0 %1338
      %v1340 = vsel %vm615, %v1320, -inf
      %1341 = vmax.xlane.f32.xlu0 %v1340
      %v1342 = vpop.xlane.xlu0 %1341
      %v1343 = vsel %vm615, %v1321, -inf
      %1344 = vmax.xlane.f32.xlu0 %v1343
      %v1345 = vpop.xlane.xlu0 %1344
      %v1346 = vsub.f32 %v1314, %v1324
      %v1347 = vsub.f32 %v1315, %v1327
      %v1348 = vsub.f32 %v1316, %v1330
      %v1349 = vsub.f32 %v1317, %v1333
      %v1350 = vsub.f32 %v1318, %v1336
      %v1351 = vsub.f32 %v1319, %v1339
      %v1352 = vsub.f32 %v1320, %v1342
      %v1353 = vsub.f32 %v1321, %v1345
      %v1354 = vmul.f32 %v1346, 1.442695
      %v1355 = vpow.pop %v1354
      %v1356 = vmul.f32 %v1347, 1.442695
      %v1357 = vpow.pop %v1356
      %v1358 = vmul.f32 %v1348, 1.442695
      %v1359 = vpow.pop %v1358
      %v1360 = vmul.f32 %v1349, 1.442695
      %v1361 = vpow.pop %v1360
      %v1362 = vmul.f32 %v1350, 1.442695
      %v1363 = vpow.pop %v1362
      %v1364 = vmul.f32 %v1351, 1.442695
      %v1365 = vpow.pop %v1364
      %v1366 = vmul.f32 %v1352, 1.442695
      %v1367 = vpow.pop %v1366
      %v1368 = vmul.f32 %v1353, 1.442695
      %v1369 = vpow.pop %v1368
      %v1370 = vsel %vm615, %v1355, 0.0
      %1371 = vadd.xlane.f32.xlu0 %v1370
      %v1372 = vpop.xlane.xlu0 %1371
      %v1373 = vsel %vm615, %v1357, 0.0
      %1374 = vadd.xlane.f32.xlu0 %v1373
      %v1375 = vpop.xlane.xlu0 %1374
      %v1376 = vsel %vm615, %v1359, 0.0
      %1377 = vadd.xlane.f32.xlu0 %v1376
      %v1378 = vpop.xlane.xlu0 %1377
      %v1379 = vsel %vm615, %v1361, 0.0
      %1380 = vadd.xlane.f32.xlu0 %v1379
      %v1381 = vpop.xlane.xlu0 %1380
      %v1382 = vsel %vm615, %v1363, 0.0
      %1383 = vadd.xlane.f32.xlu0 %v1382
      %v1384 = vpop.xlane.xlu0 %1383
      %v1385 = vsel %vm615, %v1365, 0.0
      %1386 = vadd.xlane.f32.xlu0 %v1385
      %v1387 = vpop.xlane.xlu0 %1386
      %v1388 = vsel %vm615, %v1367, 0.0
      %1389 = vadd.xlane.f32.xlu0 %v1388
      %v1390 = vpop.xlane.xlu0 %1389
      %v1391 = vsel %vm615, %v1369, 0.0
      %1392 = vadd.xlane.f32.xlu0 %v1391
      %v1393 = vpop.xlane.xlu0 %1392
      %v1394 = vrcp.pop %v1372
      %v1395 = vrcp.pop %v1375
      %v1396 = vrcp.pop %v1378
      %v1397 = vrcp.pop %v1381
      %v1398 = vrcp.pop %v1384
      %v1399 = vrcp.pop %v1387
      %v1400 = vrcp.pop %v1390
      %v1401 = vrcp.pop %v1393
      %v1402 = vmul.f32 %v1355, %v1394
      %v1403 = vmul.f32 %v1357, %v1395
      %v1404 = vmul.f32 %v1359, %v1396
      %v1405 = vmul.f32 %v1361, %v1397
      %v1406 = vmul.f32 %v1363, %v1398
      %v1407 = vmul.f32 %v1365, %v1399
      %v1408 = vmul.f32 %v1367, %v1400
      %v1409 = vmul.f32 %v1369, %v1401
      %v1410 = vpack.c.bf16 %v1403, %v1402
      %v1411 = vpack.c.bf16 %v1405, %v1404
      %v1412 = vpack.c.bf16 %v1407, %v1406
      %v1413 = vpack.c.bf16 %v1409, %v1408
      %1414 = vrot.lane.b32.xlu0 %v608, 48
      %v1415 = vpop.permute.xlu0 %1414
      %v1418 = vsel %vm615, %v1410, 0
      %1420 = vmatprep.subr.bf16.mxu0 0
      %1421 = vmatpush1.bf16.msra.mxu0 %v1415
      %1422 = vmatprep.subr.bf16.mxu0 0
      %1423 = vmatpush1.bf16.msra.mxu0 0
      %1424 = vmatprep.subr.bf16.mxu0 0
      %1425 = vmatpush1.bf16.msra.mxu0 0
      %1426 = vmatprep.subr.bf16.mxu0 0
      %1427 = vmatpush1.bf16.msra.mxu0 0
      %1428 = vmatprep.subr.bf16.mxu0 0
      %1429 = vmatpush1.bf16.msra.mxu0 0
      %1430 = vmatprep.subr.bf16.mxu0 0
      %1431 = vmatpush1.bf16.msra.mxu0 0
      %1432 = vmatprep.subr.bf16.mxu0 0
      %1433 = vmatpush1.bf16.msra.mxu0 0
      %1434 = vmatprep.subr.bf16.mxu0 0
      %1435 = vmatpush1.bf16.msra.mxu0 0
      %1436 = vmatprep.subr.bf16.mxu0 0
      %1437 = vmatpush1.bf16.msra.mxu0 0
      %1438 = vmatprep.subr.bf16.mxu0 0
      %1439 = vmatpush1.bf16.msra.mxu0 0
      %1440 = vmatprep.subr.bf16.mxu0 0
      %1441 = vmatpush1.bf16.msra.mxu0 0
      %1442 = vmatprep.subr.bf16.mxu0 0
      %1443 = vmatpush1.bf16.msra.mxu0 0
      %1444 = vmatprep.subr.bf16.mxu0 0
      %1445 = vmatpush1.bf16.msra.mxu0 0
      %1446 = vmatprep.subr.bf16.mxu0 0
      %1447 = vmatpush1.bf16.msra.mxu0 0
      %1448 = vmatprep.subr.bf16.mxu0 0
      %1449 = vmatpush1.bf16.msra.mxu0 0
      %1450 = vmatprep.subr.bf16.mxu0 0
      %1451 = vmatpush1.bf16.msra.mxu0 0
      %1452 = vmatprep.mubr.bf16.mxu0 0
      %1453 = vmatmul.mubr.bf16.gmra.mrb[0].mxu0 %v1418
      %v1454 = vpop.f32.mrb[0].mxu0
      %v1455 = vadd.f32 0.0, %v1454
      %v1456 = vpop.f32.mrb[0].mxu0
      %v1457 = vpop.f32.mrb[0].mxu0
      %v1458 = vadd.f32 0.0, %v1457
      %v1459 = vpop.f32.mrb[0].mxu0
      %1460 = vdwg.mxu0
      %1461 = vrot.lane.b32.xlu0 %v609, 48
      %v1462 = vpop.permute.xlu0 %1461
      %v1465 = vsel %vm615, %v1411, 0
      %1467 = vmatprep.subr.bf16.mxu0 0
      %1468 = vmatpush1.bf16.msra.mxu0 %v1462
      %1469 = vmatprep.subr.bf16.mxu0 0
      %1470 = vmatpush1.bf16.msra.mxu0 0
      %1471 = vmatprep.subr.bf16.mxu0 0
      %1472 = vmatpush1.bf16.msra.mxu0 0
      %1473 = vmatprep.subr.bf16.mxu0 0
      %1474 = vmatpush1.bf16.msra.mxu0 0
      %1475 = vmatprep.subr.bf16.mxu0 0
      %1476 = vmatpush1.bf16.msra.mxu0 0
      %1477 = vmatprep.subr.bf16.mxu0 0
      %1478 = vmatpush1.bf16.msra.mxu0 0
      %1479 = vmatprep.subr.bf16.mxu0 0
      %1480 = vmatpush1.bf16.msra.mxu0 0
      %1481 = vmatprep.subr.bf16.mxu0 0
      %1482 = vmatpush1.bf16.msra.mxu0 0
      %1483 = vmatprep.subr.bf16.mxu0 0
      %1484 = vmatpush1.bf16.msra.mxu0 0
      %1485 = vmatprep.subr.bf16.mxu0 0
      %1486 = vmatpush1.bf16.msra.mxu0 0
      %1487 = vmatprep.subr.bf16.mxu0 0
      %1488 = vmatpush1.bf16.msra.mxu0 0
      %1489 = vmatprep.subr.bf16.mxu0 0
      %1490 = vmatpush1.bf16.msra.mxu0 0
      %1491 = vmatprep.subr.bf16.mxu0 0
      %1492 = vmatpush1.bf16.msra.mxu0 0
      %1493 = vmatprep.subr.bf16.mxu0 0
      %1494 = vmatpush1.bf16.msra.mxu0 0
      %1495 = vmatprep.subr.bf16.mxu0 0
      %1496 = vmatpush1.bf16.msra.mxu0 0
      %1497 = vmatprep.subr.bf16.mxu0 0
      %1498 = vmatpush1.bf16.msra.mxu0 0
      %1499 = vmatprep.mubr.bf16.mxu0 0
      %1500 = vmatmul.mubr.bf16.gmra.mrb[0].mxu0 %v1465
      %v1501 = vpop.f32.mrb[0].mxu0
      %v1502 = vadd.f32 0.0, %v1501
      %v1503 = vpop.f32.mrb[0].mxu0
      %v1504 = vpop.f32.mrb[0].mxu0
      %v1505 = vadd.f32 0.0, %v1504
      %v1506 = vpop.f32.mrb[0].mxu0
      %1507 = vdwg.mxu0
      %1508 = vrot.lane.b32.xlu0 %v610, 48
      %v1509 = vpop.permute.xlu0 %1508
      %v1512 = vsel %vm615, %v1412, 0
      %1514 = vmatprep.subr.bf16.mxu0 0
      %1515 = vmatpush1.bf16.msra.mxu0 %v1509
      %1516 = vmatprep.subr.bf16.mxu0 0
      %1517 = vmatpush1.bf16.msra.mxu0 0
      %1518 = vmatprep.subr.bf16.mxu0 0
      %1519 = vmatpush1.bf16.msra.mxu0 0
      %1520 = vmatprep.subr.bf16.mxu0 0
      %1521 = vmatpush1.bf16.msra.mxu0 0
      %1522 = vmatprep.subr.bf16.mxu0 0
      %1523 = vmatpush1.bf16.msra.mxu0 0
      %1524 = vmatprep.subr.bf16.mxu0 0
      %1525 = vmatpush1.bf16.msra.mxu0 0
      %1526 = vmatprep.subr.bf16.mxu0 0
      %1527 = vmatpush1.bf16.msra.mxu0 0
      %1528 = vmatprep.subr.bf16.mxu0 0
      %1529 = vmatpush1.bf16.msra.mxu0 0
      %1530 = vmatprep.subr.bf16.mxu0 0
      %1531 = vmatpush1.bf16.msra.mxu0 0
      %1532 = vmatprep.subr.bf16.mxu0 0
      %1533 = vmatpush1.bf16.msra.mxu0 0
      %1534 = vmatprep.subr.bf16.mxu0 0
      %1535 = vmatpush1.bf16.msra.mxu0 0
      %1536 = vmatprep.subr.bf16.mxu0 0
      %1537 = vmatpush1.bf16.msra.mxu0 0
      %1538 = vmatprep.subr.bf16.mxu0 0
      %1539 = vmatpush1.bf16.msra.mxu0 0
      %1540 = vmatprep.subr.bf16.mxu0 0
      %1541 = vmatpush1.bf16.msra.mxu0 0
      %1542 = vmatprep.subr.bf16.mxu0 0
      %1543 = vmatpush1.bf16.msra.mxu0 0
      %1544 = vmatprep.subr.bf16.mxu0 0
      %1545 = vmatpush1.bf16.msra.mxu0 0
      %1546 = vmatprep.mubr.bf16.mxu0 0
      %1547 = vmatmul.mubr.bf16.gmra.mrb[0].mxu0 %v1512
      %v1548 = vpop.f32.mrb[0].mxu0
      %v1549 = vadd.f32 0.0, %v1548
      %v1550 = vpop.f32.mrb[0].mxu0
      %v1551 = vpop.f32.mrb[0].mxu0
      %v1552 = vadd.f32 0.0, %v1551
      %v1553 = vpop.f32.mrb[0].mxu0
      %1554 = vdwg.mxu0
      %1555 = vrot.lane.b32.xlu0 %v611, 48
      %v1556 = vpop.permute.xlu0 %1555
      %v1559 = vsel %vm615, %v1413, 0
      %1561 = vmatprep.subr.bf16.mxu0 0
      %1562 = vmatpush1.bf16.msra.mxu0 %v1556
      %1563 = vmatprep.subr.bf16.mxu0 0
      %1564 = vmatpush1.bf16.msra.mxu0 0
      %1565 = vmatprep.subr.bf16.mxu0 0
      %1566 = vmatpush1.bf16.msra.mxu0 0
      %1567 = vmatprep.subr.bf16.mxu0 0
      %1568 = vmatpush1.bf16.msra.mxu0 0
      %1569 = vmatprep.subr.bf16.mxu0 0
      %1570 = vmatpush1.bf16.msra.mxu0 0
      %1571 = vmatprep.subr.bf16.mxu0 0
      %1572 = vmatpush1.bf16.msra.mxu0 0
      %1573 = vmatprep.subr.bf16.mxu0 0
      %1574 = vmatpush1.bf16.msra.mxu0 0
      %1575 = vmatprep.subr.bf16.mxu0 0
      %1576 = vmatpush1.bf16.msra.mxu0 0
      %1577 = vmatprep.subr.bf16.mxu0 0
      %1578 = vmatpush1.bf16.msra.mxu0 0
      %1579 = vmatprep.subr.bf16.mxu0 0
      %1580 = vmatpush1.bf16.msra.mxu0 0
      %1581 = vmatprep.subr.bf16.mxu0 0
      %1582 = vmatpush1.bf16.msra.mxu0 0
      %1583 = vmatprep.subr.bf16.mxu0 0
      %1584 = vmatpush1.bf16.msra.mxu0 0
      %1585 = vmatprep.subr.bf16.mxu0 0
      %1586 = vmatpush1.bf16.msra.mxu0 0
      %1587 = vmatprep.subr.bf16.mxu0 0
      %1588 = vmatpush1.bf16.msra.mxu0 0
      %1589 = vmatprep.subr.bf16.mxu0 0
      %1590 = vmatpush1.bf16.msra.mxu0 0
      %1591 = vmatprep.subr.bf16.mxu0 0
      %1592 = vmatpush1.bf16.msra.mxu0 0
      %1593 = vmatprep.mubr.bf16.mxu0 0
      %1594 = vmatmul.mubr.bf16.gmra.mrb[0].mxu0 %v1559
      %v1595 = vpop.f32.mrb[0].mxu0
      %v1596 = vadd.f32 0.0, %v1595
      %v1597 = vpop.f32.mrb[0].mxu0
      %v1598 = vpop.f32.mrb[0].mxu0
      %v1599 = vadd.f32 0.0, %v1598
      %v1600 = vpop.f32.mrb[0].mxu0
      %1601 = vdwg.mxu0
      %v1602 = vpack.c.bf16 %v1458, %v1455
      %v1603 = vpack.c.bf16 %v1505, %v1502
      %v1604 = vpack.c.bf16 %v1552, %v1549
      %v1605 = vpack.c.bf16 %v1599, %v1596
      %v1606 = vpack.c.bf16 %v595, %v594
      %v1608 = vsel %vm615, %v1602, 0
      %v1611 = vsel %vm615, %v1603, 0
      %v1614 = vsel %vm615, %v1604, 0
      %v1617 = vsel %vm615, %v1605, 0
      %1619 = vmatprep.subr.bf16.mxu0 0
      %1620 = vmatpush1.bf16.msra.mxu0 %v1606
      %1621 = vmatprep.subr.bf16.mxu0 0
      %1622 = vmatpush1.bf16.msra.mxu0 0
      %1623 = vmatprep.subr.bf16.mxu0 0
      %1624 = vmatpush1.bf16.msra.mxu0 0
      %1625 = vmatprep.subr.bf16.mxu0 0
      %1626 = vmatpush1.bf16.msra.mxu0 0
      %1627 = vmatprep.subr.bf16.mxu0 0
      %1628 = vmatpush1.bf16.msra.mxu0 0
      %1629 = vmatprep.subr.bf16.mxu0 0
      %1630 = vmatpush1.bf16.msra.mxu0 0
      %1631 = vmatprep.subr.bf16.mxu0 0
      %1632 = vmatpush1.bf16.msra.mxu0 0
      %1633 = vmatprep.subr.bf16.mxu0 0
      %1634 = vmatpush1.bf16.msra.mxu0 0
      %1635 = vmatprep.subr.bf16.mxu0 0
      %1636 = vmatpush1.bf16.msra.mxu0 0
      %1637 = vmatprep.subr.bf16.mxu0 0
      %1638 = vmatpush1.bf16.msra.mxu0 0
      %1639 = vmatprep.subr.bf16.mxu0 0
      %1640 = vmatpush1.bf16.msra.mxu0 0
      %1641 = vmatprep.subr.bf16.mxu0 0
      %1642 = vmatpush1.bf16.msra.mxu0 0
      %1643 = vmatprep.subr.bf16.mxu0 0
      %1644 = vmatpush1.bf16.msra.mxu0 0
      %1645 = vmatprep.subr.bf16.mxu0 0
      %1646 = vmatpush1.bf16.msra.mxu0 0
      %1647 = vmatprep.subr.bf16.mxu0 0
      %1648 = vmatpush1.bf16.msra.mxu0 0
      %1649 = vmatprep.subr.bf16.mxu0 0
      %1650 = vmatpush1.bf16.msra.mxu0 0
      %1651 = vmatprep.mubr.bf16.mxu0 0
      %1652 = vmatmul.mubr.bf16.gmra.mrb[0].mxu0 %v1608
      %v1653 = vpop.f32.mrb[0].mxu0
      %v1654 = vadd.f32 0.0, %v1653
      %v1655 = vpop.f32.mrb[0].mxu0
      %v1656 = vpop.f32.mrb[0].mxu0
      %v1657 = vadd.f32 0.0, %v1656
      %v1658 = vpop.f32.mrb[0].mxu0
      %1659 = vmatprep.mubr.bf16.mxu0 0
      %1660 = vmatmul.mubr.bf16.gmra.mrb[0].mxu0 %v1611
      %v1661 = vpop.f32.mrb[0].mxu0
      %v1662 = vadd.f32 0.0, %v1661
      %v1663 = vpop.f32.mrb[0].mxu0
      %v1664 = vpop.f32.mrb[0].mxu0
      %v1665 = vadd.f32 0.0, %v1664
      %v1666 = vpop.f32.mrb[0].mxu0
      %1667 = vmatprep.mubr.bf16.mxu0 0
      %1668 = vmatmul.mubr.bf16.gmra.mrb[0].mxu0 %v1614
      %v1669 = vpop.f32.mrb[0].mxu0
      %v1670 = vadd.f32 0.0, %v1669
      %v1671 = vpop.f32.mrb[0].mxu0
      %v1672 = vpop.f32.mrb[0].mxu0
      %v1673 = vadd.f32 0.0, %v1672
      %v1674 = vpop.f32.mrb[0].mxu0
      %1675 = vmatprep.mubr.bf16.mxu0 0
      %1676 = vmatmul.mubr.bf16.gmra.mrb[0].mxu0 %v1617
      %v1677 = vpop.f32.mrb[0].mxu0
      %v1678 = vadd.f32 0.0, %v1677
      %v1679 = vpop.f32.mrb[0].mxu0
      %v1680 = vpop.f32.mrb[0].mxu0
      %v1681 = vadd.f32 0.0, %v1680
      %v1682 = vpop.f32.mrb[0].mxu0
      %1683 = vdwg.mxu0
      %v1685 = vsel %vm615, %v1101, 0
      %v1688 = vsel %vm615, %v1102, 0
      %v1691 = vsel %vm615, %v1103, 0
      %v1694 = vsel %vm615, %v1104, 0
      %1696 = vmatprep.subr.bf16.mxu0 0
      %1697 = vmatpush1.bf16.msra.mxu0 %v1105
      %1698 = vmatprep.subr.bf16.mxu0 0
      %1699 = vmatpush1.bf16.msra.mxu0 0
      %1700 = vmatprep.subr.bf16.mxu0 0
      %1701 = vmatpush1.bf16.msra.mxu0 0
      %1702 = vmatprep.subr.bf16.mxu0 0
      %1703 = vmatpush1.bf16.msra.mxu0 0
      %1704 = vmatprep.subr.bf16.mxu0 0
      %1705 = vmatpush1.bf16.msra.mxu0 0
      %1706 = vmatprep.subr.bf16.mxu0 0
      %1707 = vmatpush1.bf16.msra.mxu0 0
      %1708 = vmatprep.subr.bf16.mxu0 0
      %1709 = vmatpush1.bf16.msra.mxu0 0
      %1710 = vmatprep.subr.bf16.mxu0 0
      %1711 = vmatpush1.bf16.msra.mxu0 0
      %1712 = vmatprep.subr.bf16.mxu0 0
      %1713 = vmatpush1.bf16.msra.mxu0 0
      %1714 = vmatprep.subr.bf16.mxu0 0
      %1715 = vmatpush1.bf16.msra.mxu0 0
      %1716 = vmatprep.subr.bf16.mxu0 0
      %1717 = vmatpush1.bf16.msra.mxu0 0
      %1718 = vmatprep.subr.bf16.mxu0 0
      %1719 = vmatpush1.bf16.msra.mxu0 0
      %1720 = vmatprep.subr.bf16.mxu0 0
      %1721 = vmatpush1.bf16.msra.mxu0 0
      %1722 = vmatprep.subr.bf16.mxu0 0
      %1723 = vmatpush1.bf16.msra.mxu0 0
      %1724 = vmatprep.subr.bf16.mxu0 0
      %1725 = vmatpush1.bf16.msra.mxu0 0
      %1726 = vmatprep.subr.bf16.mxu0 0
      %1727 = vmatpush1.bf16.msra.mxu0 0
      %1728 = vmatprep.mubr.bf16.mxu0 0
      %1729 = vmatmul.mubr.bf16.gmra.mrb[0].mxu0 %v1685
      %v1730 = vpop.f32.mrb[0].mxu0
      %v1731 = vadd.f32 %v1654, %v1730
      %v1732 = vpop.f32.mrb[0].mxu0
      %v1733 = vpop.f32.mrb[0].mxu0
      %v1734 = vadd.f32 %v1657, %v1733
      %v1735 = vpop.f32.mrb[0].mxu0
      %1736 = vmatprep.mubr.bf16.mxu0 0
      %1737 = vmatmul.mubr.bf16.gmra.mrb[0].mxu0 %v1688
      %v1738 = vpop.f32.mrb[0].mxu0
      %v1739 = vadd.f32 %v1662, %v1738
      %v1740 = vpop.f32.mrb[0].mxu0
      %v1741 = vpop.f32.mrb[0].mxu0
      %v1742 = vadd.f32 %v1665, %v1741
      %v1743 = vpop.f32.mrb[0].mxu0
      %1744 = vmatprep.mubr.bf16.mxu0 0
      %1745 = vmatmul.mubr.bf16.gmra.mrb[0].mxu0 %v1691
      %v1746 = vpop.f32.mrb[0].mxu0
      %v1747 = vadd.f32 %v1670, %v1746
      %v1748 = vpop.f32.mrb[0].mxu0
      %v1749 = vpop.f32.mrb[0].mxu0
      %v1750 = vadd.f32 %v1673, %v1749
      %v1751 = vpop.f32.mrb[0].mxu0
      %1752 = vmatprep.mubr.bf16.mxu0 0
      %1753 = vmatmul.mubr.bf16.gmra.mrb[0].mxu0 %v1694
      %v1754 = vpop.f32.mrb[0].mxu0
      %v1755 = vadd.f32 %v1678, %v1754
      %v1756 = vpop.f32.mrb[0].mxu0
      %v1757 = vpop.f32.mrb[0].mxu0
      %v1758 = vadd.f32 %v1681, %v1757
      %v1759 = vpop.f32.mrb[0].mxu0
      %1760 = vdwg.mxu0
      %v1761 = vld [vmem:[%s8] sm:$0x1]
      %v1763 = vlaneseq
      %v1764 = vshrl.u32 %v1763, 7
      %v1765 = vsub.s32 0, %v1764
      %v1766 = vrot.slane %v1761, %v1765
      %v1768 = vadd.f32 %v1731, %v1766
      %v1769 = vadd.f32 %v1734, %v1766
      %v1770 = vadd.f32 %v1739, %v1766
      %v1771 = vadd.f32 %v1742, %v1766
      %v1772 = vadd.f32 %v1747, %v1766
      %v1773 = vadd.f32 %v1750, %v1766
      %v1774 = vadd.f32 %v1755, %v1766
      %v1775 = vadd.f32 %v1758, %v1766
      %v1776 = vadd.f32 %v1768, %v342
      %v1777 = vadd.f32 %v1769, %v343
      %v1778 = vadd.f32 %v1770, %v344
      %v1779 = vadd.f32 %v1771, %v345
      %v1780 = vadd.f32 %v1772, %v346
      %v1781 = vadd.f32 %v1773, %v347
      %v1782 = vadd.f32 %v1774, %v348
      %v1783 = vadd.f32 %v1775, %v349
      %1784 = vst.msk [vmem:[%s339] sm:$0xff] %vm352, %v1776
      %1785 = vst.msk [vmem:[%s339 + $0x8] sm:$0xff] %vm352, %v1777
      %1786 = vst.msk [vmem:[%s339 + $0x10] sm:$0xff] %vm352, %v1778
      %1787 = vst.msk [vmem:[%s339 + $0x18] sm:$0xff] %vm352, %v1779
      %1788 = vst.msk [vmem:[%s339 + $0x20] sm:$0xff] %vm352, %v1780
      %1789 = vst.msk [vmem:[%s339 + $0x28] sm:$0xff] %vm352, %v1781
      %1790 = vst.msk [vmem:[%s339 + $0x30] sm:$0xff] %vm352, %v1782
      %1791 = vst.msk [vmem:[%s339 + $0x38] sm:$0xff] %vm352, %v1783
      %s1792 = smul.u32 4, %s20
      %p1793 = scmp.lt.s32.totalorder %s1792, 7
      %s1794 = scalar_select %p1793, %s1792, 7
      %s1795 = smul.addr %s1794, 2
      %s1796 = smul.addr %s1795, 8
      %s1797 = scalar_lea.vmem %s9, %s1796
      // Predicated region
      $region57: #{swin_forward.12} parent=55 // pred_check
        %p1798 = pneg %p232
      $region58: #{swin_forward.12} parent=55 // pred_check_branch
        %1800 = sbr.rel (%p1798) target = $region60
      $region59: #{swin_forward.12} parent=55 // pred_region
        %s1801 = smul.u32 4, %s20
      $region60: #{swin_forward.12} parent=55 // pred_fallthru
        _
    $region56: #{swin_forward.12} parent=5 // pred_fallthru
      _
    %p1802 = scmp.le.s32.totalorder 2, %s15
    // Predicated region
    $region61: #{swin_forward.12} parent=5 // pred_check
      %p1803 = pneg %p1802
    $region62: #{swin_forward.12} parent=5 // pred_check_branch
      %1805 = sbr.rel (%p1803) target = $region64
    $region63: #{swin_forward.12} parent=5 // pred_region
      %s1806 = ssub.s32 %s15, 2
      // Predicated region
      $region65: #{swin_forward.12} parent=63 // pred_check
        %p1807 = pneg %p238
      $region66: #{swin_forward.12} parent=63 // pred_check_branch
        %1809 = sbr.rel (%p1807) target = $region68
      $region67: #{swin_forward.12} parent=63 // pred_region
        %s1810 = smul.u32 4, %s21
        %p1811 = scmp.lt.s32.totalorder %s1810, 7
        %s1812 = scalar_select %p1811, %s1810, 7
        %s1813 = smul.addr %s1812, 2
        %s1814 = smul.addr %s1813, 8
        %s1815 = scalar_lea.vmem %s9, %s1814
      $region68: #{swin_forward.12} parent=63 // pred_fallthru
        _
    $region64: #{swin_forward.12} parent=5 // pred_fallthru
      _
  $region6: #{swin_forward.12} parent=0 // loop_footer
    %s19 = sadd.s32 1, %s15
  $region7: #{swin_forward.12} parent=0 // loop_footer_branch
    %14 = sbr.rel target = $region3
  $region8: #{swin_forward.12} parent=0 // loop_exit
    _

// kernel: swin_forward.16
$region0: #{swin_forward.16}
  #allocation0 [shape = 'u32[]', space=smem, size = 0x4, offset = 0x4, fixed_abs, tag = 'smem constant byte address 0x4 - core index']
  #allocation1 [shape = 'u32[144,128]{1,0:T(1,128)}', space=vmem, size = 0x12000, scoped, tag = 'internal scratch']
  %s0 = inlined_call_operand.vmem [shape: f32[32,128], index: 0, kind: input, shape index: {}]
  %s1 = inlined_call_operand.vmem [shape: f32[1,128], index: 1, kind: input, shape index: {}]
  %s2 = inlined_call_operand.vmem [shape: f32[1,128], index: 2, kind: input, shape index: {}]
  %s3 = inlined_call_operand.vmem [shape: f32[128,64], index: 3, kind: input, shape index: {}]
  %s4 = inlined_call_operand.vmem [shape: f32[32,64], index: 4, kind: output, shape index: {}]
  %s5 = sld [smem:[#allocation0]]
  $region49: #{swin_forward.16} parent=0
    _
  %s7 = ssub.s32 1, %s5
  %s8 = scalar_select 0, %s7, %s5
  loop: start=0, step=1, limit=4
  $region2: #{swin_forward.16} parent=0 // loop_pre_header
    _
  $region3: #{swin_forward.16} parent=0 // loop_header
    %s10 = sphi 0, %s14
    %p11 = scmp.ge.s32.totalorder %s10, 4
    %s20 = sphi 0, %s22
    %s23 = sphi 0, %s20
    %s24 = sphi 0, %s23
    %s40 = sphi 0, %s24
    %s44 = sphi 0, %s44
    %s46 = sphi 0, %s44
    %s47 = sphi 0, %s46
    %s61 = sphi 0, %s47
    %s65 = sphi 0, %s65
    %s67 = sphi 0, %s65
    %s68 = sphi 0, %s67
    %s82 = sphi 0, %s68
    %s86 = sphi 0, %s86
    %s88 = sphi 0, %s86
    %s89 = sphi 0, %s88
    %s103 = sphi 0, %s89
    %s109 = sphi 0, %s111
    %s112 = sphi 0, %s109
    %s113 = sphi 0, %s112
    %s129 = sphi 0, %s113
  $region4: #{swin_forward.16} parent=0 // loop_header_branch
    %13 = sbr.rel (%p11) target = $region8
  $region5: #{swin_forward.16} parent=0 // loop_body
    %s15 = ssub.s32 %s10, 1
    %s16 = ssub.s32 %s10, 2
    %s17 = sadd.s32 %s10, 1
    %s18 = ssub.s32 %s10, %s17
    %p19 = scmp.eq.s32.totalorder %s18, 0
    %s21 = sadd.s32 %s20, 1
    %s22 = scalar_select %p19, %s20, %s21
    %p25 = pneg %p19
    %p26 = scmp.eq.s32.totalorder %s10, 1
    %p27 = por %p25, %p26
    %p28 = scmp.ne.s32.totalorder %s20, %s23
    %p29 = scmp.eq.s32.totalorder %s10, 0
    %p30 = por %p28, %p29
    %p31 = scmp.ne.s32.totalorder %s20, %s23
    %p32 = scmp.eq.s32.totalorder %s15, 1
    %p33 = por %p31, %p32
    %p34 = scmp.ne.s32.totalorder %s23, %s24
    %p35 = scmp.eq.s32.totalorder %s15, 0
    %p36 = por %p34, %p35
    %p37 = scmp.ne.s32.totalorder %s23, %s24
    %p38 = scmp.eq.s32.totalorder %s16, 1
    %p39 = por %p37, %p38
    %p41 = scmp.ne.s32.totalorder %s24, %s40
    %p42 = scmp.eq.s32.totalorder %s16, 0
    %p43 = por %p41, %p42
    %s45 = sadd.s32 %s44, 1
    %p48 = scmp.eq.s32.totalorder %s10, 1
    %p49 = scmp.ne.s32.totalorder %s44, %s46
    %p50 = scmp.eq.s32.totalorder %s10, 0
    %p51 = por %p49, %p50
    %p52 = scmp.ne.s32.totalorder %s44, %s46
    %p53 = scmp.eq.s32.totalorder %s15, 1
    %p54 = por %p52, %p53
    %p55 = scmp.ne.s32.totalorder %s46, %s47
    %p56 = scmp.eq.s32.totalorder %s15, 0
    %p57 = por %p55, %p56
    %p58 = scmp.ne.s32.totalorder %s46, %s47
    %p59 = scmp.eq.s32.totalorder %s16, 1
    %p60 = por %p58, %p59
    %p62 = scmp.ne.s32.totalorder %s47, %s61
    %p63 = scmp.eq.s32.totalorder %s16, 0
    %p64 = por %p62, %p63
    %s66 = sadd.s32 %s65, 1
    %p69 = scmp.eq.s32.totalorder %s10, 1
    %p70 = scmp.ne.s32.totalorder %s65, %s67
    %p71 = scmp.eq.s32.totalorder %s10, 0
    %p72 = por %p70, %p71
    %p73 = scmp.ne.s32.totalorder %s65, %s67
    %p74 = scmp.eq.s32.totalorder %s15, 1
    %p75 = por %p73, %p74
    %p76 = scmp.ne.s32.totalorder %s67, %s68
    %p77 = scmp.eq.s32.totalorder %s15, 0
    %p78 = por %p76, %p77
    %p79 = scmp.ne.s32.totalorder %s67, %s68
    %p80 = scmp.eq.s32.totalorder %s16, 1
    %p81 = por %p79, %p80
    %p83 = scmp.ne.s32.totalorder %s68, %s82
    %p84 = scmp.eq.s32.totalorder %s16, 0
    %p85 = por %p83, %p84
    %s87 = sadd.s32 %s86, 1
    %p90 = scmp.eq.s32.totalorder %s10, 1
    %p91 = scmp.ne.s32.totalorder %s86, %s88
    %p92 = scmp.eq.s32.totalorder %s10, 0
    %p93 = por %p91, %p92
    %p94 = scmp.ne.s32.totalorder %s86, %s88
    %p95 = scmp.eq.s32.totalorder %s15, 1
    %p96 = por %p94, %p95
    %p97 = scmp.ne.s32.totalorder %s88, %s89
    %p98 = scmp.eq.s32.totalorder %s15, 0
    %p99 = por %p97, %p98
    %p100 = scmp.ne.s32.totalorder %s88, %s89
    %p101 = scmp.eq.s32.totalorder %s16, 1
    %p102 = por %p100, %p101
    %p104 = scmp.ne.s32.totalorder %s89, %s103
    %p105 = scmp.eq.s32.totalorder %s16, 0
    %p106 = por %p104, %p105
    %s107 = ssub.s32 %s10, %s17
    %p108 = scmp.eq.s32.totalorder %s107, 0
    %s110 = sadd.s32 %s109, 1
    %s111 = scalar_select %p108, %s109, %s110
    %p114 = pneg %p108
    %p115 = scmp.eq.s32.totalorder %s10, 1
    %p116 = por %p114, %p115
    %p117 = scmp.ne.s32.totalorder %s109, %s112
    %p118 = scmp.eq.s32.totalorder %s10, 0
    %p119 = por %p117, %p118
    %p120 = scmp.ne.s32.totalorder %s109, %s112
    %p121 = scmp.eq.s32.totalorder %s15, 1
    %p122 = por %p120, %p121
    %p123 = scmp.ne.s32.totalorder %s112, %s113
    %p124 = scmp.eq.s32.totalorder %s15, 0
    %p125 = por %p123, %p124
    %p126 = scmp.ne.s32.totalorder %s112, %s113
    %p127 = scmp.eq.s32.totalorder %s16, 1
    %p128 = por %p126, %p127
    %p130 = scmp.ne.s32.totalorder %s113, %s129
    %p131 = scmp.eq.s32.totalorder %s16, 0
    %p132 = por %p130, %p131
    %p133 = scmp.le.s32.totalorder 1, %s10
    %p134 = scmp.lt.s32.totalorder %s10, 3
    %p135 = pnand %p133, %p134
    %p136 = pneg %p135
    // Predicated region
    $region9: #{swin_forward.16} parent=5 // pred_check
      _
    $region10: #{swin_forward.16} parent=5 // pred_check_branch
      %138 = sbr.rel (%p135) target = $region12
    $region11: #{swin_forward.16} parent=5 // pred_region
      %s139 = ssub.s32 %s10, 1
      // Predicated region
      $region13: #{swin_forward.16} parent=11 // pred_check
        %p140 = pneg %p57
      $region14: #{swin_forward.16} parent=11 // pred_check_branch
        %142 = sbr.rel (%p140) target = $region16
      $region15: #{swin_forward.16} parent=11 // pred_region
        _
      $region16: #{swin_forward.16} parent=11 // pred_fallthru
        _
      // Predicated region
      $region17: #{swin_forward.16} parent=11 // pred_check
        %p143 = pneg %p78
      $region18: #{swin_forward.16} parent=11 // pred_check_branch
        %145 = sbr.rel (%p143) target = $region20
      $region19: #{swin_forward.16} parent=11 // pred_region
        _
      $region20: #{swin_forward.16} parent=11 // pred_fallthru
        _
      // Predicated region
      $region21: #{swin_forward.16} parent=11 // pred_check
        %p146 = pneg %p99
      $region22: #{swin_forward.16} parent=11 // pred_check_branch
        %148 = sbr.rel (%p146) target = $region24
      $region23: #{swin_forward.16} parent=11 // pred_region
        _
      $region24: #{swin_forward.16} parent=11 // pred_fallthru
        _
    $region12: #{swin_forward.16} parent=5 // pred_fallthru
      _
    %p149 = scmp.lt.s32.totalorder %s10, 2
    // Predicated region
    $region25: #{swin_forward.16} parent=5 // pred_check
      %p150 = pneg %p149
    $region26: #{swin_forward.16} parent=5 // pred_check_branch
      %152 = sbr.rel (%p150) target = $region28
    $region27: #{swin_forward.16} parent=5 // pred_region
      // Predicated region
      $region29: #{swin_forward.16} parent=27 // pred_check
        %p153 = pneg %p30
      $region30: #{swin_forward.16} parent=27 // pred_check_branch
        %155 = sbr.rel (%p153) target = $region32
      $region31: #{swin_forward.16} parent=27 // pred_region
        %s156 = smul.u32 2, %s10
        %p157 = scmp.lt.s32.totalorder %s156, 3
        %s158 = scalar_select %p157, %s156, 3
        %s159 = smul.addr %s158, 8
        %s160 = scalar_lea.vmem %s0, %s159
        %s161 = smul.u32 2, %s10
      $region32: #{swin_forward.16} parent=27 // pred_fallthru
        _
    $region28: #{swin_forward.16} parent=5 // pred_fallthru
      _
    %p162 = scmp.le.s32.totalorder 1, %s10
    %p163 = scmp.lt.s32.totalorder %s10, 3
    %p164 = pnand %p162, %p163
    %p165 = pneg %p164
    // Predicated region
    $region33: #{swin_forward.16} parent=5 // pred_check
      _
    $region34: #{swin_forward.16} parent=5 // pred_check_branch
      %167 = sbr.rel (%p164) target = $region36
    $region35: #{swin_forward.16} parent=5 // pred_region
      %s168 = ssub.s32 %s10, 1
      %s169 = smul.u32 2, %s15
      %p170 = scmp.lt.s32.totalorder %s169, 3
      %s171 = scalar_select %p170, %s169, 3
      %s172 = smul.addr %s171, 8
      %s173 = scalar_lea.vmem %s0, %s172
      %p174 = pneg %p36
      %p175 = pneg %p33
      %p176 = pneg %p57
      %p177 = pneg %p54
      %p178 = pneg %p78
      %p179 = pneg %p75
      %p180 = pneg %p99
      %p181 = pneg %p96
      %p182 = pneg %p125
      %p183 = pneg %p122
      %s184 = smul.u32 2, %s15
      %p185 = scmp.lt.s32.totalorder %s184, 3
      %s186 = scalar_select %p185, %s184, 3
      %s187 = smul.addr %s186, 8
      %s188 = scalar_lea.vmem %s4, %s187
      %s189 = smul.u32 2, %s15
      %p190 = scmp.lt.s32.totalorder %s189, 3
      %s191 = scalar_select %p190, %s189, 3
      %s192 = smul.addr %s191, 8
      %s193 = scalar_lea.vmem %s0, %s192
      %s194 = smul.u32 2, %s15
      %s195 = smul.u32 2, %s15
      %p196 = scmp.lt.s32.totalorder %s195, 3
      %s197 = scalar_select %p196, %s195, 3
      %s198 = smul.addr %s197, 8
      %s199 = scalar_lea.vmem %s4, %s198
      %s200 = smul.u32 2, %s15
      %v202 = vld [vmem:[%s193] sm:$0xff]
      %v203 = vld [vmem:[%s193 + $0x8] sm:$0xff]
      %v204 = vld [vmem:[%s1] sm:$0x1]
      %v205 = vld [vmem:[%s2] sm:$0x1]
      %206 = vadd.xlane.f32.xlu0 %v202
      %v207 = vpop.xlane.xlu0 %206
      %208 = vadd.xlane.f32.xlu0 %v203
      %v209 = vpop.xlane.xlu0 %208
      %v210 = vrcp.pop 128.0
      %v211 = vmul.f32 %v207, %v210
      %v212 = vmul.f32 %v209, %v210
      %v213 = vsub.f32 %v202, %v211
      %v214 = vsub.f32 %v203, %v212
      %v215 = vmul.f32 %v213, %v213
      %v216 = vmul.f32 %v214, %v214
      %217 = vadd.xlane.f32.xlu0 %v215
      %v218 = vpop.xlane.xlu0 %217
      %219 = vadd.xlane.f32.xlu0 %v216
      %v220 = vpop.xlane.xlu0 %219
      %v221 = vmul.f32 %v218, %v210
      %v222 = vmul.f32 %v220, %v210
      %v223 = vadd.f32 %v221, 1e-05
      %v224 = vadd.f32 %v222, 1e-05
      %v225 = vrsqrt.pop %v223
      %v226 = vrsqrt.pop %v224
      %v227 = vmul.f32 %v213, %v225
      %v228 = vmul.f32 %v214, %v226
      %v230 = vlaneseq
      %v231 = vshrl.u32 %v230, 7
      %v232 = vsub.s32 0, %v231
      %v233 = vrot.slane %v204, %v232
      %v235 = vmul.f32 %v227, %v233
      %v236 = vmul.f32 %v228, %v233
      %v238 = vlaneseq
      %v239 = vshrl.u32 %v238, 7
      %v240 = vsub.s32 0, %v239
      %v241 = vrot.slane %v205, %v240
      %v243 = vadd.f32 %v235, %v241
      %v244 = vadd.f32 %v236, %v241
      %v245 = vld [vmem:[%s3] sm:$0xff]
      %v246 = vld [vmem:[%s3 + $0x8] sm:$0xff]
      %v247 = vld [vmem:[%s3 + $0x10] sm:$0xff]
      %v248 = vld [vmem:[%s3 + $0x18] sm:$0xff]
      %v249 = vld [vmem:[%s3 + $0x20] sm:$0xff]
      %v250 = vld [vmem:[%s3 + $0x28] sm:$0xff]
      %v251 = vld [vmem:[%s3 + $0x30] sm:$0xff]
      %v252 = vld [vmem:[%s3 + $0x38] sm:$0xff]
      %v253 = vld [vmem:[%s3 + $0x40] sm:$0xff]
      %v254 = vld [vmem:[%s3 + $0x48] sm:$0xff]
      %v255 = vld [vmem:[%s3 + $0x50] sm:$0xff]
      %v256 = vld [vmem:[%s3 + $0x58] sm:$0xff]
      %v257 = vld [vmem:[%s3 + $0x60] sm:$0xff]
      %v258 = vld [vmem:[%s3 + $0x68] sm:$0xff]
      %v259 = vld [vmem:[%s3 + $0x70] sm:$0xff]
      %v260 = vld [vmem:[%s3 + $0x78] sm:$0xff]
      %v261 = vpack.c.bf16 %v244, %v243
      %v262 = vpack.c.bf16 %v246, %v245
      %v263 = vpack.c.bf16 %v248, %v247
      %v264 = vpack.c.bf16 %v250, %v249
      %v265 = vpack.c.bf16 %v252, %v251
      %v266 = vpack.c.bf16 %v254, %v253
      %v267 = vpack.c.bf16 %v256, %v255
      %v268 = vpack.c.bf16 %v258, %v257
      %v269 = vpack.c.bf16 %v260, %v259
      %270 = vmatprep.subr.bf16.mxu0 0
      %271 = vmatpush1.bf16.msra.mxu0 %v262
      %272 = vmatprep.subr.bf16.mxu0 0
      %273 = vmatpush1.bf16.msra.mxu0 %v263
      %274 = vmatprep.subr.bf16.mxu0 0
      %275 = vmatpush1.bf16.msra.mxu0 %v264
      %276 = vmatprep.subr.bf16.mxu0 0
      %277 = vmatpush1.bf16.msra.mxu0 %v265
      %278 = vmatprep.subr.bf16.mxu0 0
      %279 = vmatpush1.bf16.msra.mxu0 %v266
      %280 = vmatprep.subr.bf16.mxu0 0
      %281 = vmatpush1.bf16.msra.mxu0 %v267
      %282 = vmatprep.subr.bf16.mxu0 0
      %283 = vmatpush1.bf16.msra.mxu0 %v268
      %284 = vmatprep.subr.bf16.mxu0 0
      %285 = vmatpush1.bf16.msra.mxu0 %v269
      %286 = vmatprep.subr.bf16.mxu0 0
      %287 = vmatpush1.bf16.msra.mxu0 0
      %288 = vmatprep.subr.bf16.mxu0 0
      %289 = vmatpush1.bf16.msra.mxu0 0
      %290 = vmatprep.subr.bf16.mxu0 0
      %291 = vmatpush1.bf16.msra.mxu0 0
      %292 = vmatprep.subr.bf16.mxu0 0
      %293 = vmatpush1.bf16.msra.mxu0 0
      %294 = vmatprep.subr.bf16.mxu0 0
      %295 = vmatpush1.bf16.msra.mxu0 0
      %296 = vmatprep.subr.bf16.mxu0 0
      %297 = vmatpush1.bf16.msra.mxu0 0
      %298 = vmatprep.subr.bf16.mxu0 0
      %299 = vmatpush1.bf16.msra.mxu0 0
      %300 = vmatprep.subr.bf16.mxu0 0
      %301 = vmatpush1.bf16.msra.mxu0 0
      %302 = vmatprep.mubr.bf16.mxu0 0
      %303 = vmatmul.mubr.bf16.gmra.mrb[0].mxu0 %v261
      %v304 = vpop.f32.mrb[0].mxu0
      %v305 = vadd.f32 0.0, %v304
      %v306 = vpop.f32.mrb[0].mxu0
      %v307 = vpop.f32.mrb[0].mxu0
      %v308 = vadd.f32 0.0, %v307
      %v309 = vpop.f32.mrb[0].mxu0
      %310 = vdwg.mxu0
      %vm311 = vcmask 523264
      %312 = vst.msk [vmem:[%s199] sm:$0xff] %vm311, %v305
      %313 = vst.msk [vmem:[%s199 + $0x8] sm:$0xff] %vm311, %v308
      %s314 = smul.u32 2, %s15
      %p315 = scmp.lt.s32.totalorder %s314, 3
      %s316 = scalar_select %p315, %s314, 3
      %s317 = smul.addr %s316, 8
      %s318 = scalar_lea.vmem %s4, %s317
      // Predicated region
      $region37: #{swin_forward.16} parent=35 // pred_check
        %p319 = pneg %p122
      $region38: #{swin_forward.16} parent=35 // pred_check_branch
        %321 = sbr.rel (%p319) target = $region40
      $region39: #{swin_forward.16} parent=35 // pred_region
        %s322 = smul.u32 2, %s15
      $region40: #{swin_forward.16} parent=35 // pred_fallthru
        _
    $region36: #{swin_forward.16} parent=5 // pred_fallthru
      _
    %p323 = scmp.le.s32.totalorder 2, %s10
    // Predicated region
    $region41: #{swin_forward.16} parent=5 // pred_check
      %p324 = pneg %p323
    $region42: #{swin_forward.16} parent=5 // pred_check_branch
      %326 = sbr.rel (%p324) target = $region44
    $region43: #{swin_forward.16} parent=5 // pred_region
      %s327 = ssub.s32 %s10, 2
      // Predicated region
      $region45: #{swin_forward.16} parent=43 // pred_check
        %p328 = pneg %p128
      $region46: #{swin_forward.16} parent=43 // pred_check_branch
        %330 = sbr.rel (%p328) target = $region48
      $region47: #{swin_forward.16} parent=43 // pred_region
        %s331 = smul.u32 2, %s16
        %p332 = scmp.lt.s32.totalorder %s331, 3
        %s333 = scalar_select %p332, %s331, 3
        %s334 = smul.addr %s333, 8
        %s335 = scalar_lea.vmem %s4, %s334
      $region48: #{swin_forward.16} parent=43 // pred_fallthru
        _
    $region44: #{swin_forward.16} parent=5 // pred_fallthru
      _
  $region6: #{swin_forward.16} parent=0 // loop_footer
    %s14 = sadd.s32 1, %s10
  $region7: #{swin_forward.16} parent=0 // loop_footer_branch
    %9 = sbr.rel target = $region3
  $region8: #{swin_forward.16} parent=0 // loop_exit
    _

// kernel: swin_forward.18
$region0: #{swin_forward.18}
  #allocation0 [shape = 'u32[]', space=smem, size = 0x4, offset = 0x4, fixed_abs, tag = 'smem constant byte address 0x4 - core index']
  #allocation1 [shape = 'u32[144,128]{1,0:T(1,128)}', space=vmem, size = 0x12000, scoped, tag = 'internal scratch']
  %s0 = inlined_call_operand.vmem [shape: f32[32,64], index: 0, kind: input, shape index: {}]
  %s1 = inlined_call_operand.vmem [shape: f32[1,64], index: 1, kind: input, shape index: {}]
  %s2 = inlined_call_operand.vmem [shape: f32[1,64], index: 2, kind: input, shape index: {}]
  %s3 = inlined_call_operand.vmem [shape: f32[64,256], index: 3, kind: input, shape index: {}]
  %s4 = inlined_call_operand.vmem [shape: f32[1,256], index: 4, kind: input, shape index: {}]
  %s5 = inlined_call_operand.vmem [shape: f32[256,64], index: 5, kind: input, shape index: {}]
  %s6 = inlined_call_operand.vmem [shape: f32[1,64], index: 6, kind: input, shape index: {}]
  %s7 = inlined_call_operand.vmem [shape: f32[32,64], index: 7, kind: output, shape index: {}]
  %s8 = sld [smem:[#allocation0]]
  $region61: #{swin_forward.18} parent=0
    _
  %s10 = ssub.s32 1, %s8
  %s11 = scalar_select 0, %s10, %s8
  loop: start=0, step=1, limit=4
  $region2: #{swin_forward.18} parent=0 // loop_pre_header
    _
  $region3: #{swin_forward.18} parent=0 // loop_header
    %s13 = sphi 0, %s17
    %p14 = scmp.ge.s32.totalorder %s13, 4
    %s23 = sphi 0, %s25
    %s26 = sphi 0, %s23
    %s27 = sphi 0, %s26
    %s43 = sphi 0, %s27
    %s47 = sphi 0, %s47
    %s49 = sphi 0, %s47
    %s50 = sphi 0, %s49
    %s64 = sphi 0, %s50
    %s68 = sphi 0, %s68
    %s70 = sphi 0, %s68
    %s71 = sphi 0, %s70
    %s85 = sphi 0, %s71
    %s89 = sphi 0, %s89
    %s91 = sphi 0, %s89
    %s92 = sphi 0, %s91
    %s106 = sphi 0, %s92
    %s110 = sphi 0, %s110
    %s112 = sphi 0, %s110
    %s113 = sphi 0, %s112
    %s127 = sphi 0, %s113
    %s131 = sphi 0, %s131
    %s133 = sphi 0, %s131
    %s134 = sphi 0, %s133
    %s148 = sphi 0, %s134
    %s152 = sphi 0, %s152
    %s154 = sphi 0, %s152
    %s155 = sphi 0, %s154
    %s169 = sphi 0, %s155
    %s175 = sphi 0, %s177
    %s178 = sphi 0, %s175
    %s179 = sphi 0, %s178
    %s195 = sphi 0, %s179
  $region4: #{swin_forward.18} parent=0 // loop_header_branch
    %16 = sbr.rel (%p14) target = $region8
  $region5: #{swin_forward.18} parent=0 // loop_body
    %s18 = ssub.s32 %s13, 1
    %s19 = ssub.s32 %s13, 2
    %s20 = sadd.s32 %s13, 1
    %s21 = ssub.s32 %s13, %s20
    %p22 = scmp.eq.s32.totalorder %s21, 0
    %s24 = sadd.s32 %s23, 1
    %s25 = scalar_select %p22, %s23, %s24
    %p28 = pneg %p22
    %p29 = scmp.eq.s32.totalorder %s13, 1
    %p30 = por %p28, %p29
    %p31 = scmp.ne.s32.totalorder %s23, %s26
    %p32 = scmp.eq.s32.totalorder %s13, 0
    %p33 = por %p31, %p32
    %p34 = scmp.ne.s32.totalorder %s23, %s26
    %p35 = scmp.eq.s32.totalorder %s18, 1
    %p36 = por %p34, %p35
    %p37 = scmp.ne.s32.totalorder %s26, %s27
    %p38 = scmp.eq.s32.totalorder %s18, 0
    %p39 = por %p37, %p38
    %p40 = scmp.ne.s32.totalorder %s26, %s27
    %p41 = scmp.eq.s32.totalorder %s19, 1
    %p42 = por %p40, %p41
    %p44 = scmp.ne.s32.totalorder %s27, %s43
    %p45 = scmp.eq.s32.totalorder %s19, 0
    %p46 = por %p44, %p45
    %s48 = sadd.s32 %s47, 1
    %p51 = scmp.eq.s32.totalorder %s13, 1
    %p52 = scmp.ne.s32.totalorder %s47, %s49
    %p53 = scmp.eq.s32.totalorder %s13, 0
    %p54 = por %p52, %p53
    %p55 = scmp.ne.s32.totalorder %s47, %s49
    %p56 = scmp.eq.s32.totalorder %s18, 1
    %p57 = por %p55, %p56
    %p58 = scmp.ne.s32.totalorder %s49, %s50
    %p59 = scmp.eq.s32.totalorder %s18, 0
    %p60 = por %p58, %p59
    %p61 = scmp.ne.s32.totalorder %s49, %s50
    %p62 = scmp.eq.s32.totalorder %s19, 1
    %p63 = por %p61, %p62
    %p65 = scmp.ne.s32.totalorder %s50, %s64
    %p66 = scmp.eq.s32.totalorder %s19, 0
    %p67 = por %p65, %p66
    %s69 = sadd.s32 %s68, 1
    %p72 = scmp.eq.s32.totalorder %s13, 1
    %p73 = scmp.ne.s32.totalorder %s68, %s70
    %p74 = scmp.eq.s32.totalorder %s13, 0
    %p75 = por %p73, %p74
    %p76 = scmp.ne.s32.totalorder %s68, %s70
    %p77 = scmp.eq.s32.totalorder %s18, 1
    %p78 = por %p76, %p77
    %p79 = scmp.ne.s32.totalorder %s70, %s71
    %p80 = scmp.eq.s32.totalorder %s18, 0
    %p81 = por %p79, %p80
    %p82 = scmp.ne.s32.totalorder %s70, %s71
    %p83 = scmp.eq.s32.totalorder %s19, 1
    %p84 = por %p82, %p83
    %p86 = scmp.ne.s32.totalorder %s71, %s85
    %p87 = scmp.eq.s32.totalorder %s19, 0
    %p88 = por %p86, %p87
    %s90 = sadd.s32 %s89, 1
    %p93 = scmp.eq.s32.totalorder %s13, 1
    %p94 = scmp.ne.s32.totalorder %s89, %s91
    %p95 = scmp.eq.s32.totalorder %s13, 0
    %p96 = por %p94, %p95
    %p97 = scmp.ne.s32.totalorder %s89, %s91
    %p98 = scmp.eq.s32.totalorder %s18, 1
    %p99 = por %p97, %p98
    %p100 = scmp.ne.s32.totalorder %s91, %s92
    %p101 = scmp.eq.s32.totalorder %s18, 0
    %p102 = por %p100, %p101
    %p103 = scmp.ne.s32.totalorder %s91, %s92
    %p104 = scmp.eq.s32.totalorder %s19, 1
    %p105 = por %p103, %p104
    %p107 = scmp.ne.s32.totalorder %s92, %s106
    %p108 = scmp.eq.s32.totalorder %s19, 0
    %p109 = por %p107, %p108
    %s111 = sadd.s32 %s110, 1
    %p114 = scmp.eq.s32.totalorder %s13, 1
    %p115 = scmp.ne.s32.totalorder %s110, %s112
    %p116 = scmp.eq.s32.totalorder %s13, 0
    %p117 = por %p115, %p116
    %p118 = scmp.ne.s32.totalorder %s110, %s112
    %p119 = scmp.eq.s32.totalorder %s18, 1
    %p120 = por %p118, %p119
    %p121 = scmp.ne.s32.totalorder %s112, %s113
    %p122 = scmp.eq.s32.totalorder %s18, 0
    %p123 = por %p121, %p122
    %p124 = scmp.ne.s32.totalorder %s112, %s113
    %p125 = scmp.eq.s32.totalorder %s19, 1
    %p126 = por %p124, %p125
    %p128 = scmp.ne.s32.totalorder %s113, %s127
    %p129 = scmp.eq.s32.totalorder %s19, 0
    %p130 = por %p128, %p129
    %s132 = sadd.s32 %s131, 1
    %p135 = scmp.eq.s32.totalorder %s13, 1
    %p136 = scmp.ne.s32.totalorder %s131, %s133
    %p137 = scmp.eq.s32.totalorder %s13, 0
    %p138 = por %p136, %p137
    %p139 = scmp.ne.s32.totalorder %s131, %s133
    %p140 = scmp.eq.s32.totalorder %s18, 1
    %p141 = por %p139, %p140
    %p142 = scmp.ne.s32.totalorder %s133, %s134
    %p143 = scmp.eq.s32.totalorder %s18, 0
    %p144 = por %p142, %p143
    %p145 = scmp.ne.s32.totalorder %s133, %s134
    %p146 = scmp.eq.s32.totalorder %s19, 1
    %p147 = por %p145, %p146
    %p149 = scmp.ne.s32.totalorder %s134, %s148
    %p150 = scmp.eq.s32.totalorder %s19, 0
    %p151 = por %p149, %p150
    %s153 = sadd.s32 %s152, 1
    %p156 = scmp.eq.s32.totalorder %s13, 1
    %p157 = scmp.ne.s32.totalorder %s152, %s154
    %p158 = scmp.eq.s32.totalorder %s13, 0
    %p159 = por %p157, %p158
    %p160 = scmp.ne.s32.totalorder %s152, %s154
    %p161 = scmp.eq.s32.totalorder %s18, 1
    %p162 = por %p160, %p161
    %p163 = scmp.ne.s32.totalorder %s154, %s155
    %p164 = scmp.eq.s32.totalorder %s18, 0
    %p165 = por %p163, %p164
    %p166 = scmp.ne.s32.totalorder %s154, %s155
    %p167 = scmp.eq.s32.totalorder %s19, 1
    %p168 = por %p166, %p167
    %p170 = scmp.ne.s32.totalorder %s155, %s169
    %p171 = scmp.eq.s32.totalorder %s19, 0
    %p172 = por %p170, %p171
    %s173 = ssub.s32 %s13, %s20
    %p174 = scmp.eq.s32.totalorder %s173, 0
    %s176 = sadd.s32 %s175, 1
    %s177 = scalar_select %p174, %s175, %s176
    %p180 = pneg %p174
    %p181 = scmp.eq.s32.totalorder %s13, 1
    %p182 = por %p180, %p181
    %p183 = scmp.ne.s32.totalorder %s175, %s178
    %p184 = scmp.eq.s32.totalorder %s13, 0
    %p185 = por %p183, %p184
    %p186 = scmp.ne.s32.totalorder %s175, %s178
    %p187 = scmp.eq.s32.totalorder %s18, 1
    %p188 = por %p186, %p187
    %p189 = scmp.ne.s32.totalorder %s178, %s179
    %p190 = scmp.eq.s32.totalorder %s18, 0
    %p191 = por %p189, %p190
    %p192 = scmp.ne.s32.totalorder %s178, %s179
    %p193 = scmp.eq.s32.totalorder %s19, 1
    %p194 = por %p192, %p193
    %p196 = scmp.ne.s32.totalorder %s179, %s195
    %p197 = scmp.eq.s32.totalorder %s19, 0
    %p198 = por %p196, %p197
    %p199 = scmp.le.s32.totalorder 1, %s13
    %p200 = scmp.lt.s32.totalorder %s13, 3
    %p201 = pnand %p199, %p200
    %p202 = pneg %p201
    // Predicated region
    $region9: #{swin_forward.18} parent=5 // pred_check
      _
    $region10: #{swin_forward.18} parent=5 // pred_check_branch
      %204 = sbr.rel (%p201) target = $region12
    $region11: #{swin_forward.18} parent=5 // pred_region
      %s205 = ssub.s32 %s13, 1
      // Predicated region
      $region13: #{swin_forward.18} parent=11 // pred_check
        %p206 = pneg %p60
      $region14: #{swin_forward.18} parent=11 // pred_check_branch
        %208 = sbr.rel (%p206) target = $region16
      $region15: #{swin_forward.18} parent=11 // pred_region
        _
      $region16: #{swin_forward.18} parent=11 // pred_fallthru
        _
      // Predicated region
      $region17: #{swin_forward.18} parent=11 // pred_check
        %p209 = pneg %p81
      $region18: #{swin_forward.18} parent=11 // pred_check_branch
        %211 = sbr.rel (%p209) target = $region20
      $region19: #{swin_forward.18} parent=11 // pred_region
        _
      $region20: #{swin_forward.18} parent=11 // pred_fallthru
        _
      // Predicated region
      $region21: #{swin_forward.18} parent=11 // pred_check
        %p212 = pneg %p102
      $region22: #{swin_forward.18} parent=11 // pred_check_branch
        %214 = sbr.rel (%p212) target = $region24
      $region23: #{swin_forward.18} parent=11 // pred_region
        _
      $region24: #{swin_forward.18} parent=11 // pred_fallthru
        _
      // Predicated region
      $region25: #{swin_forward.18} parent=11 // pred_check
        %p215 = pneg %p123
      $region26: #{swin_forward.18} parent=11 // pred_check_branch
        %217 = sbr.rel (%p215) target = $region28
      $region27: #{swin_forward.18} parent=11 // pred_region
        _
      $region28: #{swin_forward.18} parent=11 // pred_fallthru
        _
      // Predicated region
      $region29: #{swin_forward.18} parent=11 // pred_check
        %p218 = pneg %p144
      $region30: #{swin_forward.18} parent=11 // pred_check_branch
        %220 = sbr.rel (%p218) target = $region32
      $region31: #{swin_forward.18} parent=11 // pred_region
        _
      $region32: #{swin_forward.18} parent=11 // pred_fallthru
        _
      // Predicated region
      $region33: #{swin_forward.18} parent=11 // pred_check
        %p221 = pneg %p165
      $region34: #{swin_forward.18} parent=11 // pred_check_branch
        %223 = sbr.rel (%p221) target = $region36
      $region35: #{swin_forward.18} parent=11 // pred_region
        _
      $region36: #{swin_forward.18} parent=11 // pred_fallthru
        _
    $region12: #{swin_forward.18} parent=5 // pred_fallthru
      _
    %p224 = scmp.lt.s32.totalorder %s13, 2
    // Predicated region
    $region37: #{swin_forward.18} parent=5 // pred_check
      %p225 = pneg %p224
    $region38: #{swin_forward.18} parent=5 // pred_check_branch
      %227 = sbr.rel (%p225) target = $region40
    $region39: #{swin_forward.18} parent=5 // pred_region
      // Predicated region
      $region41: #{swin_forward.18} parent=39 // pred_check
        %p228 = pneg %p33
      $region42: #{swin_forward.18} parent=39 // pred_check_branch
        %230 = sbr.rel (%p228) target = $region44
      $region43: #{swin_forward.18} parent=39 // pred_region
        %s231 = smul.u32 2, %s13
        %p232 = scmp.lt.s32.totalorder %s231, 3
        %s233 = scalar_select %p232, %s231, 3
        %s234 = smul.addr %s233, 8
        %s235 = scalar_lea.vmem %s0, %s234
        %s236 = smul.u32 2, %s13
      $region44: #{swin_forward.18} parent=39 // pred_fallthru
        _
    $region40: #{swin_forward.18} parent=5 // pred_fallthru
      _
    %p237 = scmp.le.s32.totalorder 1, %s13
    %p238 = scmp.lt.s32.totalorder %s13, 3
    %p239 = pnand %p237, %p238
    %p240 = pneg %p239
    // Predicated region
    $region45: #{swin_forward.18} parent=5 // pred_check
      _
    $region46: #{swin_forward.18} parent=5 // pred_check_branch
      %242 = sbr.rel (%p239) target = $region48
    $region47: #{swin_forward.18} parent=5 // pred_region
      %s243 = ssub.s32 %s13, 1
      %s244 = smul.u32 2, %s18
      %p245 = scmp.lt.s32.totalorder %s244, 3
      %s246 = scalar_select %p245, %s244, 3
      %s247 = smul.addr %s246, 8
      %s248 = scalar_lea.vmem %s0, %s247
      %p249 = pneg %p39
      %p250 = pneg %p36
      %p251 = pneg %p60
      %p252 = pneg %p57
      %p253 = pneg %p81
      %p254 = pneg %p78
      %p255 = pneg %p102
      %p256 = pneg %p99
      %p257 = pneg %p123
      %p258 = pneg %p120
      %p259 = pneg %p144
      %p260 = pneg %p141
      %p261 = pneg %p165
      %p262 = pneg %p162
      %p263 = pneg %p191
      %p264 = pneg %p188
      %s265 = smul.u32 2, %s18
      %p266 = scmp.lt.s32.totalorder %s265, 3
      %s267 = scalar_select %p266, %s265, 3
      %s268 = smul.addr %s267, 8
      %s269 = scalar_lea.vmem %s7, %s268
      %s270 = smul.u32 2, %s18
      %p271 = scmp.lt.s32.totalorder %s270, 3
      %s272 = scalar_select %p271, %s270, 3
      %s273 = smul.addr %s272, 8
      %s274 = scalar_lea.vmem %s0, %s273
      %s275 = smul.u32 2, %s18
      %s276 = smul.u32 2, %s18
      %p277 = scmp.lt.s32.totalorder %s276, 3
      %s278 = scalar_select %p277, %s276, 3
      %s279 = smul.addr %s278, 8
      %s280 = scalar_lea.vmem %s7, %s279
      %s281 = smul.u32 2, %s18
      %v283 = vld [vmem:[%s274] sm:$0xff]
      %v284 = vld [vmem:[%s274 + $0x8] sm:$0xff]
      %v285 = vld [vmem:[%s1] sm:$0x1]
      %v286 = vld [vmem:[%s2] sm:$0x1]
      %vm287 = vcmask 523264
      %v288 = vsel %vm287, %v283, 0.0
      %289 = vadd.xlane.f32.xlu0 %v288
      %v290 = vpop.xlane.xlu0 %289
      %v291 = vsel %vm287, %v284, 0.0
      %292 = vadd.xlane.f32.xlu0 %v291
      %v293 = vpop.xlane.xlu0 %292
      %v294 = vrcp.pop 64.0
      %v295 = vmul.f32 %v290, %v294
      %v296 = vmul.f32 %v293, %v294
      %v297 = vsub.f32 %v283, %v295
      %v298 = vsub.f32 %v284, %v296
      %v299 = vmul.f32 %v297, %v297
      %v300 = vmul.f32 %v298, %v298
      %v301 = vsel %vm287, %v299, 0.0
      %302 = vadd.xlane.f32.xlu0 %v301
      %v303 = vpop.xlane.xlu0 %302
      %v304 = vsel %vm287, %v300, 0.0
      %305 = vadd.xlane.f32.xlu0 %v304
      %v306 = vpop.xlane.xlu0 %305
      %v307 = vmul.f32 %v303, %v294
      %v308 = vmul.f32 %v306, %v294
      %v309 = vadd.f32 %v307, 1e-05
      %v310 = vadd.f32 %v308, 1e-05
      %v311 = vrsqrt.pop %v309
      %v312 = vrsqrt.pop %v310
      %v313 = vmul.f32 %v297, %v311
      %v314 = vmul.f32 %v298, %v312
      %v316 = vlaneseq
      %v317 = vshrl.u32 %v316, 7
      %v318 = vsub.s32 0, %v317
      %v319 = vrot.slane %v285, %v318
      %v321 = vmul.f32 %v313, %v319
      %v322 = vmul.f32 %v314, %v319
      %v324 = vlaneseq
      %v325 = vshrl.u32 %v324, 7
      %v326 = vsub.s32 0, %v325
      %v327 = vrot.slane %v286, %v326
      %v329 = vadd.f32 %v321, %v327
      %v330 = vadd.f32 %v322, %v327
      %v331 = vld [vmem:[%s3] sm:$0xff]
      %v332 = vld [vmem:[%s3 + $0x8] sm:$0xff]
      %v333 = vld [vmem:[%s3 + $0x10] sm:$0xff]
      %v334 = vld [vmem:[%s3 + $0x18] sm:$0xff]
      %v335 = vld [vmem:[%s3 + $0x20] sm:$0xff]
      %v336 = vld [vmem:[%s3 + $0x28] sm:$0xff]
      %v337 = vld [vmem:[%s3 + $0x30] sm:$0xff]
      %v338 = vld [vmem:[%s3 + $0x38] sm:$0xff]
      %v339 = vld [vmem:[%s3 + $0x40] sm:$0xff]
      %v340 = vld [vmem:[%s3 + $0x48] sm:$0xff]
      %v341 = vld [vmem:[%s3 + $0x50] sm:$0xff]
      %v342 = vld [vmem:[%s3 + $0x58] sm:$0xff]
      %v343 = vld [vmem:[%s3 + $0x60] sm:$0xff]
      %v344 = vld [vmem:[%s3 + $0x68] sm:$0xff]
      %v345 = vld [vmem:[%s3 + $0x70] sm:$0xff]
      %v346 = vld [vmem:[%s3 + $0x78] sm:$0xff]
      %v347 = vpack.c.bf16 %v330, %v329
      %v348 = vpack.c.bf16 %v333, %v331
      %v349 = vpack.c.bf16 %v334, %v332
      %v350 = vpack.c.bf16 %v337, %v335
      %v351 = vpack.c.bf16 %v338, %v336
      %v352 = vpack.c.bf16 %v341, %v339
      %v353 = vpack.c.bf16 %v342, %v340
      %v354 = vpack.c.bf16 %v345, %v343
      %v355 = vpack.c.bf16 %v346, %v344
      %v356 = vld [vmem:[%s4] sm:$0x3]
      %v358 = vlaneseq
      %v359 = vshrl.u32 %v358, 7
      %v360 = vsub.s32 0, %v359
      %v361 = vrot.slane %v356, %v360
      %v362 = vlaneseq
      %v363 = vshrl.u32 %v362, 7
      %v364 = vsub.s32 1, %v363
      %v365 = vrot.slane %v356, %v364
      %v369 = vsel %vm287, %v347, 0
      %371 = vmatprep.subr.bf16.mxu0 %v349
      %372 = vmatpush1.bf16.msra.mxu0 %v348
      %373 = vmatprep.subr.bf16.mxu0 %v351
      %374 = vmatpush1.bf16.msra.mxu0 %v350
      %375 = vmatprep.subr.bf16.mxu0 %v353
      %376 = vmatpush1.bf16.msra.mxu0 %v352
      %377 = vmatprep.subr.bf16.mxu0 %v355
      %378 = vmatpush1.bf16.msra.mxu0 %v354
      %379 = vmatprep.subr.bf16.mxu0 0
      %380 = vmatpush1.bf16.msra.mxu0 0
      %381 = vmatprep.subr.bf16.mxu0 0
      %382 = vmatpush1.bf16.msra.mxu0 0
      %383 = vmatprep.subr.bf16.mxu0 0
      %384 = vmatpush1.bf16.msra.mxu0 0
      %385 = vmatprep.subr.bf16.mxu0 0
      %386 = vmatpush1.bf16.msra.mxu0 0
      %387 = vmatprep.subr.bf16.mxu0 0
      %388 = vmatpush1.bf16.msra.mxu0 0
      %389 = vmatprep.subr.bf16.mxu0 0
      %390 = vmatpush1.bf16.msra.mxu0 0
      %391 = vmatprep.subr.bf16.mxu0 0
      %392 = vmatpush1.bf16.msra.mxu0 0
      %393 = vmatprep.subr.bf16.mxu0 0
      %394 = vmatpush1.bf16.msra.mxu0 0
      %395 = vmatprep.subr.bf16.mxu0 0
      %396 = vmatpush1.bf16.msra.mxu0 0
      %397 = vmatprep.subr.bf16.mxu0 0
      %398 = vmatpush1.bf16.msra.mxu0 0
      %399 = vmatprep.subr.bf16.mxu0 0
      %400 = vmatpush1.bf16.msra.mxu0 0
      %401 = vmatprep.subr.bf16.mxu0 0
      %402 = vmatpush1.bf16.msra.mxu0 0
      %403 = vmatprep.mubr.bf16.mxu0 0
      %404 = vmatmul.mubr.bf16.gmra.mrb[0].mxu0 %v369
      %v405 = vpop.f32.mrb[0].mxu0
      %v406 = vadd.f32 %v361, %v405
      %v407 = vpop.f32.mrb[0].mxu0
      %v408 = vadd.f32 %v365, %v407
      %v409 = vpop.f32.mrb[0].mxu0
      %v410 = vadd.f32 %v361, %v409
      %v411 = vpop.f32.mrb[0].mxu0
      %v412 = vadd.f32 %v365, %v411
      %413 = vdwg.mxu0
      %v414 = vmul.f32 %v406, 0.5
      %v415 = vmul.f32 %v408, 0.5
      %v416 = vmul.f32 %v410, 0.5
      %v417 = vmul.f32 %v412, 0.5
      %v418 = vmul.f32 %v406, 0.70710677
      %v419 = vmul.f32 %v408, 0.70710677
      %v420 = vmul.f32 %v410, 0.70710677
      %v421 = vmul.f32 %v412, 0.70710677
      %v422 = verf.f32.pop %v418
      %v423 = verf.f32.pop %v419
      %v424 = verf.f32.pop %v420
      %v425 = verf.f32.pop %v421
      %v426 = vadd.f32 %v422, 1.0
      %v427 = vadd.f32 %v423, 1.0
      %v428 = vadd.f32 %v424, 1.0
      %v429 = vadd.f32 %v425, 1.0
      %v430 = vmul.f32 %v414, %v426
      %v431 = vmul.f32 %v415, %v427
      %v432 = vmul.f32 %v416, %v428
      %v433 = vmul.f32 %v417, %v429
      %v434 = vld [vmem:[%s5] sm:$0xff]
      %v435 = vld [vmem:[%s5 + $0x8] sm:$0xff]
      %v436 = vld [vmem:[%s5 + $0x10] sm:$0xff]
      %v437 = vld [vmem:[%s5 + $0x18] sm:$0xff]
      %v438 = vld [vmem:[%s5 + $0x20] sm:$0xff]
      %v439 = vld [vmem:[%s5 + $0x28] sm:$0xff]
      %v440 = vld [vmem:[%s5 + $0x30] sm:$0xff]
      %v441 = vld [vmem:[%s5 + $0x38] sm:$0xff]
      %v442 = vld [vmem:[%s5 + $0x40] sm:$0xff]
      %v443 = vld [vmem:[%s5 + $0x48] sm:$0xff]
      %v444 = vld [vmem:[%s5 + $0x50] sm:$0xff]
      %v445 = vld [vmem:[%s5 + $0x58] sm:$0xff]
      %v446 = vld [vmem:[%s5 + $0x60] sm:$0xff]
      %v447 = vld [vmem:[%s5 + $0x68] sm:$0xff]
      %v448 = vld [vmem:[%s5 + $0x70] sm:$0xff]
      %v449 = vld [vmem:[%s5 + $0x78] sm:$0xff]
      %v450 = vld [vmem:[%s5 + $0x80] sm:$0xff]
      %v451 = vld [vmem:[%s5 + $0x88] sm:$0xff]
      %v452 = vld [vmem:[%s5 + $0x90] sm:$0xff]
      %v453 = vld [vmem:[%s5 + $0x98] sm:$0xff]
      %v454 = vld [vmem:[%s5 + $0xa0] sm:$0xff]
      %v455 = vld [vmem:[%s5 + $0xa8] sm:$0xff]
      %v456 = vld [vmem:[%s5 + $0xb0] sm:$0xff]
      %v457 = vld [vmem:[%s5 + $0xb8] sm:$0xff]
      %v458 = vld [vmem:[%s5 + $0xc0] sm:$0xff]
      %v459 = vld [vmem:[%s5 + $0xc8] sm:$0xff]
      %v460 = vld [vmem:[%s5 + $0xd0] sm:$0xff]
      %v461 = vld [vmem:[%s5 + $0xd8] sm:$0xff]
      %v462 = vld [vmem:[%s5 + $0xe0] sm:$0xff]
      %v463 = vld [vmem:[%s5 + $0xe8] sm:$0xff]
      %v464 = vld [vmem:[%s5 + $0xf0] sm:$0xff]
      %v465 = vld [vmem:[%s5 + $0xf8] sm:$0xff]
      %v466 = vpack.c.bf16 %v432, %v430
      %v467 = vpack.c.bf16 %v433, %v431
      %v468 = vpack.c.bf16 %v435, %v434
      %v469 = vpack.c.bf16 %v437, %v436
      %v470 = vpack.c.bf16 %v439, %v438
      %v471 = vpack.c.bf16 %v441, %v440
      %v472 = vpack.c.bf16 %v443, %v442
      %v473 = vpack.c.bf16 %v445, %v444
      %v474 = vpack.c.bf16 %v447, %v446
      %v475 = vpack.c.bf16 %v449, %v448
      %v476 = vpack.c.bf16 %v451, %v450
      %v477 = vpack.c.bf16 %v453, %v452
      %v478 = vpack.c.bf16 %v455, %v454
      %v479 = vpack.c.bf16 %v457, %v456
      %v480 = vpack.c.bf16 %v459, %v458
      %v481 = vpack.c.bf16 %v461, %v460
      %v482 = vpack.c.bf16 %v463, %v462
      %v483 = vpack.c.bf16 %v465, %v464
      %v484 = vld [vmem:[%s6] sm:$0x1]
      %v486 = vlaneseq
      %v487 = vshrl.u32 %v486, 7
      %v488 = vsub.s32 0, %v487
      %v489 = vrot.slane %v484, %v488
      %491 = vmatprep.subr.bf16.mxu0 0
      %492 = vmatpush1.bf16.msra.mxu0 %v468
      %493 = vmatprep.subr.bf16.mxu0 0
      %494 = vmatpush1.bf16.msra.mxu0 %v469
      %495 = vmatprep.subr.bf16.mxu0 0
      %496 = vmatpush1.bf16.msra.mxu0 %v470
      %497 = vmatprep.subr.bf16.mxu0 0
      %498 = vmatpush1.bf16.msra.mxu0 %v471
      %499 = vmatprep.subr.bf16.mxu0 0
      %500 = vmatpush1.bf16.msra.mxu0 %v472
      %501 = vmatprep.subr.bf16.mxu0 0
      %502 = vmatpush1.bf16.msra.mxu0 %v473
      %503 = vmatprep.subr.bf16.mxu0 0
      %504 = vmatpush1.bf16.msra.mxu0 %v474
      %505 = vmatprep.subr.bf16.mxu0 0
      %506 = vmatpush1.bf16.msra.mxu0 %v475
      %507 = vmatprep.subr.bf16.mxu0 0
      %508 = vmatpush1.bf16.msra.mxu0 %v476
      %509 = vmatprep.subr.bf16.mxu0 0
      %510 = vmatpush1.bf16.msra.mxu0 %v477
      %511 = vmatprep.subr.bf16.mxu0 0
      %512 = vmatpush1.bf16.msra.mxu0 %v478
      %513 = vmatprep.subr.bf16.mxu0 0
      %514 = vmatpush1.bf16.msra.mxu0 %v479
      %515 = vmatprep.subr.bf16.mxu0 0
      %516 = vmatpush1.bf16.msra.mxu0 %v480
      %517 = vmatprep.subr.bf16.mxu0 0
      %518 = vmatpush1.bf16.msra.mxu0 %v481
      %519 = vmatprep.subr.bf16.mxu0 0
      %520 = vmatpush1.bf16.msra.mxu0 %v482
      %521 = vmatprep.subr.bf16.mxu0 0
      %522 = vmatpush1.bf16.msra.mxu0 %v483
      %523 = vmatprep.mubr.bf16.mxu0 %v467
      %524 = vmatmul.mubr.bf16.gmra.mrb[0].mxu0 %v466
      %v525 = vpop.f32.mrb[0].mxu0
      %v526 = vadd.f32 %v489, %v525
      %v527 = vpop.f32.mrb[0].mxu0
      %v528 = vpop.f32.mrb[0].mxu0
      %v529 = vadd.f32 %v489, %v528
      %v530 = vpop.f32.mrb[0].mxu0
      %531 = vdwg.mxu0
      %v532 = vadd.f32 %v283, %v526
      %v533 = vadd.f32 %v284, %v529
      %534 = vst.msk [vmem:[%s280] sm:$0xff] %vm287, %v532
      %535 = vst.msk [vmem:[%s280 + $0x8] sm:$0xff] %vm287, %v533
      %s536 = smul.u32 2, %s18
      %p537 = scmp.lt.s32.totalorder %s536, 3
      %s538 = scalar_select %p537, %s536, 3
      %s539 = smul.addr %s538, 8
      %s540 = scalar_lea.vmem %s7, %s539
      // Predicated region
      $region49: #{swin_forward.18} parent=47 // pred_check
        %p541 = pneg %p188
      $region50: #{swin_forward.18} parent=47 // pred_check_branch
        %543 = sbr.rel (%p541) target = $region52
      $region51: #{swin_forward.18} parent=47 // pred_region
        %s544 = smul.u32 2, %s18
      $region52: #{swin_forward.18} parent=47 // pred_fallthru
        _
    $region48: #{swin_forward.18} parent=5 // pred_fallthru
      _
    %p545 = scmp.le.s32.totalorder 2, %s13
    // Predicated region
    $region53: #{swin_forward.18} parent=5 // pred_check
      %p546 = pneg %p545
    $region54: #{swin_forward.18} parent=5 // pred_check_branch
      %548 = sbr.rel (%p546) target = $region56
    $region55: #{swin_forward.18} parent=5 // pred_region
      %s549 = ssub.s32 %s13, 2
      // Predicated region
      $region57: #{swin_forward.18} parent=55 // pred_check
        %p550 = pneg %p194
      $region58: #{swin_forward.18} parent=55 // pred_check_branch
        %552 = sbr.rel (%p550) target = $region60
      $region59: #{swin_forward.18} parent=55 // pred_region
        %s553 = smul.u32 2, %s19
        %p554 = scmp.lt.s32.totalorder %s553, 3
        %s555 = scalar_select %p554, %s553, 3
        %s556 = smul.addr %s555, 8
        %s557 = scalar_lea.vmem %s7, %s556
      $region60: #{swin_forward.18} parent=55 // pred_fallthru
        _
    $region56: #{swin_forward.18} parent=5 // pred_fallthru
      _
  $region6: #{swin_forward.18} parent=0 // loop_footer
    %s17 = sadd.s32 1, %s13
  $region7: #{swin_forward.18} parent=0 // loop_footer_branch
    %12 = sbr.rel target = $region3
  $region8: #{swin_forward.18} parent=0 // loop_exit
    _

// kernel: swin_forward.21
$region0: #{swin_forward.21}
  #allocation0 [shape = 'u32[]', space=smem, size = 0x4, offset = 0x4, fixed_abs, tag = 'smem constant byte address 0x4 - core index']
  #allocation1 [shape = 'u32[144,128]{1,0:T(1,128)}', space=vmem, size = 0x12000, scoped, tag = 'internal scratch']
  %s0 = inlined_call_operand.vmem [shape: f32[2,16,64], index: 0, kind: input, shape index: {}]
  %s1 = inlined_call_operand.vmem [shape: f32[1,64], index: 1, kind: input, shape index: {}]
  %s2 = inlined_call_operand.vmem [shape: f32[1,64], index: 2, kind: input, shape index: {}]
  %s3 = inlined_call_operand.vmem [shape: f32[64,4], index: 3, kind: input, shape index: {}]
  %s4 = inlined_call_operand.vmem [shape: f32[1,4], index: 4, kind: input, shape index: {}]
  %s5 = inlined_call_operand.hbm [shape: f32[2,4], index: 5, kind: output, shape index: {}]
  %s6 = sld [smem:[#allocation0]]
  $region30: #{swin_forward.21} parent=0
    _
  %s8 = ssub.s32 1, %s6
  %s9 = scalar_select 0, %s8, %s6
  $region1: #{swin_forward.21} parent=0
    #allocation2 [shape = 'u8[1024]{0}', space=vmem, size = 0x400, scoped, tag = 'output window, operand 0, single buffered']
    #allocation3 [shape = 's32[1]{0}', space=sflag, size = 0x4, scoped, tag = 'scoped memory for swin_forward.21']
    %10 = vsyncpa [#allocation3], 0
    // Predicated region
    $region2: #{swin_forward.21} parent=1 // pred_check
      _
    $region3: #{swin_forward.21} parent=1 // pred_check_branch
      %12 = sbr.rel (0) target = $region5
    $region4: #{swin_forward.21} parent=1 // pred_region
      _
    $region5: #{swin_forward.21} parent=1 // pred_fallthru
      _
    // Predicated region
    $region6: #{swin_forward.21} parent=1 // pred_check
      _
    $region7: #{swin_forward.21} parent=1 // pred_check_branch
      %14 = sbr.rel (0) target = $region9
    $region8: #{swin_forward.21} parent=1 // pred_region
      _
    $region9: #{swin_forward.21} parent=1 // pred_fallthru
      _
    // Predicated region
    $region10: #{swin_forward.21} parent=1 // pred_check
      _
    $region11: #{swin_forward.21} parent=1 // pred_check_branch
      %16 = sbr.rel (0) target = $region13
    $region12: #{swin_forward.21} parent=1 // pred_region
      _
    $region13: #{swin_forward.21} parent=1 // pred_fallthru
      _
    // Predicated region
    $region14: #{swin_forward.21} parent=1 // pred_check
      _
    $region15: #{swin_forward.21} parent=1 // pred_check_branch
      %18 = sbr.rel (0) target = $region17
    $region16: #{swin_forward.21} parent=1 // pred_region
      _
    $region17: #{swin_forward.21} parent=1 // pred_fallthru
      _
    // Predicated region
    $region18: #{swin_forward.21} parent=1 // pred_check
      _
    $region19: #{swin_forward.21} parent=1 // pred_check_branch
      %20 = sbr.rel (0) target = $region21
    $region20: #{swin_forward.21} parent=1 // pred_region
      _
    $region21: #{swin_forward.21} parent=1 // pred_fallthru
      _
    %v22 = vld [vmem:[%s0] sm:$0xff]
    %v23 = vld [vmem:[%s0 + $0x8] sm:$0xff]
    %v24 = vld [vmem:[%s0 + $0x10] sm:$0xff]
    %v25 = vld [vmem:[%s0 + $0x18] sm:$0xff]
    %v26 = vld [vmem:[%s1] sm:$0x1]
    %v27 = vld [vmem:[%s2] sm:$0x1]
    %vm28 = vcmask 523264
    %v29 = vsel %vm28, %v22, 0.0
    %30 = vadd.xlane.f32.xlu0 %v29
    %v31 = vpop.xlane.xlu0 %30
    %v32 = vsel %vm28, %v23, 0.0
    %33 = vadd.xlane.f32.xlu0 %v32
    %v34 = vpop.xlane.xlu0 %33
    %v35 = vsel %vm28, %v24, 0.0
    %36 = vadd.xlane.f32.xlu0 %v35
    %v37 = vpop.xlane.xlu0 %36
    %v38 = vsel %vm28, %v25, 0.0
    %39 = vadd.xlane.f32.xlu0 %v38
    %v40 = vpop.xlane.xlu0 %39
    %v41 = vrcp.pop 64.0
    %v42 = vmul.f32 %v31, %v41
    %v43 = vmul.f32 %v34, %v41
    %v44 = vmul.f32 %v37, %v41
    %v45 = vmul.f32 %v40, %v41
    %v46 = vsub.f32 %v22, %v42
    %v47 = vsub.f32 %v23, %v43
    %v48 = vsub.f32 %v24, %v44
    %v49 = vsub.f32 %v25, %v45
    %v50 = vmul.f32 %v46, %v46
    %v51 = vmul.f32 %v47, %v47
    %v52 = vmul.f32 %v48, %v48
    %v53 = vmul.f32 %v49, %v49
    %v54 = vsel %vm28, %v50, 0.0
    %55 = vadd.xlane.f32.xlu0 %v54
    %v56 = vpop.xlane.xlu0 %55
    %v57 = vsel %vm28, %v51, 0.0
    %58 = vadd.xlane.f32.xlu0 %v57
    %v59 = vpop.xlane.xlu0 %58
    %v60 = vsel %vm28, %v52, 0.0
    %61 = vadd.xlane.f32.xlu0 %v60
    %v62 = vpop.xlane.xlu0 %61
    %v63 = vsel %vm28, %v53, 0.0
    %64 = vadd.xlane.f32.xlu0 %v63
    %v65 = vpop.xlane.xlu0 %64
    %v66 = vmul.f32 %v56, %v41
    %v67 = vmul.f32 %v59, %v41
    %v68 = vmul.f32 %v62, %v41
    %v69 = vmul.f32 %v65, %v41
    %v70 = vadd.f32 %v66, 1e-05
    %v71 = vadd.f32 %v67, 1e-05
    %v72 = vadd.f32 %v68, 1e-05
    %v73 = vadd.f32 %v69, 1e-05
    %v74 = vrsqrt.pop %v70
    %v75 = vrsqrt.pop %v71
    %v76 = vrsqrt.pop %v72
    %v77 = vrsqrt.pop %v73
    %v78 = vmul.f32 %v46, %v74
    %v79 = vmul.f32 %v47, %v75
    %v80 = vmul.f32 %v48, %v76
    %v81 = vmul.f32 %v49, %v77
    %v83 = vlaneseq
    %v84 = vshrl.u32 %v83, 7
    %v85 = vsub.s32 0, %v84
    %v86 = vrot.slane %v26, %v85
    %v88 = vmul.f32 %v78, %v86
    %v89 = vmul.f32 %v79, %v86
    %v90 = vmul.f32 %v80, %v86
    %v91 = vmul.f32 %v81, %v86
    %v93 = vlaneseq
    %v94 = vshrl.u32 %v93, 7
    %v95 = vsub.s32 0, %v94
    %v96 = vrot.slane %v27, %v95
    %v98 = vadd.f32 %v88, %v96
    %v99 = vadd.f32 %v89, %v96
    %v100 = vadd.f32 %v90, %v96
    %v101 = vadd.f32 %v91, %v96
    %v102 = vsel %vm28, %v98, 0.0
    %v103 = vsel %vm28, %v99, 0.0
    %v104 = vadd.f32 %v102, %v103
    %v105 = vrot.slane %v104, 4
    %v106 = vadd.f32 %v104, %v105
    %v107 = vrot.slane %v106, 2
    %v108 = vadd.f32 %v106, %v107
    %v109 = vrot.slane %v108, 1
    %v110 = vadd.f32 %v108, %v109
    %v111 = vsel %vm28, %v100, 0.0
    %v112 = vsel %vm28, %v101, 0.0
    %v113 = vadd.f32 %v111, %v112
    %v114 = vrot.slane %v113, 4
    %v115 = vadd.f32 %v113, %v114
    %v116 = vrot.slane %v115, 2
    %v117 = vadd.f32 %v115, %v116
    %v118 = vrot.slane %v117, 1
    %v119 = vadd.f32 %v117, %v118
    %v120 = vrcp.pop 16.0
    %v121 = vmul.f32 %v110, %v120
    %v122 = vmul.f32 %v119, %v120
    %v123 = vld [vmem:[%s3] sm:$0xff]
    %v124 = vld [vmem:[%s3 + $0x8] sm:$0xff]
    %v125 = vld [vmem:[%s3 + $0x10] sm:$0xff]
    %v126 = vld [vmem:[%s3 + $0x18] sm:$0xff]
    %v127 = vld [vmem:[%s3 + $0x20] sm:$0xff]
    %v128 = vld [vmem:[%s3 + $0x28] sm:$0xff]
    %v129 = vld [vmem:[%s3 + $0x30] sm:$0xff]
    %v130 = vld [vmem:[%s3 + $0x38] sm:$0xff]
    %v131 = vpack.c.bf16 %v121, %v121
    %v132 = vpack.c.bf16 %v122, %v122
    %v133 = vpack.c.bf16 %v124, %v123
    %v134 = vpack.c.bf16 %v126, %v125
    %v135 = vpack.c.bf16 %v128, %v127
    %v136 = vpack.c.bf16 %v130, %v129
    %v137 = vld [vmem:[%s4] sm:$0x1]
    %v139 = vlaneseq
    %v140 = vshrl.u32 %v139, 7
    %v141 = vsub.s32 0, %v140
    %v142 = vrot.slane %v137, %v141
    %v146 = vunpack.c.l.b16 %v131
    %v147 = vunpack.c.l.b16 %v132
    %vm148 = vcmask 1041409
    %v149 = vsel %vm148, %v147, %v146
    %v150 = vpack.c.b16 %v149, %v149
    %v152 = vsel %vm28, %v150, 0
    %154 = vmatprep.subr.bf16.mxu0 0
    %155 = vmatpush1.bf16.msra.mxu0 %v133
    %156 = vmatprep.subr.bf16.mxu0 0
    %157 = vmatpush1.bf16.msra.mxu0 %v134
    %158 = vmatprep.subr.bf16.mxu0 0
    %159 = vmatpush1.bf16.msra.mxu0 %v135
    %160 = vmatprep.subr.bf16.mxu0 0
    %161 = vmatpush1.bf16.msra.mxu0 %v136
    %162 = vmatprep.subr.bf16.mxu0 0
    %163 = vmatpush1.bf16.msra.mxu0 0
    %164 = vmatprep.subr.bf16.mxu0 0
    %165 = vmatpush1.bf16.msra.mxu0 0
    %166 = vmatprep.subr.bf16.mxu0 0
    %167 = vmatpush1.bf16.msra.mxu0 0
    %168 = vmatprep.subr.bf16.mxu0 0
    %169 = vmatpush1.bf16.msra.mxu0 0
    %170 = vmatprep.subr.bf16.mxu0 0
    %171 = vmatpush1.bf16.msra.mxu0 0
    %172 = vmatprep.subr.bf16.mxu0 0
    %173 = vmatpush1.bf16.msra.mxu0 0
    %174 = vmatprep.subr.bf16.mxu0 0
    %175 = vmatpush1.bf16.msra.mxu0 0
    %176 = vmatprep.subr.bf16.mxu0 0
    %177 = vmatpush1.bf16.msra.mxu0 0
    %178 = vmatprep.subr.bf16.mxu0 0
    %179 = vmatpush1.bf16.msra.mxu0 0
    %180 = vmatprep.subr.bf16.mxu0 0
    %181 = vmatpush1.bf16.msra.mxu0 0
    %182 = vmatprep.subr.bf16.mxu0 0
    %183 = vmatpush1.bf16.msra.mxu0 0
    %184 = vmatprep.subr.bf16.mxu0 0
    %185 = vmatpush1.bf16.msra.mxu0 0
    %186 = vmatprep.mubr.bf16.mxu0 0
    %187 = vmatmul.mubr.bf16.gmra.mrb[0].mxu0 %v152
    %v188 = vpop.f32.mrb[0].mxu0
    %v189 = vadd.f32 %v142, %v188
    %v190 = vpop.f32.mrb[0].mxu0
    %v191 = vpop.f32.mrb[0].mxu0
    %v192 = vpop.f32.mrb[0].mxu0
    %193 = vdwg.mxu0
    %vm194 = vcmask 25600
    %195 = vst.msk [vmem:[#allocation2] sm:$0x3] %vm194, %v189
    // Predicated region
    $region22: #{swin_forward.21} parent=1 // pred_check
      _
    $region23: #{swin_forward.21} parent=1 // pred_check_branch
      %197 = sbr.rel (0) target = $region25
    $region24: #{swin_forward.21} parent=1 // pred_region
      %s199 = ssub.s32 32, 32
      %200 = vsyncadd [#allocation3], %s199
      %s202 = sshll.u32 [#allocation2], 4
      %s203 = int_to_ptr.vmem [resolvable:$true] %s202
      %205 = dma.vmem_to_hbm [thread:$0]  %s203, 32, %s5, [#allocation3]
    $region25: #{swin_forward.21} parent=1 // pred_fallthru
      _
    // Predicated region
    $region26: #{swin_forward.21} parent=1 // pred_check
      _
    $region27: #{swin_forward.21} parent=1 // pred_check_branch
      %207 = sbr.rel (0) target = $region29
    $region28: #{swin_forward.21} parent=1 // pred_region
      %208 = dma.done [#allocation3], 32
    $region29: #{swin_forward.21} parent=1 // pred_fallthru
      _
    %209 = vsyncpa [#allocation3], 1

// kernel: swin_forward.17
$region0: #{swin_forward.17}
  #allocation0 [shape = 'u32[]', space=smem, size = 0x4, offset = 0x4, fixed_abs, tag = 'smem constant byte address 0x4 - core index']
  #allocation1 [shape = 'u32[144,128]{1,0:T(1,128)}', space=vmem, size = 0x12000, scoped, tag = 'internal scratch']
  %s0 = inlined_call_operand.vmem [shape: f32[2,16,64], index: 0, kind: input, shape index: {}]
  %s1 = inlined_call_operand.vmem [shape: f32[1,64], index: 1, kind: input, shape index: {}]
  %s2 = inlined_call_operand.vmem [shape: f32[1,64], index: 2, kind: input, shape index: {}]
  %s3 = inlined_call_operand.vmem [shape: f32[64,192], index: 3, kind: input, shape index: {}]
  %s4 = inlined_call_operand.vmem [shape: f32[1,192], index: 4, kind: input, shape index: {}]
  %s5 = inlined_call_operand.vmem [shape: f32[4,16,16], index: 5, kind: input, shape index: {}]
  %s6 = inlined_call_operand.vmem [shape: f32[1,16,16], index: 6, kind: input, shape index: {}]
  %s7 = inlined_call_operand.vmem [shape: f32[64,64], index: 7, kind: input, shape index: {}]
  %s8 = inlined_call_operand.vmem [shape: f32[1,64], index: 8, kind: input, shape index: {}]
  %s9 = inlined_call_operand.vmem [shape: f32[2,16,64], index: 9, kind: output, shape index: {}]
  %s10 = sld [smem:[#allocation0]]
  $region69: #{swin_forward.17} parent=0
    _
  %s12 = ssub.s32 1, %s10
  %s13 = scalar_select 0, %s12, %s10
  loop: start=0, step=1, limit=4
  $region2: #{swin_forward.17} parent=0 // loop_pre_header
    _
  $region3: #{swin_forward.17} parent=0 // loop_header
    %s15 = sphi 0, %s19
    %p16 = scmp.ge.s32.totalorder %s15, 4
    %s25 = sphi 0, %s27
    %s28 = sphi 0, %s25
    %s29 = sphi 0, %s28
    %s45 = sphi 0, %s29
    %s49 = sphi 0, %s49
    %s51 = sphi 0, %s49
    %s52 = sphi 0, %s51
    %s66 = sphi 0, %s52
    %s70 = sphi 0, %s70
    %s72 = sphi 0, %s70
    %s73 = sphi 0, %s72
    %s87 = sphi 0, %s73
    %s91 = sphi 0, %s91
    %s93 = sphi 0, %s91
    %s94 = sphi 0, %s93
    %s108 = sphi 0, %s94
    %s112 = sphi 0, %s112
    %s114 = sphi 0, %s112
    %s115 = sphi 0, %s114
    %s129 = sphi 0, %s115
    %s133 = sphi 0, %s133
    %s135 = sphi 0, %s133
    %s136 = sphi 0, %s135
    %s150 = sphi 0, %s136
    %s154 = sphi 0, %s154
    %s156 = sphi 0, %s154
    %s157 = sphi 0, %s156
    %s171 = sphi 0, %s157
    %s175 = sphi 0, %s175
    %s177 = sphi 0, %s175
    %s178 = sphi 0, %s177
    %s192 = sphi 0, %s178
    %s196 = sphi 0, %s196
    %s198 = sphi 0, %s196
    %s199 = sphi 0, %s198
    %s213 = sphi 0, %s199
    %s219 = sphi 0, %s221
    %s222 = sphi 0, %s219
    %s223 = sphi 0, %s222
    %s239 = sphi 0, %s223
  $region4: #{swin_forward.17} parent=0 // loop_header_branch
    %18 = sbr.rel (%p16) target = $region8
  $region5: #{swin_forward.17} parent=0 // loop_body
    %s20 = ssub.s32 %s15, 1
    %s21 = ssub.s32 %s15, 2
    %s22 = sadd.s32 %s15, 1
    %s23 = ssub.s32 %s15, %s22
    %p24 = scmp.eq.s32.totalorder %s23, 0
    %s26 = sadd.s32 %s25, 1
    %s27 = scalar_select %p24, %s25, %s26
    %p30 = pneg %p24
    %p31 = scmp.eq.s32.totalorder %s15, 1
    %p32 = por %p30, %p31
    %p33 = scmp.ne.s32.totalorder %s25, %s28
    %p34 = scmp.eq.s32.totalorder %s15, 0
    %p35 = por %p33, %p34
    %p36 = scmp.ne.s32.totalorder %s25, %s28
    %p37 = scmp.eq.s32.totalorder %s20, 1
    %p38 = por %p36, %p37
    %p39 = scmp.ne.s32.totalorder %s28, %s29
    %p40 = scmp.eq.s32.totalorder %s20, 0
    %p41 = por %p39, %p40
    %p42 = scmp.ne.s32.totalorder %s28, %s29
    %p43 = scmp.eq.s32.totalorder %s21, 1
    %p44 = por %p42, %p43
    %p46 = scmp.ne.s32.totalorder %s29, %s45
    %p47 = scmp.eq.s32.totalorder %s21, 0
    %p48 = por %p46, %p47
    %s50 = sadd.s32 %s49, 1
    %p53 = scmp.eq.s32.totalorder %s15, 1
    %p54 = scmp.ne.s32.totalorder %s49, %s51
    %p55 = scmp.eq.s32.totalorder %s15, 0
    %p56 = por %p54, %p55
    %p57 = scmp.ne.s32.totalorder %s49, %s51
    %p58 = scmp.eq.s32.totalorder %s20, 1
    %p59 = por %p57, %p58
    %p60 = scmp.ne.s32.totalorder %s51, %s52
    %p61 = scmp.eq.s32.totalorder %s20, 0
    %p62 = por %p60, %p61
    %p63 = scmp.ne.s32.totalorder %s51, %s52
    %p64 = scmp.eq.s32.totalorder %s21, 1
    %p65 = por %p63, %p64
    %p67 = scmp.ne.s32.totalorder %s52, %s66
    %p68 = scmp.eq.s32.totalorder %s21, 0
    %p69 = por %p67, %p68
    %s71 = sadd.s32 %s70, 1
    %p74 = scmp.eq.s32.totalorder %s15, 1
    %p75 = scmp.ne.s32.totalorder %s70, %s72
    %p76 = scmp.eq.s32.totalorder %s15, 0
    %p77 = por %p75, %p76
    %p78 = scmp.ne.s32.totalorder %s70, %s72
    %p79 = scmp.eq.s32.totalorder %s20, 1
    %p80 = por %p78, %p79
    %p81 = scmp.ne.s32.totalorder %s72, %s73
    %p82 = scmp.eq.s32.totalorder %s20, 0
    %p83 = por %p81, %p82
    %p84 = scmp.ne.s32.totalorder %s72, %s73
    %p85 = scmp.eq.s32.totalorder %s21, 1
    %p86 = por %p84, %p85
    %p88 = scmp.ne.s32.totalorder %s73, %s87
    %p89 = scmp.eq.s32.totalorder %s21, 0
    %p90 = por %p88, %p89
    %s92 = sadd.s32 %s91, 1
    %p95 = scmp.eq.s32.totalorder %s15, 1
    %p96 = scmp.ne.s32.totalorder %s91, %s93
    %p97 = scmp.eq.s32.totalorder %s15, 0
    %p98 = por %p96, %p97
    %p99 = scmp.ne.s32.totalorder %s91, %s93
    %p100 = scmp.eq.s32.totalorder %s20, 1
    %p101 = por %p99, %p100
    %p102 = scmp.ne.s32.totalorder %s93, %s94
    %p103 = scmp.eq.s32.totalorder %s20, 0
    %p104 = por %p102, %p103
    %p105 = scmp.ne.s32.totalorder %s93, %s94
    %p106 = scmp.eq.s32.totalorder %s21, 1
    %p107 = por %p105, %p106
    %p109 = scmp.ne.s32.totalorder %s94, %s108
    %p110 = scmp.eq.s32.totalorder %s21, 0
    %p111 = por %p109, %p110
    %s113 = sadd.s32 %s112, 1
    %p116 = scmp.eq.s32.totalorder %s15, 1
    %p117 = scmp.ne.s32.totalorder %s112, %s114
    %p118 = scmp.eq.s32.totalorder %s15, 0
    %p119 = por %p117, %p118
    %p120 = scmp.ne.s32.totalorder %s112, %s114
    %p121 = scmp.eq.s32.totalorder %s20, 1
    %p122 = por %p120, %p121
    %p123 = scmp.ne.s32.totalorder %s114, %s115
    %p124 = scmp.eq.s32.totalorder %s20, 0
    %p125 = por %p123, %p124
    %p126 = scmp.ne.s32.totalorder %s114, %s115
    %p127 = scmp.eq.s32.totalorder %s21, 1
    %p128 = por %p126, %p127
    %p130 = scmp.ne.s32.totalorder %s115, %s129
    %p131 = scmp.eq.s32.totalorder %s21, 0
    %p132 = por %p130, %p131
    %s134 = sadd.s32 %s133, 1
    %p137 = scmp.eq.s32.totalorder %s15, 1
    %p138 = scmp.ne.s32.totalorder %s133, %s135
    %p139 = scmp.eq.s32.totalorder %s15, 0
    %p140 = por %p138, %p139
    %p141 = scmp.ne.s32.totalorder %s133, %s135
    %p142 = scmp.eq.s32.totalorder %s20, 1
    %p143 = por %p141, %p142
    %p144 = scmp.ne.s32.totalorder %s135, %s136
    %p145 = scmp.eq.s32.totalorder %s20, 0
    %p146 = por %p144, %p145
    %p147 = scmp.ne.s32.totalorder %s135, %s136
    %p148 = scmp.eq.s32.totalorder %s21, 1
    %p149 = por %p147, %p148
    %p151 = scmp.ne.s32.totalorder %s136, %s150
    %p152 = scmp.eq.s32.totalorder %s21, 0
    %p153 = por %p151, %p152
    %s155 = sadd.s32 %s154, 1
    %p158 = scmp.eq.s32.totalorder %s15, 1
    %p159 = scmp.ne.s32.totalorder %s154, %s156
    %p160 = scmp.eq.s32.totalorder %s15, 0
    %p161 = por %p159, %p160
    %p162 = scmp.ne.s32.totalorder %s154, %s156
    %p163 = scmp.eq.s32.totalorder %s20, 1
    %p164 = por %p162, %p163
    %p165 = scmp.ne.s32.totalorder %s156, %s157
    %p166 = scmp.eq.s32.totalorder %s20, 0
    %p167 = por %p165, %p166
    %p168 = scmp.ne.s32.totalorder %s156, %s157
    %p169 = scmp.eq.s32.totalorder %s21, 1
    %p170 = por %p168, %p169
    %p172 = scmp.ne.s32.totalorder %s157, %s171
    %p173 = scmp.eq.s32.totalorder %s21, 0
    %p174 = por %p172, %p173
    %s176 = sadd.s32 %s175, 1
    %p179 = scmp.eq.s32.totalorder %s15, 1
    %p180 = scmp.ne.s32.totalorder %s175, %s177
    %p181 = scmp.eq.s32.totalorder %s15, 0
    %p182 = por %p180, %p181
    %p183 = scmp.ne.s32.totalorder %s175, %s177
    %p184 = scmp.eq.s32.totalorder %s20, 1
    %p185 = por %p183, %p184
    %p186 = scmp.ne.s32.totalorder %s177, %s178
    %p187 = scmp.eq.s32.totalorder %s20, 0
    %p188 = por %p186, %p187
    %p189 = scmp.ne.s32.totalorder %s177, %s178
    %p190 = scmp.eq.s32.totalorder %s21, 1
    %p191 = por %p189, %p190
    %p193 = scmp.ne.s32.totalorder %s178, %s192
    %p194 = scmp.eq.s32.totalorder %s21, 0
    %p195 = por %p193, %p194
    %s197 = sadd.s32 %s196, 1
    %p200 = scmp.eq.s32.totalorder %s15, 1
    %p201 = scmp.ne.s32.totalorder %s196, %s198
    %p202 = scmp.eq.s32.totalorder %s15, 0
    %p203 = por %p201, %p202
    %p204 = scmp.ne.s32.totalorder %s196, %s198
    %p205 = scmp.eq.s32.totalorder %s20, 1
    %p206 = por %p204, %p205
    %p207 = scmp.ne.s32.totalorder %s198, %s199
    %p208 = scmp.eq.s32.totalorder %s20, 0
    %p209 = por %p207, %p208
    %p210 = scmp.ne.s32.totalorder %s198, %s199
    %p211 = scmp.eq.s32.totalorder %s21, 1
    %p212 = por %p210, %p211
    %p214 = scmp.ne.s32.totalorder %s199, %s213
    %p215 = scmp.eq.s32.totalorder %s21, 0
    %p216 = por %p214, %p215
    %s217 = ssub.s32 %s15, %s22
    %p218 = scmp.eq.s32.totalorder %s217, 0
    %s220 = sadd.s32 %s219, 1
    %s221 = scalar_select %p218, %s219, %s220
    %p224 = pneg %p218
    %p225 = scmp.eq.s32.totalorder %s15, 1
    %p226 = por %p224, %p225
    %p227 = scmp.ne.s32.totalorder %s219, %s222
    %p228 = scmp.eq.s32.totalorder %s15, 0
    %p229 = por %p227, %p228
    %p230 = scmp.ne.s32.totalorder %s219, %s222
    %p231 = scmp.eq.s32.totalorder %s20, 1
    %p232 = por %p230, %p231
    %p233 = scmp.ne.s32.totalorder %s222, %s223
    %p234 = scmp.eq.s32.totalorder %s20, 0
    %p235 = por %p233, %p234
    %p236 = scmp.ne.s32.totalorder %s222, %s223
    %p237 = scmp.eq.s32.totalorder %s21, 1
    %p238 = por %p236, %p237
    %p240 = scmp.ne.s32.totalorder %s223, %s239
    %p241 = scmp.eq.s32.totalorder %s21, 0
    %p242 = por %p240, %p241
    %p243 = scmp.le.s32.totalorder 1, %s15
    %p244 = scmp.lt.s32.totalorder %s15, 3
    %p245 = pnand %p243, %p244
    %p246 = pneg %p245
    // Predicated region
    $region9: #{swin_forward.17} parent=5 // pred_check
      _
    $region10: #{swin_forward.17} parent=5 // pred_check_branch
      %248 = sbr.rel (%p245) target = $region12
    $region11: #{swin_forward.17} parent=5 // pred_region
      %s249 = ssub.s32 %s15, 1
      // Predicated region
      $region13: #{swin_forward.17} parent=11 // pred_check
        %p250 = pneg %p62
      $region14: #{swin_forward.17} parent=11 // pred_check_branch
        %252 = sbr.rel (%p250) target = $region16
      $region15: #{swin_forward.17} parent=11 // pred_region
        _
      $region16: #{swin_forward.17} parent=11 // pred_fallthru
        _
      // Predicated region
      $region17: #{swin_forward.17} parent=11 // pred_check
        %p253 = pneg %p83
      $region18: #{swin_forward.17} parent=11 // pred_check_branch
        %255 = sbr.rel (%p253) target = $region20
      $region19: #{swin_forward.17} parent=11 // pred_region
        _
      $region20: #{swin_forward.17} parent=11 // pred_fallthru
        _
      // Predicated region
      $region21: #{swin_forward.17} parent=11 // pred_check
        %p256 = pneg %p104
      $region22: #{swin_forward.17} parent=11 // pred_check_branch
        %258 = sbr.rel (%p256) target = $region24
      $region23: #{swin_forward.17} parent=11 // pred_region
        _
      $region24: #{swin_forward.17} parent=11 // pred_fallthru
        _
      // Predicated region
      $region25: #{swin_forward.17} parent=11 // pred_check
        %p259 = pneg %p125
      $region26: #{swin_forward.17} parent=11 // pred_check_branch
        %261 = sbr.rel (%p259) target = $region28
      $region27: #{swin_forward.17} parent=11 // pred_region
        _
      $region28: #{swin_forward.17} parent=11 // pred_fallthru
        _
      // Predicated region
      $region29: #{swin_forward.17} parent=11 // pred_check
        %p262 = pneg %p146
      $region30: #{swin_forward.17} parent=11 // pred_check_branch
        %264 = sbr.rel (%p262) target = $region32
      $region31: #{swin_forward.17} parent=11 // pred_region
        _
      $region32: #{swin_forward.17} parent=11 // pred_fallthru
        _
      // Predicated region
      $region33: #{swin_forward.17} parent=11 // pred_check
        %p265 = pneg %p167
      $region34: #{swin_forward.17} parent=11 // pred_check_branch
        %267 = sbr.rel (%p265) target = $region36
      $region35: #{swin_forward.17} parent=11 // pred_region
        _
      $region36: #{swin_forward.17} parent=11 // pred_fallthru
        _
      // Predicated region
      $region37: #{swin_forward.17} parent=11 // pred_check
        %p268 = pneg %p188
      $region38: #{swin_forward.17} parent=11 // pred_check_branch
        %270 = sbr.rel (%p268) target = $region40
      $region39: #{swin_forward.17} parent=11 // pred_region
        _
      $region40: #{swin_forward.17} parent=11 // pred_fallthru
        _
      // Predicated region
      $region41: #{swin_forward.17} parent=11 // pred_check
        %p271 = pneg %p209
      $region42: #{swin_forward.17} parent=11 // pred_check_branch
        %273 = sbr.rel (%p271) target = $region44
      $region43: #{swin_forward.17} parent=11 // pred_region
        _
      $region44: #{swin_forward.17} parent=11 // pred_fallthru
        _
    $region12: #{swin_forward.17} parent=5 // pred_fallthru
      _
    %p274 = scmp.lt.s32.totalorder %s15, 2
    // Predicated region
    $region45: #{swin_forward.17} parent=5 // pred_check
      %p275 = pneg %p274
    $region46: #{swin_forward.17} parent=5 // pred_check_branch
      %277 = sbr.rel (%p275) target = $region48
    $region47: #{swin_forward.17} parent=5 // pred_region
      // Predicated region
      $region49: #{swin_forward.17} parent=47 // pred_check
        %p278 = pneg %p35
      $region50: #{swin_forward.17} parent=47 // pred_check_branch
        %280 = sbr.rel (%p278) target = $region52
      $region51: #{swin_forward.17} parent=47 // pred_region
        %p281 = scmp.lt.s32.totalorder %s15, 1
        %s282 = scalar_select %p281, %s15, 1
        %s283 = smul.addr %s282, 2
        %s284 = smul.addr %s283, 8
        %s285 = scalar_lea.vmem %s0, %s284
      $region52: #{swin_forward.17} parent=47 // pred_fallthru
        _
    $region48: #{swin_forward.17} parent=5 // pred_fallthru
      _
    %p286 = scmp.le.s32.totalorder 1, %s15
    %p287 = scmp.lt.s32.totalorder %s15, 3
    %p288 = pnand %p286, %p287
    %p289 = pneg %p288
    // Predicated region
    $region53: #{swin_forward.17} parent=5 // pred_check
      _
    $region54: #{swin_forward.17} parent=5 // pred_check_branch
      %291 = sbr.rel (%p288) target = $region56
    $region55: #{swin_forward.17} parent=5 // pred_region
      %s292 = ssub.s32 %s15, 1
      %p293 = scmp.lt.s32.totalorder %s20, 1
      %s294 = scalar_select %p293, %s20, 1
      %s295 = smul.addr %s294, 2
      %s296 = smul.addr %s295, 8
      %s297 = scalar_lea.vmem %s0, %s296
      %p298 = pneg %p41
      %p299 = pneg %p38
      %p300 = pneg %p62
      %p301 = pneg %p59
      %p302 = pneg %p83
      %p303 = pneg %p80
      %p304 = pneg %p104
      %p305 = pneg %p101
      %p306 = pneg %p125
      %p307 = pneg %p122
      %p308 = pneg %p146
      %p309 = pneg %p143
      %p310 = pneg %p167
      %p311 = pneg %p164
      %p312 = pneg %p188
      %p313 = pneg %p185
      %p314 = pneg %p209
      %p315 = pneg %p206
      %p316 = pneg %p235
      %p317 = pneg %p232
      %p318 = scmp.lt.s32.totalorder %s20, 1
      %s319 = scalar_select %p318, %s20, 1
      %s320 = smul.addr %s319, 2
      %s321 = smul.addr %s320, 8
      %s322 = scalar_lea.vmem %s9, %s321
      %p323 = scmp.lt.s32.totalorder %s20, 1
      %s324 = scalar_select %p323, %s20, 1
      %s325 = smul.addr %s324, 2
      %s326 = smul.addr %s325, 8
      %s327 = scalar_lea.vmem %s0, %s326
      %p328 = scmp.lt.s32.totalorder %s20, 1
      %s329 = scalar_select %p328, %s20, 1
      %s330 = smul.addr %s329, 2
      %s331 = smul.addr %s330, 8
      %s332 = scalar_lea.vmem %s9, %s331
      %v334 = vld [vmem:[%s327] sm:$0xff]
      %v335 = vld [vmem:[%s327 + $0x8] sm:$0xff]
      %v336 = vld [vmem:[%s1] sm:$0x1]
      %v337 = vld [vmem:[%s2] sm:$0x1]
      %vm338 = vcmask 523264
      %v339 = vsel %vm338, %v334, 0.0
      %340 = vadd.xlane.f32.xlu0 %v339
      %v341 = vpop.xlane.xlu0 %340
      %v342 = vsel %vm338, %v335, 0.0
      %343 = vadd.xlane.f32.xlu0 %v342
      %v344 = vpop.xlane.xlu0 %343
      %v345 = vrcp.pop 64.0
      %v346 = vmul.f32 %v341, %v345
      %v347 = vmul.f32 %v344, %v345
      %v348 = vsub.f32 %v334, %v346
      %v349 = vsub.f32 %v335, %v347
      %v350 = vmul.f32 %v348, %v348
      %v351 = vmul.f32 %v349, %v349
      %v352 = vsel %vm338, %v350, 0.0
      %353 = vadd.xlane.f32.xlu0 %v352
      %v354 = vpop.xlane.xlu0 %353
      %v355 = vsel %vm338, %v351, 0.0
      %356 = vadd.xlane.f32.xlu0 %v355
      %v357 = vpop.xlane.xlu0 %356
      %v358 = vmul.f32 %v354, %v345
      %v359 = vmul.f32 %v357, %v345
      %v360 = vadd.f32 %v358, 1e-05
      %v361 = vadd.f32 %v359, 1e-05
      %v362 = vrsqrt.pop %v360
      %v363 = vrsqrt.pop %v361
      %v364 = vmul.f32 %v348, %v362
      %v365 = vmul.f32 %v349, %v363
      %v367 = vlaneseq
      %v368 = vshrl.u32 %v367, 7
      %v369 = vsub.s32 0, %v368
      %v370 = vrot.slane %v336, %v369
      %v372 = vmul.f32 %v364, %v370
      %v373 = vmul.f32 %v365, %v370
      %v375 = vlaneseq
      %v376 = vshrl.u32 %v375, 7
      %v377 = vsub.s32 0, %v376
      %v378 = vrot.slane %v337, %v377
      %v380 = vadd.f32 %v372, %v378
      %v381 = vadd.f32 %v373, %v378
      %v382 = vld [vmem:[%s3] sm:$0xff]
      %v383 = vld [vmem:[%s3 + $0x8] sm:$0xff]
      %v384 = vld [vmem:[%s3 + $0x10] sm:$0xff]
      %v385 = vld [vmem:[%s3 + $0x18] sm:$0xff]
      %v386 = vld [vmem:[%s3 + $0x20] sm:$0xff]
      %v387 = vld [vmem:[%s3 + $0x28] sm:$0xff]
      %v388 = vld [vmem:[%s3 + $0x30] sm:$0xff]
      %v389 = vld [vmem:[%s3 + $0x38] sm:$0xff]
      %v390 = vld [vmem:[%s3 + $0x40] sm:$0xff]
      %v391 = vld [vmem:[%s3 + $0x48] sm:$0xff]
      %v392 = vld [vmem:[%s3 + $0x50] sm:$0xff]
      %v393 = vld [vmem:[%s3 + $0x58] sm:$0xff]
      %v394 = vld [vmem:[%s3 + $0x60] sm:$0xff]
      %v395 = vld [vmem:[%s3 + $0x68] sm:$0xff]
      %v396 = vld [vmem:[%s3 + $0x70] sm:$0xff]
      %v397 = vld [vmem:[%s3 + $0x78] sm:$0xff]
      %v398 = vpack.c.bf16 %v381, %v380
      %v399 = vpack.c.bf16 %v384, %v382
      %v400 = vpack.c.bf16 %v385, %v383
      %v401 = vpack.c.bf16 %v388, %v386
      %v402 = vpack.c.bf16 %v389, %v387
      %v403 = vpack.c.bf16 %v392, %v390
      %v404 = vpack.c.bf16 %v393, %v391
      %v405 = vpack.c.bf16 %v396, %v394
      %v406 = vpack.c.bf16 %v397, %v395
      %v407 = vld [vmem:[%s4] sm:$0x3]
      %v409 = vlaneseq
      %v410 = vshrl.u32 %v409, 7
      %v411 = vsub.s32 0, %v410
      %v412 = vrot.slane %v407, %v411
      %v413 = vlaneseq
      %v414 = vshrl.u32 %v413, 7
      %v415 = vsub.s32 1, %v414
      %v416 = vrot.slane %v407, %v415
      %v420 = vsel %vm338, %v398, 0
      %422 = vmatprep.subr.bf16.mxu0 %v400
      %423 = vmatpush1.bf16.msra.mxu0 %v399
      %424 = vmatprep.subr.bf16.mxu0 %v402
      %425 = vmatpush1.bf16.msra.mxu0 %v401
      %426 = vmatprep.subr.bf16.mxu0 %v404
      %427 = vmatpush1.bf16.msra.mxu0 %v403
      %428 = vmatprep.subr.bf16.mxu0 %v406
      %429 = vmatpush1.bf16.msra.mxu0 %v405
      %430 = vmatprep.subr.bf16.mxu0 0
      %431 = vmatpush1.bf16.msra.mxu0 0
      %432 = vmatprep.subr.bf16.mxu0 0
      %433 = vmatpush1.bf16.msra.mxu0 0
      %434 = vmatprep.subr.bf16.mxu0 0
      %435 = vmatpush1.bf16.msra.mxu0 0
      %436 = vmatprep.subr.bf16.mxu0 0
      %437 = vmatpush1.bf16.msra.mxu0 0
      %438 = vmatprep.subr.bf16.mxu0 0
      %439 = vmatpush1.bf16.msra.mxu0 0
      %440 = vmatprep.subr.bf16.mxu0 0
      %441 = vmatpush1.bf16.msra.mxu0 0
      %442 = vmatprep.subr.bf16.mxu0 0
      %443 = vmatpush1.bf16.msra.mxu0 0
      %444 = vmatprep.subr.bf16.mxu0 0
      %445 = vmatpush1.bf16.msra.mxu0 0
      %446 = vmatprep.subr.bf16.mxu0 0
      %447 = vmatpush1.bf16.msra.mxu0 0
      %448 = vmatprep.subr.bf16.mxu0 0
      %449 = vmatpush1.bf16.msra.mxu0 0
      %450 = vmatprep.subr.bf16.mxu0 0
      %451 = vmatpush1.bf16.msra.mxu0 0
      %452 = vmatprep.subr.bf16.mxu0 0
      %453 = vmatpush1.bf16.msra.mxu0 0
      %454 = vmatprep.mubr.bf16.mxu0 0
      %455 = vmatmul.mubr.bf16.gmra.mrb[0].mxu0 %v420
      %v456 = vpop.f32.mrb[0].mxu0
      %v457 = vadd.f32 %v412, %v456
      %v458 = vpop.f32.mrb[0].mxu0
      %v459 = vadd.f32 %v416, %v458
      %v460 = vpop.f32.mrb[0].mxu0
      %v461 = vadd.f32 %v412, %v460
      %v462 = vpop.f32.mrb[0].mxu0
      %v463 = vadd.f32 %v416, %v462
      %464 = vdwg.mxu0
      %v465 = vld [vmem:[%s5] sm:$0xff]
      %v466 = vld [vmem:[%s5 + $0x8] sm:$0xff]
      %v467 = vld [vmem:[%s5 + $0x10] sm:$0xff]
      %v468 = vld [vmem:[%s5 + $0x18] sm:$0xff]
      %v469 = vld [vmem:[%s5 + $0x20] sm:$0xff]
      %v470 = vld [vmem:[%s5 + $0x28] sm:$0xff]
      %v471 = vld [vmem:[%s5 + $0x30] sm:$0xff]
      %v472 = vld [vmem:[%s5 + $0x38] sm:$0xff]
      %v473 = vld [vmem:[%s6] sm:$0xff]
      %v474 = vld [vmem:[%s6 + $0x8] sm:$0xff]
      %v475 = vld [vmem:[%s7] sm:$0xff]
      %v476 = vld [vmem:[%s7 + $0x8] sm:$0xff]
      %v477 = vld [vmem:[%s7 + $0x10] sm:$0xff]
      %v478 = vld [vmem:[%s7 + $0x18] sm:$0xff]
      %v479 = vld [vmem:[%s7 + $0x20] sm:$0xff]
      %v480 = vld [vmem:[%s7 + $0x28] sm:$0xff]
      %v481 = vld [vmem:[%s7 + $0x30] sm:$0xff]
      %v482 = vld [vmem:[%s7 + $0x38] sm:$0xff]
      %v483 = vmul.f32 %v457, 0.25
      %v484 = vmul.f32 %v461, 0.25
      %v485 = vpack.c.bf16 %v484, %v483
      %v486 = vpack.c.bf16 %v461, %v457
      %488 = vrot.lane.b32.xlu0 %v486, 64
      %v489 = vpop.permute.xlu0 %488
      %vm490 = vcmask 130048
      %v492 = vsel %vm490, %v485, 0
      %v495 = vsel %vm490, %v489, 0
      %497 = vmatprep.subr.bf16.mxu0 0
      %498 = vmatpush1.bf16.xpose.msra.mxu0 %v495
      %499 = vmatprep.subr.bf16.mxu0 0
      %500 = vmatpush1.bf16.xpose.msra.mxu0 0
      %501 = vmatprep.subr.bf16.mxu0 0
      %502 = vmatpush1.bf16.xpose.msra.mxu0 0
      %503 = vmatprep.subr.bf16.mxu0 0
      %504 = vmatpush1.bf16.xpose.msra.mxu0 0
      %505 = vmatprep.subr.bf16.mxu0 0
      %506 = vmatpush1.bf16.xpose.msra.mxu0 0
      %507 = vmatprep.subr.bf16.mxu0 0
      %508 = vmatpush1.bf16.xpose.msra.mxu0 0
      %509 = vmatprep.subr.bf16.mxu0 0
      %510 = vmatpush1.bf16.xpose.msra.mxu0 0
      %511 = vmatprep.subr.bf16.mxu0 0
      %512 = vmatpush1.bf16.xpose.msra.mxu0 0
      %513 = vmatprep.subr.bf16.mxu0 0
      %514 = vmatpush1.bf16.xpose.msra.mxu0 0
      %515 = vmatprep.subr.bf16.mxu0 0
      %516 = vmatpush1.bf16.xpose.msra.mxu0 0
      %517 = vmatprep.subr.bf16.mxu0 0
      %518 = vmatpush1.bf16.xpose.msra.mxu0 0
      %519 = vmatprep.subr.bf16.mxu0 0
      %520 = vmatpush1.bf16.xpose.msra.mxu0 0
      %521 = vmatprep.subr.bf16.mxu0 0
      %522 = vmatpush1.bf16.xpose.msra.mxu0 0
      %523 = vmatprep.subr.bf16.mxu0 0
      %524 = vmatpush1.bf16.xpose.msra.mxu0 0
      %525 = vmatprep.subr.bf16.mxu0 0
      %526 = vmatpush1.bf16.xpose.msra.mxu0 0
      %527 = vmatprep.subr.bf16.mxu0 0
      %528 = vmatpush1.bf16.xpose.msra.mxu0 0
      %529 = vmatprep.mubr.bf16.mxu0 0
      %530 = vmatmul.mubr.bf16.gmra.mrb[0].mxu0 %v492
      %v531 = vpop.f32.mrb[0].mxu0
      %v532 = vadd.f32 %v465, %v531
      %v533 = vpop.f32.mrb[0].mxu0
      %v534 = vpop.f32.mrb[0].mxu0
      %v535 = vadd.f32 %v466, %v534
      %v536 = vpop.f32.mrb[0].mxu0
      %537 = vdwg.mxu0
      %v538 = vadd.f32 %v532, %v473
      %v539 = vadd.f32 %v535, %v474
      %v540 = vsel %vm490, %v538, -inf
      %541 = vmax.xlane.f32.xlu0 %v540
      %v542 = vpop.xlane.xlu0 %541
      %v543 = vsel %vm490, %v539, -inf
      %544 = vmax.xlane.f32.xlu0 %v543
      %v545 = vpop.xlane.xlu0 %544
      %v546 = vsub.f32 %v538, %v542
      %v547 = vsub.f32 %v539, %v545
      %v548 = vmul.f32 %v546, 1.442695
      %v549 = vpow.pop %v548
      %v550 = vmul.f32 %v547, 1.442695
      %v551 = vpow.pop %v550
      %v552 = vsel %vm490, %v549, 0.0
      %553 = vadd.xlane.f32.xlu0 %v552
      %v554 = vpop.xlane.xlu0 %553
      %v555 = vsel %vm490, %v551, 0.0
      %556 = vadd.xlane.f32.xlu0 %v555
      %v557 = vpop.xlane.xlu0 %556
      %v558 = vrcp.pop %v554
      %v559 = vrcp.pop %v557
      %v560 = vmul.f32 %v549, %v558
      %v561 = vmul.f32 %v551, %v559
      %v562 = vpack.c.bf16 %v561, %v560
      %v563 = vpack.c.bf16 %v463, %v459
      %v565 = vsel %vm490, %v562, 0
      %567 = vmatprep.subr.bf16.mxu0 0
      %568 = vmatpush1.bf16.msra.mxu0 %v563
      %569 = vmatprep.subr.bf16.mxu0 0
      %570 = vmatpush1.bf16.msra.mxu0 0
      %571 = vmatprep.subr.bf16.mxu0 0
      %572 = vmatpush1.bf16.msra.mxu0 0
      %573 = vmatprep.subr.bf16.mxu0 0
      %574 = vmatpush1.bf16.msra.mxu0 0
      %575 = vmatprep.subr.bf16.mxu0 0
      %576 = vmatpush1.bf16.msra.mxu0 0
      %577 = vmatprep.subr.bf16.mxu0 0
      %578 = vmatpush1.bf16.msra.mxu0 0
      %579 = vmatprep.subr.bf16.mxu0 0
      %580 = vmatpush1.bf16.msra.mxu0 0
      %581 = vmatprep.subr.bf16.mxu0 0
      %582 = vmatpush1.bf16.msra.mxu0 0
      %583 = vmatprep.subr.bf16.mxu0 0
      %584 = vmatpush1.bf16.msra.mxu0 0
      %585 = vmatprep.subr.bf16.mxu0 0
      %586 = vmatpush1.bf16.msra.mxu0 0
      %587 = vmatprep.subr.bf16.mxu0 0
      %588 = vmatpush1.bf16.msra.mxu0 0
      %589 = vmatprep.subr.bf16.mxu0 0
      %590 = vmatpush1.bf16.msra.mxu0 0
      %591 = vmatprep.subr.bf16.mxu0 0
      %592 = vmatpush1.bf16.msra.mxu0 0
      %593 = vmatprep.subr.bf16.mxu0 0
      %594 = vmatpush1.bf16.msra.mxu0 0
      %595 = vmatprep.subr.bf16.mxu0 0
      %596 = vmatpush1.bf16.msra.mxu0 0
      %597 = vmatprep.subr.bf16.mxu0 0
      %598 = vmatpush1.bf16.msra.mxu0 0
      %599 = vmatprep.mubr.bf16.mxu0 0
      %600 = vmatmul.mubr.bf16.gmra.mrb[0].mxu0 %v565
      %v601 = vpop.f32.mrb[0].mxu0
      %v602 = vadd.f32 0.0, %v601
      %v603 = vpop.f32.mrb[0].mxu0
      %v604 = vpop.f32.mrb[0].mxu0
      %v605 = vadd.f32 0.0, %v604
      %v606 = vpop.f32.mrb[0].mxu0
      %607 = vdwg.mxu0
      %v608 = vpack.c.bf16 %v605, %v602
      %v609 = vpack.c.bf16 %v476, %v475
      %611 = vrot.lane.b32.xlu0 %v485, 112
      %v612 = vpop.permute.xlu0 %611
      %613 = vrot.lane.b32.xlu0 %v486, 48
      %v614 = vpop.permute.xlu0 %613
      %v616 = vsel %vm490, %v612, 0
      %v619 = vsel %vm490, %v614, 0
      %621 = vmatprep.subr.bf16.mxu0 0
      %622 = vmatpush1.bf16.xpose.msra.mxu0 %v619
      %623 = vmatprep.subr.bf16.mxu0 0
      %624 = vmatpush1.bf16.xpose.msra.mxu0 0
      %625 = vmatprep.subr.bf16.mxu0 0
      %626 = vmatpush1.bf16.xpose.msra.mxu0 0
      %627 = vmatprep.subr.bf16.mxu0 0
      %628 = vmatpush1.bf16.xpose.msra.mxu0 0
      %629 = vmatprep.subr.bf16.mxu0 0
      %630 = vmatpush1.bf16.xpose.msra.mxu0 0
      %631 = vmatprep.subr.bf16.mxu0 0
      %632 = vmatpush1.bf16.xpose.msra.mxu0 0
      %633 = vmatprep.subr.bf16.mxu0 0
      %634 = vmatpush1.bf16.xpose.msra.mxu0 0
      %635 = vmatprep.subr.bf16.mxu0 0
      %636 = vmatpush1.bf16.xpose.msra.mxu0 0
      %637 = vmatprep.subr.bf16.mxu0 0
      %638 = vmatpush1.bf16.xpose.msra.mxu0 0
      %639 = vmatprep.subr.bf16.mxu0 0
      %640 = vmatpush1.bf16.xpose.msra.mxu0 0
      %641 = vmatprep.subr.bf16.mxu0 0
      %642 = vmatpush1.bf16.xpose.msra.mxu0 0
      %643 = vmatprep.subr.bf16.mxu0 0
      %644 = vmatpush1.bf16.xpose.msra.mxu0 0
      %645 = vmatprep.subr.bf16.mxu0 0
      %646 = vmatpush1.bf16.xpose.msra.mxu0 0
      %647 = vmatprep.subr.bf16.mxu0 0
      %648 = vmatpush1.bf16.xpose.msra.mxu0 0
      %649 = vmatprep.subr.bf16.mxu0 0
      %650 = vmatpush1.bf16.xpose.msra.mxu0 0
      %651 = vmatprep.subr.bf16.mxu0 0
      %652 = vmatpush1.bf16.xpose.msra.mxu0 0
      %653 = vmatprep.mubr.bf16.mxu0 0
      %654 = vmatmul.mubr.bf16.gmra.mrb[0].mxu0 %v616
      %v655 = vpop.f32.mrb[0].mxu0
      %v656 = vadd.f32 %v467, %v655
      %v657 = vpop.f32.mrb[0].mxu0
      %v658 = vpop.f32.mrb[0].mxu0
      %v659 = vadd.f32 %v468, %v658
      %v660 = vpop.f32.mrb[0].mxu0
      %661 = vdwg.mxu0
      %v662 = vadd.f32 %v656, %v473
      %v663 = vadd.f32 %v659, %v474
      %v664 = vsel %vm490, %v662, -inf
      %665 = vmax.xlane.f32.xlu0 %v664
      %v666 = vpop.xlane.xlu0 %665
      %v667 = vsel %vm490, %v663, -inf
      %668 = vmax.xlane.f32.xlu0 %v667
      %v669 = vpop.xlane.xlu0 %668
      %v670 = vsub.f32 %v662, %v666
      %v671 = vsub.f32 %v663, %v669
      %v672 = vmul.f32 %v670, 1.442695
      %v673 = vpow.pop %v672
      %v674 = vmul.f32 %v671, 1.442695
      %v675 = vpow.pop %v674
      %v676 = vsel %vm490, %v673, 0.0
      %677 = vadd.xlane.f32.xlu0 %v676
      %v678 = vpop.xlane.xlu0 %677
      %v679 = vsel %vm490, %v675, 0.0
      %680 = vadd.xlane.f32.xlu0 %v679
      %v681 = vpop.xlane.xlu0 %680
      %v682 = vrcp.pop %v678
      %v683 = vrcp.pop %v681
      %v684 = vmul.f32 %v673, %v682
      %v685 = vmul.f32 %v675, %v683
      %v686 = vpack.c.bf16 %v685, %v684
      %688 = vrot.lane.b32.xlu0 %v563, 112
      %v689 = vpop.permute.xlu0 %688
      %v692 = vsel %vm490, %v686, 0
      %694 = vmatprep.subr.bf16.mxu0 0
      %695 = vmatpush1.bf16.msra.mxu0 %v689
      %696 = vmatprep.subr.bf16.mxu0 0
      %697 = vmatpush1.bf16.msra.mxu0 0
      %698 = vmatprep.subr.bf16.mxu0 0
      %699 = vmatpush1.bf16.msra.mxu0 0
      %700 = vmatprep.subr.bf16.mxu0 0
      %701 = vmatpush1.bf16.msra.mxu0 0
      %702 = vmatprep.subr.bf16.mxu0 0
      %703 = vmatpush1.bf16.msra.mxu0 0
      %704 = vmatprep.subr.bf16.mxu0 0
      %705 = vmatpush1.bf16.msra.mxu0 0
      %706 = vmatprep.subr.bf16.mxu0 0
      %707 = vmatpush1.bf16.msra.mxu0 0
      %708 = vmatprep.subr.bf16.mxu0 0
      %709 = vmatpush1.bf16.msra.mxu0 0
      %710 = vmatprep.subr.bf16.mxu0 0
      %711 = vmatpush1.bf16.msra.mxu0 0
      %712 = vmatprep.subr.bf16.mxu0 0
      %713 = vmatpush1.bf16.msra.mxu0 0
      %714 = vmatprep.subr.bf16.mxu0 0
      %715 = vmatpush1.bf16.msra.mxu0 0
      %716 = vmatprep.subr.bf16.mxu0 0
      %717 = vmatpush1.bf16.msra.mxu0 0
      %718 = vmatprep.subr.bf16.mxu0 0
      %719 = vmatpush1.bf16.msra.mxu0 0
      %720 = vmatprep.subr.bf16.mxu0 0
      %721 = vmatpush1.bf16.msra.mxu0 0
      %722 = vmatprep.subr.bf16.mxu0 0
      %723 = vmatpush1.bf16.msra.mxu0 0
      %724 = vmatprep.subr.bf16.mxu0 0
      %725 = vmatpush1.bf16.msra.mxu0 0
      %726 = vmatprep.mubr.bf16.mxu0 0
      %727 = vmatmul.mubr.bf16.gmra.mrb[0].mxu0 %v692
      %v728 = vpop.f32.mrb[0].mxu0
      %v729 = vadd.f32 0.0, %v728
      %v730 = vpop.f32.mrb[0].mxu0
      %v731 = vpop.f32.mrb[0].mxu0
      %v732 = vadd.f32 0.0, %v731
      %v733 = vpop.f32.mrb[0].mxu0
      %734 = vdwg.mxu0
      %v735 = vpack.c.bf16 %v732, %v729
      %v736 = vpack.c.bf16 %v478, %v477
      %v738 = vsel %vm490, %v735, 0
      %740 = vmatprep.subr.bf16.mxu0 0
      %741 = vmatpush1.bf16.msra.mxu0 %v736
      %742 = vmatprep.subr.bf16.mxu0 0
      %743 = vmatpush1.bf16.msra.mxu0 0
      %744 = vmatprep.subr.bf16.mxu0 0
      %745 = vmatpush1.bf16.msra.mxu0 0
      %746 = vmatprep.subr.bf16.mxu0 0
      %747 = vmatpush1.bf16.msra.mxu0 0
      %748 = vmatprep.subr.bf16.mxu0 0
      %749 = vmatpush1.bf16.msra.mxu0 0
      %750 = vmatprep.subr.bf16.mxu0 0
      %751 = vmatpush1.bf16.msra.mxu0 0
      %752 = vmatprep.subr.bf16.mxu0 0
      %753 = vmatpush1.bf16.msra.mxu0 0
      %754 = vmatprep.subr.bf16.mxu0 0
      %755 = vmatpush1.bf16.msra.mxu0 0
      %756 = vmatprep.subr.bf16.mxu0 0
      %757 = vmatpush1.bf16.msra.mxu0 0
      %758 = vmatprep.subr.bf16.mxu0 0
      %759 = vmatpush1.bf16.msra.mxu0 0
      %760 = vmatprep.subr.bf16.mxu0 0
      %761 = vmatpush1.bf16.msra.mxu0 0
      %762 = vmatprep.subr.bf16.mxu0 0
      %763 = vmatpush1.bf16.msra.mxu0 0
      %764 = vmatprep.subr.bf16.mxu0 0
      %765 = vmatpush1.bf16.msra.mxu0 0
      %766 = vmatprep.subr.bf16.mxu0 0
      %767 = vmatpush1.bf16.msra.mxu0 0
      %768 = vmatprep.subr.bf16.mxu0 0
      %769 = vmatpush1.bf16.msra.mxu0 0
      %770 = vmatprep.subr.bf16.mxu0 0
      %771 = vmatpush1.bf16.msra.mxu0 0
      %772 = vmatprep.mubr.bf16.mxu0 0
      %773 = vmatmul.mubr.bf16.gmra.mrb[0].mxu0 %v738
      %v774 = vpop.f32.mrb[0].mxu0
      %v775 = vadd.f32 0.0, %v774
      %v776 = vpop.f32.mrb[0].mxu0
      %v777 = vpop.f32.mrb[0].mxu0
      %v778 = vadd.f32 0.0, %v777
      %v779 = vpop.f32.mrb[0].mxu0
      %780 = vdwg.mxu0
      %v782 = vsel %vm490, %v608, 0
      %784 = vmatprep.subr.bf16.mxu0 0
      %785 = vmatpush1.bf16.msra.mxu0 %v609
      %786 = vmatprep.subr.bf16.mxu0 0
      %787 = vmatpush1.bf16.msra.mxu0 0
      %788 = vmatprep.subr.bf16.mxu0 0
      %789 = vmatpush1.bf16.msra.mxu0 0
      %790 = vmatprep.subr.bf16.mxu0 0
      %791 = vmatpush1.bf16.msra.mxu0 0
      %792 = vmatprep.subr.bf16.mxu0 0
      %793 = vmatpush1.bf16.msra.mxu0 0
      %794 = vmatprep.subr.bf16.mxu0 0
      %795 = vmatpush1.bf16.msra.mxu0 0
      %796 = vmatprep.subr.bf16.mxu0 0
      %797 = vmatpush1.bf16.msra.mxu0 0
      %798 = vmatprep.subr.bf16.mxu0 0
      %799 = vmatpush1.bf16.msra.mxu0 0
      %800 = vmatprep.subr.bf16.mxu0 0
      %801 = vmatpush1.bf16.msra.mxu0 0
      %802 = vmatprep.subr.bf16.mxu0 0
      %803 = vmatpush1.bf16.msra.mxu0 0
      %804 = vmatprep.subr.bf16.mxu0 0
      %805 = vmatpush1.bf16.msra.mxu0 0
      %806 = vmatprep.subr.bf16.mxu0 0
      %807 = vmatpush1.bf16.msra.mxu0 0
      %808 = vmatprep.subr.bf16.mxu0 0
      %809 = vmatpush1.bf16.msra.mxu0 0
      %810 = vmatprep.subr.bf16.mxu0 0
      %811 = vmatpush1.bf16.msra.mxu0 0
      %812 = vmatprep.subr.bf16.mxu0 0
      %813 = vmatpush1.bf16.msra.mxu0 0
      %814 = vmatprep.subr.bf16.mxu0 0
      %815 = vmatpush1.bf16.msra.mxu0 0
      %816 = vmatprep.mubr.bf16.mxu0 0
      %817 = vmatmul.mubr.bf16.gmra.mrb[0].mxu0 %v782
      %v818 = vpop.f32.mrb[0].mxu0
      %v819 = vadd.f32 %v775, %v818
      %v820 = vpop.f32.mrb[0].mxu0
      %v821 = vpop.f32.mrb[0].mxu0
      %v822 = vadd.f32 %v778, %v821
      %v823 = vpop.f32.mrb[0].mxu0
      %824 = vdwg.mxu0
      %825 = vrot.lane.b32.xlu0 %v485, 96
      %v826 = vpop.permute.xlu0 %825
      %827 = vrot.lane.b32.xlu0 %v486, 32
      %v828 = vpop.permute.xlu0 %827
      %v830 = vsel %vm490, %v826, 0
      %v833 = vsel %vm490, %v828, 0
      %835 = vmatprep.subr.bf16.mxu0 0
      %836 = vmatpush1.bf16.xpose.msra.mxu0 %v833
      %837 = vmatprep.subr.bf16.mxu0 0
      %838 = vmatpush1.bf16.xpose.msra.mxu0 0
      %839 = vmatprep.subr.bf16.mxu0 0
      %840 = vmatpush1.bf16.xpose.msra.mxu0 0
      %841 = vmatprep.subr.bf16.mxu0 0
      %842 = vmatpush1.bf16.xpose.msra.mxu0 0
      %843 = vmatprep.subr.bf16.mxu0 0
      %844 = vmatpush1.bf16.xpose.msra.mxu0 0
      %845 = vmatprep.subr.bf16.mxu0 0
      %846 = vmatpush1.bf16.xpose.msra.mxu0 0
      %847 = vmatprep.subr.bf16.mxu0 0
      %848 = vmatpush1.bf16.xpose.msra.mxu0 0
      %849 = vmatprep.subr.bf16.mxu0 0
      %850 = vmatpush1.bf16.xpose.msra.mxu0 0
      %851 = vmatprep.subr.bf16.mxu0 0
      %852 = vmatpush1.bf16.xpose.msra.mxu0 0
      %853 = vmatprep.subr.bf16.mxu0 0
      %854 = vmatpush1.bf16.xpose.msra.mxu0 0
      %855 = vmatprep.subr.bf16.mxu0 0
      %856 = vmatpush1.bf16.xpose.msra.mxu0 0
      %857 = vmatprep.subr.bf16.mxu0 0
      %858 = vmatpush1.bf16.xpose.msra.mxu0 0
      %859 = vmatprep.subr.bf16.mxu0 0
      %860 = vmatpush1.bf16.xpose.msra.mxu0 0
      %861 = vmatprep.subr.bf16.mxu0 0
      %862 = vmatpush1.bf16.xpose.msra.mxu0 0
      %863 = vmatprep.subr.bf16.mxu0 0
      %864 = vmatpush1.bf16.xpose.msra.mxu0 0
      %865 = vmatprep.subr.bf16.mxu0 0
      %866 = vmatpush1.bf16.xpose.msra.mxu0 0
      %867 = vmatprep.mubr.bf16.mxu0 0
      %868 = vmatmul.mubr.bf16.gmra.mrb[0].mxu0 %v830
      %v869 = vpop.f32.mrb[0].mxu0
      %v870 = vadd.f32 %v469, %v869
      %v871 = vpop.f32.mrb[0].mxu0
      %v872 = vpop.f32.mrb[0].mxu0
      %v873 = vadd.f32 %v470, %v872
      %v874 = vpop.f32.mrb[0].mxu0
      %875 = vdwg.mxu0
      %v876 = vadd.f32 %v870, %v473
      %v877 = vadd.f32 %v873, %v474
      %v878 = vsel %vm490, %v876, -inf
      %879 = vmax.xlane.f32.xlu0 %v878
      %v880 = vpop.xlane.xlu0 %879
      %v881 = vsel %vm490, %v877, -inf
      %882 = vmax.xlane.f32.xlu0 %v881
      %v883 = vpop.xlane.xlu0 %882
      %v884 = vsub.f32 %v876, %v880
      %v885 = vsub.f32 %v877, %v883
      %v886 = vmul.f32 %v884, 1.442695
      %v887 = vpow.pop %v886
      %v888 = vmul.f32 %v885, 1.442695
      %v889 = vpow.pop %v888
      %v890 = vsel %vm490, %v887, 0.0
      %891 = vadd.xlane.f32.xlu0 %v890
      %v892 = vpop.xlane.xlu0 %891
      %v893 = vsel %vm490, %v889, 0.0
      %894 = vadd.xlane.f32.xlu0 %v893
      %v895 = vpop.xlane.xlu0 %894
      %v896 = vrcp.pop %v892
      %v897 = vrcp.pop %v895
      %v898 = vmul.f32 %v887, %v896
      %v899 = vmul.f32 %v889, %v897
      %v900 = vpack.c.bf16 %v899, %v898
      %901 = vrot.lane.b32.xlu0 %v563, 96
      %v902 = vpop.permute.xlu0 %901
      %v905 = vsel %vm490, %v900, 0
      %907 = vmatprep.subr.bf16.mxu0 0
      %908 = vmatpush1.bf16.msra.mxu0 %v902
      %909 = vmatprep.subr.bf16.mxu0 0
      %910 = vmatpush1.bf16.msra.mxu0 0
      %911 = vmatprep.subr.bf16.mxu0 0
      %912 = vmatpush1.bf16.msra.mxu0 0
      %913 = vmatprep.subr.bf16.mxu0 0
      %914 = vmatpush1.bf16.msra.mxu0 0
      %915 = vmatprep.subr.bf16.mxu0 0
      %916 = vmatpush1.bf16.msra.mxu0 0
      %917 = vmatprep.subr.bf16.mxu0 0
      %918 = vmatpush1.bf16.msra.mxu0 0
      %919 = vmatprep.subr.bf16.mxu0 0
      %920 = vmatpush1.bf16.msra.mxu0 0
      %921 = vmatprep.subr.bf16.mxu0 0
      %922 = vmatpush1.bf16.msra.mxu0 0
      %923 = vmatprep.subr.bf16.mxu0 0
      %924 = vmatpush1.bf16.msra.mxu0 0
      %925 = vmatprep.subr.bf16.mxu0 0
      %926 = vmatpush1.bf16.msra.mxu0 0
      %927 = vmatprep.subr.bf16.mxu0 0
      %928 = vmatpush1.bf16.msra.mxu0 0
      %929 = vmatprep.subr.bf16.mxu0 0
      %930 = vmatpush1.bf16.msra.mxu0 0
      %931 = vmatprep.subr.bf16.mxu0 0
      %932 = vmatpush1.bf16.msra.mxu0 0
      %933 = vmatprep.subr.bf16.mxu0 0
      %934 = vmatpush1.bf16.msra.mxu0 0
      %935 = vmatprep.subr.bf16.mxu0 0
      %936 = vmatpush1.bf16.msra.mxu0 0
      %937 = vmatprep.subr.bf16.mxu0 0
      %938 = vmatpush1.bf16.msra.mxu0 0
      %939 = vmatprep.mubr.bf16.mxu0 0
      %940 = vmatmul.mubr.bf16.gmra.mrb[0].mxu0 %v905
      %v941 = vpop.f32.mrb[0].mxu0
      %v942 = vadd.f32 0.0, %v941
      %v943 = vpop.f32.mrb[0].mxu0
      %v944 = vpop.f32.mrb[0].mxu0
      %v945 = vadd.f32 0.0, %v944
      %v946 = vpop.f32.mrb[0].mxu0
      %947 = vdwg.mxu0
      %v948 = vpack.c.bf16 %v945, %v942
      %v949 = vpack.c.bf16 %v480, %v479
      %v951 = vsel %vm490, %v948, 0
      %953 = vmatprep.subr.bf16.mxu0 0
      %954 = vmatpush1.bf16.msra.mxu0 %v949
      %955 = vmatprep.subr.bf16.mxu0 0
      %956 = vmatpush1.bf16.msra.mxu0 0
      %957 = vmatprep.subr.bf16.mxu0 0
      %958 = vmatpush1.bf16.msra.mxu0 0
      %959 = vmatprep.subr.bf16.mxu0 0
      %960 = vmatpush1.bf16.msra.mxu0 0
      %961 = vmatprep.subr.bf16.mxu0 0
      %962 = vmatpush1.bf16.msra.mxu0 0
      %963 = vmatprep.subr.bf16.mxu0 0
      %964 = vmatpush1.bf16.msra.mxu0 0
      %965 = vmatprep.subr.bf16.mxu0 0
      %966 = vmatpush1.bf16.msra.mxu0 0
      %967 = vmatprep.subr.bf16.mxu0 0
      %968 = vmatpush1.bf16.msra.mxu0 0
      %969 = vmatprep.subr.bf16.mxu0 0
      %970 = vmatpush1.bf16.msra.mxu0 0
      %971 = vmatprep.subr.bf16.mxu0 0
      %972 = vmatpush1.bf16.msra.mxu0 0
      %973 = vmatprep.subr.bf16.mxu0 0
      %974 = vmatpush1.bf16.msra.mxu0 0
      %975 = vmatprep.subr.bf16.mxu0 0
      %976 = vmatpush1.bf16.msra.mxu0 0
      %977 = vmatprep.subr.bf16.mxu0 0
      %978 = vmatpush1.bf16.msra.mxu0 0
      %979 = vmatprep.subr.bf16.mxu0 0
      %980 = vmatpush1.bf16.msra.mxu0 0
      %981 = vmatprep.subr.bf16.mxu0 0
      %982 = vmatpush1.bf16.msra.mxu0 0
      %983 = vmatprep.subr.bf16.mxu0 0
      %984 = vmatpush1.bf16.msra.mxu0 0
      %985 = vmatprep.mubr.bf16.mxu0 0
      %986 = vmatmul.mubr.bf16.gmra.mrb[0].mxu0 %v951
      %v987 = vpop.f32.mrb[0].mxu0
      %v988 = vadd.f32 0.0, %v987
      %v989 = vpop.f32.mrb[0].mxu0
      %v990 = vpop.f32.mrb[0].mxu0
      %v991 = vadd.f32 0.0, %v990
      %v992 = vpop.f32.mrb[0].mxu0
      %993 = vdwg.mxu0
      %v994 = vadd.f32 %v819, %v988
      %v995 = vadd.f32 %v822, %v991
      %996 = vrot.lane.b32.xlu0 %v485, 80
      %v997 = vpop.permute.xlu0 %996
      %998 = vrot.lane.b32.xlu0 %v486, 16
      %v999 = vpop.permute.xlu0 %998
      %v1001 = vsel %vm490, %v997, 0
      %v1004 = vsel %vm490, %v999, 0
      %1006 = vmatprep.subr.bf16.mxu0 0
      %1007 = vmatpush1.bf16.xpose.msra.mxu0 %v1004
      %1008 = vmatprep.subr.bf16.mxu0 0
      %1009 = vmatpush1.bf16.xpose.msra.mxu0 0
      %1010 = vmatprep.subr.bf16.mxu0 0
      %1011 = vmatpush1.bf16.xpose.msra.mxu0 0
      %1012 = vmatprep.subr.bf16.mxu0 0
      %1013 = vmatpush1.bf16.xpose.msra.mxu0 0
      %1014 = vmatprep.subr.bf16.mxu0 0
      %1015 = vmatpush1.bf16.xpose.msra.mxu0 0
      %1016 = vmatprep.subr.bf16.mxu0 0
      %1017 = vmatpush1.bf16.xpose.msra.mxu0 0
      %1018 = vmatprep.subr.bf16.mxu0 0
      %1019 = vmatpush1.bf16.xpose.msra.mxu0 0
      %1020 = vmatprep.subr.bf16.mxu0 0
      %1021 = vmatpush1.bf16.xpose.msra.mxu0 0
      %1022 = vmatprep.subr.bf16.mxu0 0
      %1023 = vmatpush1.bf16.xpose.msra.mxu0 0
      %1024 = vmatprep.subr.bf16.mxu0 0
      %1025 = vmatpush1.bf16.xpose.msra.mxu0 0
      %1026 = vmatprep.subr.bf16.mxu0 0
      %1027 = vmatpush1.bf16.xpose.msra.mxu0 0
      %1028 = vmatprep.subr.bf16.mxu0 0
      %1029 = vmatpush1.bf16.xpose.msra.mxu0 0
      %1030 = vmatprep.subr.bf16.mxu0 0
      %1031 = vmatpush1.bf16.xpose.msra.mxu0 0
      %1032 = vmatprep.subr.bf16.mxu0 0
      %1033 = vmatpush1.bf16.xpose.msra.mxu0 0
      %1034 = vmatprep.subr.bf16.mxu0 0
      %1035 = vmatpush1.bf16.xpose.msra.mxu0 0
      %1036 = vmatprep.subr.bf16.mxu0 0
      %1037 = vmatpush1.bf16.xpose.msra.mxu0 0
      %1038 = vmatprep.mubr.bf16.mxu0 0
      %1039 = vmatmul.mubr.bf16.gmra.mrb[0].mxu0 %v1001
      %v1040 = vpop.f32.mrb[0].mxu0
      %v1041 = vadd.f32 %v471, %v1040
      %v1042 = vpop.f32.mrb[0].mxu0
      %v1043 = vpop.f32.mrb[0].mxu0
      %v1044 = vadd.f32 %v472, %v1043
      %v1045 = vpop.f32.mrb[0].mxu0
      %1046 = vdwg.mxu0
      %v1047 = vadd.f32 %v1041, %v473
      %v1048 = vadd.f32 %v1044, %v474
      %v1049 = vsel %vm490, %v1047, -inf
      %1050 = vmax.xlane.f32.xlu0 %v1049
      %v1051 = vpop.xlane.xlu0 %1050
      %v1052 = vsel %vm490, %v1048, -inf
      %1053 = vmax.xlane.f32.xlu0 %v1052
      %v1054 = vpop.xlane.xlu0 %1053
      %v1055 = vsub.f32 %v1047, %v1051
      %v1056 = vsub.f32 %v1048, %v1054
      %v1057 = vmul.f32 %v1055, 1.442695
      %v1058 = vpow.pop %v1057
      %v1059 = vmul.f32 %v1056, 1.442695
      %v1060 = vpow.pop %v1059
      %v1061 = vsel %vm490, %v1058, 0.0
      %1062 = vadd.xlane.f32.xlu0 %v1061
      %v1063 = vpop.xlane.xlu0 %1062
      %v1064 = vsel %vm490, %v1060, 0.0
      %1065 = vadd.xlane.f32.xlu0 %v1064
      %v1066 = vpop.xlane.xlu0 %1065
      %v1067 = vrcp.pop %v1063
      %v1068 = vrcp.pop %v1066
      %v1069 = vmul.f32 %v1058, %v1067
      %v1070 = vmul.f32 %v1060, %v1068
      %v1071 = vpack.c.bf16 %v1070, %v1069
      %1072 = vrot.lane.b32.xlu0 %v563, 80
      %v1073 = vpop.permute.xlu0 %1072
      %v1076 = vsel %vm490, %v1071, 0
      %1078 = vmatprep.subr.bf16.mxu0 0
      %1079 = vmatpush1.bf16.msra.mxu0 %v1073
      %1080 = vmatprep.subr.bf16.mxu0 0
      %1081 = vmatpush1.bf16.msra.mxu0 0
      %1082 = vmatprep.subr.bf16.mxu0 0
      %1083 = vmatpush1.bf16.msra.mxu0 0
      %1084 = vmatprep.subr.bf16.mxu0 0
      %1085 = vmatpush1.bf16.msra.mxu0 0
      %1086 = vmatprep.subr.bf16.mxu0 0
      %1087 = vmatpush1.bf16.msra.mxu0 0
      %1088 = vmatprep.subr.bf16.mxu0 0
      %1089 = vmatpush1.bf16.msra.mxu0 0
      %1090 = vmatprep.subr.bf16.mxu0 0
      %1091 = vmatpush1.bf16.msra.mxu0 0
      %1092 = vmatprep.subr.bf16.mxu0 0
      %1093 = vmatpush1.bf16.msra.mxu0 0
      %1094 = vmatprep.subr.bf16.mxu0 0
      %1095 = vmatpush1.bf16.msra.mxu0 0
      %1096 = vmatprep.subr.bf16.mxu0 0
      %1097 = vmatpush1.bf16.msra.mxu0 0
      %1098 = vmatprep.subr.bf16.mxu0 0
      %1099 = vmatpush1.bf16.msra.mxu0 0
      %1100 = vmatprep.subr.bf16.mxu0 0
      %1101 = vmatpush1.bf16.msra.mxu0 0
      %1102 = vmatprep.subr.bf16.mxu0 0
      %1103 = vmatpush1.bf16.msra.mxu0 0
      %1104 = vmatprep.subr.bf16.mxu0 0
      %1105 = vmatpush1.bf16.msra.mxu0 0
      %1106 = vmatprep.subr.bf16.mxu0 0
      %1107 = vmatpush1.bf16.msra.mxu0 0
      %1108 = vmatprep.subr.bf16.mxu0 0
      %1109 = vmatpush1.bf16.msra.mxu0 0
      %1110 = vmatprep.mubr.bf16.mxu0 0
      %1111 = vmatmul.mubr.bf16.gmra.mrb[0].mxu0 %v1076
      %v1112 = vpop.f32.mrb[0].mxu0
      %v1113 = vadd.f32 0.0, %v1112
      %v1114 = vpop.f32.mrb[0].mxu0
      %v1115 = vpop.f32.mrb[0].mxu0
      %v1116 = vadd.f32 0.0, %v1115
      %v1117 = vpop.f32.mrb[0].mxu0
      %1118 = vdwg.mxu0
      %v1119 = vpack.c.bf16 %v1116, %v1113
      %v1120 = vpack.c.bf16 %v482, %v481
      %v1122 = vsel %vm490, %v1119, 0
      %1124 = vmatprep.subr.bf16.mxu0 0
      %1125 = vmatpush1.bf16.msra.mxu0 %v1120
      %1126 = vmatprep.subr.bf16.mxu0 0
      %1127 = vmatpush1.bf16.msra.mxu0 0
      %1128 = vmatprep.subr.bf16.mxu0 0
      %1129 = vmatpush1.bf16.msra.mxu0 0
      %1130 = vmatprep.subr.bf16.mxu0 0
      %1131 = vmatpush1.bf16.msra.mxu0 0
      %1132 = vmatprep.subr.bf16.mxu0 0
      %1133 = vmatpush1.bf16.msra.mxu0 0
      %1134 = vmatprep.subr.bf16.mxu0 0
      %1135 = vmatpush1.bf16.msra.mxu0 0
      %1136 = vmatprep.subr.bf16.mxu0 0
      %1137 = vmatpush1.bf16.msra.mxu0 0
      %1138 = vmatprep.subr.bf16.mxu0 0
      %1139 = vmatpush1.bf16.msra.mxu0 0
      %1140 = vmatprep.subr.bf16.mxu0 0
      %1141 = vmatpush1.bf16.msra.mxu0 0
      %1142 = vmatprep.subr.bf16.mxu0 0
      %1143 = vmatpush1.bf16.msra.mxu0 0
      %1144 = vmatprep.subr.bf16.mxu0 0
      %1145 = vmatpush1.bf16.msra.mxu0 0
      %1146 = vmatprep.subr.bf16.mxu0 0
      %1147 = vmatpush1.bf16.msra.mxu0 0
      %1148 = vmatprep.subr.bf16.mxu0 0
      %1149 = vmatpush1.bf16.msra.mxu0 0
      %1150 = vmatprep.subr.bf16.mxu0 0
      %1151 = vmatpush1.bf16.msra.mxu0 0
      %1152 = vmatprep.subr.bf16.mxu0 0
      %1153 = vmatpush1.bf16.msra.mxu0 0
      %1154 = vmatprep.subr.bf16.mxu0 0
      %1155 = vmatpush1.bf16.msra.mxu0 0
      %1156 = vmatprep.mubr.bf16.mxu0 0
      %1157 = vmatmul.mubr.bf16.gmra.mrb[0].mxu0 %v1122
      %v1158 = vpop.f32.mrb[0].mxu0
      %v1159 = vadd.f32 0.0, %v1158
      %v1160 = vpop.f32.mrb[0].mxu0
      %v1161 = vpop.f32.mrb[0].mxu0
      %v1162 = vadd.f32 0.0, %v1161
      %v1163 = vpop.f32.mrb[0].mxu0
      %1164 = vdwg.mxu0
      %v1165 = vadd.f32 %v994, %v1159
      %v1166 = vadd.f32 %v995, %v1162
      %v1167 = vld [vmem:[%s8] sm:$0x1]
      %v1169 = vlaneseq
      %v1170 = vshrl.u32 %v1169, 7
      %v1171 = vsub.s32 0, %v1170
      %v1172 = vrot.slane %v1167, %v1171
      %v1174 = vadd.f32 %v1165, %v1172
      %v1175 = vadd.f32 %v1166, %v1172
      %v1176 = vadd.f32 %v1174, %v334
      %v1177 = vadd.f32 %v1175, %v335
      %1178 = vst.msk [vmem:[%s332] sm:$0xff] %vm338, %v1176
      %1179 = vst.msk [vmem:[%s332 + $0x8] sm:$0xff] %vm338, %v1177
      %p1180 = scmp.lt.s32.totalorder %s20, 1
      %s1181 = scalar_select %p1180, %s20, 1
      %s1182 = smul.addr %s1181, 2
      %s1183 = smul.addr %s1182, 8
      %s1184 = scalar_lea.vmem %s9, %s1183
      // Predicated region
      $region57: #{swin_forward.17} parent=55 // pred_check
        %p1185 = pneg %p232
      $region58: #{swin_forward.17} parent=55 // pred_check_branch
        %1187 = sbr.rel (%p1185) target = $region60
      $region59: #{swin_forward.17} parent=55 // pred_region
        _
      $region60: #{swin_forward.17} parent=55 // pred_fallthru
        _
    $region56: #{swin_forward.17} parent=5 // pred_fallthru
      _
    %p1188 = scmp.le.s32.totalorder 2, %s15
    // Predicated region
    $region61: #{swin_forward.17} parent=5 // pred_check
      %p1189 = pneg %p1188
    $region62: #{swin_forward.17} parent=5 // pred_check_branch
      %1191 = sbr.rel (%p1189) target = $region64
    $region63: #{swin_forward.17} parent=5 // pred_region
      %s1192 = ssub.s32 %s15, 2
      // Predicated region
      $region65: #{swin_forward.17} parent=63 // pred_check
        %p1193 = pneg %p238
      $region66: #{swin_forward.17} parent=63 // pred_check_branch
        %1195 = sbr.rel (%p1193) target = $region68
      $region67: #{swin_forward.17} parent=63 // pred_region
        %p1196 = scmp.lt.s32.totalorder %s21, 1
        %s1197 = scalar_select %p1196, %s21, 1
        %s1198 = smul.addr %s1197, 2
        %s1199 = smul.addr %s1198, 8
        %s1200 = scalar_lea.vmem %s9, %s1199
      $region68: #{swin_forward.17} parent=63 // pred_fallthru
        _
    $region64: #{swin_forward.17} parent=5 // pred_fallthru
      _
  $region6: #{swin_forward.17} parent=0 // loop_footer
    %s19 = sadd.s32 1, %s15
  $region7: #{swin_forward.17} parent=0 // loop_footer_branch
    %14 = sbr.rel target = $region3
  $region8: #{swin_forward.17} parent=0 // loop_exit
    _

</llo_original>
